<compile_context>
chip_gen: v5e
topology: v5e:2x2
jax: 0.10.0
libtpu: 0.0.40
codegen_flags: <defaults>
</compile_context>

<pallas_src>
import math
import functools

import jax
import jax.numpy as jnp
from jax.experimental import pallas as pl
from jax.experimental.pallas import tpu as pltpu


def _encoder_layer_kernel(nhead, compute_dtype, fast_layout,
                          x_ref, pos_ref,
                          wq_ref, wk_ref, wv_ref, bq_ref, bk_ref, bv_ref,
                          wo_ref, bo_ref, ln1w_ref, ln1b_ref,
                          w1_ref, b1_ref, w2_ref, b2_ref,
                          ln2w_ref, ln2b_ref,
                          o_ref):
    """One encoder layer (post-norm, ReLU FFN) for a (S, Bt, D) batch tile."""
    S, Bt, D = x_ref.shape
    H = nhead
    dh = D // H
    N = S * Bt
    cdt = compute_dtype
    approx = (compute_dtype != jnp.float32)   # approximate EUP reciprocal in bf16 mode

    x_sbd = x_ref[...].astype(jnp.float32)                 # (S, Bt, D) seq-first
    qk_sbd = x_sbd + pos_ref[...].astype(jnp.float32)      # q = k = src + pos

    if fast_layout:
        # Token-wise stages use the natural seq-first flatten (token n = s*Bt + b):
        # no batch-major pivot on entry and none on the store path.
        xf = x_sbd.reshape(N, D)
        qkf = qk_sbd.reshape(N, D)
    else:
        # Conservative fallback: batch-major pivot (token n = b*S + s), using only
        # relayout op classes previously validated on this kernel.
        xf = jnp.transpose(x_sbd, (1, 0, 2)).reshape(N, D)
        qkf = jnp.transpose(qk_sbd, (1, 0, 2)).reshape(N, D)

    # Full-width fused in-projections over all tokens (MXU-efficient GEMMs).
    # The 1/sqrt(dh) softmax scale is folded into wq/bq at pack time.
    q = jnp.dot(qkf.astype(cdt), wq_ref[...], preferred_element_type=jnp.float32) + bq_ref[...]
    k = jnp.dot(qkf.astype(cdt), wk_ref[...], preferred_element_type=jnp.float32) + bk_ref[...]
    v = jnp.dot(xf.astype(cdt), wv_ref[...], preferred_element_type=jnp.float32) + bv_ref[...]

    if fast_layout:
        def split_heads(t):
            # (N, D) seq-first -> (Bt*H, S, dh): one reshape + one transpose
            # (replaces the old per-head lane-slice / stack / double-transpose chain).
            return jnp.transpose(t.reshape(S, Bt, H, dh), (1, 2, 0, 3)).reshape(Bt * H, S, dh)
    else:
        def split_heads(t):
            # Lane slices + stack; with batch-major tokens the (H, Bt, S, dh)
            # grouping is a pure leading-dim reshape (no transpose needed).
            th = jnp.stack([t[:, h * dh:(h + 1) * dh] for h in range(H)], axis=0)  # (H, N, dh)
            return th.reshape(H * Bt, S, dh)

    qh = split_heads(q).astype(cdt)
    kh = split_heads(k).astype(cdt)
    vh = split_heads(v).astype(cdt)

    # (batch*head)-batched attention core; softmax math stays f32.
    s = jnp.einsum('bqd,bkd->bqk', qh, kh, preferred_element_type=jnp.float32)
    s = s - jnp.max(s, axis=-1, keepdims=True)
    p = jnp.exp(s)
    p = p * pl.reciprocal(jnp.sum(p, axis=-1, keepdims=True), approx=approx)
    o = jnp.einsum('bqk,bkd->bqd', p.astype(cdt), vh,
                   preferred_element_type=jnp.float32)      # (Bt*H, S, dh)

    if fast_layout:
        # Merge heads back into the seq-first token order and run the output
        # projection as ONE full-width GEMM: no (H, N, D) intermediate, no H-way
        # reduction, and the result is already in store order.
        o = jnp.transpose(o.reshape(Bt, H, S, dh), (2, 0, 1, 3)).reshape(N, D)
        attn = jnp.dot(o.astype(cdt), wo_ref[...],
                       preferred_element_type=jnp.float32) + bo_ref[...]
    else:
        # Per-head accumulation: still avoids the (H, N, D) f32 intermediate.
        o3 = o.reshape(H, N, dh)
        wo3 = wo_ref[...].reshape(H, dh, D)
        acc = jnp.dot(o3[0].astype(cdt), wo3[0], preferred_element_type=jnp.float32)
        for h in range(1, H):
            acc = acc + jnp.dot(o3[h].astype(cdt), wo3[h],
                                preferred_element_type=jnp.float32)
        attn = acc + bo_ref[...]

    # Residual + LayerNorm1 (f32 math, eps = 1e-5 like nn.LayerNorm).
    h1 = xf + attn
    mu1 = jnp.mean(h1, axis=-1, keepdims=True)
    var1 = jnp.mean(jnp.square(h1 - mu1), axis=-1, keepdims=True)
    h1 = (h1 - mu1) * jax.lax.rsqrt(var1 + 1e-5) * ln1w_ref[...] + ln1b_ref[...]

    # FFN: linear1 -> ReLU -> linear2 over all tokens at once.
    f = jnp.dot(h1.astype(cdt), w1_ref[...], preferred_element_type=jnp.float32) + b1_ref[...]
    f = jnp.maximum(f, 0.0)
    f = jnp.dot(f.astype(cdt), w2_ref[...], preferred_element_type=jnp.float32) + b2_ref[...]

    # Residual + LayerNorm2.
    h2 = h1 + f
    mu2 = jnp.mean(h2, axis=-1, keepdims=True)
    var2 = jnp.mean(jnp.square(h2 - mu2), axis=-1, keepdims=True)
    h2 = (h2 - mu2) * jax.lax.rsqrt(var2 + 1e-5) * ln2w_ref[...] + ln2b_ref[...]

    if fast_layout:
        # Already in (S, Bt, D) flatten order: single full-block store, no pivot.
        o_ref[...] = h2.reshape(S, Bt, D).astype(o_ref.dtype)
    else:
        o_ref[...] = jnp.transpose(h2.reshape(Bt, S, D), (1, 0, 2)).astype(o_ref.dtype)


def pack_params(params, nhead, compute_dtype=jnp.float32):
    """One-time packing OUTSIDE the hot path: transpose weights for x @ W form,
    fold 1/sqrt(dh) into Wq/bq, cast matmul weights to compute_dtype (bf16 on
    v6e/v7x); biases / LayerNorm params stay f32."""
    D = params["norm1_weight"].shape[0]
    assert D % nhead == 0, "d_model must be divisible by nhead"
    dh = D // nhead
    scale = 1.0 / math.sqrt(dh)
    f32 = jnp.float32

    in_w = params["in_proj_weight"]          # (3D, D) packed QKV (PyTorch layout)
    in_b = params["in_proj_bias"]            # (3D,)
    wq = (in_w[0:D].T * scale).astype(compute_dtype)
    wk = in_w[D:2 * D].T.astype(compute_dtype)
    wv = in_w[2 * D:3 * D].T.astype(compute_dtype)
    bq = (in_b[0:D] * scale).reshape(1, D).astype(f32)
    bk = in_b[D:2 * D].reshape(1, D).astype(f32)
    bv = in_b[2 * D:3 * D].reshape(1, D).astype(f32)
    wo = params["out_proj_weight"].T.astype(compute_dtype)          # (D, D)
    bo = params["out_proj_bias"].reshape(1, D).astype(f32)
    w1 = params["linear1_weight"].T.astype(compute_dtype)           # (D, F)
    b1 = params["linear1_bias"].reshape(1, -1).astype(f32)
    w2 = params["linear2_weight"].T.astype(compute_dtype)           # (F, D)
    b2 = params["linear2_bias"].reshape(1, D).astype(f32)
    ln1w = params["norm1_weight"].reshape(1, D).astype(f32)
    ln1b = params["norm1_bias"].reshape(1, D).astype(f32)
    ln2w = params["norm2_weight"].reshape(1, D).astype(f32)
    ln2b = params["norm2_bias"].reshape(1, D).astype(f32)
    return (wq, wk, wv, bq, bk, bv, wo, bo, ln1w, ln1b, w1, b1, w2, b2, ln2w, ln2b)


def transformer_encoder_layer(src, pos, packed, nhead, *,
                              batch_tile=None, compute_dtype=jnp.float32):
    """src, pos: (S, B, D) seq-first (PyTorch convention). Returns (S, B, D)."""
    S, B, D = src.shape
    assert D % nhead == 0, "d_model must be divisible by nhead"
    assert S % 8 == 0, "tile-aligned in-kernel relayouts assume S % 8 == 0"

    if batch_tile is None:
        # Prefer grid >= 2 (activation-tile pipelining; both TensorCores busy on
        # v7x) whenever the (8,128) second-minor rule allows a sub-batch tile.
        half = B // 2
        Bt = half if (half > 0 and half % 8 == 0) else B
    else:
        Bt = batch_tile
    assert B % Bt == 0
    assert Bt == B or Bt % 8 == 0, "batch tile must be the full batch or a multiple of 8"

    # VMEM budget: at production sizes keep
    #   scores (Bt*H*S*S*4 B) + FFN act (Bt*S*F*4 B) + single-buffered weights
    # under this limit (v7x has only 64 MiB physical VMEM; default scoped limit
    # on v5e is just 16 MiB).
    compiler_params = pltpu.CompilerParams(
        dimension_semantics=("parallel",),
        vmem_limit_bytes=48 * 1024 * 1024)

    act_spec = pl.BlockSpec((S, Bt, D), lambda i: (0, i, 0))

    def make_weight_specs(single_buffer):
        specs = []
        for a in packed:
            idx = (lambda i, nd=a.ndim: (0,) * nd)
            if single_buffer:
                # Constant index_map => a second pipeline buffer is pure VMEM waste.
                specs.append(pl.BlockSpec(a.shape, idx, pipeline_mode=pl.Buffered(1)))
            else:
                specs.append(pl.BlockSpec(a.shape, idx))
        return specs

    def run(fast_layout, single_buffer):
        f = pl.pallas_call(
            functools.partial(_encoder_layer_kernel, nhead, compute_dtype, fast_layout),
            out_shape=jax.ShapeDtypeStruct((S, B, D), src.dtype),
            grid=(B // Bt,),
            in_specs=[act_spec, act_spec] + make_weight_specs(single_buffer),
            out_specs=act_spec,
            compiler_params=compiler_params,
        )
        return jax.block_until_ready(f(src, pos, *packed))

    # Preferred configuration first; fall back if this JAX/Mosaic build rejects
    # pl.Buffered(1) or the fast layout's lane-splitting reshape/transpose.
    for fast_layout, single_buffer in ((True, True), (True, False), (False, True)):
        try:
            return run(fast_layout, single_buffer)
        except Exception:
            continue
    return run(False, False)


def reference(src, pos, params, nhead):
    """Pure-JAX mirror of PyTorch forward_post (eval mode) for validation."""
    S, B, D = src.shape
    dh = D // nhead
    in_w, in_b = params["in_proj_weight"], params["in_proj_bias"]
    qk = src + pos
    q = qk @ in_w[:D].T + in_b[:D]
    k = qk @ in_w[D:2 * D].T + in_b[D:2 * D]
    v = src @ in_w[2 * D:].T + in_b[2 * D:]

    def to_heads(t):
        return t.reshape(S, B, nhead, dh).transpose(1, 2, 0, 3)   # (B,H,S,dh)

    qh, kh, vh = to_heads(q), to_heads(k), to_heads(v)
    s = jnp.einsum("bhqd,bhkd->bhqk", qh, kh) / math.sqrt(dh)
    p = jax.nn.softmax(s, axis=-1)
    o = jnp.einsum("bhqk,bhkd->bhqd", p, vh)
    o = o.transpose(2, 0, 1, 3).reshape(S, B, D)
    o = o @ params["out_proj_weight"].T + params["out_proj_bias"]

    def ln(t, w, b):
        mu = t.mean(-1, keepdims=True)
        var = ((t - mu) ** 2).mean(-1, keepdims=True)
        return (t - mu) * jax.lax.rsqrt(var + 1e-5) * w + b

    x = ln(src + o, params["norm1_weight"], params["norm1_bias"])
    f = jnp.maximum(x @ params["linear1_weight"].T + params["linear1_bias"], 0.0)
    f = f @ params["linear2_weight"].T + params["linear2_bias"]
    return ln(x + f, params["norm2_weight"], params["norm2_bias"])


def init_params(key, d_model, nhead, dim_feedforward):
    ks = jax.random.split(key, 8)
    sc = 0.1
    return {
        "in_proj_weight": sc * jax.random.normal(ks[0], (3 * d_model, d_model), jnp.float32),
        "in_proj_bias": sc * jax.random.normal(ks[1], (3 * d_model,), jnp.float32),
        "out_proj_weight": sc * jax.random.normal(ks[2], (d_model, d_model), jnp.float32),
        "out_proj_bias": sc * jax.random.normal(ks[3], (d_model,), jnp.float32),
        "linear1_weight": sc * jax.random.normal(ks[4], (dim_feedforward, d_model), jnp.float32),
        "linear1_bias": sc * jax.random.normal(ks[5], (dim_feedforward,), jnp.float32),
        "linear2_weight": sc * jax.random.normal(ks[6], (d_model, dim_feedforward), jnp.float32),
        "linear2_bias": sc * jax.random.normal(ks[7], (d_model,), jnp.float32),
        "norm1_weight": jnp.ones((d_model,), jnp.float32),
        "norm1_bias": jnp.zeros((d_model,), jnp.float32),
        "norm2_weight": jnp.ones((d_model,), jnp.float32),
        "norm2_bias": jnp.zeros((d_model,), jnp.float32),
    }


if __name__ == "__main__":
    S, B, D, NHEAD, FF = 8, 2, 32, 4, 64
    key = jax.random.PRNGKey(0)
    k_src, k_pos, k_par = jax.random.split(key, 3)
    src = jax.random.normal(k_src, (S, B, D), jnp.float32)
    pos = jax.random.normal(k_pos, (S, B, D), jnp.float32)
    params = init_params(k_par, D, NHEAD, FF)
    ref = reference(src, pos, params, NHEAD)

    # f32 everywhere: tight validation tolerance.
    packed = pack_params(params, NHEAD, compute_dtype=jnp.float32)
    out = transformer_encoder_layer(src, pos, packed, NHEAD, compute_dtype=jnp.float32)
    out = jax.block_until_ready(out)
    assert out.shape == (S, B, D)
    assert jnp.allclose(out, ref, atol=1e-4, rtol=1e-4), "mismatch vs JAX reference (f32)"

    # bf16 matmul operands (v6e/v7x MXU path); softmax/LayerNorm stay f32, so only
    # a loose tolerance vs the f32 reference is expected.
    packed_bf16 = pack_params(params, NHEAD, compute_dtype=jnp.bfloat16)
    out_bf16 = transformer_encoder_layer(src, pos, packed_bf16, NHEAD,
                                         compute_dtype=jnp.bfloat16)
    out_bf16 = jax.block_until_ready(out_bf16)
    assert jnp.allclose(out_bf16, ref, atol=1e-1, rtol=1e-1), "mismatch vs JAX reference (bf16)"

    print("KERNEL_OK")
</pallas_src>

<mosaic_0001>
module attributes {stable_mosaic.version = 11 : i64} {
  func.func @_encoder_layer_kernel(%arg0: i32, %arg1: memref<8x2x32xf32, #tpu.memory_space<vmem>>, %arg2: memref<8x2x32xf32, #tpu.memory_space<vmem>>, %arg3: memref<32x32xf32, #tpu.memory_space<vmem>>, %arg4: memref<32x32xf32, #tpu.memory_space<vmem>>, %arg5: memref<32x32xf32, #tpu.memory_space<vmem>>, %arg6: memref<1x32xf32, #tpu.memory_space<vmem>>, %arg7: memref<1x32xf32, #tpu.memory_space<vmem>>, %arg8: memref<1x32xf32, #tpu.memory_space<vmem>>, %arg9: memref<32x32xf32, #tpu.memory_space<vmem>>, %arg10: memref<1x32xf32, #tpu.memory_space<vmem>>, %arg11: memref<1x32xf32, #tpu.memory_space<vmem>>, %arg12: memref<1x32xf32, #tpu.memory_space<vmem>>, %arg13: memref<32x64xf32, #tpu.memory_space<vmem>>, %arg14: memref<1x64xf32, #tpu.memory_space<vmem>>, %arg15: memref<64x32xf32, #tpu.memory_space<vmem>>, %arg16: memref<1x32xf32, #tpu.memory_space<vmem>>, %arg17: memref<1x32xf32, #tpu.memory_space<vmem>>, %arg18: memref<1x32xf32, #tpu.memory_space<vmem>>, %arg19: memref<8x2x32xf32, #tpu.memory_space<vmem>>) attributes {dimension_semantics = [#tpu.dimension_semantics<parallel>], iteration_bounds = array<i64: 1>, scalar_prefetch = 0 : i64, scratch_operands = 0 : i64, tpu.core_type = #tpu.core_type<tc>, window_params = [{transform_indices = @transform_0, window_bounds = array<i64: 8, 2, 32>}, {transform_indices = @transform_1, window_bounds = array<i64: 8, 2, 32>}, {pipeline_mode = #tpu.pipeline_mode<synchronous>, transform_indices = @transform_2, window_bounds = array<i64: 32, 32>}, {pipeline_mode = #tpu.pipeline_mode<synchronous>, transform_indices = @transform_3, window_bounds = array<i64: 32, 32>}, {pipeline_mode = #tpu.pipeline_mode<synchronous>, transform_indices = @transform_4, window_bounds = array<i64: 32, 32>}, {pipeline_mode = #tpu.pipeline_mode<synchronous>, transform_indices = @transform_5, window_bounds = array<i64: 1, 32>}, {pipeline_mode = #tpu.pipeline_mode<synchronous>, transform_indices = @transform_6, window_bounds = array<i64: 1, 32>}, {pipeline_mode = #tpu.pipeline_mode<synchronous>, transform_indices = @transform_7, window_bounds = array<i64: 1, 32>}, {pipeline_mode = #tpu.pipeline_mode<synchronous>, transform_indices = @transform_8, window_bounds = array<i64: 32, 32>}, {pipeline_mode = #tpu.pipeline_mode<synchronous>, transform_indices = @transform_9, window_bounds = array<i64: 1, 32>}, {pipeline_mode = #tpu.pipeline_mode<synchronous>, transform_indices = @transform_10, window_bounds = array<i64: 1, 32>}, {pipeline_mode = #tpu.pipeline_mode<synchronous>, transform_indices = @transform_11, window_bounds = array<i64: 1, 32>}, {pipeline_mode = #tpu.pipeline_mode<synchronous>, transform_indices = @transform_12, window_bounds = array<i64: 32, 64>}, {pipeline_mode = #tpu.pipeline_mode<synchronous>, transform_indices = @transform_13, window_bounds = array<i64: 1, 64>}, {pipeline_mode = #tpu.pipeline_mode<synchronous>, transform_indices = @transform_14, window_bounds = array<i64: 64, 32>}, {pipeline_mode = #tpu.pipeline_mode<synchronous>, transform_indices = @transform_15, window_bounds = array<i64: 1, 32>}, {pipeline_mode = #tpu.pipeline_mode<synchronous>, transform_indices = @transform_16, window_bounds = array<i64: 1, 32>}, {pipeline_mode = #tpu.pipeline_mode<synchronous>, transform_indices = @transform_17, window_bounds = array<i64: 1, 32>}, {transform_indices = @transform_18, window_bounds = array<i64: 8, 2, 32>}]} {
    %c0 = arith.constant 0 : index
    %c0_0 = arith.constant 0 : index
    %c0_1 = arith.constant 0 : index
    %0 = vector.load %arg1[%c0, %c0_0, %c0_1] : memref<8x2x32xf32, #tpu.memory_space<vmem>>, vector<8x2x32xf32>
    %c0_2 = arith.constant 0 : index
    %c0_3 = arith.constant 0 : index
    %c0_4 = arith.constant 0 : index
    %1 = vector.load %arg2[%c0_2, %c0_3, %c0_4] : memref<8x2x32xf32, #tpu.memory_space<vmem>>, vector<8x2x32xf32>
    %2 = arith.addf %0, %1 : vector<8x2x32xf32>
    %3 = vector.shape_cast %0 : vector<8x2x32xf32> to vector<16x32xf32>
    %4 = vector.shape_cast %2 : vector<8x2x32xf32> to vector<16x32xf32>
    %c0_5 = arith.constant 0 : index
    %c0_6 = arith.constant 0 : index
    %5 = vector.load %arg3[%c0_5, %c0_6] : memref<32x32xf32, #tpu.memory_space<vmem>>, vector<32x32xf32>
    %cst = arith.constant dense<0.000000e+00> : vector<16x32xf32>
    %6 = tpu.matmul %4, %5, %cst {dimension_numbers = #tpu.dot_dimension_numbers<[1], [0], [0], [1], [0, 0, 1, 1], [], []>} : vector<16x32xf32>, vector<32x32xf32>, vector<16x32xf32> -> vector<16x32xf32>
    %c0_7 = arith.constant 0 : index
    %c0_8 = arith.constant 0 : index
    %7 = vector.load %arg6[%c0_7, %c0_8] : memref<1x32xf32, #tpu.memory_space<vmem>>, vector<1x32xf32>
    %8 = vector.broadcast %7 : vector<1x32xf32> to vector<16x32xf32>
    %9 = arith.addf %6, %8 : vector<16x32xf32>
    %c0_9 = arith.constant 0 : index
    %c0_10 = arith.constant 0 : index
    %10 = vector.load %arg4[%c0_9, %c0_10] : memref<32x32xf32, #tpu.memory_space<vmem>>, vector<32x32xf32>
    %cst_11 = arith.constant dense<0.000000e+00> : vector<16x32xf32>
    %11 = tpu.matmul %4, %10, %cst_11 {dimension_numbers = #tpu.dot_dimension_numbers<[1], [0], [0], [1], [0, 0, 1, 1], [], []>} : vector<16x32xf32>, vector<32x32xf32>, vector<16x32xf32> -> vector<16x32xf32>
    %c0_12 = arith.constant 0 : index
    %c0_13 = arith.constant 0 : index
    %12 = vector.load %arg7[%c0_12, %c0_13] : memref<1x32xf32, #tpu.memory_space<vmem>>, vector<1x32xf32>
    %13 = vector.broadcast %12 : vector<1x32xf32> to vector<16x32xf32>
    %14 = arith.addf %11, %13 : vector<16x32xf32>
    %c0_14 = arith.constant 0 : index
    %c0_15 = arith.constant 0 : index
    %15 = vector.load %arg5[%c0_14, %c0_15] : memref<32x32xf32, #tpu.memory_space<vmem>>, vector<32x32xf32>
    %cst_16 = arith.constant dense<0.000000e+00> : vector<16x32xf32>
    %16 = tpu.matmul %3, %15, %cst_16 {dimension_numbers = #tpu.dot_dimension_numbers<[1], [0], [0], [1], [0, 0, 1, 1], [], []>} : vector<16x32xf32>, vector<32x32xf32>, vector<16x32xf32> -> vector<16x32xf32>
    %c0_17 = arith.constant 0 : index
    %c0_18 = arith.constant 0 : index
    %17 = vector.load %arg8[%c0_17, %c0_18] : memref<1x32xf32, #tpu.memory_space<vmem>>, vector<1x32xf32>
    %18 = vector.broadcast %17 : vector<1x32xf32> to vector<16x32xf32>
    %19 = arith.addf %16, %18 : vector<16x32xf32>
    %20 = vector.shape_cast %9 : vector<16x32xf32> to vector<8x2x4x8xf32>
    %21 = tpu.transpose %20, [1, 2, 0, 3] : vector<8x2x4x8xf32> -> vector<2x4x8x8xf32>
    %22 = vector.shape_cast %21 : vector<2x4x8x8xf32> to vector<8x8x8xf32>
    %23 = vector.shape_cast %14 : vector<16x32xf32> to vector<8x2x4x8xf32>
    %24 = tpu.transpose %23, [1, 2, 0, 3] : vector<8x2x4x8xf32> -> vector<2x4x8x8xf32>
    %25 = vector.shape_cast %24 : vector<2x4x8x8xf32> to vector<8x8x8xf32>
    %26 = vector.shape_cast %19 : vector<16x32xf32> to vector<8x2x4x8xf32>
    %27 = tpu.transpose %26, [1, 2, 0, 3] : vector<8x2x4x8xf32> -> vector<2x4x8x8xf32>
    %28 = vector.shape_cast %27 : vector<2x4x8x8xf32> to vector<8x8x8xf32>
    "tpu.trace_start"() <{level = 10 : i32, message = "bqd,bkd->bqk"}> : () -> ()
    %cst_19 = arith.constant dense<0.000000e+00> : vector<8x8x8xf32>
    %29 = tpu.matmul %22, %25, %cst_19 {dimension_numbers = #tpu.dot_dimension_numbers<[2], [2], [1], [1], [0, 0, 0, 1, 1, 1], [0], [0]>} : vector<8x8x8xf32>, vector<8x8x8xf32>, vector<8x8x8xf32> -> vector<8x8x8xf32>
    "tpu.trace_stop"() : () -> ()
    %cst_20 = arith.constant dense<0xFF800000> : vector<8x8xf32>
    %30 = vector.multi_reduction <maximumf>, %29, %cst_20 [2] : vector<8x8x8xf32> to vector<8x8xf32>
    %31 = vector.shape_cast %30 : vector<8x8xf32> to vector<8x8x1xf32>
    %32 = vector.broadcast %31 : vector<8x8x1xf32> to vector<8x8x8xf32>
    %33 = arith.subf %29, %32 : vector<8x8x8xf32>
    %34 = math.exp %33 : vector<8x8x8xf32>
    %cst_21 = arith.constant dense<0.000000e+00> : vector<8x8xf32>
    %35 = vector.multi_reduction <add>, %34, %cst_21 [2] : vector<8x8x8xf32> to vector<8x8xf32>
    %36 = vector.shape_cast %35 : vector<8x8xf32> to vector<8x8x1xf32>
    %37 = tpu.reciprocal %36 : vector<8x8x1xf32> -> vector<8x8x1xf32>
    %38 = vector.broadcast %37 : vector<8x8x1xf32> to vector<8x8x8xf32>
    %39 = arith.mulf %34, %38 : vector<8x8x8xf32>
    "tpu.trace_start"() <{level = 10 : i32, message = "bqk,bkd->bqd"}> : () -> ()
    %cst_22 = arith.constant dense<0.000000e+00> : vector<8x8x8xf32>
    %40 = tpu.matmul %39, %28, %cst_22 {dimension_numbers = #tpu.dot_dimension_numbers<[2], [1], [1], [2], [0, 0, 0, 1, 1, 2], [0], [0]>} : vector<8x8x8xf32>, vector<8x8x8xf32>, vector<8x8x8xf32> -> vector<8x8x8xf32>
    "tpu.trace_stop"() : () -> ()
    %41 = vector.shape_cast %40 : vector<8x8x8xf32> to vector<2x4x8x8xf32>
    %42 = tpu.transpose %41, [2, 0, 1, 3] : vector<2x4x8x8xf32> -> vector<8x2x4x8xf32>
    %43 = vector.shape_cast %42 : vector<8x2x4x8xf32> to vector<16x32xf32>
    %c0_23 = arith.constant 0 : index
    %c0_24 = arith.constant 0 : index
    %44 = vector.load %arg9[%c0_23, %c0_24] : memref<32x32xf32, #tpu.memory_space<vmem>>, vector<32x32xf32>
    %cst_25 = arith.constant dense<0.000000e+00> : vector<16x32xf32>
    %45 = tpu.matmul %43, %44, %cst_25 {dimension_numbers = #tpu.dot_dimension_numbers<[1], [0], [0], [1], [0, 0, 1, 1], [], []>} : vector<16x32xf32>, vector<32x32xf32>, vector<16x32xf32> -> vector<16x32xf32>
    %c0_26 = arith.constant 0 : index
    %c0_27 = arith.constant 0 : index
    %46 = vector.load %arg10[%c0_26, %c0_27] : memref<1x32xf32, #tpu.memory_space<vmem>>, vector<1x32xf32>
    %47 = vector.broadcast %46 : vector<1x32xf32> to vector<16x32xf32>
    %48 = arith.addf %45, %47 : vector<16x32xf32>
    %49 = arith.addf %3, %48 : vector<16x32xf32>
    %cst_28 = arith.constant dense<0.000000e+00> : vector<16xf32>
    %50 = vector.multi_reduction <add>, %49, %cst_28 [1] : vector<16x32xf32> to vector<16xf32>
    %51 = vector.shape_cast %50 : vector<16xf32> to vector<16x1xf32>
    %cst_29 = arith.constant 3.200000e+01 : f32
    %52 = vector.broadcast %cst_29 : f32 to vector<16x1xf32>
    %53 = arith.divf %51, %52 : vector<16x1xf32>
    %54 = vector.broadcast %53 : vector<16x1xf32> to vector<16x32xf32>
    %55 = arith.subf %49, %54 : vector<16x32xf32>
    %56 = arith.mulf %55, %55 : vector<16x32xf32>
    %cst_30 = arith.constant dense<0.000000e+00> : vector<16xf32>
    %57 = vector.multi_reduction <add>, %56, %cst_30 [1] : vector<16x32xf32> to vector<16xf32>
    %58 = vector.shape_cast %57 : vector<16xf32> to vector<16x1xf32>
    %cst_31 = arith.constant 3.200000e+01 : f32
    %59 = vector.broadcast %cst_31 : f32 to vector<16x1xf32>
    %60 = arith.divf %58, %59 : vector<16x1xf32>
    %61 = vector.broadcast %53 : vector<16x1xf32> to vector<16x32xf32>
    %62 = arith.subf %49, %61 : vector<16x32xf32>
    %cst_32 = arith.constant 9.99999974E-6 : f32
    %63 = vector.broadcast %cst_32 : f32 to vector<16x1xf32>
    %64 = arith.addf %60, %63 : vector<16x1xf32>
    %65 = math.rsqrt %64 : vector<16x1xf32>
    %66 = vector.broadcast %65 : vector<16x1xf32> to vector<16x32xf32>
    %67 = arith.mulf %62, %66 : vector<16x32xf32>
    %c0_33 = arith.constant 0 : index
    %c0_34 = arith.constant 0 : index
    %68 = vector.load %arg11[%c0_33, %c0_34] : memref<1x32xf32, #tpu.memory_space<vmem>>, vector<1x32xf32>
    %69 = vector.broadcast %68 : vector<1x32xf32> to vector<16x32xf32>
    %70 = arith.mulf %67, %69 : vector<16x32xf32>
    %c0_35 = arith.constant 0 : index
    %c0_36 = arith.constant 0 : index
    %71 = vector.load %arg12[%c0_35, %c0_36] : memref<1x32xf32, #tpu.memory_space<vmem>>, vector<1x32xf32>
    %72 = vector.broadcast %71 : vector<1x32xf32> to vector<16x32xf32>
    %73 = arith.addf %70, %72 : vector<16x32xf32>
    %c0_37 = arith.constant 0 : index
    %c0_38 = arith.constant 0 : index
    %74 = vector.load %arg13[%c0_37, %c0_38] : memref<32x64xf32, #tpu.memory_space<vmem>>, vector<32x64xf32>
    %cst_39 = arith.constant dense<0.000000e+00> : vector<16x64xf32>
    %75 = tpu.matmul %73, %74, %cst_39 {dimension_numbers = #tpu.dot_dimension_numbers<[1], [0], [0], [1], [0, 0, 1, 1], [], []>} : vector<16x32xf32>, vector<32x64xf32>, vector<16x64xf32> -> vector<16x64xf32>
    %c0_40 = arith.constant 0 : index
    %c0_41 = arith.constant 0 : index
    %76 = vector.load %arg14[%c0_40, %c0_41] : memref<1x64xf32, #tpu.memory_space<vmem>>, vector<1x64xf32>
    %77 = vector.broadcast %76 : vector<1x64xf32> to vector<16x64xf32>
    %78 = arith.addf %75, %77 : vector<16x64xf32>
    %cst_42 = arith.constant 0.000000e+00 : f32
    %79 = vector.broadcast %cst_42 : f32 to vector<16x64xf32>
    %80 = arith.maximumf %78, %79 : vector<16x64xf32>
    %c0_43 = arith.constant 0 : index
    %c0_44 = arith.constant 0 : index
    %81 = vector.load %arg15[%c0_43, %c0_44] : memref<64x32xf32, #tpu.memory_space<vmem>>, vector<64x32xf32>
    %cst_45 = arith.constant dense<0.000000e+00> : vector<16x32xf32>
    %82 = tpu.matmul %80, %81, %cst_45 {dimension_numbers = #tpu.dot_dimension_numbers<[1], [0], [0], [1], [0, 0, 1, 1], [], []>} : vector<16x64xf32>, vector<64x32xf32>, vector<16x32xf32> -> vector<16x32xf32>
    %c0_46 = arith.constant 0 : index
    %c0_47 = arith.constant 0 : index
    %83 = vector.load %arg16[%c0_46, %c0_47] : memref<1x32xf32, #tpu.memory_space<vmem>>, vector<1x32xf32>
    %84 = vector.broadcast %83 : vector<1x32xf32> to vector<16x32xf32>
    %85 = arith.addf %82, %84 : vector<16x32xf32>
    %86 = arith.addf %73, %85 : vector<16x32xf32>
    %cst_48 = arith.constant dense<0.000000e+00> : vector<16xf32>
    %87 = vector.multi_reduction <add>, %86, %cst_48 [1] : vector<16x32xf32> to vector<16xf32>
    %88 = vector.shape_cast %87 : vector<16xf32> to vector<16x1xf32>
    %cst_49 = arith.constant 3.200000e+01 : f32
    %89 = vector.broadcast %cst_49 : f32 to vector<16x1xf32>
    %90 = arith.divf %88, %89 : vector<16x1xf32>
    %91 = vector.broadcast %90 : vector<16x1xf32> to vector<16x32xf32>
    %92 = arith.subf %86, %91 : vector<16x32xf32>
    %93 = arith.mulf %92, %92 : vector<16x32xf32>
    %cst_50 = arith.constant dense<0.000000e+00> : vector<16xf32>
    %94 = vector.multi_reduction <add>, %93, %cst_50 [1] : vector<16x32xf32> to vector<16xf32>
    %95 = vector.shape_cast %94 : vector<16xf32> to vector<16x1xf32>
    %cst_51 = arith.constant 3.200000e+01 : f32
    %96 = vector.broadcast %cst_51 : f32 to vector<16x1xf32>
    %97 = arith.divf %95, %96 : vector<16x1xf32>
    %98 = vector.broadcast %90 : vector<16x1xf32> to vector<16x32xf32>
    %99 = arith.subf %86, %98 : vector<16x32xf32>
    %cst_52 = arith.constant 9.99999974E-6 : f32
    %100 = vector.broadcast %cst_52 : f32 to vector<16x1xf32>
    %101 = arith.addf %97, %100 : vector<16x1xf32>
    %102 = math.rsqrt %101 : vector<16x1xf32>
    %103 = vector.broadcast %102 : vector<16x1xf32> to vector<16x32xf32>
    %104 = arith.mulf %99, %103 : vector<16x32xf32>
    %c0_53 = arith.constant 0 : index
    %c0_54 = arith.constant 0 : index
    %105 = vector.load %arg17[%c0_53, %c0_54] : memref<1x32xf32, #tpu.memory_space<vmem>>, vector<1x32xf32>
    %106 = vector.broadcast %105 : vector<1x32xf32> to vector<16x32xf32>
    %107 = arith.mulf %104, %106 : vector<16x32xf32>
    %c0_55 = arith.constant 0 : index
    %c0_56 = arith.constant 0 : index
    %108 = vector.load %arg18[%c0_55, %c0_56] : memref<1x32xf32, #tpu.memory_space<vmem>>, vector<1x32xf32>
    %109 = vector.broadcast %108 : vector<1x32xf32> to vector<16x32xf32>
    %110 = arith.addf %107, %109 : vector<16x32xf32>
    %111 = vector.shape_cast %110 : vector<16x32xf32> to vector<8x2x32xf32>
    %c0_57 = arith.constant 0 : index
    %c0_58 = arith.constant 0 : index
    %c0_59 = arith.constant 0 : index
    %112 = vector.load %arg19[%c0_57, %c0_58, %c0_59] : memref<8x2x32xf32, #tpu.memory_space<vmem>>, vector<8x2x32xf32>
    tpu.vector_store %arg19[%c0_57, %c0_58, %c0_59], %111 {strides = array<i32>} : memref<8x2x32xf32, #tpu.memory_space<vmem>>, vector<8x2x32xf32>,
    return
  }
  func.func @transform_0(%arg0: i32) -> (i32, i32, i32) {
    %c0_i32 = arith.constant 0 : i32
    %c0_i32_0 = arith.constant 0 : i32
    %c0_i32_1 = arith.constant 0 : i32
    return %c0_i32, %arg0, %c0_i32_0 : i32, i32, i32
  }
  func.func @transform_1(%arg0: i32) -> (i32, i32, i32) {
    %c0_i32 = arith.constant 0 : i32
    %c0_i32_0 = arith.constant 0 : i32
    %c0_i32_1 = arith.constant 0 : i32
    return %c0_i32, %arg0, %c0_i32_0 : i32, i32, i32
  }
  func.func @transform_2(%arg0: i32) -> (i32, i32) {
    %c0_i32 = arith.constant 0 : i32
    %c0_i32_0 = arith.constant 0 : i32
    %c0_i32_1 = arith.constant 0 : i32
    return %c0_i32, %c0_i32_0 : i32, i32
  }
  func.func @transform_3(%arg0: i32) -> (i32, i32) {
    %c0_i32 = arith.constant 0 : i32
    %c0_i32_0 = arith.constant 0 : i32
    %c0_i32_1 = arith.constant 0 : i32
    return %c0_i32, %c0_i32_0 : i32, i32
  }
  func.func @transform_4(%arg0: i32) -> (i32, i32) {
    %c0_i32 = arith.constant 0 : i32
    %c0_i32_0 = arith.constant 0 : i32
    %c0_i32_1 = arith.constant 0 : i32
    return %c0_i32, %c0_i32_0 : i32, i32
  }
  func.func @transform_5(%arg0: i32) -> (i32, i32) {
    %c0_i32 = arith.constant 0 : i32
    %c0_i32_0 = arith.constant 0 : i32
    %c0_i32_1 = arith.constant 0 : i32
    return %c0_i32, %c0_i32_0 : i32, i32
  }
  func.func @transform_6(%arg0: i32) -> (i32, i32) {
    %c0_i32 = arith.constant 0 : i32
    %c0_i32_0 = arith.constant 0 : i32
    %c0_i32_1 = arith.constant 0 : i32
    return %c0_i32, %c0_i32_0 : i32, i32
  }
  func.func @transform_7(%arg0: i32) -> (i32, i32) {
    %c0_i32 = arith.constant 0 : i32
    %c0_i32_0 = arith.constant 0 : i32
    %c0_i32_1 = arith.constant 0 : i32
    return %c0_i32, %c0_i32_0 : i32, i32
  }
  func.func @transform_8(%arg0: i32) -> (i32, i32) {
    %c0_i32 = arith.constant 0 : i32
    %c0_i32_0 = arith.constant 0 : i32
    %c0_i32_1 = arith.constant 0 : i32
    return %c0_i32, %c0_i32_0 : i32, i32
  }
  func.func @transform_9(%arg0: i32) -> (i32, i32) {
    %c0_i32 = arith.constant 0 : i32
    %c0_i32_0 = arith.constant 0 : i32
    %c0_i32_1 = arith.constant 0 : i32
    return %c0_i32, %c0_i32_0 : i32, i32
  }
  func.func @transform_10(%arg0: i32) -> (i32, i32) {
    %c0_i32 = arith.constant 0 : i32
    %c0_i32_0 = arith.constant 0 : i32
    %c0_i32_1 = arith.constant 0 : i32
    return %c0_i32, %c0_i32_0 : i32, i32
  }
  func.func @transform_11(%arg0: i32) -> (i32, i32) {
    %c0_i32 = arith.constant 0 : i32
    %c0_i32_0 = arith.constant 0 : i32
    %c0_i32_1 = arith.constant 0 : i32
    return %c0_i32, %c0_i32_0 : i32, i32
  }
  func.func @transform_12(%arg0: i32) -> (i32, i32) {
    %c0_i32 = arith.constant 0 : i32
    %c0_i32_0 = arith.constant 0 : i32
    %c0_i32_1 = arith.constant 0 : i32
    return %c0_i32, %c0_i32_0 : i32, i32
  }
  func.func @transform_13(%arg0: i32) -> (i32, i32) {
    %c0_i32 = arith.constant 0 : i32
    %c0_i32_0 = arith.constant 0 : i32
    %c0_i32_1 = arith.constant 0 : i32
    return %c0_i32, %c0_i32_0 : i32, i32
  }
  func.func @transform_14(%arg0: i32) -> (i32, i32) {
    %c0_i32 = arith.constant 0 : i32
    %c0_i32_0 = arith.constant 0 : i32
    %c0_i32_1 = arith.constant 0 : i32
    return %c0_i32, %c0_i32_0 : i32, i32
  }
  func.func @transform_15(%arg0: i32) -> (i32, i32) {
    %c0_i32 = arith.constant 0 : i32
    %c0_i32_0 = arith.constant 0 : i32
    %c0_i32_1 = arith.constant 0 : i32
    return %c0_i32, %c0_i32_0 : i32, i32
  }
  func.func @transform_16(%arg0: i32) -> (i32, i32) {
    %c0_i32 = arith.constant 0 : i32
    %c0_i32_0 = arith.constant 0 : i32
    %c0_i32_1 = arith.constant 0 : i32
    return %c0_i32, %c0_i32_0 : i32, i32
  }
  func.func @transform_17(%arg0: i32) -> (i32, i32) {
    %c0_i32 = arith.constant 0 : i32
    %c0_i32_0 = arith.constant 0 : i32
    %c0_i32_1 = arith.constant 0 : i32
    return %c0_i32, %c0_i32_0 : i32, i32
  }
  func.func @transform_18(%arg0: i32) -> (i32, i32, i32) {
    %c0_i32 = arith.constant 0 : i32
    %c0_i32_0 = arith.constant 0 : i32
    %c0_i32_1 = arith.constant 0 : i32
    return %c0_i32, %arg0, %c0_i32_0 : i32, i32, i32
  }
}

module attributes {stable_mosaic.version = 11 : i64} {
  func.func @_encoder_layer_kernel(%arg0: i32, %arg1: memref<8x2x32xf32, #tpu.memory_space<vmem>>, %arg2: memref<8x2x32xf32, #tpu.memory_space<vmem>>, %arg3: memref<32x32xf32, #tpu.memory_space<vmem>>, %arg4: memref<32x32xf32, #tpu.memory_space<vmem>>, %arg5: memref<32x32xf32, #tpu.memory_space<vmem>>, %arg6: memref<1x32xf32, #tpu.memory_space<vmem>>, %arg7: memref<1x32xf32, #tpu.memory_space<vmem>>, %arg8: memref<1x32xf32, #tpu.memory_space<vmem>>, %arg9: memref<32x32xf32, #tpu.memory_space<vmem>>, %arg10: memref<1x32xf32, #tpu.memory_space<vmem>>, %arg11: memref<1x32xf32, #tpu.memory_space<vmem>>, %arg12: memref<1x32xf32, #tpu.memory_space<vmem>>, %arg13: memref<32x64xf32, #tpu.memory_space<vmem>>, %arg14: memref<1x64xf32, #tpu.memory_space<vmem>>, %arg15: memref<64x32xf32, #tpu.memory_space<vmem>>, %arg16: memref<1x32xf32, #tpu.memory_space<vmem>>, %arg17: memref<1x32xf32, #tpu.memory_space<vmem>>, %arg18: memref<1x32xf32, #tpu.memory_space<vmem>>, %arg19: memref<8x2x32xf32, #tpu.memory_space<vmem>>) attributes {dimension_semantics = [#tpu.dimension_semantics<parallel>], iteration_bounds = array<i64: 1>, scalar_prefetch = 0 : i64, scratch_operands = 0 : i64, tpu.core_type = #tpu.core_type<tc>, window_params = [{transform_indices = @transform_0, window_bounds = array<i64: 8, 2, 32>}, {transform_indices = @transform_1, window_bounds = array<i64: 8, 2, 32>}, {pipeline_mode = #tpu.pipeline_mode<synchronous>, transform_indices = @transform_2, window_bounds = array<i64: 32, 32>}, {pipeline_mode = #tpu.pipeline_mode<synchronous>, transform_indices = @transform_3, window_bounds = array<i64: 32, 32>}, {pipeline_mode = #tpu.pipeline_mode<synchronous>, transform_indices = @transform_4, window_bounds = array<i64: 32, 32>}, {pipeline_mode = #tpu.pipeline_mode<synchronous>, transform_indices = @transform_5, window_bounds = array<i64: 1, 32>}, {pipeline_mode = #tpu.pipeline_mode<synchronous>, transform_indices = @transform_6, window_bounds = array<i64: 1, 32>}, {pipeline_mode = #tpu.pipeline_mode<synchronous>, transform_indices = @transform_7, window_bounds = array<i64: 1, 32>}, {pipeline_mode = #tpu.pipeline_mode<synchronous>, transform_indices = @transform_8, window_bounds = array<i64: 32, 32>}, {pipeline_mode = #tpu.pipeline_mode<synchronous>, transform_indices = @transform_9, window_bounds = array<i64: 1, 32>}, {pipeline_mode = #tpu.pipeline_mode<synchronous>, transform_indices = @transform_10, window_bounds = array<i64: 1, 32>}, {pipeline_mode = #tpu.pipeline_mode<synchronous>, transform_indices = @transform_11, window_bounds = array<i64: 1, 32>}, {pipeline_mode = #tpu.pipeline_mode<synchronous>, transform_indices = @transform_12, window_bounds = array<i64: 32, 64>}, {pipeline_mode = #tpu.pipeline_mode<synchronous>, transform_indices = @transform_13, window_bounds = array<i64: 1, 64>}, {pipeline_mode = #tpu.pipeline_mode<synchronous>, transform_indices = @transform_14, window_bounds = array<i64: 64, 32>}, {pipeline_mode = #tpu.pipeline_mode<synchronous>, transform_indices = @transform_15, window_bounds = array<i64: 1, 32>}, {pipeline_mode = #tpu.pipeline_mode<synchronous>, transform_indices = @transform_16, window_bounds = array<i64: 1, 32>}, {pipeline_mode = #tpu.pipeline_mode<synchronous>, transform_indices = @transform_17, window_bounds = array<i64: 1, 32>}, {transform_indices = @transform_18, window_bounds = array<i64: 8, 2, 32>}]} {
    %c0 = arith.constant 0 : index
    %c0_0 = arith.constant 0 : index
    %c0_1 = arith.constant 0 : index
    %0 = vector.load %arg1[%c0, %c0_0, %c0_1] : memref<8x2x32xf32, #tpu.memory_space<vmem>>, vector<8x2x32xf32>
    %c0_2 = arith.constant 0 : index
    %c0_3 = arith.constant 0 : index
    %c0_4 = arith.constant 0 : index
    %1 = vector.load %arg2[%c0_2, %c0_3, %c0_4] : memref<8x2x32xf32, #tpu.memory_space<vmem>>, vector<8x2x32xf32>
    %2 = arith.addf %0, %1 : vector<8x2x32xf32>
    %3 = vector.shape_cast %0 : vector<8x2x32xf32> to vector<16x32xf32>
    %4 = vector.shape_cast %2 : vector<8x2x32xf32> to vector<16x32xf32>
    %c0_5 = arith.constant 0 : index
    %c0_6 = arith.constant 0 : index
    %5 = vector.load %arg3[%c0_5, %c0_6] : memref<32x32xf32, #tpu.memory_space<vmem>>, vector<32x32xf32>
    %cst = arith.constant dense<0.000000e+00> : vector<16x32xf32>
    %6 = tpu.matmul %4, %5, %cst {dimension_numbers = #tpu.dot_dimension_numbers<[1], [0], [0], [1], [0, 0, 1, 1], [], []>} : vector<16x32xf32>, vector<32x32xf32>, vector<16x32xf32> -> vector<16x32xf32>
    %c0_7 = arith.constant 0 : index
    %c0_8 = arith.constant 0 : index
    %7 = vector.load %arg6[%c0_7, %c0_8] : memref<1x32xf32, #tpu.memory_space<vmem>>, vector<1x32xf32>
    %8 = vector.broadcast %7 : vector<1x32xf32> to vector<16x32xf32>
    %9 = arith.addf %6, %8 : vector<16x32xf32>
    %c0_9 = arith.constant 0 : index
    %c0_10 = arith.constant 0 : index
    %10 = vector.load %arg4[%c0_9, %c0_10] : memref<32x32xf32, #tpu.memory_space<vmem>>, vector<32x32xf32>
    %cst_11 = arith.constant dense<0.000000e+00> : vector<16x32xf32>
    %11 = tpu.matmul %4, %10, %cst_11 {dimension_numbers = #tpu.dot_dimension_numbers<[1], [0], [0], [1], [0, 0, 1, 1], [], []>} : vector<16x32xf32>, vector<32x32xf32>, vector<16x32xf32> -> vector<16x32xf32>
    %c0_12 = arith.constant 0 : index
    %c0_13 = arith.constant 0 : index
    %12 = vector.load %arg7[%c0_12, %c0_13] : memref<1x32xf32, #tpu.memory_space<vmem>>, vector<1x32xf32>
    %13 = vector.broadcast %12 : vector<1x32xf32> to vector<16x32xf32>
    %14 = arith.addf %11, %13 : vector<16x32xf32>
    %c0_14 = arith.constant 0 : index
    %c0_15 = arith.constant 0 : index
    %15 = vector.load %arg5[%c0_14, %c0_15] : memref<32x32xf32, #tpu.memory_space<vmem>>, vector<32x32xf32>
    %cst_16 = arith.constant dense<0.000000e+00> : vector<16x32xf32>
    %16 = tpu.matmul %3, %15, %cst_16 {dimension_numbers = #tpu.dot_dimension_numbers<[1], [0], [0], [1], [0, 0, 1, 1], [], []>} : vector<16x32xf32>, vector<32x32xf32>, vector<16x32xf32> -> vector<16x32xf32>
    %c0_17 = arith.constant 0 : index
    %c0_18 = arith.constant 0 : index
    %17 = vector.load %arg8[%c0_17, %c0_18] : memref<1x32xf32, #tpu.memory_space<vmem>>, vector<1x32xf32>
    %18 = vector.broadcast %17 : vector<1x32xf32> to vector<16x32xf32>
    %19 = arith.addf %16, %18 : vector<16x32xf32>
    %20 = vector.shape_cast %9 : vector<16x32xf32> to vector<8x2x4x8xf32>
    %21 = tpu.transpose %20, [1, 2, 0, 3] : vector<8x2x4x8xf32> -> vector<2x4x8x8xf32>
    %22 = vector.shape_cast %21 : vector<2x4x8x8xf32> to vector<8x8x8xf32>
    %23 = vector.shape_cast %14 : vector<16x32xf32> to vector<8x2x4x8xf32>
    %24 = tpu.transpose %23, [1, 2, 0, 3] : vector<8x2x4x8xf32> -> vector<2x4x8x8xf32>
    %25 = vector.shape_cast %24 : vector<2x4x8x8xf32> to vector<8x8x8xf32>
    %26 = vector.shape_cast %19 : vector<16x32xf32> to vector<8x2x4x8xf32>
    %27 = tpu.transpose %26, [1, 2, 0, 3] : vector<8x2x4x8xf32> -> vector<2x4x8x8xf32>
    %28 = vector.shape_cast %27 : vector<2x4x8x8xf32> to vector<8x8x8xf32>
    "tpu.trace_start"() <{level = 10 : i32, message = "bqd,bkd->bqk"}> : () -> ()
    %cst_19 = arith.constant dense<0.000000e+00> : vector<8x8x8xf32>
    %29 = tpu.matmul %22, %25, %cst_19 {dimension_numbers = #tpu.dot_dimension_numbers<[2], [2], [1], [1], [0, 0, 0, 1, 1, 1], [0], [0]>} : vector<8x8x8xf32>, vector<8x8x8xf32>, vector<8x8x8xf32> -> vector<8x8x8xf32>
    "tpu.trace_stop"() : () -> ()
    %cst_20 = arith.constant dense<0xFF800000> : vector<8x8xf32>
    %30 = vector.multi_reduction <maximumf>, %29, %cst_20 [2] : vector<8x8x8xf32> to vector<8x8xf32>
    %31 = vector.shape_cast %30 : vector<8x8xf32> to vector<8x8x1xf32>
    %32 = vector.broadcast %31 : vector<8x8x1xf32> to vector<8x8x8xf32>
    %33 = arith.subf %29, %32 : vector<8x8x8xf32>
    %34 = math.exp %33 : vector<8x8x8xf32>
    %cst_21 = arith.constant dense<0.000000e+00> : vector<8x8xf32>
    %35 = vector.multi_reduction <add>, %34, %cst_21 [2] : vector<8x8x8xf32> to vector<8x8xf32>
    %36 = vector.shape_cast %35 : vector<8x8xf32> to vector<8x8x1xf32>
    %37 = tpu.reciprocal %36 : vector<8x8x1xf32> -> vector<8x8x1xf32>
    %38 = vector.broadcast %37 : vector<8x8x1xf32> to vector<8x8x8xf32>
    %39 = arith.mulf %34, %38 : vector<8x8x8xf32>
    "tpu.trace_start"() <{level = 10 : i32, message = "bqk,bkd->bqd"}> : () -> ()
    %cst_22 = arith.constant dense<0.000000e+00> : vector<8x8x8xf32>
    %40 = tpu.matmul %39, %28, %cst_22 {dimension_numbers = #tpu.dot_dimension_numbers<[2], [1], [1], [2], [0, 0, 0, 1, 1, 2], [0], [0]>} : vector<8x8x8xf32>, vector<8x8x8xf32>, vector<8x8x8xf32> -> vector<8x8x8xf32>
    "tpu.trace_stop"() : () -> ()
    %41 = vector.shape_cast %40 : vector<8x8x8xf32> to vector<2x4x8x8xf32>
    %42 = tpu.transpose %41, [2, 0, 1, 3] : vector<2x4x8x8xf32> -> vector<8x2x4x8xf32>
    %43 = vector.shape_cast %42 : vector<8x2x4x8xf32> to vector<16x32xf32>
    %c0_23 = arith.constant 0 : index
    %c0_24 = arith.constant 0 : index
    %44 = vector.load %arg9[%c0_23, %c0_24] : memref<32x32xf32, #tpu.memory_space<vmem>>, vector<32x32xf32>
    %cst_25 = arith.constant dense<0.000000e+00> : vector<16x32xf32>
    %45 = tpu.matmul %43, %44, %cst_25 {dimension_numbers = #tpu.dot_dimension_numbers<[1], [0], [0], [1], [0, 0, 1, 1], [], []>} : vector<16x32xf32>, vector<32x32xf32>, vector<16x32xf32> -> vector<16x32xf32>
    %c0_26 = arith.constant 0 : index
    %c0_27 = arith.constant 0 : index
    %46 = vector.load %arg10[%c0_26, %c0_27] : memref<1x32xf32, #tpu.memory_space<vmem>>, vector<1x32xf32>
    %47 = vector.broadcast %46 : vector<1x32xf32> to vector<16x32xf32>
    %48 = arith.addf %45, %47 : vector<16x32xf32>
    %49 = arith.addf %3, %48 : vector<16x32xf32>
    %cst_28 = arith.constant dense<0.000000e+00> : vector<16xf32>
    %50 = vector.multi_reduction <add>, %49, %cst_28 [1] : vector<16x32xf32> to vector<16xf32>
    %51 = vector.shape_cast %50 : vector<16xf32> to vector<16x1xf32>
    %cst_29 = arith.constant 3.200000e+01 : f32
    %52 = vector.broadcast %cst_29 : f32 to vector<16x1xf32>
    %53 = arith.divf %51, %52 : vector<16x1xf32>
    %54 = vector.broadcast %53 : vector<16x1xf32> to vector<16x32xf32>
    %55 = arith.subf %49, %54 : vector<16x32xf32>
    %56 = arith.mulf %55, %55 : vector<16x32xf32>
    %cst_30 = arith.constant dense<0.000000e+00> : vector<16xf32>
    %57 = vector.multi_reduction <add>, %56, %cst_30 [1] : vector<16x32xf32> to vector<16xf32>
    %58 = vector.shape_cast %57 : vector<16xf32> to vector<16x1xf32>
    %cst_31 = arith.constant 3.200000e+01 : f32
    %59 = vector.broadcast %cst_31 : f32 to vector<16x1xf32>
    %60 = arith.divf %58, %59 : vector<16x1xf32>
    %61 = vector.broadcast %53 : vector<16x1xf32> to vector<16x32xf32>
    %62 = arith.subf %49, %61 : vector<16x32xf32>
    %cst_32 = arith.constant 9.99999974E-6 : f32
    %63 = vector.broadcast %cst_32 : f32 to vector<16x1xf32>
    %64 = arith.addf %60, %63 : vector<16x1xf32>
    %65 = math.rsqrt %64 : vector<16x1xf32>
    %66 = vector.broadcast %65 : vector<16x1xf32> to vector<16x32xf32>
    %67 = arith.mulf %62, %66 : vector<16x32xf32>
    %c0_33 = arith.constant 0 : index
    %c0_34 = arith.constant 0 : index
    %68 = vector.load %arg11[%c0_33, %c0_34] : memref<1x32xf32, #tpu.memory_space<vmem>>, vector<1x32xf32>
    %69 = vector.broadcast %68 : vector<1x32xf32> to vector<16x32xf32>
    %70 = arith.mulf %67, %69 : vector<16x32xf32>
    %c0_35 = arith.constant 0 : index
    %c0_36 = arith.constant 0 : index
    %71 = vector.load %arg12[%c0_35, %c0_36] : memref<1x32xf32, #tpu.memory_space<vmem>>, vector<1x32xf32>
    %72 = vector.broadcast %71 : vector<1x32xf32> to vector<16x32xf32>
    %73 = arith.addf %70, %72 : vector<16x32xf32>
    %c0_37 = arith.constant 0 : index
    %c0_38 = arith.constant 0 : index
    %74 = vector.load %arg13[%c0_37, %c0_38] : memref<32x64xf32, #tpu.memory_space<vmem>>, vector<32x64xf32>
    %cst_39 = arith.constant dense<0.000000e+00> : vector<16x64xf32>
    %75 = tpu.matmul %73, %74, %cst_39 {dimension_numbers = #tpu.dot_dimension_numbers<[1], [0], [0], [1], [0, 0, 1, 1], [], []>} : vector<16x32xf32>, vector<32x64xf32>, vector<16x64xf32> -> vector<16x64xf32>
    %c0_40 = arith.constant 0 : index
    %c0_41 = arith.constant 0 : index
    %76 = vector.load %arg14[%c0_40, %c0_41] : memref<1x64xf32, #tpu.memory_space<vmem>>, vector<1x64xf32>
    %77 = vector.broadcast %76 : vector<1x64xf32> to vector<16x64xf32>
    %78 = arith.addf %75, %77 : vector<16x64xf32>
    %cst_42 = arith.constant 0.000000e+00 : f32
    %79 = vector.broadcast %cst_42 : f32 to vector<16x64xf32>
    %80 = arith.maximumf %78, %79 : vector<16x64xf32>
    %c0_43 = arith.constant 0 : index
    %c0_44 = arith.constant 0 : index
    %81 = vector.load %arg15[%c0_43, %c0_44] : memref<64x32xf32, #tpu.memory_space<vmem>>, vector<64x32xf32>
    %cst_45 = arith.constant dense<0.000000e+00> : vector<16x32xf32>
    %82 = tpu.matmul %80, %81, %cst_45 {dimension_numbers = #tpu.dot_dimension_numbers<[1], [0], [0], [1], [0, 0, 1, 1], [], []>} : vector<16x64xf32>, vector<64x32xf32>, vector<16x32xf32> -> vector<16x32xf32>
    %c0_46 = arith.constant 0 : index
    %c0_47 = arith.constant 0 : index
    %83 = vector.load %arg16[%c0_46, %c0_47] : memref<1x32xf32, #tpu.memory_space<vmem>>, vector<1x32xf32>
    %84 = vector.broadcast %83 : vector<1x32xf32> to vector<16x32xf32>
    %85 = arith.addf %82, %84 : vector<16x32xf32>
    %86 = arith.addf %73, %85 : vector<16x32xf32>
    %cst_48 = arith.constant dense<0.000000e+00> : vector<16xf32>
    %87 = vector.multi_reduction <add>, %86, %cst_48 [1] : vector<16x32xf32> to vector<16xf32>
    %88 = vector.shape_cast %87 : vector<16xf32> to vector<16x1xf32>
    %cst_49 = arith.constant 3.200000e+01 : f32
    %89 = vector.broadcast %cst_49 : f32 to vector<16x1xf32>
    %90 = arith.divf %88, %89 : vector<16x1xf32>
    %91 = vector.broadcast %90 : vector<16x1xf32> to vector<16x32xf32>
    %92 = arith.subf %86, %91 : vector<16x32xf32>
    %93 = arith.mulf %92, %92 : vector<16x32xf32>
    %cst_50 = arith.constant dense<0.000000e+00> : vector<16xf32>
    %94 = vector.multi_reduction <add>, %93, %cst_50 [1] : vector<16x32xf32> to vector<16xf32>
    %95 = vector.shape_cast %94 : vector<16xf32> to vector<16x1xf32>
    %cst_51 = arith.constant 3.200000e+01 : f32
    %96 = vector.broadcast %cst_51 : f32 to vector<16x1xf32>
    %97 = arith.divf %95, %96 : vector<16x1xf32>
    %98 = vector.broadcast %90 : vector<16x1xf32> to vector<16x32xf32>
    %99 = arith.subf %86, %98 : vector<16x32xf32>
    %cst_52 = arith.constant 9.99999974E-6 : f32
    %100 = vector.broadcast %cst_52 : f32 to vector<16x1xf32>
    %101 = arith.addf %97, %100 : vector<16x1xf32>
    %102 = math.rsqrt %101 : vector<16x1xf32>
    %103 = vector.broadcast %102 : vector<16x1xf32> to vector<16x32xf32>
    %104 = arith.mulf %99, %103 : vector<16x32xf32>
    %c0_53 = arith.constant 0 : index
    %c0_54 = arith.constant 0 : index
    %105 = vector.load %arg17[%c0_53, %c0_54] : memref<1x32xf32, #tpu.memory_space<vmem>>, vector<1x32xf32>
    %106 = vector.broadcast %105 : vector<1x32xf32> to vector<16x32xf32>
    %107 = arith.mulf %104, %106 : vector<16x32xf32>
    %c0_55 = arith.constant 0 : index
    %c0_56 = arith.constant 0 : index
    %108 = vector.load %arg18[%c0_55, %c0_56] : memref<1x32xf32, #tpu.memory_space<vmem>>, vector<1x32xf32>
    %109 = vector.broadcast %108 : vector<1x32xf32> to vector<16x32xf32>
    %110 = arith.addf %107, %109 : vector<16x32xf32>
    %111 = vector.shape_cast %110 : vector<16x32xf32> to vector<8x2x32xf32>
    %c0_57 = arith.constant 0 : index
    %c0_58 = arith.constant 0 : index
    %c0_59 = arith.constant 0 : index
    %112 = vector.load %arg19[%c0_57, %c0_58, %c0_59] : memref<8x2x32xf32, #tpu.memory_space<vmem>>, vector<8x2x32xf32>
    tpu.vector_store %arg19[%c0_57, %c0_58, %c0_59], %111 {strides = array<i32>} : memref<8x2x32xf32, #tpu.memory_space<vmem>>, vector<8x2x32xf32>,
    return
  }
  func.func @transform_0(%arg0: i32) -> (i32, i32, i32) {
    %c0_i32 = arith.constant 0 : i32
    %c0_i32_0 = arith.constant 0 : i32
    %c0_i32_1 = arith.constant 0 : i32
    return %c0_i32, %arg0, %c0_i32_0 : i32, i32, i32
  }
  func.func @transform_1(%arg0: i32) -> (i32, i32, i32) {
    %c0_i32 = arith.constant 0 : i32
    %c0_i32_0 = arith.constant 0 : i32
    %c0_i32_1 = arith.constant 0 : i32
    return %c0_i32, %arg0, %c0_i32_0 : i32, i32, i32
  }
  func.func @transform_2(%arg0: i32) -> (i32, i32) {
    %c0_i32 = arith.constant 0 : i32
    %c0_i32_0 = arith.constant 0 : i32
    %c0_i32_1 = arith.constant 0 : i32
    return %c0_i32, %c0_i32_0 : i32, i32
  }
  func.func @transform_3(%arg0: i32) -> (i32, i32) {
    %c0_i32 = arith.constant 0 : i32
    %c0_i32_0 = arith.constant 0 : i32
    %c0_i32_1 = arith.constant 0 : i32
    return %c0_i32, %c0_i32_0 : i32, i32
  }
  func.func @transform_4(%arg0: i32) -> (i32, i32) {
    %c0_i32 = arith.constant 0 : i32
    %c0_i32_0 = arith.constant 0 : i32
    %c0_i32_1 = arith.constant 0 : i32
    return %c0_i32, %c0_i32_0 : i32, i32
  }
  func.func @transform_5(%arg0: i32) -> (i32, i32) {
    %c0_i32 = arith.constant 0 : i32
    %c0_i32_0 = arith.constant 0 : i32
    %c0_i32_1 = arith.constant 0 : i32
    return %c0_i32, %c0_i32_0 : i32, i32
  }
  func.func @transform_6(%arg0: i32) -> (i32, i32) {
    %c0_i32 = arith.constant 0 : i32
    %c0_i32_0 = arith.constant 0 : i32
    %c0_i32_1 = arith.constant 0 : i32
    return %c0_i32, %c0_i32_0 : i32, i32
  }
  func.func @transform_7(%arg0: i32) -> (i32, i32) {
    %c0_i32 = arith.constant 0 : i32
    %c0_i32_0 = arith.constant 0 : i32
    %c0_i32_1 = arith.constant 0 : i32
    return %c0_i32, %c0_i32_0 : i32, i32
  }
  func.func @transform_8(%arg0: i32) -> (i32, i32) {
    %c0_i32 = arith.constant 0 : i32
    %c0_i32_0 = arith.constant 0 : i32
    %c0_i32_1 = arith.constant 0 : i32
    return %c0_i32, %c0_i32_0 : i32, i32
  }
  func.func @transform_9(%arg0: i32) -> (i32, i32) {
    %c0_i32 = arith.constant 0 : i32
    %c0_i32_0 = arith.constant 0 : i32
    %c0_i32_1 = arith.constant 0 : i32
    return %c0_i32, %c0_i32_0 : i32, i32
  }
  func.func @transform_10(%arg0: i32) -> (i32, i32) {
    %c0_i32 = arith.constant 0 : i32
    %c0_i32_0 = arith.constant 0 : i32
    %c0_i32_1 = arith.constant 0 : i32
    return %c0_i32, %c0_i32_0 : i32, i32
  }
  func.func @transform_11(%arg0: i32) -> (i32, i32) {
    %c0_i32 = arith.constant 0 : i32
    %c0_i32_0 = arith.constant 0 : i32
    %c0_i32_1 = arith.constant 0 : i32
    return %c0_i32, %c0_i32_0 : i32, i32
  }
  func.func @transform_12(%arg0: i32) -> (i32, i32) {
    %c0_i32 = arith.constant 0 : i32
    %c0_i32_0 = arith.constant 0 : i32
    %c0_i32_1 = arith.constant 0 : i32
    return %c0_i32, %c0_i32_0 : i32, i32
  }
  func.func @transform_13(%arg0: i32) -> (i32, i32) {
    %c0_i32 = arith.constant 0 : i32
    %c0_i32_0 = arith.constant 0 : i32
    %c0_i32_1 = arith.constant 0 : i32
    return %c0_i32, %c0_i32_0 : i32, i32
  }
  func.func @transform_14(%arg0: i32) -> (i32, i32) {
    %c0_i32 = arith.constant 0 : i32
    %c0_i32_0 = arith.constant 0 : i32
    %c0_i32_1 = arith.constant 0 : i32
    return %c0_i32, %c0_i32_0 : i32, i32
  }
  func.func @transform_15(%arg0: i32) -> (i32, i32) {
    %c0_i32 = arith.constant 0 : i32
    %c0_i32_0 = arith.constant 0 : i32
    %c0_i32_1 = arith.constant 0 : i32
    return %c0_i32, %c0_i32_0 : i32, i32
  }
  func.func @transform_16(%arg0: i32) -> (i32, i32) {
    %c0_i32 = arith.constant 0 : i32
    %c0_i32_0 = arith.constant 0 : i32
    %c0_i32_1 = arith.constant 0 : i32
    return %c0_i32, %c0_i32_0 : i32, i32
  }
  func.func @transform_17(%arg0: i32) -> (i32, i32) {
    %c0_i32 = arith.constant 0 : i32
    %c0_i32_0 = arith.constant 0 : i32
    %c0_i32_1 = arith.constant 0 : i32
    return %c0_i32, %c0_i32_0 : i32, i32
  }
  func.func @transform_18(%arg0: i32) -> (i32, i32, i32) {
    %c0_i32 = arith.constant 0 : i32
    %c0_i32_0 = arith.constant 0 : i32
    %c0_i32_1 = arith.constant 0 : i32
    return %c0_i32, %arg0, %c0_i32_0 : i32, i32, i32
  }
}

module attributes {stable_mosaic.version = 11 : i64} {
  func.func @_encoder_layer_kernel(%arg0: i32, %arg1: memref<8x2x32xf32, #tpu.memory_space<vmem>>, %arg2: memref<8x2x32xf32, #tpu.memory_space<vmem>>, %arg3: memref<32x32xf32, #tpu.memory_space<vmem>>, %arg4: memref<32x32xf32, #tpu.memory_space<vmem>>, %arg5: memref<32x32xf32, #tpu.memory_space<vmem>>, %arg6: memref<1x32xf32, #tpu.memory_space<vmem>>, %arg7: memref<1x32xf32, #tpu.memory_space<vmem>>, %arg8: memref<1x32xf32, #tpu.memory_space<vmem>>, %arg9: memref<32x32xf32, #tpu.memory_space<vmem>>, %arg10: memref<1x32xf32, #tpu.memory_space<vmem>>, %arg11: memref<1x32xf32, #tpu.memory_space<vmem>>, %arg12: memref<1x32xf32, #tpu.memory_space<vmem>>, %arg13: memref<32x64xf32, #tpu.memory_space<vmem>>, %arg14: memref<1x64xf32, #tpu.memory_space<vmem>>, %arg15: memref<64x32xf32, #tpu.memory_space<vmem>>, %arg16: memref<1x32xf32, #tpu.memory_space<vmem>>, %arg17: memref<1x32xf32, #tpu.memory_space<vmem>>, %arg18: memref<1x32xf32, #tpu.memory_space<vmem>>, %arg19: memref<8x2x32xf32, #tpu.memory_space<vmem>>) attributes {dimension_semantics = [#tpu.dimension_semantics<parallel>], iteration_bounds = array<i64: 1>, scalar_prefetch = 0 : i64, scratch_operands = 0 : i64, tpu.core_type = #tpu.core_type<tc>, window_params = [{transform_indices = @transform_0, window_bounds = array<i64: 8, 2, 32>}, {transform_indices = @transform_1, window_bounds = array<i64: 8, 2, 32>}, {pipeline_mode = #tpu.pipeline_mode<synchronous>, transform_indices = @transform_2, window_bounds = array<i64: 32, 32>}, {pipeline_mode = #tpu.pipeline_mode<synchronous>, transform_indices = @transform_3, window_bounds = array<i64: 32, 32>}, {pipeline_mode = #tpu.pipeline_mode<synchronous>, transform_indices = @transform_4, window_bounds = array<i64: 32, 32>}, {pipeline_mode = #tpu.pipeline_mode<synchronous>, transform_indices = @transform_5, window_bounds = array<i64: 1, 32>}, {pipeline_mode = #tpu.pipeline_mode<synchronous>, transform_indices = @transform_6, window_bounds = array<i64: 1, 32>}, {pipeline_mode = #tpu.pipeline_mode<synchronous>, transform_indices = @transform_7, window_bounds = array<i64: 1, 32>}, {pipeline_mode = #tpu.pipeline_mode<synchronous>, transform_indices = @transform_8, window_bounds = array<i64: 32, 32>}, {pipeline_mode = #tpu.pipeline_mode<synchronous>, transform_indices = @transform_9, window_bounds = array<i64: 1, 32>}, {pipeline_mode = #tpu.pipeline_mode<synchronous>, transform_indices = @transform_10, window_bounds = array<i64: 1, 32>}, {pipeline_mode = #tpu.pipeline_mode<synchronous>, transform_indices = @transform_11, window_bounds = array<i64: 1, 32>}, {pipeline_mode = #tpu.pipeline_mode<synchronous>, transform_indices = @transform_12, window_bounds = array<i64: 32, 64>}, {pipeline_mode = #tpu.pipeline_mode<synchronous>, transform_indices = @transform_13, window_bounds = array<i64: 1, 64>}, {pipeline_mode = #tpu.pipeline_mode<synchronous>, transform_indices = @transform_14, window_bounds = array<i64: 64, 32>}, {pipeline_mode = #tpu.pipeline_mode<synchronous>, transform_indices = @transform_15, window_bounds = array<i64: 1, 32>}, {pipeline_mode = #tpu.pipeline_mode<synchronous>, transform_indices = @transform_16, window_bounds = array<i64: 1, 32>}, {pipeline_mode = #tpu.pipeline_mode<synchronous>, transform_indices = @transform_17, window_bounds = array<i64: 1, 32>}, {transform_indices = @transform_18, window_bounds = array<i64: 8, 2, 32>}]} {
    %c0 = arith.constant 0 : index
    %c0_0 = arith.constant 0 : index
    %c0_1 = arith.constant 0 : index
    %0 = vector.load %arg1[%c0, %c0_0, %c0_1] : memref<8x2x32xf32, #tpu.memory_space<vmem>>, vector<8x2x32xf32>
    %c0_2 = arith.constant 0 : index
    %c0_3 = arith.constant 0 : index
    %c0_4 = arith.constant 0 : index
    %1 = vector.load %arg2[%c0_2, %c0_3, %c0_4] : memref<8x2x32xf32, #tpu.memory_space<vmem>>, vector<8x2x32xf32>
    %2 = arith.addf %0, %1 : vector<8x2x32xf32>
    %3 = tpu.transpose %0, [1, 0, 2] : vector<8x2x32xf32> -> vector<2x8x32xf32>
    %4 = vector.shape_cast %3 : vector<2x8x32xf32> to vector<16x32xf32>
    %5 = tpu.transpose %2, [1, 0, 2] : vector<8x2x32xf32> -> vector<2x8x32xf32>
    %6 = vector.shape_cast %5 : vector<2x8x32xf32> to vector<16x32xf32>
    %c0_5 = arith.constant 0 : index
    %c0_6 = arith.constant 0 : index
    %7 = vector.load %arg3[%c0_5, %c0_6] : memref<32x32xf32, #tpu.memory_space<vmem>>, vector<32x32xf32>
    %cst = arith.constant dense<0.000000e+00> : vector<16x32xf32>
    %8 = tpu.matmul %6, %7, %cst {dimension_numbers = #tpu.dot_dimension_numbers<[1], [0], [0], [1], [0, 0, 1, 1], [], []>} : vector<16x32xf32>, vector<32x32xf32>, vector<16x32xf32> -> vector<16x32xf32>
    %c0_7 = arith.constant 0 : index
    %c0_8 = arith.constant 0 : index
    %9 = vector.load %arg6[%c0_7, %c0_8] : memref<1x32xf32, #tpu.memory_space<vmem>>, vector<1x32xf32>
    %10 = vector.broadcast %9 : vector<1x32xf32> to vector<16x32xf32>
    %11 = arith.addf %8, %10 : vector<16x32xf32>
    %c0_9 = arith.constant 0 : index
    %c0_10 = arith.constant 0 : index
    %12 = vector.load %arg4[%c0_9, %c0_10] : memref<32x32xf32, #tpu.memory_space<vmem>>, vector<32x32xf32>
    %cst_11 = arith.constant dense<0.000000e+00> : vector<16x32xf32>
    %13 = tpu.matmul %6, %12, %cst_11 {dimension_numbers = #tpu.dot_dimension_numbers<[1], [0], [0], [1], [0, 0, 1, 1], [], []>} : vector<16x32xf32>, vector<32x32xf32>, vector<16x32xf32> -> vector<16x32xf32>
    %c0_12 = arith.constant 0 : index
    %c0_13 = arith.constant 0 : index
    %14 = vector.load %arg7[%c0_12, %c0_13] : memref<1x32xf32, #tpu.memory_space<vmem>>, vector<1x32xf32>
    %15 = vector.broadcast %14 : vector<1x32xf32> to vector<16x32xf32>
    %16 = arith.addf %13, %15 : vector<16x32xf32>
    %c0_14 = arith.constant 0 : index
    %c0_15 = arith.constant 0 : index
    %17 = vector.load %arg5[%c0_14, %c0_15] : memref<32x32xf32, #tpu.memory_space<vmem>>, vector<32x32xf32>
    %cst_16 = arith.constant dense<0.000000e+00> : vector<16x32xf32>
    %18 = tpu.matmul %4, %17, %cst_16 {dimension_numbers = #tpu.dot_dimension_numbers<[1], [0], [0], [1], [0, 0, 1, 1], [], []>} : vector<16x32xf32>, vector<32x32xf32>, vector<16x32xf32> -> vector<16x32xf32>
    %c0_17 = arith.constant 0 : index
    %c0_18 = arith.constant 0 : index
    %19 = vector.load %arg8[%c0_17, %c0_18] : memref<1x32xf32, #tpu.memory_space<vmem>>, vector<1x32xf32>
    %20 = vector.broadcast %19 : vector<1x32xf32> to vector<16x32xf32>
    %21 = arith.addf %18, %20 : vector<16x32xf32>
    %22 = vector.extract_strided_slice %11 {offsets = [0, 0], sizes = [16, 8], strides = [1, 1]} : vector<16x32xf32> to vector<16x8xf32>
    %23 = vector.extract_strided_slice %11 {offsets = [0, 8], sizes = [16, 8], strides = [1, 1]} : vector<16x32xf32> to vector<16x8xf32>
    %24 = vector.extract_strided_slice %11 {offsets = [0, 16], sizes = [16, 8], strides = [1, 1]} : vector<16x32xf32> to vector<16x8xf32>
    %25 = vector.extract_strided_slice %11 {offsets = [0, 24], sizes = [16, 8], strides = [1, 1]} : vector<16x32xf32> to vector<16x8xf32>
    %26 = vector.shape_cast %22 : vector<16x8xf32> to vector<1x16x8xf32>
    %27 = vector.shape_cast %23 : vector<16x8xf32> to vector<1x16x8xf32>
    %28 = vector.shape_cast %24 : vector<16x8xf32> to vector<1x16x8xf32>
    %29 = vector.shape_cast %25 : vector<16x8xf32> to vector<1x16x8xf32>
    %30 = tpu.concatenate %26, %27, %28, %29 in 0 : vector<1x16x8xf32>, vector<1x16x8xf32>, vector<1x16x8xf32>, vector<1x16x8xf32> -> vector<4x16x8xf32>
    %31 = vector.shape_cast %30 : vector<4x16x8xf32> to vector<8x8x8xf32>
    %32 = vector.extract_strided_slice %16 {offsets = [0, 0], sizes = [16, 8], strides = [1, 1]} : vector<16x32xf32> to vector<16x8xf32>
    %33 = vector.extract_strided_slice %16 {offsets = [0, 8], sizes = [16, 8], strides = [1, 1]} : vector<16x32xf32> to vector<16x8xf32>
    %34 = vector.extract_strided_slice %16 {offsets = [0, 16], sizes = [16, 8], strides = [1, 1]} : vector<16x32xf32> to vector<16x8xf32>
    %35 = vector.extract_strided_slice %16 {offsets = [0, 24], sizes = [16, 8], strides = [1, 1]} : vector<16x32xf32> to vector<16x8xf32>
    %36 = vector.shape_cast %32 : vector<16x8xf32> to vector<1x16x8xf32>
    %37 = vector.shape_cast %33 : vector<16x8xf32> to vector<1x16x8xf32>
    %38 = vector.shape_cast %34 : vector<16x8xf32> to vector<1x16x8xf32>
    %39 = vector.shape_cast %35 : vector<16x8xf32> to vector<1x16x8xf32>
    %40 = tpu.concatenate %36, %37, %38, %39 in 0 : vector<1x16x8xf32>, vector<1x16x8xf32>, vector<1x16x8xf32>, vector<1x16x8xf32> -> vector<4x16x8xf32>
    %41 = vector.shape_cast %40 : vector<4x16x8xf32> to vector<8x8x8xf32>
    %42 = vector.extract_strided_slice %21 {offsets = [0, 0], sizes = [16, 8], strides = [1, 1]} : vector<16x32xf32> to vector<16x8xf32>
    %43 = vector.extract_strided_slice %21 {offsets = [0, 8], sizes = [16, 8], strides = [1, 1]} : vector<16x32xf32> to vector<16x8xf32>
    %44 = vector.extract_strided_slice %21 {offsets = [0, 16], sizes = [16, 8], strides = [1, 1]} : vector<16x32xf32> to vector<16x8xf32>
    %45 = vector.extract_strided_slice %21 {offsets = [0, 24], sizes = [16, 8], strides = [1, 1]} : vector<16x32xf32> to vector<16x8xf32>
    %46 = vector.shape_cast %42 : vector<16x8xf32> to vector<1x16x8xf32>
    %47 = vector.shape_cast %43 : vector<16x8xf32> to vector<1x16x8xf32>
    %48 = vector.shape_cast %44 : vector<16x8xf32> to vector<1x16x8xf32>
    %49 = vector.shape_cast %45 : vector<16x8xf32> to vector<1x16x8xf32>
    %50 = tpu.concatenate %46, %47, %48, %49 in 0 : vector<1x16x8xf32>, vector<1x16x8xf32>, vector<1x16x8xf32>, vector<1x16x8xf32> -> vector<4x16x8xf32>
    %51 = vector.shape_cast %50 : vector<4x16x8xf32> to vector<8x8x8xf32>
    "tpu.trace_start"() <{level = 10 : i32, message = "bqd,bkd->bqk"}> : () -> ()
    %cst_19 = arith.constant dense<0.000000e+00> : vector<8x8x8xf32>
    %52 = tpu.matmul %31, %41, %cst_19 {dimension_numbers = #tpu.dot_dimension_numbers<[2], [2], [1], [1], [0, 0, 0, 1, 1, 1], [0], [0]>} : vector<8x8x8xf32>, vector<8x8x8xf32>, vector<8x8x8xf32> -> vector<8x8x8xf32>
    "tpu.trace_stop"() : () -> ()
    %cst_20 = arith.constant dense<0xFF800000> : vector<8x8xf32>
    %53 = vector.multi_reduction <maximumf>, %52, %cst_20 [2] : vector<8x8x8xf32> to vector<8x8xf32>
    %54 = vector.shape_cast %53 : vector<8x8xf32> to vector<8x8x1xf32>
    %55 = vector.broadcast %54 : vector<8x8x1xf32> to vector<8x8x8xf32>
    %56 = arith.subf %52, %55 : vector<8x8x8xf32>
    %57 = math.exp %56 : vector<8x8x8xf32>
    %cst_21 = arith.constant dense<0.000000e+00> : vector<8x8xf32>
    %58 = vector.multi_reduction <add>, %57, %cst_21 [2] : vector<8x8x8xf32> to vector<8x8xf32>
    %59 = vector.shape_cast %58 : vector<8x8xf32> to vector<8x8x1xf32>
    %60 = tpu.reciprocal %59 : vector<8x8x1xf32> -> vector<8x8x1xf32>
    %61 = vector.broadcast %60 : vector<8x8x1xf32> to vector<8x8x8xf32>
    %62 = arith.mulf %57, %61 : vector<8x8x8xf32>
    "tpu.trace_start"() <{level = 10 : i32, message = "bqk,bkd->bqd"}> : () -> ()
    %cst_22 = arith.constant dense<0.000000e+00> : vector<8x8x8xf32>
    %63 = tpu.matmul %62, %51, %cst_22 {dimension_numbers = #tpu.dot_dimension_numbers<[2], [1], [1], [2], [0, 0, 0, 1, 1, 2], [0], [0]>} : vector<8x8x8xf32>, vector<8x8x8xf32>, vector<8x8x8xf32> -> vector<8x8x8xf32>
    "tpu.trace_stop"() : () -> ()
    %64 = vector.shape_cast %63 : vector<8x8x8xf32> to vector<4x16x8xf32>
    %c0_23 = arith.constant 0 : index
    %c0_24 = arith.constant 0 : index
    %65 = vector.load %arg9[%c0_23, %c0_24] : memref<32x32xf32, #tpu.memory_space<vmem>>, vector<32x32xf32>
    %66 = vector.shape_cast %65 : vector<32x32xf32> to vector<4x8x32xf32>
    %67 = vector.extract_strided_slice %64 {offsets = [0, 0, 0], sizes = [1, 16, 8], strides = [1, 1, 1]} : vector<4x16x8xf32> to vector<1x16x8xf32>
    %68 = vector.shape_cast %67 : vector<1x16x8xf32> to vector<16x8xf32>
    %69 = vector.extract_strided_slice %66 {offsets = [0, 0, 0], sizes = [1, 8, 32], strides = [1, 1, 1]} : vector<4x8x32xf32> to vector<1x8x32xf32>
    %70 = vector.shape_cast %69 : vector<1x8x32xf32> to vector<8x32xf32>
    %cst_25 = arith.constant dense<0.000000e+00> : vector<16x32xf32>
    %71 = tpu.matmul %68, %70, %cst_25 {dimension_numbers = #tpu.dot_dimension_numbers<[1], [0], [0], [1], [0, 0, 1, 1], [], []>} : vector<16x8xf32>, vector<8x32xf32>, vector<16x32xf32> -> vector<16x32xf32>
    %72 = vector.extract_strided_slice %64 {offsets = [1, 0, 0], sizes = [1, 16, 8], strides = [1, 1, 1]} : vector<4x16x8xf32> to vector<1x16x8xf32>
    %73 = vector.shape_cast %72 : vector<1x16x8xf32> to vector<16x8xf32>
    %74 = vector.extract_strided_slice %66 {offsets = [1, 0, 0], sizes = [1, 8, 32], strides = [1, 1, 1]} : vector<4x8x32xf32> to vector<1x8x32xf32>
    %75 = vector.shape_cast %74 : vector<1x8x32xf32> to vector<8x32xf32>
    %cst_26 = arith.constant dense<0.000000e+00> : vector<16x32xf32>
    %76 = tpu.matmul %73, %75, %cst_26 {dimension_numbers = #tpu.dot_dimension_numbers<[1], [0], [0], [1], [0, 0, 1, 1], [], []>} : vector<16x8xf32>, vector<8x32xf32>, vector<16x32xf32> -> vector<16x32xf32>
    %77 = arith.addf %71, %76 : vector<16x32xf32>
    %78 = vector.extract_strided_slice %64 {offsets = [2, 0, 0], sizes = [1, 16, 8], strides = [1, 1, 1]} : vector<4x16x8xf32> to vector<1x16x8xf32>
    %79 = vector.shape_cast %78 : vector<1x16x8xf32> to vector<16x8xf32>
    %80 = vector.extract_strided_slice %66 {offsets = [2, 0, 0], sizes = [1, 8, 32], strides = [1, 1, 1]} : vector<4x8x32xf32> to vector<1x8x32xf32>
    %81 = vector.shape_cast %80 : vector<1x8x32xf32> to vector<8x32xf32>
    %cst_27 = arith.constant dense<0.000000e+00> : vector<16x32xf32>
    %82 = tpu.matmul %79, %81, %cst_27 {dimension_numbers = #tpu.dot_dimension_numbers<[1], [0], [0], [1], [0, 0, 1, 1], [], []>} : vector<16x8xf32>, vector<8x32xf32>, vector<16x32xf32> -> vector<16x32xf32>
    %83 = arith.addf %77, %82 : vector<16x32xf32>
    %84 = vector.extract_strided_slice %64 {offsets = [3, 0, 0], sizes = [1, 16, 8], strides = [1, 1, 1]} : vector<4x16x8xf32> to vector<1x16x8xf32>
    %85 = vector.shape_cast %84 : vector<1x16x8xf32> to vector<16x8xf32>
    %86 = vector.extract_strided_slice %66 {offsets = [3, 0, 0], sizes = [1, 8, 32], strides = [1, 1, 1]} : vector<4x8x32xf32> to vector<1x8x32xf32>
    %87 = vector.shape_cast %86 : vector<1x8x32xf32> to vector<8x32xf32>
    %cst_28 = arith.constant dense<0.000000e+00> : vector<16x32xf32>
    %88 = tpu.matmul %85, %87, %cst_28 {dimension_numbers = #tpu.dot_dimension_numbers<[1], [0], [0], [1], [0, 0, 1, 1], [], []>} : vector<16x8xf32>, vector<8x32xf32>, vector<16x32xf32> -> vector<16x32xf32>
    %89 = arith.addf %83, %88 : vector<16x32xf32>
    %c0_29 = arith.constant 0 : index
    %c0_30 = arith.constant 0 : index
    %90 = vector.load %arg10[%c0_29, %c0_30] : memref<1x32xf32, #tpu.memory_space<vmem>>, vector<1x32xf32>
    %91 = vector.broadcast %90 : vector<1x32xf32> to vector<16x32xf32>
    %92 = arith.addf %89, %91 : vector<16x32xf32>
    %93 = arith.addf %4, %92 : vector<16x32xf32>
    %cst_31 = arith.constant dense<0.000000e+00> : vector<16xf32>
    %94 = vector.multi_reduction <add>, %93, %cst_31 [1] : vector<16x32xf32> to vector<16xf32>
    %95 = vector.shape_cast %94 : vector<16xf32> to vector<16x1xf32>
    %cst_32 = arith.constant 3.200000e+01 : f32
    %96 = vector.broadcast %cst_32 : f32 to vector<16x1xf32>
    %97 = arith.divf %95, %96 : vector<16x1xf32>
    %98 = vector.broadcast %97 : vector<16x1xf32> to vector<16x32xf32>
    %99 = arith.subf %93, %98 : vector<16x32xf32>
    %100 = arith.mulf %99, %99 : vector<16x32xf32>
    %cst_33 = arith.constant dense<0.000000e+00> : vector<16xf32>
    %101 = vector.multi_reduction <add>, %100, %cst_33 [1] : vector<16x32xf32> to vector<16xf32>
    %102 = vector.shape_cast %101 : vector<16xf32> to vector<16x1xf32>
    %cst_34 = arith.constant 3.200000e+01 : f32
    %103 = vector.broadcast %cst_34 : f32 to vector<16x1xf32>
    %104 = arith.divf %102, %103 : vector<16x1xf32>
    %105 = vector.broadcast %97 : vector<16x1xf32> to vector<16x32xf32>
    %106 = arith.subf %93, %105 : vector<16x32xf32>
    %cst_35 = arith.constant 9.99999974E-6 : f32
    %107 = vector.broadcast %cst_35 : f32 to vector<16x1xf32>
    %108 = arith.addf %104, %107 : vector<16x1xf32>
    %109 = math.rsqrt %108 : vector<16x1xf32>
    %110 = vector.broadcast %109 : vector<16x1xf32> to vector<16x32xf32>
    %111 = arith.mulf %106, %110 : vector<16x32xf32>
    %c0_36 = arith.constant 0 : index
    %c0_37 = arith.constant 0 : index
    %112 = vector.load %arg11[%c0_36, %c0_37] : memref<1x32xf32, #tpu.memory_space<vmem>>, vector<1x32xf32>
    %113 = vector.broadcast %112 : vector<1x32xf32> to vector<16x32xf32>
    %114 = arith.mulf %111, %113 : vector<16x32xf32>
    %c0_38 = arith.constant 0 : index
    %c0_39 = arith.constant 0 : index
    %115 = vector.load %arg12[%c0_38, %c0_39] : memref<1x32xf32, #tpu.memory_space<vmem>>, vector<1x32xf32>
    %116 = vector.broadcast %115 : vector<1x32xf32> to vector<16x32xf32>
    %117 = arith.addf %114, %116 : vector<16x32xf32>
    %c0_40 = arith.constant 0 : index
    %c0_41 = arith.constant 0 : index
    %118 = vector.load %arg13[%c0_40, %c0_41] : memref<32x64xf32, #tpu.memory_space<vmem>>, vector<32x64xf32>
    %cst_42 = arith.constant dense<0.000000e+00> : vector<16x64xf32>
    %119 = tpu.matmul %117, %118, %cst_42 {dimension_numbers = #tpu.dot_dimension_numbers<[1], [0], [0], [1], [0, 0, 1, 1], [], []>} : vector<16x32xf32>, vector<32x64xf32>, vector<16x64xf32> -> vector<16x64xf32>
    %c0_43 = arith.constant 0 : index
    %c0_44 = arith.constant 0 : index
    %120 = vector.load %arg14[%c0_43, %c0_44] : memref<1x64xf32, #tpu.memory_space<vmem>>, vector<1x64xf32>
    %121 = vector.broadcast %120 : vector<1x64xf32> to vector<16x64xf32>
    %122 = arith.addf %119, %121 : vector<16x64xf32>
    %cst_45 = arith.constant 0.000000e+00 : f32
    %123 = vector.broadcast %cst_45 : f32 to vector<16x64xf32>
    %124 = arith.maximumf %122, %123 : vector<16x64xf32>
    %c0_46 = arith.constant 0 : index
    %c0_47 = arith.constant 0 : index
    %125 = vector.load %arg15[%c0_46, %c0_47] : memref<64x32xf32, #tpu.memory_space<vmem>>, vector<64x32xf32>
    %cst_48 = arith.constant dense<0.000000e+00> : vector<16x32xf32>
    %126 = tpu.matmul %124, %125, %cst_48 {dimension_numbers = #tpu.dot_dimension_numbers<[1], [0], [0], [1], [0, 0, 1, 1], [], []>} : vector<16x64xf32>, vector<64x32xf32>, vector<16x32xf32> -> vector<16x32xf32>
    %c0_49 = arith.constant 0 : index
    %c0_50 = arith.constant 0 : index
    %127 = vector.load %arg16[%c0_49, %c0_50] : memref<1x32xf32, #tpu.memory_space<vmem>>, vector<1x32xf32>
    %128 = vector.broadcast %127 : vector<1x32xf32> to vector<16x32xf32>
    %129 = arith.addf %126, %128 : vector<16x32xf32>
    %130 = arith.addf %117, %129 : vector<16x32xf32>
    %cst_51 = arith.constant dense<0.000000e+00> : vector<16xf32>
    %131 = vector.multi_reduction <add>, %130, %cst_51 [1] : vector<16x32xf32> to vector<16xf32>
    %132 = vector.shape_cast %131 : vector<16xf32> to vector<16x1xf32>
    %cst_52 = arith.constant 3.200000e+01 : f32
    %133 = vector.broadcast %cst_52 : f32 to vector<16x1xf32>
    %134 = arith.divf %132, %133 : vector<16x1xf32>
    %135 = vector.broadcast %134 : vector<16x1xf32> to vector<16x32xf32>
    %136 = arith.subf %130, %135 : vector<16x32xf32>
    %137 = arith.mulf %136, %136 : vector<16x32xf32>
    %cst_53 = arith.constant dense<0.000000e+00> : vector<16xf32>
    %138 = vector.multi_reduction <add>, %137, %cst_53 [1] : vector<16x32xf32> to vector<16xf32>
    %139 = vector.shape_cast %138 : vector<16xf32> to vector<16x1xf32>
    %cst_54 = arith.constant 3.200000e+01 : f32
    %140 = vector.broadcast %cst_54 : f32 to vector<16x1xf32>
    %141 = arith.divf %139, %140 : vector<16x1xf32>
    %142 = vector.broadcast %134 : vector<16x1xf32> to vector<16x32xf32>
    %143 = arith.subf %130, %142 : vector<16x32xf32>
    %cst_55 = arith.constant 9.99999974E-6 : f32
    %144 = vector.broadcast %cst_55 : f32 to vector<16x1xf32>
    %145 = arith.addf %141, %144 : vector<16x1xf32>
    %146 = math.rsqrt %145 : vector<16x1xf32>
    %147 = vector.broadcast %146 : vector<16x1xf32> to vector<16x32xf32>
    %148 = arith.mulf %143, %147 : vector<16x32xf32>
    %c0_56 = arith.constant 0 : index
    %c0_57 = arith.constant 0 : index
    %149 = vector.load %arg17[%c0_56, %c0_57] : memref<1x32xf32, #tpu.memory_space<vmem>>, vector<1x32xf32>
    %150 = vector.broadcast %149 : vector<1x32xf32> to vector<16x32xf32>
    %151 = arith.mulf %148, %150 : vector<16x32xf32>
    %c0_58 = arith.constant 0 : index
    %c0_59 = arith.constant 0 : index
    %152 = vector.load %arg18[%c0_58, %c0_59] : memref<1x32xf32, #tpu.memory_space<vmem>>, vector<1x32xf32>
    %153 = vector.broadcast %152 : vector<1x32xf32> to vector<16x32xf32>
    %154 = arith.addf %151, %153 : vector<16x32xf32>
    %155 = vector.shape_cast %154 : vector<16x32xf32> to vector<2x8x32xf32>
    %156 = tpu.transpose %155, [1, 0, 2] : vector<2x8x32xf32> -> vector<8x2x32xf32>
    %c0_60 = arith.constant 0 : index
    %c0_61 = arith.constant 0 : index
    %c0_62 = arith.constant 0 : index
    %157 = vector.load %arg19[%c0_60, %c0_61, %c0_62] : memref<8x2x32xf32, #tpu.memory_space<vmem>>, vector<8x2x32xf32>
    tpu.vector_store %arg19[%c0_60, %c0_61, %c0_62], %156 {strides = array<i32>} : memref<8x2x32xf32, #tpu.memory_space<vmem>>, vector<8x2x32xf32>,
    return
  }
  func.func @transform_0(%arg0: i32) -> (i32, i32, i32) {
    %c0_i32 = arith.constant 0 : i32
    %c0_i32_0 = arith.constant 0 : i32
    %c0_i32_1 = arith.constant 0 : i32
    return %c0_i32, %arg0, %c0_i32_0 : i32, i32, i32
  }
  func.func @transform_1(%arg0: i32) -> (i32, i32, i32) {
    %c0_i32 = arith.constant 0 : i32
    %c0_i32_0 = arith.constant 0 : i32
    %c0_i32_1 = arith.constant 0 : i32
    return %c0_i32, %arg0, %c0_i32_0 : i32, i32, i32
  }
  func.func @transform_2(%arg0: i32) -> (i32, i32) {
    %c0_i32 = arith.constant 0 : i32
    %c0_i32_0 = arith.constant 0 : i32
    %c0_i32_1 = arith.constant 0 : i32
    return %c0_i32, %c0_i32_0 : i32, i32
  }
  func.func @transform_3(%arg0: i32) -> (i32, i32) {
    %c0_i32 = arith.constant 0 : i32
    %c0_i32_0 = arith.constant 0 : i32
    %c0_i32_1 = arith.constant 0 : i32
    return %c0_i32, %c0_i32_0 : i32, i32
  }
  func.func @transform_4(%arg0: i32) -> (i32, i32) {
    %c0_i32 = arith.constant 0 : i32
    %c0_i32_0 = arith.constant 0 : i32
    %c0_i32_1 = arith.constant 0 : i32
    return %c0_i32, %c0_i32_0 : i32, i32
  }
  func.func @transform_5(%arg0: i32) -> (i32, i32) {
    %c0_i32 = arith.constant 0 : i32
    %c0_i32_0 = arith.constant 0 : i32
    %c0_i32_1 = arith.constant 0 : i32
    return %c0_i32, %c0_i32_0 : i32, i32
  }
  func.func @transform_6(%arg0: i32) -> (i32, i32) {
    %c0_i32 = arith.constant 0 : i32
    %c0_i32_0 = arith.constant 0 : i32
    %c0_i32_1 = arith.constant 0 : i32
    return %c0_i32, %c0_i32_0 : i32, i32
  }
  func.func @transform_7(%arg0: i32) -> (i32, i32) {
    %c0_i32 = arith.constant 0 : i32
    %c0_i32_0 = arith.constant 0 : i32
    %c0_i32_1 = arith.constant 0 : i32
    return %c0_i32, %c0_i32_0 : i32, i32
  }
  func.func @transform_8(%arg0: i32) -> (i32, i32) {
    %c0_i32 = arith.constant 0 : i32
    %c0_i32_0 = arith.constant 0 : i32
    %c0_i32_1 = arith.constant 0 : i32
    return %c0_i32, %c0_i32_0 : i32, i32
  }
  func.func @transform_9(%arg0: i32) -> (i32, i32) {
    %c0_i32 = arith.constant 0 : i32
    %c0_i32_0 = arith.constant 0 : i32
    %c0_i32_1 = arith.constant 0 : i32
    return %c0_i32, %c0_i32_0 : i32, i32
  }
  func.func @transform_10(%arg0: i32) -> (i32, i32) {
    %c0_i32 = arith.constant 0 : i32
    %c0_i32_0 = arith.constant 0 : i32
    %c0_i32_1 = arith.constant 0 : i32
    return %c0_i32, %c0_i32_0 : i32, i32
  }
  func.func @transform_11(%arg0: i32) -> (i32, i32) {
    %c0_i32 = arith.constant 0 : i32
    %c0_i32_0 = arith.constant 0 : i32
    %c0_i32_1 = arith.constant 0 : i32
    return %c0_i32, %c0_i32_0 : i32, i32
  }
  func.func @transform_12(%arg0: i32) -> (i32, i32) {
    %c0_i32 = arith.constant 0 : i32
    %c0_i32_0 = arith.constant 0 : i32
    %c0_i32_1 = arith.constant 0 : i32
    return %c0_i32, %c0_i32_0 : i32, i32
  }
  func.func @transform_13(%arg0: i32) -> (i32, i32) {
    %c0_i32 = arith.constant 0 : i32
    %c0_i32_0 = arith.constant 0 : i32
    %c0_i32_1 = arith.constant 0 : i32
    return %c0_i32, %c0_i32_0 : i32, i32
  }
  func.func @transform_14(%arg0: i32) -> (i32, i32) {
    %c0_i32 = arith.constant 0 : i32
    %c0_i32_0 = arith.constant 0 : i32
    %c0_i32_1 = arith.constant 0 : i32
    return %c0_i32, %c0_i32_0 : i32, i32
  }
  func.func @transform_15(%arg0: i32) -> (i32, i32) {
    %c0_i32 = arith.constant 0 : i32
    %c0_i32_0 = arith.constant 0 : i32
    %c0_i32_1 = arith.constant 0 : i32
    return %c0_i32, %c0_i32_0 : i32, i32
  }
  func.func @transform_16(%arg0: i32) -> (i32, i32) {
    %c0_i32 = arith.constant 0 : i32
    %c0_i32_0 = arith.constant 0 : i32
    %c0_i32_1 = arith.constant 0 : i32
    return %c0_i32, %c0_i32_0 : i32, i32
  }
  func.func @transform_17(%arg0: i32) -> (i32, i32) {
    %c0_i32 = arith.constant 0 : i32
    %c0_i32_0 = arith.constant 0 : i32
    %c0_i32_1 = arith.constant 0 : i32
    return %c0_i32, %c0_i32_0 : i32, i32
  }
  func.func @transform_18(%arg0: i32) -> (i32, i32, i32) {
    %c0_i32 = arith.constant 0 : i32
    %c0_i32_0 = arith.constant 0 : i32
    %c0_i32_1 = arith.constant 0 : i32
    return %c0_i32, %arg0, %c0_i32_0 : i32, i32, i32
  }
}

module attributes {stable_mosaic.version = 11 : i64} {
  func.func @_encoder_layer_kernel(%arg0: i32, %arg1: memref<8x2x32xf32, #tpu.memory_space<vmem>>, %arg2: memref<8x2x32xf32, #tpu.memory_space<vmem>>, %arg3: memref<32x32xf32, #tpu.memory_space<vmem>>, %arg4: memref<32x32xf32, #tpu.memory_space<vmem>>, %arg5: memref<32x32xf32, #tpu.memory_space<vmem>>, %arg6: memref<1x32xf32, #tpu.memory_space<vmem>>, %arg7: memref<1x32xf32, #tpu.memory_space<vmem>>, %arg8: memref<1x32xf32, #tpu.memory_space<vmem>>, %arg9: memref<32x32xf32, #tpu.memory_space<vmem>>, %arg10: memref<1x32xf32, #tpu.memory_space<vmem>>, %arg11: memref<1x32xf32, #tpu.memory_space<vmem>>, %arg12: memref<1x32xf32, #tpu.memory_space<vmem>>, %arg13: memref<32x64xf32, #tpu.memory_space<vmem>>, %arg14: memref<1x64xf32, #tpu.memory_space<vmem>>, %arg15: memref<64x32xf32, #tpu.memory_space<vmem>>, %arg16: memref<1x32xf32, #tpu.memory_space<vmem>>, %arg17: memref<1x32xf32, #tpu.memory_space<vmem>>, %arg18: memref<1x32xf32, #tpu.memory_space<vmem>>, %arg19: memref<8x2x32xf32, #tpu.memory_space<vmem>>) attributes {dimension_semantics = [#tpu.dimension_semantics<parallel>], iteration_bounds = array<i64: 1>, scalar_prefetch = 0 : i64, scratch_operands = 0 : i64, tpu.core_type = #tpu.core_type<tc>, window_params = [{transform_indices = @transform_0, window_bounds = array<i64: 8, 2, 32>}, {transform_indices = @transform_1, window_bounds = array<i64: 8, 2, 32>}, {pipeline_mode = #tpu.pipeline_mode<synchronous>, transform_indices = @transform_2, window_bounds = array<i64: 32, 32>}, {pipeline_mode = #tpu.pipeline_mode<synchronous>, transform_indices = @transform_3, window_bounds = array<i64: 32, 32>}, {pipeline_mode = #tpu.pipeline_mode<synchronous>, transform_indices = @transform_4, window_bounds = array<i64: 32, 32>}, {pipeline_mode = #tpu.pipeline_mode<synchronous>, transform_indices = @transform_5, window_bounds = array<i64: 1, 32>}, {pipeline_mode = #tpu.pipeline_mode<synchronous>, transform_indices = @transform_6, window_bounds = array<i64: 1, 32>}, {pipeline_mode = #tpu.pipeline_mode<synchronous>, transform_indices = @transform_7, window_bounds = array<i64: 1, 32>}, {pipeline_mode = #tpu.pipeline_mode<synchronous>, transform_indices = @transform_8, window_bounds = array<i64: 32, 32>}, {pipeline_mode = #tpu.pipeline_mode<synchronous>, transform_indices = @transform_9, window_bounds = array<i64: 1, 32>}, {pipeline_mode = #tpu.pipeline_mode<synchronous>, transform_indices = @transform_10, window_bounds = array<i64: 1, 32>}, {pipeline_mode = #tpu.pipeline_mode<synchronous>, transform_indices = @transform_11, window_bounds = array<i64: 1, 32>}, {pipeline_mode = #tpu.pipeline_mode<synchronous>, transform_indices = @transform_12, window_bounds = array<i64: 32, 64>}, {pipeline_mode = #tpu.pipeline_mode<synchronous>, transform_indices = @transform_13, window_bounds = array<i64: 1, 64>}, {pipeline_mode = #tpu.pipeline_mode<synchronous>, transform_indices = @transform_14, window_bounds = array<i64: 64, 32>}, {pipeline_mode = #tpu.pipeline_mode<synchronous>, transform_indices = @transform_15, window_bounds = array<i64: 1, 32>}, {pipeline_mode = #tpu.pipeline_mode<synchronous>, transform_indices = @transform_16, window_bounds = array<i64: 1, 32>}, {pipeline_mode = #tpu.pipeline_mode<synchronous>, transform_indices = @transform_17, window_bounds = array<i64: 1, 32>}, {transform_indices = @transform_18, window_bounds = array<i64: 8, 2, 32>}]} {
    %c0 = arith.constant 0 : index
    %c0_0 = arith.constant 0 : index
    %c0_1 = arith.constant 0 : index
    %0 = vector.load %arg1[%c0, %c0_0, %c0_1] : memref<8x2x32xf32, #tpu.memory_space<vmem>>, vector<8x2x32xf32>
    %c0_2 = arith.constant 0 : index
    %c0_3 = arith.constant 0 : index
    %c0_4 = arith.constant 0 : index
    %1 = vector.load %arg2[%c0_2, %c0_3, %c0_4] : memref<8x2x32xf32, #tpu.memory_space<vmem>>, vector<8x2x32xf32>
    %2 = arith.addf %0, %1 : vector<8x2x32xf32>
    %3 = tpu.transpose %0, [1, 0, 2] : vector<8x2x32xf32> -> vector<2x8x32xf32>
    %4 = vector.shape_cast %3 : vector<2x8x32xf32> to vector<16x32xf32>
    %5 = tpu.transpose %2, [1, 0, 2] : vector<8x2x32xf32> -> vector<2x8x32xf32>
    %6 = vector.shape_cast %5 : vector<2x8x32xf32> to vector<16x32xf32>
    %c0_5 = arith.constant 0 : index
    %c0_6 = arith.constant 0 : index
    %7 = vector.load %arg3[%c0_5, %c0_6] : memref<32x32xf32, #tpu.memory_space<vmem>>, vector<32x32xf32>
    %cst = arith.constant dense<0.000000e+00> : vector<16x32xf32>
    %8 = tpu.matmul %6, %7, %cst {dimension_numbers = #tpu.dot_dimension_numbers<[1], [0], [0], [1], [0, 0, 1, 1], [], []>} : vector<16x32xf32>, vector<32x32xf32>, vector<16x32xf32> -> vector<16x32xf32>
    %c0_7 = arith.constant 0 : index
    %c0_8 = arith.constant 0 : index
    %9 = vector.load %arg6[%c0_7, %c0_8] : memref<1x32xf32, #tpu.memory_space<vmem>>, vector<1x32xf32>
    %10 = vector.broadcast %9 : vector<1x32xf32> to vector<16x32xf32>
    %11 = arith.addf %8, %10 : vector<16x32xf32>
    %c0_9 = arith.constant 0 : index
    %c0_10 = arith.constant 0 : index
    %12 = vector.load %arg4[%c0_9, %c0_10] : memref<32x32xf32, #tpu.memory_space<vmem>>, vector<32x32xf32>
    %cst_11 = arith.constant dense<0.000000e+00> : vector<16x32xf32>
    %13 = tpu.matmul %6, %12, %cst_11 {dimension_numbers = #tpu.dot_dimension_numbers<[1], [0], [0], [1], [0, 0, 1, 1], [], []>} : vector<16x32xf32>, vector<32x32xf32>, vector<16x32xf32> -> vector<16x32xf32>
    %c0_12 = arith.constant 0 : index
    %c0_13 = arith.constant 0 : index
    %14 = vector.load %arg7[%c0_12, %c0_13] : memref<1x32xf32, #tpu.memory_space<vmem>>, vector<1x32xf32>
    %15 = vector.broadcast %14 : vector<1x32xf32> to vector<16x32xf32>
    %16 = arith.addf %13, %15 : vector<16x32xf32>
    %c0_14 = arith.constant 0 : index
    %c0_15 = arith.constant 0 : index
    %17 = vector.load %arg5[%c0_14, %c0_15] : memref<32x32xf32, #tpu.memory_space<vmem>>, vector<32x32xf32>
    %cst_16 = arith.constant dense<0.000000e+00> : vector<16x32xf32>
    %18 = tpu.matmul %4, %17, %cst_16 {dimension_numbers = #tpu.dot_dimension_numbers<[1], [0], [0], [1], [0, 0, 1, 1], [], []>} : vector<16x32xf32>, vector<32x32xf32>, vector<16x32xf32> -> vector<16x32xf32>
    %c0_17 = arith.constant 0 : index
    %c0_18 = arith.constant 0 : index
    %19 = vector.load %arg8[%c0_17, %c0_18] : memref<1x32xf32, #tpu.memory_space<vmem>>, vector<1x32xf32>
    %20 = vector.broadcast %19 : vector<1x32xf32> to vector<16x32xf32>
    %21 = arith.addf %18, %20 : vector<16x32xf32>
    %22 = vector.extract_strided_slice %11 {offsets = [0, 0], sizes = [16, 8], strides = [1, 1]} : vector<16x32xf32> to vector<16x8xf32>
    %23 = vector.extract_strided_slice %11 {offsets = [0, 8], sizes = [16, 8], strides = [1, 1]} : vector<16x32xf32> to vector<16x8xf32>
    %24 = vector.extract_strided_slice %11 {offsets = [0, 16], sizes = [16, 8], strides = [1, 1]} : vector<16x32xf32> to vector<16x8xf32>
    %25 = vector.extract_strided_slice %11 {offsets = [0, 24], sizes = [16, 8], strides = [1, 1]} : vector<16x32xf32> to vector<16x8xf32>
    %26 = vector.shape_cast %22 : vector<16x8xf32> to vector<1x16x8xf32>
    %27 = vector.shape_cast %23 : vector<16x8xf32> to vector<1x16x8xf32>
    %28 = vector.shape_cast %24 : vector<16x8xf32> to vector<1x16x8xf32>
    %29 = vector.shape_cast %25 : vector<16x8xf32> to vector<1x16x8xf32>
    %30 = tpu.concatenate %26, %27, %28, %29 in 0 : vector<1x16x8xf32>, vector<1x16x8xf32>, vector<1x16x8xf32>, vector<1x16x8xf32> -> vector<4x16x8xf32>
    %31 = vector.shape_cast %30 : vector<4x16x8xf32> to vector<8x8x8xf32>
    %32 = vector.extract_strided_slice %16 {offsets = [0, 0], sizes = [16, 8], strides = [1, 1]} : vector<16x32xf32> to vector<16x8xf32>
    %33 = vector.extract_strided_slice %16 {offsets = [0, 8], sizes = [16, 8], strides = [1, 1]} : vector<16x32xf32> to vector<16x8xf32>
    %34 = vector.extract_strided_slice %16 {offsets = [0, 16], sizes = [16, 8], strides = [1, 1]} : vector<16x32xf32> to vector<16x8xf32>
    %35 = vector.extract_strided_slice %16 {offsets = [0, 24], sizes = [16, 8], strides = [1, 1]} : vector<16x32xf32> to vector<16x8xf32>
    %36 = vector.shape_cast %32 : vector<16x8xf32> to vector<1x16x8xf32>
    %37 = vector.shape_cast %33 : vector<16x8xf32> to vector<1x16x8xf32>
    %38 = vector.shape_cast %34 : vector<16x8xf32> to vector<1x16x8xf32>
    %39 = vector.shape_cast %35 : vector<16x8xf32> to vector<1x16x8xf32>
    %40 = tpu.concatenate %36, %37, %38, %39 in 0 : vector<1x16x8xf32>, vector<1x16x8xf32>, vector<1x16x8xf32>, vector<1x16x8xf32> -> vector<4x16x8xf32>
    %41 = vector.shape_cast %40 : vector<4x16x8xf32> to vector<8x8x8xf32>
    %42 = vector.extract_strided_slice %21 {offsets = [0, 0], sizes = [16, 8], strides = [1, 1]} : vector<16x32xf32> to vector<16x8xf32>
    %43 = vector.extract_strided_slice %21 {offsets = [0, 8], sizes = [16, 8], strides = [1, 1]} : vector<16x32xf32> to vector<16x8xf32>
    %44 = vector.extract_strided_slice %21 {offsets = [0, 16], sizes = [16, 8], strides = [1, 1]} : vector<16x32xf32> to vector<16x8xf32>
    %45 = vector.extract_strided_slice %21 {offsets = [0, 24], sizes = [16, 8], strides = [1, 1]} : vector<16x32xf32> to vector<16x8xf32>
    %46 = vector.shape_cast %42 : vector<16x8xf32> to vector<1x16x8xf32>
    %47 = vector.shape_cast %43 : vector<16x8xf32> to vector<1x16x8xf32>
    %48 = vector.shape_cast %44 : vector<16x8xf32> to vector<1x16x8xf32>
    %49 = vector.shape_cast %45 : vector<16x8xf32> to vector<1x16x8xf32>
    %50 = tpu.concatenate %46, %47, %48, %49 in 0 : vector<1x16x8xf32>, vector<1x16x8xf32>, vector<1x16x8xf32>, vector<1x16x8xf32> -> vector<4x16x8xf32>
    %51 = vector.shape_cast %50 : vector<4x16x8xf32> to vector<8x8x8xf32>
    "tpu.trace_start"() <{level = 10 : i32, message = "bqd,bkd->bqk"}> : () -> ()
    %cst_19 = arith.constant dense<0.000000e+00> : vector<8x8x8xf32>
    %52 = tpu.matmul %31, %41, %cst_19 {dimension_numbers = #tpu.dot_dimension_numbers<[2], [2], [1], [1], [0, 0, 0, 1, 1, 1], [0], [0]>} : vector<8x8x8xf32>, vector<8x8x8xf32>, vector<8x8x8xf32> -> vector<8x8x8xf32>
    "tpu.trace_stop"() : () -> ()
    %cst_20 = arith.constant dense<0xFF800000> : vector<8x8xf32>
    %53 = vector.multi_reduction <maximumf>, %52, %cst_20 [2] : vector<8x8x8xf32> to vector<8x8xf32>
    %54 = vector.shape_cast %53 : vector<8x8xf32> to vector<8x8x1xf32>
    %55 = vector.broadcast %54 : vector<8x8x1xf32> to vector<8x8x8xf32>
    %56 = arith.subf %52, %55 : vector<8x8x8xf32>
    %57 = math.exp %56 : vector<8x8x8xf32>
    %cst_21 = arith.constant dense<0.000000e+00> : vector<8x8xf32>
    %58 = vector.multi_reduction <add>, %57, %cst_21 [2] : vector<8x8x8xf32> to vector<8x8xf32>
    %59 = vector.shape_cast %58 : vector<8x8xf32> to vector<8x8x1xf32>
    %60 = tpu.reciprocal %59 : vector<8x8x1xf32> -> vector<8x8x1xf32>
    %61 = vector.broadcast %60 : vector<8x8x1xf32> to vector<8x8x8xf32>
    %62 = arith.mulf %57, %61 : vector<8x8x8xf32>
    "tpu.trace_start"() <{level = 10 : i32, message = "bqk,bkd->bqd"}> : () -> ()
    %cst_22 = arith.constant dense<0.000000e+00> : vector<8x8x8xf32>
    %63 = tpu.matmul %62, %51, %cst_22 {dimension_numbers = #tpu.dot_dimension_numbers<[2], [1], [1], [2], [0, 0, 0, 1, 1, 2], [0], [0]>} : vector<8x8x8xf32>, vector<8x8x8xf32>, vector<8x8x8xf32> -> vector<8x8x8xf32>
    "tpu.trace_stop"() : () -> ()
    %64 = vector.shape_cast %63 : vector<8x8x8xf32> to vector<4x16x8xf32>
    %c0_23 = arith.constant 0 : index
    %c0_24 = arith.constant 0 : index
    %65 = vector.load %arg9[%c0_23, %c0_24] : memref<32x32xf32, #tpu.memory_space<vmem>>, vector<32x32xf32>
    %66 = vector.shape_cast %65 : vector<32x32xf32> to vector<4x8x32xf32>
    %67 = vector.extract_strided_slice %64 {offsets = [0, 0, 0], sizes = [1, 16, 8], strides = [1, 1, 1]} : vector<4x16x8xf32> to vector<1x16x8xf32>
    %68 = vector.shape_cast %67 : vector<1x16x8xf32> to vector<16x8xf32>
    %69 = vector.extract_strided_slice %66 {offsets = [0, 0, 0], sizes = [1, 8, 32], strides = [1, 1, 1]} : vector<4x8x32xf32> to vector<1x8x32xf32>
    %70 = vector.shape_cast %69 : vector<1x8x32xf32> to vector<8x32xf32>
    %cst_25 = arith.constant dense<0.000000e+00> : vector<16x32xf32>
    %71 = tpu.matmul %68, %70, %cst_25 {dimension_numbers = #tpu.dot_dimension_numbers<[1], [0], [0], [1], [0, 0, 1, 1], [], []>} : vector<16x8xf32>, vector<8x32xf32>, vector<16x32xf32> -> vector<16x32xf32>
    %72 = vector.extract_strided_slice %64 {offsets = [1, 0, 0], sizes = [1, 16, 8], strides = [1, 1, 1]} : vector<4x16x8xf32> to vector<1x16x8xf32>
    %73 = vector.shape_cast %72 : vector<1x16x8xf32> to vector<16x8xf32>
    %74 = vector.extract_strided_slice %66 {offsets = [1, 0, 0], sizes = [1, 8, 32], strides = [1, 1, 1]} : vector<4x8x32xf32> to vector<1x8x32xf32>
    %75 = vector.shape_cast %74 : vector<1x8x32xf32> to vector<8x32xf32>
    %cst_26 = arith.constant dense<0.000000e+00> : vector<16x32xf32>
    %76 = tpu.matmul %73, %75, %cst_26 {dimension_numbers = #tpu.dot_dimension_numbers<[1], [0], [0], [1], [0, 0, 1, 1], [], []>} : vector<16x8xf32>, vector<8x32xf32>, vector<16x32xf32> -> vector<16x32xf32>
    %77 = arith.addf %71, %76 : vector<16x32xf32>
    %78 = vector.extract_strided_slice %64 {offsets = [2, 0, 0], sizes = [1, 16, 8], strides = [1, 1, 1]} : vector<4x16x8xf32> to vector<1x16x8xf32>
    %79 = vector.shape_cast %78 : vector<1x16x8xf32> to vector<16x8xf32>
    %80 = vector.extract_strided_slice %66 {offsets = [2, 0, 0], sizes = [1, 8, 32], strides = [1, 1, 1]} : vector<4x8x32xf32> to vector<1x8x32xf32>
    %81 = vector.shape_cast %80 : vector<1x8x32xf32> to vector<8x32xf32>
    %cst_27 = arith.constant dense<0.000000e+00> : vector<16x32xf32>
    %82 = tpu.matmul %79, %81, %cst_27 {dimension_numbers = #tpu.dot_dimension_numbers<[1], [0], [0], [1], [0, 0, 1, 1], [], []>} : vector<16x8xf32>, vector<8x32xf32>, vector<16x32xf32> -> vector<16x32xf32>
    %83 = arith.addf %77, %82 : vector<16x32xf32>
    %84 = vector.extract_strided_slice %64 {offsets = [3, 0, 0], sizes = [1, 16, 8], strides = [1, 1, 1]} : vector<4x16x8xf32> to vector<1x16x8xf32>
    %85 = vector.shape_cast %84 : vector<1x16x8xf32> to vector<16x8xf32>
    %86 = vector.extract_strided_slice %66 {offsets = [3, 0, 0], sizes = [1, 8, 32], strides = [1, 1, 1]} : vector<4x8x32xf32> to vector<1x8x32xf32>
    %87 = vector.shape_cast %86 : vector<1x8x32xf32> to vector<8x32xf32>
    %cst_28 = arith.constant dense<0.000000e+00> : vector<16x32xf32>
    %88 = tpu.matmul %85, %87, %cst_28 {dimension_numbers = #tpu.dot_dimension_numbers<[1], [0], [0], [1], [0, 0, 1, 1], [], []>} : vector<16x8xf32>, vector<8x32xf32>, vector<16x32xf32> -> vector<16x32xf32>
    %89 = arith.addf %83, %88 : vector<16x32xf32>
    %c0_29 = arith.constant 0 : index
    %c0_30 = arith.constant 0 : index
    %90 = vector.load %arg10[%c0_29, %c0_30] : memref<1x32xf32, #tpu.memory_space<vmem>>, vector<1x32xf32>
    %91 = vector.broadcast %90 : vector<1x32xf32> to vector<16x32xf32>
    %92 = arith.addf %89, %91 : vector<16x32xf32>
    %93 = arith.addf %4, %92 : vector<16x32xf32>
    %cst_31 = arith.constant dense<0.000000e+00> : vector<16xf32>
    %94 = vector.multi_reduction <add>, %93, %cst_31 [1] : vector<16x32xf32> to vector<16xf32>
    %95 = vector.shape_cast %94 : vector<16xf32> to vector<16x1xf32>
    %cst_32 = arith.constant 3.200000e+01 : f32
    %96 = vector.broadcast %cst_32 : f32 to vector<16x1xf32>
    %97 = arith.divf %95, %96 : vector<16x1xf32>
    %98 = vector.broadcast %97 : vector<16x1xf32> to vector<16x32xf32>
    %99 = arith.subf %93, %98 : vector<16x32xf32>
    %100 = arith.mulf %99, %99 : vector<16x32xf32>
    %cst_33 = arith.constant dense<0.000000e+00> : vector<16xf32>
    %101 = vector.multi_reduction <add>, %100, %cst_33 [1] : vector<16x32xf32> to vector<16xf32>
    %102 = vector.shape_cast %101 : vector<16xf32> to vector<16x1xf32>
    %cst_34 = arith.constant 3.200000e+01 : f32
    %103 = vector.broadcast %cst_34 : f32 to vector<16x1xf32>
    %104 = arith.divf %102, %103 : vector<16x1xf32>
    %105 = vector.broadcast %97 : vector<16x1xf32> to vector<16x32xf32>
    %106 = arith.subf %93, %105 : vector<16x32xf32>
    %cst_35 = arith.constant 9.99999974E-6 : f32
    %107 = vector.broadcast %cst_35 : f32 to vector<16x1xf32>
    %108 = arith.addf %104, %107 : vector<16x1xf32>
    %109 = math.rsqrt %108 : vector<16x1xf32>
    %110 = vector.broadcast %109 : vector<16x1xf32> to vector<16x32xf32>
    %111 = arith.mulf %106, %110 : vector<16x32xf32>
    %c0_36 = arith.constant 0 : index
    %c0_37 = arith.constant 0 : index
    %112 = vector.load %arg11[%c0_36, %c0_37] : memref<1x32xf32, #tpu.memory_space<vmem>>, vector<1x32xf32>
    %113 = vector.broadcast %112 : vector<1x32xf32> to vector<16x32xf32>
    %114 = arith.mulf %111, %113 : vector<16x32xf32>
    %c0_38 = arith.constant 0 : index
    %c0_39 = arith.constant 0 : index
    %115 = vector.load %arg12[%c0_38, %c0_39] : memref<1x32xf32, #tpu.memory_space<vmem>>, vector<1x32xf32>
    %116 = vector.broadcast %115 : vector<1x32xf32> to vector<16x32xf32>
    %117 = arith.addf %114, %116 : vector<16x32xf32>
    %c0_40 = arith.constant 0 : index
    %c0_41 = arith.constant 0 : index
    %118 = vector.load %arg13[%c0_40, %c0_41] : memref<32x64xf32, #tpu.memory_space<vmem>>, vector<32x64xf32>
    %cst_42 = arith.constant dense<0.000000e+00> : vector<16x64xf32>
    %119 = tpu.matmul %117, %118, %cst_42 {dimension_numbers = #tpu.dot_dimension_numbers<[1], [0], [0], [1], [0, 0, 1, 1], [], []>} : vector<16x32xf32>, vector<32x64xf32>, vector<16x64xf32> -> vector<16x64xf32>
    %c0_43 = arith.constant 0 : index
    %c0_44 = arith.constant 0 : index
    %120 = vector.load %arg14[%c0_43, %c0_44] : memref<1x64xf32, #tpu.memory_space<vmem>>, vector<1x64xf32>
    %121 = vector.broadcast %120 : vector<1x64xf32> to vector<16x64xf32>
    %122 = arith.addf %119, %121 : vector<16x64xf32>
    %cst_45 = arith.constant 0.000000e+00 : f32
    %123 = vector.broadcast %cst_45 : f32 to vector<16x64xf32>
    %124 = arith.maximumf %122, %123 : vector<16x64xf32>
    %c0_46 = arith.constant 0 : index
    %c0_47 = arith.constant 0 : index
    %125 = vector.load %arg15[%c0_46, %c0_47] : memref<64x32xf32, #tpu.memory_space<vmem>>, vector<64x32xf32>
    %cst_48 = arith.constant dense<0.000000e+00> : vector<16x32xf32>
    %126 = tpu.matmul %124, %125, %cst_48 {dimension_numbers = #tpu.dot_dimension_numbers<[1], [0], [0], [1], [0, 0, 1, 1], [], []>} : vector<16x64xf32>, vector<64x32xf32>, vector<16x32xf32> -> vector<16x32xf32>
    %c0_49 = arith.constant 0 : index
    %c0_50 = arith.constant 0 : index
    %127 = vector.load %arg16[%c0_49, %c0_50] : memref<1x32xf32, #tpu.memory_space<vmem>>, vector<1x32xf32>
    %128 = vector.broadcast %127 : vector<1x32xf32> to vector<16x32xf32>
    %129 = arith.addf %126, %128 : vector<16x32xf32>
    %130 = arith.addf %117, %129 : vector<16x32xf32>
    %cst_51 = arith.constant dense<0.000000e+00> : vector<16xf32>
    %131 = vector.multi_reduction <add>, %130, %cst_51 [1] : vector<16x32xf32> to vector<16xf32>
    %132 = vector.shape_cast %131 : vector<16xf32> to vector<16x1xf32>
    %cst_52 = arith.constant 3.200000e+01 : f32
    %133 = vector.broadcast %cst_52 : f32 to vector<16x1xf32>
    %134 = arith.divf %132, %133 : vector<16x1xf32>
    %135 = vector.broadcast %134 : vector<16x1xf32> to vector<16x32xf32>
    %136 = arith.subf %130, %135 : vector<16x32xf32>
    %137 = arith.mulf %136, %136 : vector<16x32xf32>
    %cst_53 = arith.constant dense<0.000000e+00> : vector<16xf32>
    %138 = vector.multi_reduction <add>, %137, %cst_53 [1] : vector<16x32xf32> to vector<16xf32>
    %139 = vector.shape_cast %138 : vector<16xf32> to vector<16x1xf32>
    %cst_54 = arith.constant 3.200000e+01 : f32
    %140 = vector.broadcast %cst_54 : f32 to vector<16x1xf32>
    %141 = arith.divf %139, %140 : vector<16x1xf32>
    %142 = vector.broadcast %134 : vector<16x1xf32> to vector<16x32xf32>
    %143 = arith.subf %130, %142 : vector<16x32xf32>
    %cst_55 = arith.constant 9.99999974E-6 : f32
    %144 = vector.broadcast %cst_55 : f32 to vector<16x1xf32>
    %145 = arith.addf %141, %144 : vector<16x1xf32>
    %146 = math.rsqrt %145 : vector<16x1xf32>
    %147 = vector.broadcast %146 : vector<16x1xf32> to vector<16x32xf32>
    %148 = arith.mulf %143, %147 : vector<16x32xf32>
    %c0_56 = arith.constant 0 : index
    %c0_57 = arith.constant 0 : index
    %149 = vector.load %arg17[%c0_56, %c0_57] : memref<1x32xf32, #tpu.memory_space<vmem>>, vector<1x32xf32>
    %150 = vector.broadcast %149 : vector<1x32xf32> to vector<16x32xf32>
    %151 = arith.mulf %148, %150 : vector<16x32xf32>
    %c0_58 = arith.constant 0 : index
    %c0_59 = arith.constant 0 : index
    %152 = vector.load %arg18[%c0_58, %c0_59] : memref<1x32xf32, #tpu.memory_space<vmem>>, vector<1x32xf32>
    %153 = vector.broadcast %152 : vector<1x32xf32> to vector<16x32xf32>
    %154 = arith.addf %151, %153 : vector<16x32xf32>
    %155 = vector.shape_cast %154 : vector<16x32xf32> to vector<2x8x32xf32>
    %156 = tpu.transpose %155, [1, 0, 2] : vector<2x8x32xf32> -> vector<8x2x32xf32>
    %c0_60 = arith.constant 0 : index
    %c0_61 = arith.constant 0 : index
    %c0_62 = arith.constant 0 : index
    %157 = vector.load %arg19[%c0_60, %c0_61, %c0_62] : memref<8x2x32xf32, #tpu.memory_space<vmem>>, vector<8x2x32xf32>
    tpu.vector_store %arg19[%c0_60, %c0_61, %c0_62], %156 {strides = array<i32>} : memref<8x2x32xf32, #tpu.memory_space<vmem>>, vector<8x2x32xf32>,
    return
  }
  func.func @transform_0(%arg0: i32) -> (i32, i32, i32) {
    %c0_i32 = arith.constant 0 : i32
    %c0_i32_0 = arith.constant 0 : i32
    %c0_i32_1 = arith.constant 0 : i32
    return %c0_i32, %arg0, %c0_i32_0 : i32, i32, i32
  }
  func.func @transform_1(%arg0: i32) -> (i32, i32, i32) {
    %c0_i32 = arith.constant 0 : i32
    %c0_i32_0 = arith.constant 0 : i32
    %c0_i32_1 = arith.constant 0 : i32
    return %c0_i32, %arg0, %c0_i32_0 : i32, i32, i32
  }
  func.func @transform_2(%arg0: i32) -> (i32, i32) {
    %c0_i32 = arith.constant 0 : i32
    %c0_i32_0 = arith.constant 0 : i32
    %c0_i32_1 = arith.constant 0 : i32
    return %c0_i32, %c0_i32_0 : i32, i32
  }
  func.func @transform_3(%arg0: i32) -> (i32, i32) {
    %c0_i32 = arith.constant 0 : i32
    %c0_i32_0 = arith.constant 0 : i32
    %c0_i32_1 = arith.constant 0 : i32
    return %c0_i32, %c0_i32_0 : i32, i32
  }
  func.func @transform_4(%arg0: i32) -> (i32, i32) {
    %c0_i32 = arith.constant 0 : i32
    %c0_i32_0 = arith.constant 0 : i32
    %c0_i32_1 = arith.constant 0 : i32
    return %c0_i32, %c0_i32_0 : i32, i32
  }
  func.func @transform_5(%arg0: i32) -> (i32, i32) {
    %c0_i32 = arith.constant 0 : i32
    %c0_i32_0 = arith.constant 0 : i32
    %c0_i32_1 = arith.constant 0 : i32
    return %c0_i32, %c0_i32_0 : i32, i32
  }
  func.func @transform_6(%arg0: i32) -> (i32, i32) {
    %c0_i32 = arith.constant 0 : i32
    %c0_i32_0 = arith.constant 0 : i32
    %c0_i32_1 = arith.constant 0 : i32
    return %c0_i32, %c0_i32_0 : i32, i32
  }
  func.func @transform_7(%arg0: i32) -> (i32, i32) {
    %c0_i32 = arith.constant 0 : i32
    %c0_i32_0 = arith.constant 0 : i32
    %c0_i32_1 = arith.constant 0 : i32
    return %c0_i32, %c0_i32_0 : i32, i32
  }
  func.func @transform_8(%arg0: i32) -> (i32, i32) {
    %c0_i32 = arith.constant 0 : i32
    %c0_i32_0 = arith.constant 0 : i32
    %c0_i32_1 = arith.constant 0 : i32
    return %c0_i32, %c0_i32_0 : i32, i32
  }
  func.func @transform_9(%arg0: i32) -> (i32, i32) {
    %c0_i32 = arith.constant 0 : i32
    %c0_i32_0 = arith.constant 0 : i32
    %c0_i32_1 = arith.constant 0 : i32
    return %c0_i32, %c0_i32_0 : i32, i32
  }
  func.func @transform_10(%arg0: i32) -> (i32, i32) {
    %c0_i32 = arith.constant 0 : i32
    %c0_i32_0 = arith.constant 0 : i32
    %c0_i32_1 = arith.constant 0 : i32
    return %c0_i32, %c0_i32_0 : i32, i32
  }
  func.func @transform_11(%arg0: i32) -> (i32, i32) {
    %c0_i32 = arith.constant 0 : i32
    %c0_i32_0 = arith.constant 0 : i32
    %c0_i32_1 = arith.constant 0 : i32
    return %c0_i32, %c0_i32_0 : i32, i32
  }
  func.func @transform_12(%arg0: i32) -> (i32, i32) {
    %c0_i32 = arith.constant 0 : i32
    %c0_i32_0 = arith.constant 0 : i32
    %c0_i32_1 = arith.constant 0 : i32
    return %c0_i32, %c0_i32_0 : i32, i32
  }
  func.func @transform_13(%arg0: i32) -> (i32, i32) {
    %c0_i32 = arith.constant 0 : i32
    %c0_i32_0 = arith.constant 0 : i32
    %c0_i32_1 = arith.constant 0 : i32
    return %c0_i32, %c0_i32_0 : i32, i32
  }
  func.func @transform_14(%arg0: i32) -> (i32, i32) {
    %c0_i32 = arith.constant 0 : i32
    %c0_i32_0 = arith.constant 0 : i32
    %c0_i32_1 = arith.constant 0 : i32
    return %c0_i32, %c0_i32_0 : i32, i32
  }
  func.func @transform_15(%arg0: i32) -> (i32, i32) {
    %c0_i32 = arith.constant 0 : i32
    %c0_i32_0 = arith.constant 0 : i32
    %c0_i32_1 = arith.constant 0 : i32
    return %c0_i32, %c0_i32_0 : i32, i32
  }
  func.func @transform_16(%arg0: i32) -> (i32, i32) {
    %c0_i32 = arith.constant 0 : i32
    %c0_i32_0 = arith.constant 0 : i32
    %c0_i32_1 = arith.constant 0 : i32
    return %c0_i32, %c0_i32_0 : i32, i32
  }
  func.func @transform_17(%arg0: i32) -> (i32, i32) {
    %c0_i32 = arith.constant 0 : i32
    %c0_i32_0 = arith.constant 0 : i32
    %c0_i32_1 = arith.constant 0 : i32
    return %c0_i32, %c0_i32_0 : i32, i32
  }
  func.func @transform_18(%arg0: i32) -> (i32, i32, i32) {
    %c0_i32 = arith.constant 0 : i32
    %c0_i32_0 = arith.constant 0 : i32
    %c0_i32_1 = arith.constant 0 : i32
    return %c0_i32, %arg0, %c0_i32_0 : i32, i32, i32
  }
}

</mosaic_0001>

<llo_original>
// kernel: tpu_custom_call.1
$region0: #{tpu_custom_call.1}
  #allocation0 [shape = 'u32[]', space=smem, size = 0x4, offset = 0x4, fixed_abs, tag = 'smem constant byte address 0x4 - core index']
  #allocation1 [shape = 'u32[72,128]{1,0:T(1,128)}', space=vmem, size = 0x9000, scoped, tag = 'internal scratch']
  %s0 = inlined_call_operand.hbm [shape: f32[8,2,32], index: 0, kind: input, shape index: {}]
  %s1 = inlined_call_operand.hbm [shape: f32[8,2,32], index: 1, kind: input, shape index: {}]
  %s2 = inlined_call_operand.vmem [shape: f32[32,32], index: 2, kind: input, shape index: {}]
  %s3 = inlined_call_operand.vmem [shape: f32[32,32], index: 3, kind: input, shape index: {}]
  %s4 = inlined_call_operand.vmem [shape: f32[32,32], index: 4, kind: input, shape index: {}]
  %s5 = inlined_call_operand.vmem [shape: f32[1,32], index: 5, kind: input, shape index: {}]
  %s6 = inlined_call_operand.vmem [shape: f32[1,32], index: 6, kind: input, shape index: {}]
  %s7 = inlined_call_operand.vmem [shape: f32[1,32], index: 7, kind: input, shape index: {}]
  %s8 = inlined_call_operand.hbm [shape: f32[32,32], index: 8, kind: input, shape index: {}]
  %s9 = inlined_call_operand.vmem [shape: f32[1,32], index: 9, kind: input, shape index: {}]
  %s10 = inlined_call_operand.vmem [shape: f32[1,32], index: 10, kind: input, shape index: {}]
  %s11 = inlined_call_operand.vmem [shape: f32[1,32], index: 11, kind: input, shape index: {}]
  %s12 = inlined_call_operand.hbm [shape: f32[32,64], index: 12, kind: input, shape index: {}]
  %s13 = inlined_call_operand.vmem [shape: f32[1,64], index: 13, kind: input, shape index: {}]
  %s14 = inlined_call_operand.vmem [shape: f32[64,32], index: 14, kind: input, shape index: {}]
  %s15 = inlined_call_operand.vmem [shape: f32[1,32], index: 15, kind: input, shape index: {}]
  %s16 = inlined_call_operand.vmem [shape: f32[1,32], index: 16, kind: input, shape index: {}]
  %s17 = inlined_call_operand.vmem [shape: f32[1,32], index: 17, kind: input, shape index: {}]
  %s18 = inlined_call_operand.hbm [shape: f32[8,2,32], index: 18, kind: output, shape index: {}]
  %s19 = sld [smem:[#allocation0]]
  $region98: #{tpu_custom_call.1} parent=0
    _
  %s21 = ssub.s32 1, %s19
  %s22 = scalar_select 0, %s21, %s19
  $region1: #{tpu_custom_call.1} parent=0
    #allocation2 [shape = 'u8[8192]{0}', space=vmem, size = 0x2000, scoped, tag = 'input window, operand 0, single buffered']
    #allocation3 [shape = 's32[1]{0}', space=sflag, size = 0x4, scoped, tag = 'scoped memory for tpu_custom_call.1']
    #allocation4 [shape = 's32[1]{0}', space=sflag, size = 0x4, scoped, tag = 'scoped memory for tpu_custom_call.1']
    #allocation5 [shape = 'u8[8192]{0}', space=vmem, size = 0x2000, scoped, tag = 'input window, operand 1, single buffered']
    #allocation6 [shape = 's32[1]{0}', space=sflag, size = 0x4, scoped, tag = 'scoped memory for tpu_custom_call.1']
    #allocation7 [shape = 'u8[16384]{0}', space=vmem, size = 0x4000, scoped, tag = 'input window, operand 8, single buffered']
    #allocation8 [shape = 'u8[16384]{0}', space=vmem, size = 0x4000, scoped, tag = 'input window, operand 12, single buffered']
    #allocation9 [shape = 's32[1]{0}', space=sflag, size = 0x4, scoped, tag = 'scoped memory for tpu_custom_call.1']
    #allocation10 [shape = 'u8[8192]{0}', space=vmem, size = 0x2000, scoped, tag = 'output window, operand 0, single buffered']
    %23 = vsyncpa [#allocation3], 0
    %24 = vsyncpa [#allocation6], 0
    %25 = vsyncpa [#allocation9], 0
    %26 = vsyncpa [#allocation4], 0
    // Predicated region
    $region2: #{tpu_custom_call.1} parent=1 // pred_check
      _
    $region3: #{tpu_custom_call.1} parent=1 // pred_check_branch
      %28 = sbr.rel (0) target = $region5
    $region4: #{tpu_custom_call.1} parent=1 // pred_region
      %30 = vsyncadd [#allocation3], 0
      %s31 = sshll.u32 %s0, 4
      %s32 = int_to_ptr.hbm [resolvable:$true] %s31
      %s33 = sshll.u32 [#allocation2], 4
      %s34 = int_to_ptr.vmem [resolvable:$true] %s33
      %39 = dma.hbm_to_vmem [thread:$0]  %s32, 256, %s34, [#allocation3], 32, 32, 2
    $region5: #{tpu_custom_call.1} parent=1 // pred_fallthru
      _
    // Predicated region
    $region6: #{tpu_custom_call.1} parent=1 // pred_check
      _
    $region7: #{tpu_custom_call.1} parent=1 // pred_check_branch
      %41 = sbr.rel (0) target = $region9
    $region8: #{tpu_custom_call.1} parent=1 // pred_region
      %43 = vsyncadd [#allocation6], 0
      %s44 = sshll.u32 %s1, 4
      %s45 = int_to_ptr.hbm [resolvable:$true] %s44
      %s46 = sshll.u32 [#allocation5], 4
      %s47 = int_to_ptr.vmem [resolvable:$true] %s46
      %52 = dma.hbm_to_vmem [thread:$0]  %s45, 256, %s47, [#allocation6], 32, 32, 2
    $region9: #{tpu_custom_call.1} parent=1 // pred_fallthru
      _
    // Predicated region
    $region10: #{tpu_custom_call.1} parent=1 // pred_check
      _
    $region11: #{tpu_custom_call.1} parent=1 // pred_check_branch
      %54 = sbr.rel (0) target = $region13
    $region12: #{tpu_custom_call.1} parent=1 // pred_region
      _
    $region13: #{tpu_custom_call.1} parent=1 // pred_fallthru
      _
    // Predicated region
    $region14: #{tpu_custom_call.1} parent=1 // pred_check
      _
    $region15: #{tpu_custom_call.1} parent=1 // pred_check_branch
      %56 = sbr.rel (0) target = $region17
    $region16: #{tpu_custom_call.1} parent=1 // pred_region
      _
    $region17: #{tpu_custom_call.1} parent=1 // pred_fallthru
      _
    // Predicated region
    $region18: #{tpu_custom_call.1} parent=1 // pred_check
      _
    $region19: #{tpu_custom_call.1} parent=1 // pred_check_branch
      %58 = sbr.rel (0) target = $region21
    $region20: #{tpu_custom_call.1} parent=1 // pred_region
      _
    $region21: #{tpu_custom_call.1} parent=1 // pred_fallthru
      _
    // Predicated region
    $region22: #{tpu_custom_call.1} parent=1 // pred_check
      _
    $region23: #{tpu_custom_call.1} parent=1 // pred_check_branch
      %60 = sbr.rel (0) target = $region25
    $region24: #{tpu_custom_call.1} parent=1 // pred_region
      _
    $region25: #{tpu_custom_call.1} parent=1 // pred_fallthru
      _
    // Predicated region
    $region26: #{tpu_custom_call.1} parent=1 // pred_check
      _
    $region27: #{tpu_custom_call.1} parent=1 // pred_check_branch
      %62 = sbr.rel (0) target = $region29
    $region28: #{tpu_custom_call.1} parent=1 // pred_region
      _
    $region29: #{tpu_custom_call.1} parent=1 // pred_fallthru
      _
    // Predicated region
    $region30: #{tpu_custom_call.1} parent=1 // pred_check
      _
    $region31: #{tpu_custom_call.1} parent=1 // pred_check_branch
      %64 = sbr.rel (0) target = $region33
    $region32: #{tpu_custom_call.1} parent=1 // pred_region
      _
    $region33: #{tpu_custom_call.1} parent=1 // pred_fallthru
      _
    // Predicated region
    $region34: #{tpu_custom_call.1} parent=1 // pred_check
      _
    $region35: #{tpu_custom_call.1} parent=1 // pred_check_branch
      %66 = sbr.rel (0) target = $region37
    $region36: #{tpu_custom_call.1} parent=1 // pred_region
      %68 = vsyncadd [#allocation6], 0
      %s69 = sshll.u32 %s8, 4
      %s70 = int_to_ptr.hbm [resolvable:$true] %s69
      %s71 = sshll.u32 [#allocation7], 4
      %s72 = int_to_ptr.vmem [resolvable:$true] %s71
      %77 = dma.hbm_to_vmem [thread:$0]  %s70, 512, %s72, [#allocation6], 128, 128, 8
    $region37: #{tpu_custom_call.1} parent=1 // pred_fallthru
      _
    // Predicated region
    $region38: #{tpu_custom_call.1} parent=1 // pred_check
      _
    $region39: #{tpu_custom_call.1} parent=1 // pred_check_branch
      %79 = sbr.rel (0) target = $region41
    $region40: #{tpu_custom_call.1} parent=1 // pred_region
      _
    $region41: #{tpu_custom_call.1} parent=1 // pred_fallthru
      _
    // Predicated region
    $region42: #{tpu_custom_call.1} parent=1 // pred_check
      _
    $region43: #{tpu_custom_call.1} parent=1 // pred_check_branch
      %81 = sbr.rel (0) target = $region45
    $region44: #{tpu_custom_call.1} parent=1 // pred_region
      _
    $region45: #{tpu_custom_call.1} parent=1 // pred_fallthru
      _
    // Predicated region
    $region46: #{tpu_custom_call.1} parent=1 // pred_check
      _
    $region47: #{tpu_custom_call.1} parent=1 // pred_check_branch
      %83 = sbr.rel (0) target = $region49
    $region48: #{tpu_custom_call.1} parent=1 // pred_region
      _
    $region49: #{tpu_custom_call.1} parent=1 // pred_fallthru
      _
    // Predicated region
    $region50: #{tpu_custom_call.1} parent=1 // pred_check
      _
    $region51: #{tpu_custom_call.1} parent=1 // pred_check_branch
      %85 = sbr.rel (0) target = $region53
    $region52: #{tpu_custom_call.1} parent=1 // pred_region
      %87 = vsyncadd [#allocation9], 0
      %s88 = sshll.u32 %s12, 4
      %s89 = int_to_ptr.hbm [resolvable:$true] %s88
      %s90 = sshll.u32 [#allocation8], 4
      %s91 = int_to_ptr.vmem [resolvable:$true] %s90
      %96 = dma.hbm_to_vmem [thread:$0]  %s89, 512, %s91, [#allocation9], 128, 128, 8
    $region53: #{tpu_custom_call.1} parent=1 // pred_fallthru
      _
    // Predicated region
    $region54: #{tpu_custom_call.1} parent=1 // pred_check
      _
    $region55: #{tpu_custom_call.1} parent=1 // pred_check_branch
      %98 = sbr.rel (0) target = $region57
    $region56: #{tpu_custom_call.1} parent=1 // pred_region
      _
    $region57: #{tpu_custom_call.1} parent=1 // pred_fallthru
      _
    // Predicated region
    $region58: #{tpu_custom_call.1} parent=1 // pred_check
      _
    $region59: #{tpu_custom_call.1} parent=1 // pred_check_branch
      %100 = sbr.rel (0) target = $region61
    $region60: #{tpu_custom_call.1} parent=1 // pred_region
      _
    $region61: #{tpu_custom_call.1} parent=1 // pred_fallthru
      _
    // Predicated region
    $region62: #{tpu_custom_call.1} parent=1 // pred_check
      _
    $region63: #{tpu_custom_call.1} parent=1 // pred_check_branch
      %102 = sbr.rel (0) target = $region65
    $region64: #{tpu_custom_call.1} parent=1 // pred_region
      _
    $region65: #{tpu_custom_call.1} parent=1 // pred_fallthru
      _
    // Predicated region
    $region66: #{tpu_custom_call.1} parent=1 // pred_check
      _
    $region67: #{tpu_custom_call.1} parent=1 // pred_check_branch
      %104 = sbr.rel (0) target = $region69
    $region68: #{tpu_custom_call.1} parent=1 // pred_region
      _
    $region69: #{tpu_custom_call.1} parent=1 // pred_fallthru
      _
    // Predicated region
    $region70: #{tpu_custom_call.1} parent=1 // pred_check
      _
    $region71: #{tpu_custom_call.1} parent=1 // pred_check_branch
      %106 = sbr.rel (0) target = $region73
    $region72: #{tpu_custom_call.1} parent=1 // pred_region
      _
    $region73: #{tpu_custom_call.1} parent=1 // pred_fallthru
      _
    // Predicated region
    $region74: #{tpu_custom_call.1} parent=1 // pred_check
      _
    $region75: #{tpu_custom_call.1} parent=1 // pred_check_branch
      %108 = sbr.rel (0) target = $region77
    $region76: #{tpu_custom_call.1} parent=1 // pred_region
      %110 = dma.done [#allocation3], 256
    $region77: #{tpu_custom_call.1} parent=1 // pred_fallthru
      _
    // Predicated region
    $region78: #{tpu_custom_call.1} parent=1 // pred_check
      _
    $region79: #{tpu_custom_call.1} parent=1 // pred_check_branch
      %112 = sbr.rel (0) target = $region81
    $region80: #{tpu_custom_call.1} parent=1 // pred_region
      %114 = dma.done [#allocation6], 256
    $region81: #{tpu_custom_call.1} parent=1 // pred_fallthru
      _
    // Predicated region
    $region82: #{tpu_custom_call.1} parent=1 // pred_check
      _
    $region83: #{tpu_custom_call.1} parent=1 // pred_check_branch
      %116 = sbr.rel (0) target = $region85
    $region84: #{tpu_custom_call.1} parent=1 // pred_region
      %118 = dma.done [#allocation6], 512
    $region85: #{tpu_custom_call.1} parent=1 // pred_fallthru
      _
    // Predicated region
    $region86: #{tpu_custom_call.1} parent=1 // pred_check
      _
    $region87: #{tpu_custom_call.1} parent=1 // pred_check_branch
      %120 = sbr.rel (0) target = $region89
    $region88: #{tpu_custom_call.1} parent=1 // pred_region
      %122 = dma.done [#allocation9], 512
    $region89: #{tpu_custom_call.1} parent=1 // pred_fallthru
      _
    %v123 = vld [vmem:[#allocation2] sm:$0x3]
    %v124 = vld [vmem:[#allocation2 + $0x2] sm:$0x3]
    %v125 = vld [vmem:[#allocation2 + $0x4] sm:$0x3]
    %v126 = vld [vmem:[#allocation2 + $0x6] sm:$0x3]
    %v127 = vld [vmem:[#allocation2 + $0x8] sm:$0x3]
    %v128 = vld [vmem:[#allocation2 + $0xa] sm:$0x3]
    %v129 = vld [vmem:[#allocation2 + $0xc] sm:$0x3]
    %v130 = vld [vmem:[#allocation2 + $0xe] sm:$0x3]
    %v131 = vld [vmem:[#allocation5] sm:$0x3]
    %v132 = vld [vmem:[#allocation5 + $0x2] sm:$0x3]
    %v133 = vld [vmem:[#allocation5 + $0x4] sm:$0x3]
    %v134 = vld [vmem:[#allocation5 + $0x6] sm:$0x3]
    %v135 = vld [vmem:[#allocation5 + $0x8] sm:$0x3]
    %v136 = vld [vmem:[#allocation5 + $0xa] sm:$0x3]
    %v137 = vld [vmem:[#allocation5 + $0xc] sm:$0x3]
    %v138 = vld [vmem:[#allocation5 + $0xe] sm:$0x3]
    %v139 = vadd.f32 %v123, %v131
    %v140 = vadd.f32 %v124, %v132
    %v141 = vadd.f32 %v125, %v133
    %v142 = vadd.f32 %v126, %v134
    %v143 = vadd.f32 %v127, %v135
    %v144 = vadd.f32 %v128, %v136
    %v145 = vadd.f32 %v129, %v137
    %v146 = vadd.f32 %v130, %v138
    %v147 = vld [vmem:[%s2] sm:$0xff]
    %v148 = vld [vmem:[%s2 + $0x8] sm:$0xff]
    %v149 = vld [vmem:[%s2 + $0x10] sm:$0xff]
    %v150 = vld [vmem:[%s2 + $0x18] sm:$0xff]
    %v151 = vld [vmem:[%s5] sm:$0x1]
    %v153 = vperm.slane %v151, 0
    %163 = vst [vmem:[#allocation1] ss:$4 sm:$0xff] %v139
    %s164 = scalar_lea.vmem [#allocation1], 1
    %165 = vst [vmem:[%s164] ss:$4 sm:$0xff] %v140
    %s166 = scalar_lea.vmem [#allocation1], 2
    %167 = vst [vmem:[%s166] ss:$4 sm:$0xff] %v141
    %s168 = scalar_lea.vmem [#allocation1], 3
    %169 = vst [vmem:[%s168] ss:$4 sm:$0xff] %v142
    %s170 = scalar_lea.vmem [#allocation1], 32
    %171 = vst [vmem:[%s170] ss:$4 sm:$0xff] %v143
    %s172 = scalar_lea.vmem [#allocation1], 33
    %173 = vst [vmem:[%s172] ss:$4 sm:$0xff] %v144
    %s174 = scalar_lea.vmem [#allocation1], 34
    %175 = vst [vmem:[%s174] ss:$4 sm:$0xff] %v145
    %s176 = scalar_lea.vmem [#allocation1], 35
    %177 = vst [vmem:[%s176] ss:$4 sm:$0xff] %v146
    %v178 = vld.sshfl [vmem:[#allocation1] sm:$0xff pattern:$0x73625140]
    %v179 = vld.sshfl [vmem:[#allocation1 + $0x20] sm:$0xff pattern:$0x73625140]
    %vm180 = vcmask 261120
    %v181 = vsel %vm180, %v178, 0
    %v183 = vsel %vm180, %v179, 0
    %185 = vmatpush.msra.mxu0 0.0
    %186 = vmatpush.msra.mxu0 0.0
    %187 = vmatpush.msra.mxu0 0.0
    %188 = vmatpush.msra.mxu0 0.0
    %189 = vmatpush.msra.mxu0 0.0
    %190 = vmatpush.msra.mxu0 0.0
    %191 = vmatpush.msra.mxu0 0.0
    %192 = vmatpush.msra.mxu0 0.0
    %193 = vmatpush.msra.mxu0 0.0
    %194 = vmatpush.msra.mxu0 0.0
    %195 = vmatpush.msra.mxu0 0.0
    %196 = vmatpush.msra.mxu0 0.0
    %197 = vmatpush.msra.mxu0 %v150
    %198 = vmatpush.msra.mxu0 %v149
    %199 = vmatpush.msra.mxu0 %v148
    %200 = vmatpush.msra.mxu0 %v147
    %201 = vmatmul.f32.gmra.mxu0 %v181
    %v202 = vpop.f32.mrf.mxu0
    %v203 = vadd.f32 %v153, %v202
    %204 = vmatmul.f32.gmra.mxu0 %v183
    %v205 = vpop.f32.mrf.mxu0
    %v206 = vadd.f32 %v153, %v205
    %207 = vdwg.mxu0
    %v208 = vld [vmem:[%s3] sm:$0xff]
    %v209 = vld [vmem:[%s3 + $0x8] sm:$0xff]
    %v210 = vld [vmem:[%s3 + $0x10] sm:$0xff]
    %v211 = vld [vmem:[%s3 + $0x18] sm:$0xff]
    %v212 = vld [vmem:[%s6] sm:$0x1]
    %v214 = vperm.slane %v212, 0
    %216 = vst [vmem:[#allocation1] ss:$4 sm:$0xff] %v139
    %s217 = scalar_lea.vmem [#allocation1], 1
    %218 = vst [vmem:[%s217] ss:$4 sm:$0xff] %v140
    %s219 = scalar_lea.vmem [#allocation1], 2
    %220 = vst [vmem:[%s219] ss:$4 sm:$0xff] %v141
    %s221 = scalar_lea.vmem [#allocation1], 3
    %222 = vst [vmem:[%s221] ss:$4 sm:$0xff] %v142
    %s223 = scalar_lea.vmem [#allocation1], 32
    %224 = vst [vmem:[%s223] ss:$4 sm:$0xff] %v143
    %s225 = scalar_lea.vmem [#allocation1], 33
    %226 = vst [vmem:[%s225] ss:$4 sm:$0xff] %v144
    %s227 = scalar_lea.vmem [#allocation1], 34
    %228 = vst [vmem:[%s227] ss:$4 sm:$0xff] %v145
    %s229 = scalar_lea.vmem [#allocation1], 35
    %230 = vst [vmem:[%s229] ss:$4 sm:$0xff] %v146
    %v231 = vld.sshfl [vmem:[#allocation1] sm:$0xff pattern:$0x73625140]
    %v232 = vld.sshfl [vmem:[#allocation1 + $0x20] sm:$0xff pattern:$0x73625140]
    %v233 = vsel %vm180, %v231, 0
    %v235 = vsel %vm180, %v232, 0
    %237 = vmatpush.msra.mxu0 0.0
    %238 = vmatpush.msra.mxu0 0.0
    %239 = vmatpush.msra.mxu0 0.0
    %240 = vmatpush.msra.mxu0 0.0
    %241 = vmatpush.msra.mxu0 0.0
    %242 = vmatpush.msra.mxu0 0.0
    %243 = vmatpush.msra.mxu0 0.0
    %244 = vmatpush.msra.mxu0 0.0
    %245 = vmatpush.msra.mxu0 0.0
    %246 = vmatpush.msra.mxu0 0.0
    %247 = vmatpush.msra.mxu0 0.0
    %248 = vmatpush.msra.mxu0 0.0
    %249 = vmatpush.msra.mxu0 %v211
    %250 = vmatpush.msra.mxu0 %v210
    %251 = vmatpush.msra.mxu0 %v209
    %252 = vmatpush.msra.mxu0 %v208
    %253 = vmatmul.f32.gmra.mxu0 %v233
    %v254 = vpop.f32.mrf.mxu0
    %v255 = vadd.f32 %v214, %v254
    %256 = vmatmul.f32.gmra.mxu0 %v235
    %v257 = vpop.f32.mrf.mxu0
    %v258 = vadd.f32 %v214, %v257
    %259 = vdwg.mxu0
    %v260 = vld [vmem:[%s4] sm:$0xff]
    %v261 = vld [vmem:[%s4 + $0x8] sm:$0xff]
    %v262 = vld [vmem:[%s4 + $0x10] sm:$0xff]
    %v263 = vld [vmem:[%s4 + $0x18] sm:$0xff]
    %v264 = vld [vmem:[%s7] sm:$0x1]
    %v266 = vperm.slane %v264, 0
    %276 = vst [vmem:[#allocation1] ss:$4 sm:$0xff] %v123
    %s277 = scalar_lea.vmem [#allocation1], 1
    %278 = vst [vmem:[%s277] ss:$4 sm:$0xff] %v124
    %s279 = scalar_lea.vmem [#allocation1], 2
    %280 = vst [vmem:[%s279] ss:$4 sm:$0xff] %v125
    %s281 = scalar_lea.vmem [#allocation1], 3
    %282 = vst [vmem:[%s281] ss:$4 sm:$0xff] %v126
    %s283 = scalar_lea.vmem [#allocation1], 32
    %284 = vst [vmem:[%s283] ss:$4 sm:$0xff] %v127
    %s285 = scalar_lea.vmem [#allocation1], 33
    %286 = vst [vmem:[%s285] ss:$4 sm:$0xff] %v128
    %s287 = scalar_lea.vmem [#allocation1], 34
    %288 = vst [vmem:[%s287] ss:$4 sm:$0xff] %v129
    %s289 = scalar_lea.vmem [#allocation1], 35
    %290 = vst [vmem:[%s289] ss:$4 sm:$0xff] %v130
    %v291 = vld.sshfl [vmem:[#allocation1] sm:$0xff pattern:$0x73625140]
    %v292 = vld.sshfl [vmem:[#allocation1 + $0x20] sm:$0xff pattern:$0x73625140]
    %v293 = vsel %vm180, %v291, 0
    %v295 = vsel %vm180, %v292, 0
    %297 = vmatpush.msra.mxu0 0.0
    %298 = vmatpush.msra.mxu0 0.0
    %299 = vmatpush.msra.mxu0 0.0
    %300 = vmatpush.msra.mxu0 0.0
    %301 = vmatpush.msra.mxu0 0.0
    %302 = vmatpush.msra.mxu0 0.0
    %303 = vmatpush.msra.mxu0 0.0
    %304 = vmatpush.msra.mxu0 0.0
    %305 = vmatpush.msra.mxu0 0.0
    %306 = vmatpush.msra.mxu0 0.0
    %307 = vmatpush.msra.mxu0 0.0
    %308 = vmatpush.msra.mxu0 0.0
    %309 = vmatpush.msra.mxu0 %v263
    %310 = vmatpush.msra.mxu0 %v262
    %311 = vmatpush.msra.mxu0 %v261
    %312 = vmatpush.msra.mxu0 %v260
    %313 = vmatmul.f32.gmra.mxu0 %v293
    %v314 = vpop.f32.mrf.mxu0
    %v315 = vadd.f32 %v266, %v314
    %316 = vmatmul.f32.gmra.mxu0 %v295
    %v317 = vpop.f32.mrf.mxu0
    %v318 = vadd.f32 %v266, %v317
    %319 = vdwg.mxu0
    %322 = vrot.lane.b32.xlu0 %v203, 120
    %v323 = vpop.permute.xlu0 %322
    %324 = vrot.lane.b32.xlu0 %v206, 120
    %v325 = vpop.permute.xlu0 %324
    %328 = vrot.lane.b32.xlu0 %v203, 112
    %v329 = vpop.permute.xlu0 %328
    %330 = vrot.lane.b32.xlu0 %v206, 112
    %v331 = vpop.permute.xlu0 %330
    %334 = vrot.lane.b32.xlu0 %v203, 104
    %v335 = vpop.permute.xlu0 %334
    %336 = vrot.lane.b32.xlu0 %v206, 104
    %v337 = vpop.permute.xlu0 %336
    %v340 = vrot.slane %v329, 4
    %vm341 = vcmask 1047556
    %v342 = vsel %vm341, %v340, %v203
    %v343 = vrot.slane %v203, 4
    %v344 = vsel %vm341, %v329, %v343
    %v346 = vunpack.c.l.s4 1983009808
    %v347 = vunpack.c.0.s8 %v346
    %v348 = vperm.slane %v342, %v347
    %v350 = vunpack.c.l.s4 1983009808
    %v351 = vunpack.c.0.s8 %v350
    %v352 = vperm.slane %v344, %v351
    %v353 = vrot.slane %v335, 4
    %v354 = vsel %vm341, %v353, %v323
    %v355 = vrot.slane %v323, 4
    %v356 = vsel %vm341, %v335, %v355
    %v358 = vunpack.c.l.s4 1983009808
    %v359 = vunpack.c.0.s8 %v358
    %v360 = vperm.slane %v354, %v359
    %v362 = vunpack.c.l.s4 1983009808
    %v363 = vunpack.c.0.s8 %v362
    %v364 = vperm.slane %v356, %v363
    %v365 = vrot.slane %v360, 4
    %v366 = vsel %vm341, %v365, %v348
    %v367 = vrot.slane %v348, 4
    %v368 = vsel %vm341, %v360, %v367
    %v370 = vunpack.c.l.s4 1934713408
    %v371 = vunpack.c.0.s8 %v370
    %v372 = vperm.slane %v366, %v371
    %v374 = vunpack.c.l.s4 1934713408
    %v375 = vunpack.c.0.s8 %v374
    %v376 = vperm.slane %v368, %v375
    %v377 = vrot.slane %v364, 4
    %v378 = vsel %vm341, %v377, %v352
    %v379 = vrot.slane %v352, 4
    %v380 = vsel %vm341, %v364, %v379
    %v382 = vunpack.c.l.s4 1934713408
    %v383 = vunpack.c.0.s8 %v382
    %v384 = vperm.slane %v378, %v383
    %v386 = vunpack.c.l.s4 1934713408
    %v387 = vunpack.c.0.s8 %v386
    %v388 = vperm.slane %v380, %v387
    %v389 = vrot.slane %v372, 4
    %v390 = vsel %vm341, 0.0, %v389
    %v391 = vrot.slane %v376, 4
    %v392 = vsel %vm341, 0.0, %v391
    %v393 = vrot.slane %v384, 4
    %v394 = vsel %vm341, 0.0, %v393
    %v395 = vrot.slane %v388, 4
    %v396 = vsel %vm341, 0.0, %v395
    %v397 = vrot.slane %v331, 4
    %v398 = vsel %vm341, %v397, %v206
    %v399 = vrot.slane %v206, 4
    %v400 = vsel %vm341, %v331, %v399
    %v402 = vunpack.c.l.s4 1983009808
    %v403 = vunpack.c.0.s8 %v402
    %v404 = vperm.slane %v398, %v403
    %v406 = vunpack.c.l.s4 1983009808
    %v407 = vunpack.c.0.s8 %v406
    %v408 = vperm.slane %v400, %v407
    %v409 = vrot.slane %v337, 4
    %v410 = vsel %vm341, %v409, %v325
    %v411 = vrot.slane %v325, 4
    %v412 = vsel %vm341, %v337, %v411
    %v414 = vunpack.c.l.s4 1983009808
    %v415 = vunpack.c.0.s8 %v414
    %v416 = vperm.slane %v410, %v415
    %v418 = vunpack.c.l.s4 1983009808
    %v419 = vunpack.c.0.s8 %v418
    %v420 = vperm.slane %v412, %v419
    %v421 = vrot.slane %v416, 4
    %v422 = vsel %vm341, %v421, %v404
    %v423 = vrot.slane %v404, 4
    %v424 = vsel %vm341, %v416, %v423
    %v426 = vunpack.c.l.s4 1934713408
    %v427 = vunpack.c.0.s8 %v426
    %v428 = vperm.slane %v422, %v427
    %v430 = vunpack.c.l.s4 1934713408
    %v431 = vunpack.c.0.s8 %v430
    %v432 = vperm.slane %v424, %v431
    %v433 = vrot.slane %v420, 4
    %v434 = vsel %vm341, %v433, %v408
    %v435 = vrot.slane %v408, 4
    %v436 = vsel %vm341, %v420, %v435
    %v438 = vunpack.c.l.s4 1934713408
    %v439 = vunpack.c.0.s8 %v438
    %v440 = vperm.slane %v434, %v439
    %v442 = vunpack.c.l.s4 1934713408
    %v443 = vunpack.c.0.s8 %v442
    %v444 = vperm.slane %v436, %v443
    %v445 = vrot.slane %v428, 4
    %v446 = vsel %vm341, 0.0, %v445
    %v447 = vrot.slane %v432, 4
    %v448 = vsel %vm341, 0.0, %v447
    %v449 = vrot.slane %v440, 4
    %v450 = vsel %vm341, 0.0, %v449
    %v451 = vrot.slane %v444, 4
    %v452 = vsel %vm341, 0.0, %v451
    %v453 = vsel %vm341, %v393, %v372
    %v455 = vunpack.c.l.s4 1983009808
    %v456 = vunpack.c.0.s8 %v455
    %v457 = vperm.slane %v453, %v456
    %v458 = vsel %vm341, %v395, %v376
    %v460 = vunpack.c.l.s4 1983009808
    %v461 = vunpack.c.0.s8 %v460
    %v462 = vperm.slane %v458, %v461
    %v463 = vsel %vm341, %v449, %v428
    %v465 = vunpack.c.l.s4 1983009808
    %v466 = vunpack.c.0.s8 %v465
    %v467 = vperm.slane %v463, %v466
    %v468 = vsel %vm341, %v451, %v432
    %v470 = vunpack.c.l.s4 1983009808
    %v471 = vunpack.c.0.s8 %v470
    %v472 = vperm.slane %v468, %v471
    %v473 = vrot.slane %v462, 4
    %v474 = vsel %vm341, %v473, %v457
    %v475 = vrot.slane %v457, 4
    %v476 = vsel %vm341, %v462, %v475
    %v478 = vunpack.c.l.s4 1934713408
    %v479 = vunpack.c.0.s8 %v478
    %v480 = vperm.slane %v474, %v479
    %v482 = vunpack.c.l.s4 1934713408
    %v483 = vunpack.c.0.s8 %v482
    %v484 = vperm.slane %v476, %v483
    %v485 = vrot.slane %v472, 4
    %v486 = vsel %vm341, %v485, %v467
    %v487 = vrot.slane %v467, 4
    %v488 = vsel %vm341, %v472, %v487
    %v490 = vunpack.c.l.s4 1934713408
    %v491 = vunpack.c.0.s8 %v490
    %v492 = vperm.slane %v486, %v491
    %v494 = vunpack.c.l.s4 1934713408
    %v495 = vunpack.c.0.s8 %v494
    %v496 = vperm.slane %v488, %v495
    %v497 = vrot.slane %v492, 4
    %v498 = vsel %vm341, %v497, %v480
    %v499 = vrot.slane %v480, 4
    %v500 = vsel %vm341, %v492, %v499
    %v501 = vrot.slane %v496, 4
    %v502 = vsel %vm341, %v501, %v484
    %v503 = vrot.slane %v484, 4
    %v504 = vsel %vm341, %v496, %v503
    %v505 = vrot.slane %v394, 4
    %v506 = vsel %vm341, %v505, %v390
    %v508 = vunpack.c.l.s4 1983009808
    %v509 = vunpack.c.0.s8 %v508
    %v510 = vperm.slane %v506, %v509
    %v511 = vrot.slane %v396, 4
    %v512 = vsel %vm341, %v511, %v392
    %v514 = vunpack.c.l.s4 1983009808
    %v515 = vunpack.c.0.s8 %v514
    %v516 = vperm.slane %v512, %v515
    %v517 = vrot.slane %v450, 4
    %v518 = vsel %vm341, %v517, %v446
    %v520 = vunpack.c.l.s4 1983009808
    %v521 = vunpack.c.0.s8 %v520
    %v522 = vperm.slane %v518, %v521
    %v523 = vrot.slane %v452, 4
    %v524 = vsel %vm341, %v523, %v448
    %v526 = vunpack.c.l.s4 1983009808
    %v527 = vunpack.c.0.s8 %v526
    %v528 = vperm.slane %v524, %v527
    %v529 = vrot.slane %v516, 4
    %v530 = vsel %vm341, %v529, %v510
    %v531 = vrot.slane %v510, 4
    %v532 = vsel %vm341, %v516, %v531
    %v534 = vunpack.c.l.s4 1934713408
    %v535 = vunpack.c.0.s8 %v534
    %v536 = vperm.slane %v530, %v535
    %v538 = vunpack.c.l.s4 1934713408
    %v539 = vunpack.c.0.s8 %v538
    %v540 = vperm.slane %v532, %v539
    %v541 = vrot.slane %v528, 4
    %v542 = vsel %vm341, %v541, %v522
    %v543 = vrot.slane %v522, 4
    %v544 = vsel %vm341, %v528, %v543
    %v546 = vunpack.c.l.s4 1934713408
    %v547 = vunpack.c.0.s8 %v546
    %v548 = vperm.slane %v542, %v547
    %v550 = vunpack.c.l.s4 1934713408
    %v551 = vunpack.c.0.s8 %v550
    %v552 = vperm.slane %v544, %v551
    %v553 = vrot.slane %v548, 4
    %v554 = vsel %vm341, %v553, %v536
    %v555 = vrot.slane %v536, 4
    %v556 = vsel %vm341, %v548, %v555
    %v557 = vrot.slane %v552, 4
    %v558 = vsel %vm341, %v557, %v540
    %v559 = vrot.slane %v540, 4
    %v560 = vsel %vm341, %v552, %v559
    %563 = vrot.lane.b32.xlu0 %v255, 120
    %v564 = vpop.permute.xlu0 %563
    %565 = vrot.lane.b32.xlu0 %v258, 120
    %v566 = vpop.permute.xlu0 %565
    %569 = vrot.lane.b32.xlu0 %v255, 112
    %v570 = vpop.permute.xlu0 %569
    %571 = vrot.lane.b32.xlu0 %v258, 112
    %v572 = vpop.permute.xlu0 %571
    %575 = vrot.lane.b32.xlu0 %v255, 104
    %v576 = vpop.permute.xlu0 %575
    %577 = vrot.lane.b32.xlu0 %v258, 104
    %v578 = vpop.permute.xlu0 %577
    %v581 = vrot.slane %v570, 4
    %v582 = vsel %vm341, %v581, %v255
    %v583 = vrot.slane %v255, 4
    %v584 = vsel %vm341, %v570, %v583
    %v586 = vunpack.c.l.s4 1983009808
    %v587 = vunpack.c.0.s8 %v586
    %v588 = vperm.slane %v582, %v587
    %v590 = vunpack.c.l.s4 1983009808
    %v591 = vunpack.c.0.s8 %v590
    %v592 = vperm.slane %v584, %v591
    %v593 = vrot.slane %v576, 4
    %v594 = vsel %vm341, %v593, %v564
    %v595 = vrot.slane %v564, 4
    %v596 = vsel %vm341, %v576, %v595
    %v598 = vunpack.c.l.s4 1983009808
    %v599 = vunpack.c.0.s8 %v598
    %v600 = vperm.slane %v594, %v599
    %v602 = vunpack.c.l.s4 1983009808
    %v603 = vunpack.c.0.s8 %v602
    %v604 = vperm.slane %v596, %v603
    %v605 = vrot.slane %v600, 4
    %v606 = vsel %vm341, %v605, %v588
    %v607 = vrot.slane %v588, 4
    %v608 = vsel %vm341, %v600, %v607
    %v610 = vunpack.c.l.s4 1934713408
    %v611 = vunpack.c.0.s8 %v610
    %v612 = vperm.slane %v606, %v611
    %v614 = vunpack.c.l.s4 1934713408
    %v615 = vunpack.c.0.s8 %v614
    %v616 = vperm.slane %v608, %v615
    %v617 = vrot.slane %v604, 4
    %v618 = vsel %vm341, %v617, %v592
    %v619 = vrot.slane %v592, 4
    %v620 = vsel %vm341, %v604, %v619
    %v622 = vunpack.c.l.s4 1934713408
    %v623 = vunpack.c.0.s8 %v622
    %v624 = vperm.slane %v618, %v623
    %v626 = vunpack.c.l.s4 1934713408
    %v627 = vunpack.c.0.s8 %v626
    %v628 = vperm.slane %v620, %v627
    %v629 = vrot.slane %v612, 4
    %v630 = vsel %vm341, 0.0, %v629
    %v631 = vrot.slane %v616, 4
    %v632 = vsel %vm341, 0.0, %v631
    %v633 = vrot.slane %v624, 4
    %v634 = vsel %vm341, 0.0, %v633
    %v635 = vrot.slane %v628, 4
    %v636 = vsel %vm341, 0.0, %v635
    %v637 = vrot.slane %v572, 4
    %v638 = vsel %vm341, %v637, %v258
    %v639 = vrot.slane %v258, 4
    %v640 = vsel %vm341, %v572, %v639
    %v642 = vunpack.c.l.s4 1983009808
    %v643 = vunpack.c.0.s8 %v642
    %v644 = vperm.slane %v638, %v643
    %v646 = vunpack.c.l.s4 1983009808
    %v647 = vunpack.c.0.s8 %v646
    %v648 = vperm.slane %v640, %v647
    %v649 = vrot.slane %v578, 4
    %v650 = vsel %vm341, %v649, %v566
    %v651 = vrot.slane %v566, 4
    %v652 = vsel %vm341, %v578, %v651
    %v654 = vunpack.c.l.s4 1983009808
    %v655 = vunpack.c.0.s8 %v654
    %v656 = vperm.slane %v650, %v655
    %v658 = vunpack.c.l.s4 1983009808
    %v659 = vunpack.c.0.s8 %v658
    %v660 = vperm.slane %v652, %v659
    %v661 = vrot.slane %v656, 4
    %v662 = vsel %vm341, %v661, %v644
    %v663 = vrot.slane %v644, 4
    %v664 = vsel %vm341, %v656, %v663
    %v666 = vunpack.c.l.s4 1934713408
    %v667 = vunpack.c.0.s8 %v666
    %v668 = vperm.slane %v662, %v667
    %v670 = vunpack.c.l.s4 1934713408
    %v671 = vunpack.c.0.s8 %v670
    %v672 = vperm.slane %v664, %v671
    %v673 = vrot.slane %v660, 4
    %v674 = vsel %vm341, %v673, %v648
    %v675 = vrot.slane %v648, 4
    %v676 = vsel %vm341, %v660, %v675
    %v678 = vunpack.c.l.s4 1934713408
    %v679 = vunpack.c.0.s8 %v678
    %v680 = vperm.slane %v674, %v679
    %v682 = vunpack.c.l.s4 1934713408
    %v683 = vunpack.c.0.s8 %v682
    %v684 = vperm.slane %v676, %v683
    %v685 = vrot.slane %v668, 4
    %v686 = vsel %vm341, 0.0, %v685
    %v687 = vrot.slane %v672, 4
    %v688 = vsel %vm341, 0.0, %v687
    %v689 = vrot.slane %v680, 4
    %v690 = vsel %vm341, 0.0, %v689
    %v691 = vrot.slane %v684, 4
    %v692 = vsel %vm341, 0.0, %v691
    %v693 = vsel %vm341, %v633, %v612
    %v695 = vunpack.c.l.s4 1983009808
    %v696 = vunpack.c.0.s8 %v695
    %v697 = vperm.slane %v693, %v696
    %v698 = vsel %vm341, %v635, %v616
    %v700 = vunpack.c.l.s4 1983009808
    %v701 = vunpack.c.0.s8 %v700
    %v702 = vperm.slane %v698, %v701
    %v703 = vsel %vm341, %v689, %v668
    %v705 = vunpack.c.l.s4 1983009808
    %v706 = vunpack.c.0.s8 %v705
    %v707 = vperm.slane %v703, %v706
    %v708 = vsel %vm341, %v691, %v672
    %v710 = vunpack.c.l.s4 1983009808
    %v711 = vunpack.c.0.s8 %v710
    %v712 = vperm.slane %v708, %v711
    %v713 = vrot.slane %v702, 4
    %v714 = vsel %vm341, %v713, %v697
    %v715 = vrot.slane %v697, 4
    %v716 = vsel %vm341, %v702, %v715
    %v718 = vunpack.c.l.s4 1934713408
    %v719 = vunpack.c.0.s8 %v718
    %v720 = vperm.slane %v714, %v719
    %v722 = vunpack.c.l.s4 1934713408
    %v723 = vunpack.c.0.s8 %v722
    %v724 = vperm.slane %v716, %v723
    %v725 = vrot.slane %v712, 4
    %v726 = vsel %vm341, %v725, %v707
    %v727 = vrot.slane %v707, 4
    %v728 = vsel %vm341, %v712, %v727
    %v730 = vunpack.c.l.s4 1934713408
    %v731 = vunpack.c.0.s8 %v730
    %v732 = vperm.slane %v726, %v731
    %v734 = vunpack.c.l.s4 1934713408
    %v735 = vunpack.c.0.s8 %v734
    %v736 = vperm.slane %v728, %v735
    %v737 = vrot.slane %v732, 4
    %v738 = vsel %vm341, %v737, %v720
    %v739 = vrot.slane %v720, 4
    %v740 = vsel %vm341, %v732, %v739
    %v741 = vrot.slane %v736, 4
    %v742 = vsel %vm341, %v741, %v724
    %v743 = vrot.slane %v724, 4
    %v744 = vsel %vm341, %v736, %v743
    %v745 = vrot.slane %v634, 4
    %v746 = vsel %vm341, %v745, %v630
    %v748 = vunpack.c.l.s4 1983009808
    %v749 = vunpack.c.0.s8 %v748
    %v750 = vperm.slane %v746, %v749
    %v751 = vrot.slane %v636, 4
    %v752 = vsel %vm341, %v751, %v632
    %v754 = vunpack.c.l.s4 1983009808
    %v755 = vunpack.c.0.s8 %v754
    %v756 = vperm.slane %v752, %v755
    %v757 = vrot.slane %v690, 4
    %v758 = vsel %vm341, %v757, %v686
    %v760 = vunpack.c.l.s4 1983009808
    %v761 = vunpack.c.0.s8 %v760
    %v762 = vperm.slane %v758, %v761
    %v763 = vrot.slane %v692, 4
    %v764 = vsel %vm341, %v763, %v688
    %v766 = vunpack.c.l.s4 1983009808
    %v767 = vunpack.c.0.s8 %v766
    %v768 = vperm.slane %v764, %v767
    %v769 = vrot.slane %v756, 4
    %v770 = vsel %vm341, %v769, %v750
    %v771 = vrot.slane %v750, 4
    %v772 = vsel %vm341, %v756, %v771
    %v774 = vunpack.c.l.s4 1934713408
    %v775 = vunpack.c.0.s8 %v774
    %v776 = vperm.slane %v770, %v775
    %v778 = vunpack.c.l.s4 1934713408
    %v779 = vunpack.c.0.s8 %v778
    %v780 = vperm.slane %v772, %v779
    %v781 = vrot.slane %v768, 4
    %v782 = vsel %vm341, %v781, %v762
    %v783 = vrot.slane %v762, 4
    %v784 = vsel %vm341, %v768, %v783
    %v786 = vunpack.c.l.s4 1934713408
    %v787 = vunpack.c.0.s8 %v786
    %v788 = vperm.slane %v782, %v787
    %v790 = vunpack.c.l.s4 1934713408
    %v791 = vunpack.c.0.s8 %v790
    %v792 = vperm.slane %v784, %v791
    %v793 = vrot.slane %v788, 4
    %v794 = vsel %vm341, %v793, %v776
    %v795 = vrot.slane %v776, 4
    %v796 = vsel %vm341, %v788, %v795
    %v797 = vrot.slane %v792, 4
    %v798 = vsel %vm341, %v797, %v780
    %v799 = vrot.slane %v780, 4
    %v800 = vsel %vm341, %v792, %v799
    %803 = vrot.lane.b32.xlu0 %v315, 120
    %v804 = vpop.permute.xlu0 %803
    %805 = vrot.lane.b32.xlu0 %v318, 120
    %v806 = vpop.permute.xlu0 %805
    %809 = vrot.lane.b32.xlu0 %v315, 112
    %v810 = vpop.permute.xlu0 %809
    %811 = vrot.lane.b32.xlu0 %v318, 112
    %v812 = vpop.permute.xlu0 %811
    %815 = vrot.lane.b32.xlu0 %v315, 104
    %v816 = vpop.permute.xlu0 %815
    %817 = vrot.lane.b32.xlu0 %v318, 104
    %v818 = vpop.permute.xlu0 %817
    %v821 = vrot.slane %v810, 4
    %v822 = vsel %vm341, %v821, %v315
    %v823 = vrot.slane %v315, 4
    %v824 = vsel %vm341, %v810, %v823
    %v826 = vunpack.c.l.s4 1983009808
    %v827 = vunpack.c.0.s8 %v826
    %v828 = vperm.slane %v822, %v827
    %v830 = vunpack.c.l.s4 1983009808
    %v831 = vunpack.c.0.s8 %v830
    %v832 = vperm.slane %v824, %v831
    %v833 = vrot.slane %v816, 4
    %v834 = vsel %vm341, %v833, %v804
    %v835 = vrot.slane %v804, 4
    %v836 = vsel %vm341, %v816, %v835
    %v838 = vunpack.c.l.s4 1983009808
    %v839 = vunpack.c.0.s8 %v838
    %v840 = vperm.slane %v834, %v839
    %v842 = vunpack.c.l.s4 1983009808
    %v843 = vunpack.c.0.s8 %v842
    %v844 = vperm.slane %v836, %v843
    %v845 = vrot.slane %v840, 4
    %v846 = vsel %vm341, %v845, %v828
    %v847 = vrot.slane %v828, 4
    %v848 = vsel %vm341, %v840, %v847
    %v850 = vunpack.c.l.s4 1934713408
    %v851 = vunpack.c.0.s8 %v850
    %v852 = vperm.slane %v846, %v851
    %v854 = vunpack.c.l.s4 1934713408
    %v855 = vunpack.c.0.s8 %v854
    %v856 = vperm.slane %v848, %v855
    %v857 = vrot.slane %v844, 4
    %v858 = vsel %vm341, %v857, %v832
    %v859 = vrot.slane %v832, 4
    %v860 = vsel %vm341, %v844, %v859
    %v862 = vunpack.c.l.s4 1934713408
    %v863 = vunpack.c.0.s8 %v862
    %v864 = vperm.slane %v858, %v863
    %v866 = vunpack.c.l.s4 1934713408
    %v867 = vunpack.c.0.s8 %v866
    %v868 = vperm.slane %v860, %v867
    %v869 = vrot.slane %v852, 4
    %v870 = vsel %vm341, 0.0, %v869
    %v871 = vrot.slane %v856, 4
    %v872 = vsel %vm341, 0.0, %v871
    %v873 = vrot.slane %v864, 4
    %v874 = vsel %vm341, 0.0, %v873
    %v875 = vrot.slane %v868, 4
    %v876 = vsel %vm341, 0.0, %v875
    %v877 = vrot.slane %v812, 4
    %v878 = vsel %vm341, %v877, %v318
    %v879 = vrot.slane %v318, 4
    %v880 = vsel %vm341, %v812, %v879
    %v882 = vunpack.c.l.s4 1983009808
    %v883 = vunpack.c.0.s8 %v882
    %v884 = vperm.slane %v878, %v883
    %v886 = vunpack.c.l.s4 1983009808
    %v887 = vunpack.c.0.s8 %v886
    %v888 = vperm.slane %v880, %v887
    %v889 = vrot.slane %v818, 4
    %v890 = vsel %vm341, %v889, %v806
    %v891 = vrot.slane %v806, 4
    %v892 = vsel %vm341, %v818, %v891
    %v894 = vunpack.c.l.s4 1983009808
    %v895 = vunpack.c.0.s8 %v894
    %v896 = vperm.slane %v890, %v895
    %v898 = vunpack.c.l.s4 1983009808
    %v899 = vunpack.c.0.s8 %v898
    %v900 = vperm.slane %v892, %v899
    %v901 = vrot.slane %v896, 4
    %v902 = vsel %vm341, %v901, %v884
    %v903 = vrot.slane %v884, 4
    %v904 = vsel %vm341, %v896, %v903
    %v906 = vunpack.c.l.s4 1934713408
    %v907 = vunpack.c.0.s8 %v906
    %v908 = vperm.slane %v902, %v907
    %v910 = vunpack.c.l.s4 1934713408
    %v911 = vunpack.c.0.s8 %v910
    %v912 = vperm.slane %v904, %v911
    %v913 = vrot.slane %v900, 4
    %v914 = vsel %vm341, %v913, %v888
    %v915 = vrot.slane %v888, 4
    %v916 = vsel %vm341, %v900, %v915
    %v918 = vunpack.c.l.s4 1934713408
    %v919 = vunpack.c.0.s8 %v918
    %v920 = vperm.slane %v914, %v919
    %v922 = vunpack.c.l.s4 1934713408
    %v923 = vunpack.c.0.s8 %v922
    %v924 = vperm.slane %v916, %v923
    %v925 = vrot.slane %v908, 4
    %v926 = vsel %vm341, 0.0, %v925
    %v927 = vrot.slane %v912, 4
    %v928 = vsel %vm341, 0.0, %v927
    %v929 = vrot.slane %v920, 4
    %v930 = vsel %vm341, 0.0, %v929
    %v931 = vrot.slane %v924, 4
    %v932 = vsel %vm341, 0.0, %v931
    %v933 = vsel %vm341, %v873, %v852
    %v935 = vunpack.c.l.s4 1983009808
    %v936 = vunpack.c.0.s8 %v935
    %v937 = vperm.slane %v933, %v936
    %v938 = vsel %vm341, %v875, %v856
    %v940 = vunpack.c.l.s4 1983009808
    %v941 = vunpack.c.0.s8 %v940
    %v942 = vperm.slane %v938, %v941
    %v943 = vsel %vm341, %v929, %v908
    %v945 = vunpack.c.l.s4 1983009808
    %v946 = vunpack.c.0.s8 %v945
    %v947 = vperm.slane %v943, %v946
    %v948 = vsel %vm341, %v931, %v912
    %v950 = vunpack.c.l.s4 1983009808
    %v951 = vunpack.c.0.s8 %v950
    %v952 = vperm.slane %v948, %v951
    %v953 = vrot.slane %v942, 4
    %v954 = vsel %vm341, %v953, %v937
    %v955 = vrot.slane %v937, 4
    %v956 = vsel %vm341, %v942, %v955
    %v958 = vunpack.c.l.s4 1934713408
    %v959 = vunpack.c.0.s8 %v958
    %v960 = vperm.slane %v954, %v959
    %v962 = vunpack.c.l.s4 1934713408
    %v963 = vunpack.c.0.s8 %v962
    %v964 = vperm.slane %v956, %v963
    %v965 = vrot.slane %v952, 4
    %v966 = vsel %vm341, %v965, %v947
    %v967 = vrot.slane %v947, 4
    %v968 = vsel %vm341, %v952, %v967
    %v970 = vunpack.c.l.s4 1934713408
    %v971 = vunpack.c.0.s8 %v970
    %v972 = vperm.slane %v966, %v971
    %v974 = vunpack.c.l.s4 1934713408
    %v975 = vunpack.c.0.s8 %v974
    %v976 = vperm.slane %v968, %v975
    %v977 = vrot.slane %v972, 4
    %v978 = vsel %vm341, %v977, %v960
    %v979 = vrot.slane %v960, 4
    %v980 = vsel %vm341, %v972, %v979
    %v981 = vrot.slane %v976, 4
    %v982 = vsel %vm341, %v981, %v964
    %v983 = vrot.slane %v964, 4
    %v984 = vsel %vm341, %v976, %v983
    %v985 = vrot.slane %v874, 4
    %v986 = vsel %vm341, %v985, %v870
    %v988 = vunpack.c.l.s4 1983009808
    %v989 = vunpack.c.0.s8 %v988
    %v990 = vperm.slane %v986, %v989
    %v991 = vrot.slane %v876, 4
    %v992 = vsel %vm341, %v991, %v872
    %v994 = vunpack.c.l.s4 1983009808
    %v995 = vunpack.c.0.s8 %v994
    %v996 = vperm.slane %v992, %v995
    %v997 = vrot.slane %v930, 4
    %v998 = vsel %vm341, %v997, %v926
    %v1000 = vunpack.c.l.s4 1983009808
    %v1001 = vunpack.c.0.s8 %v1000
    %v1002 = vperm.slane %v998, %v1001
    %v1003 = vrot.slane %v932, 4
    %v1004 = vsel %vm341, %v1003, %v928
    %v1006 = vunpack.c.l.s4 1983009808
    %v1007 = vunpack.c.0.s8 %v1006
    %v1008 = vperm.slane %v1004, %v1007
    %v1009 = vrot.slane %v996, 4
    %v1010 = vsel %vm341, %v1009, %v990
    %v1011 = vrot.slane %v990, 4
    %v1012 = vsel %vm341, %v996, %v1011
    %v1014 = vunpack.c.l.s4 1934713408
    %v1015 = vunpack.c.0.s8 %v1014
    %v1016 = vperm.slane %v1010, %v1015
    %v1018 = vunpack.c.l.s4 1934713408
    %v1019 = vunpack.c.0.s8 %v1018
    %v1020 = vperm.slane %v1012, %v1019
    %v1021 = vrot.slane %v1008, 4
    %v1022 = vsel %vm341, %v1021, %v1002
    %v1023 = vrot.slane %v1002, 4
    %v1024 = vsel %vm341, %v1008, %v1023
    %v1026 = vunpack.c.l.s4 1934713408
    %v1027 = vunpack.c.0.s8 %v1026
    %v1028 = vperm.slane %v1022, %v1027
    %v1030 = vunpack.c.l.s4 1934713408
    %v1031 = vunpack.c.0.s8 %v1030
    %v1032 = vperm.slane %v1024, %v1031
    %v1033 = vrot.slane %v1028, 4
    %v1034 = vsel %vm341, %v1033, %v1016
    %v1035 = vrot.slane %v1016, 4
    %v1036 = vsel %vm341, %v1028, %v1035
    %v1037 = vrot.slane %v1032, 4
    %v1038 = vsel %vm341, %v1037, %v1020
    %v1039 = vrot.slane %v1020, 4
    %v1040 = vsel %vm341, %v1032, %v1039
    %vm1041 = vcmask 64512
    %v1043 = vsel %vm1041, %v498, 0
    %v1046 = vsel %vm1041, %v738, 0
    %1048 = vmatpush.xpose.msra.mxu0 0.0
    %1049 = vmatpush.xpose.msra.mxu0 0.0
    %1050 = vmatpush.xpose.msra.mxu0 0.0
    %1051 = vmatpush.xpose.msra.mxu0 0.0
    %1052 = vmatpush.xpose.msra.mxu0 0.0
    %1053 = vmatpush.xpose.msra.mxu0 0.0
    %1054 = vmatpush.xpose.msra.mxu0 0.0
    %1055 = vmatpush.xpose.msra.mxu0 0.0
    %1056 = vmatpush.xpose.msra.mxu0 0.0
    %1057 = vmatpush.xpose.msra.mxu0 0.0
    %1058 = vmatpush.xpose.msra.mxu0 0.0
    %1059 = vmatpush.xpose.msra.mxu0 0.0
    %1060 = vmatpush.xpose.msra.mxu0 0.0
    %1061 = vmatpush.xpose.msra.mxu0 0.0
    %1062 = vmatpush.xpose.msra.mxu0 0.0
    %1063 = vmatpush.xpose.msra.mxu0 %v1046
    %1064 = vmatmul.f32.gmra.mxu0 %v1043
    %v1065 = vpop.f32.mrf.mxu0
    %v1066 = vadd.f32 0.0, %v1065
    %1067 = vdwg.mxu0
    %v1069 = vsel %vm1041, %v500, 0
    %v1072 = vsel %vm1041, %v740, 0
    %1074 = vmatpush.xpose.msra.mxu0 0.0
    %1075 = vmatpush.xpose.msra.mxu0 0.0
    %1076 = vmatpush.xpose.msra.mxu0 0.0
    %1077 = vmatpush.xpose.msra.mxu0 0.0
    %1078 = vmatpush.xpose.msra.mxu0 0.0
    %1079 = vmatpush.xpose.msra.mxu0 0.0
    %1080 = vmatpush.xpose.msra.mxu0 0.0
    %1081 = vmatpush.xpose.msra.mxu0 0.0
    %1082 = vmatpush.xpose.msra.mxu0 0.0
    %1083 = vmatpush.xpose.msra.mxu0 0.0
    %1084 = vmatpush.xpose.msra.mxu0 0.0
    %1085 = vmatpush.xpose.msra.mxu0 0.0
    %1086 = vmatpush.xpose.msra.mxu0 0.0
    %1087 = vmatpush.xpose.msra.mxu0 0.0
    %1088 = vmatpush.xpose.msra.mxu0 0.0
    %1089 = vmatpush.xpose.msra.mxu0 %v1072
    %1090 = vmatmul.f32.gmra.mxu0 %v1069
    %v1091 = vpop.f32.mrf.mxu0
    %v1092 = vadd.f32 0.0, %v1091
    %1093 = vdwg.mxu0
    %v1095 = vsel %vm1041, %v502, 0
    %v1098 = vsel %vm1041, %v742, 0
    %1100 = vmatpush.xpose.msra.mxu0 0.0
    %1101 = vmatpush.xpose.msra.mxu0 0.0
    %1102 = vmatpush.xpose.msra.mxu0 0.0
    %1103 = vmatpush.xpose.msra.mxu0 0.0
    %1104 = vmatpush.xpose.msra.mxu0 0.0
    %1105 = vmatpush.xpose.msra.mxu0 0.0
    %1106 = vmatpush.xpose.msra.mxu0 0.0
    %1107 = vmatpush.xpose.msra.mxu0 0.0
    %1108 = vmatpush.xpose.msra.mxu0 0.0
    %1109 = vmatpush.xpose.msra.mxu0 0.0
    %1110 = vmatpush.xpose.msra.mxu0 0.0
    %1111 = vmatpush.xpose.msra.mxu0 0.0
    %1112 = vmatpush.xpose.msra.mxu0 0.0
    %1113 = vmatpush.xpose.msra.mxu0 0.0
    %1114 = vmatpush.xpose.msra.mxu0 0.0
    %1115 = vmatpush.xpose.msra.mxu0 %v1098
    %1116 = vmatmul.f32.gmra.mxu0 %v1095
    %v1117 = vpop.f32.mrf.mxu0
    %v1118 = vadd.f32 0.0, %v1117
    %1119 = vdwg.mxu0
    %v1121 = vsel %vm1041, %v504, 0
    %v1124 = vsel %vm1041, %v744, 0
    %1126 = vmatpush.xpose.msra.mxu0 0.0
    %1127 = vmatpush.xpose.msra.mxu0 0.0
    %1128 = vmatpush.xpose.msra.mxu0 0.0
    %1129 = vmatpush.xpose.msra.mxu0 0.0
    %1130 = vmatpush.xpose.msra.mxu0 0.0
    %1131 = vmatpush.xpose.msra.mxu0 0.0
    %1132 = vmatpush.xpose.msra.mxu0 0.0
    %1133 = vmatpush.xpose.msra.mxu0 0.0
    %1134 = vmatpush.xpose.msra.mxu0 0.0
    %1135 = vmatpush.xpose.msra.mxu0 0.0
    %1136 = vmatpush.xpose.msra.mxu0 0.0
    %1137 = vmatpush.xpose.msra.mxu0 0.0
    %1138 = vmatpush.xpose.msra.mxu0 0.0
    %1139 = vmatpush.xpose.msra.mxu0 0.0
    %1140 = vmatpush.xpose.msra.mxu0 0.0
    %1141 = vmatpush.xpose.msra.mxu0 %v1124
    %1142 = vmatmul.f32.gmra.mxu0 %v1121
    %v1143 = vpop.f32.mrf.mxu0
    %v1144 = vadd.f32 0.0, %v1143
    %1145 = vdwg.mxu0
    %v1147 = vsel %vm1041, %v554, 0
    %v1150 = vsel %vm1041, %v794, 0
    %1152 = vmatpush.xpose.msra.mxu0 0.0
    %1153 = vmatpush.xpose.msra.mxu0 0.0
    %1154 = vmatpush.xpose.msra.mxu0 0.0
    %1155 = vmatpush.xpose.msra.mxu0 0.0
    %1156 = vmatpush.xpose.msra.mxu0 0.0
    %1157 = vmatpush.xpose.msra.mxu0 0.0
    %1158 = vmatpush.xpose.msra.mxu0 0.0
    %1159 = vmatpush.xpose.msra.mxu0 0.0
    %1160 = vmatpush.xpose.msra.mxu0 0.0
    %1161 = vmatpush.xpose.msra.mxu0 0.0
    %1162 = vmatpush.xpose.msra.mxu0 0.0
    %1163 = vmatpush.xpose.msra.mxu0 0.0
    %1164 = vmatpush.xpose.msra.mxu0 0.0
    %1165 = vmatpush.xpose.msra.mxu0 0.0
    %1166 = vmatpush.xpose.msra.mxu0 0.0
    %1167 = vmatpush.xpose.msra.mxu0 %v1150
    %1168 = vmatmul.f32.gmra.mxu0 %v1147
    %v1169 = vpop.f32.mrf.mxu0
    %v1170 = vadd.f32 0.0, %v1169
    %1171 = vdwg.mxu0
    %v1173 = vsel %vm1041, %v556, 0
    %v1176 = vsel %vm1041, %v796, 0
    %1178 = vmatpush.xpose.msra.mxu0 0.0
    %1179 = vmatpush.xpose.msra.mxu0 0.0
    %1180 = vmatpush.xpose.msra.mxu0 0.0
    %1181 = vmatpush.xpose.msra.mxu0 0.0
    %1182 = vmatpush.xpose.msra.mxu0 0.0
    %1183 = vmatpush.xpose.msra.mxu0 0.0
    %1184 = vmatpush.xpose.msra.mxu0 0.0
    %1185 = vmatpush.xpose.msra.mxu0 0.0
    %1186 = vmatpush.xpose.msra.mxu0 0.0
    %1187 = vmatpush.xpose.msra.mxu0 0.0
    %1188 = vmatpush.xpose.msra.mxu0 0.0
    %1189 = vmatpush.xpose.msra.mxu0 0.0
    %1190 = vmatpush.xpose.msra.mxu0 0.0
    %1191 = vmatpush.xpose.msra.mxu0 0.0
    %1192 = vmatpush.xpose.msra.mxu0 0.0
    %1193 = vmatpush.xpose.msra.mxu0 %v1176
    %1194 = vmatmul.f32.gmra.mxu0 %v1173
    %v1195 = vpop.f32.mrf.mxu0
    %v1196 = vadd.f32 0.0, %v1195
    %1197 = vdwg.mxu0
    %v1199 = vsel %vm1041, %v558, 0
    %v1202 = vsel %vm1041, %v798, 0
    %1204 = vmatpush.xpose.msra.mxu0 0.0
    %1205 = vmatpush.xpose.msra.mxu0 0.0
    %1206 = vmatpush.xpose.msra.mxu0 0.0
    %1207 = vmatpush.xpose.msra.mxu0 0.0
    %1208 = vmatpush.xpose.msra.mxu0 0.0
    %1209 = vmatpush.xpose.msra.mxu0 0.0
    %1210 = vmatpush.xpose.msra.mxu0 0.0
    %1211 = vmatpush.xpose.msra.mxu0 0.0
    %1212 = vmatpush.xpose.msra.mxu0 0.0
    %1213 = vmatpush.xpose.msra.mxu0 0.0
    %1214 = vmatpush.xpose.msra.mxu0 0.0
    %1215 = vmatpush.xpose.msra.mxu0 0.0
    %1216 = vmatpush.xpose.msra.mxu0 0.0
    %1217 = vmatpush.xpose.msra.mxu0 0.0
    %1218 = vmatpush.xpose.msra.mxu0 0.0
    %1219 = vmatpush.xpose.msra.mxu0 %v1202
    %1220 = vmatmul.f32.gmra.mxu0 %v1199
    %v1221 = vpop.f32.mrf.mxu0
    %v1222 = vadd.f32 0.0, %v1221
    %1223 = vdwg.mxu0
    %v1225 = vsel %vm1041, %v560, 0
    %v1228 = vsel %vm1041, %v800, 0
    %1230 = vmatpush.xpose.msra.mxu0 0.0
    %1231 = vmatpush.xpose.msra.mxu0 0.0
    %1232 = vmatpush.xpose.msra.mxu0 0.0
    %1233 = vmatpush.xpose.msra.mxu0 0.0
    %1234 = vmatpush.xpose.msra.mxu0 0.0
    %1235 = vmatpush.xpose.msra.mxu0 0.0
    %1236 = vmatpush.xpose.msra.mxu0 0.0
    %1237 = vmatpush.xpose.msra.mxu0 0.0
    %1238 = vmatpush.xpose.msra.mxu0 0.0
    %1239 = vmatpush.xpose.msra.mxu0 0.0
    %1240 = vmatpush.xpose.msra.mxu0 0.0
    %1241 = vmatpush.xpose.msra.mxu0 0.0
    %1242 = vmatpush.xpose.msra.mxu0 0.0
    %1243 = vmatpush.xpose.msra.mxu0 0.0
    %1244 = vmatpush.xpose.msra.mxu0 0.0
    %1245 = vmatpush.xpose.msra.mxu0 %v1228
    %1246 = vmatmul.f32.gmra.mxu0 %v1225
    %v1247 = vpop.f32.mrf.mxu0
    %v1248 = vadd.f32 0.0, %v1247
    %1249 = vdwg.mxu0
    %v1250 = vsel %vm1041, %v1066, -inf
    %1251 = vmax.xlane.f32.xlu0 %v1250
    %v1252 = vpop.xlane.xlu0 %1251
    %v1253 = vsel %vm1041, %v1092, -inf
    %1254 = vmax.xlane.f32.xlu0 %v1253
    %v1255 = vpop.xlane.xlu0 %1254
    %v1256 = vsel %vm1041, %v1118, -inf
    %1257 = vmax.xlane.f32.xlu0 %v1256
    %v1258 = vpop.xlane.xlu0 %1257
    %v1259 = vsel %vm1041, %v1144, -inf
    %1260 = vmax.xlane.f32.xlu0 %v1259
    %v1261 = vpop.xlane.xlu0 %1260
    %v1262 = vsel %vm1041, %v1170, -inf
    %1263 = vmax.xlane.f32.xlu0 %v1262
    %v1264 = vpop.xlane.xlu0 %1263
    %v1265 = vsel %vm1041, %v1196, -inf
    %1266 = vmax.xlane.f32.xlu0 %v1265
    %v1267 = vpop.xlane.xlu0 %1266
    %v1268 = vsel %vm1041, %v1222, -inf
    %1269 = vmax.xlane.f32.xlu0 %v1268
    %v1270 = vpop.xlane.xlu0 %1269
    %v1271 = vsel %vm1041, %v1248, -inf
    %1272 = vmax.xlane.f32.xlu0 %v1271
    %v1273 = vpop.xlane.xlu0 %1272
    %v1274 = vsub.f32 %v1066, %v1252
    %v1275 = vsub.f32 %v1092, %v1255
    %v1276 = vsub.f32 %v1118, %v1258
    %v1277 = vsub.f32 %v1144, %v1261
    %v1278 = vsub.f32 %v1170, %v1264
    %v1279 = vsub.f32 %v1196, %v1267
    %v1280 = vsub.f32 %v1222, %v1270
    %v1281 = vsub.f32 %v1248, %v1273
    %v1282 = vmul.f32 %v1274, 1.442695
    %v1283 = vpow.pop %v1282
    %v1284 = vmul.f32 %v1275, 1.442695
    %v1285 = vpow.pop %v1284
    %v1286 = vmul.f32 %v1276, 1.442695
    %v1287 = vpow.pop %v1286
    %v1288 = vmul.f32 %v1277, 1.442695
    %v1289 = vpow.pop %v1288
    %v1290 = vmul.f32 %v1278, 1.442695
    %v1291 = vpow.pop %v1290
    %v1292 = vmul.f32 %v1279, 1.442695
    %v1293 = vpow.pop %v1292
    %v1294 = vmul.f32 %v1280, 1.442695
    %v1295 = vpow.pop %v1294
    %v1296 = vmul.f32 %v1281, 1.442695
    %v1297 = vpow.pop %v1296
    %v1298 = vsel %vm1041, %v1283, 0.0
    %1299 = vadd.xlane.f32.xlu0 %v1298
    %v1300 = vpop.xlane.xlu0 %1299
    %v1301 = vsel %vm1041, %v1285, 0.0
    %1302 = vadd.xlane.f32.xlu0 %v1301
    %v1303 = vpop.xlane.xlu0 %1302
    %v1304 = vsel %vm1041, %v1287, 0.0
    %1305 = vadd.xlane.f32.xlu0 %v1304
    %v1306 = vpop.xlane.xlu0 %1305
    %v1307 = vsel %vm1041, %v1289, 0.0
    %1308 = vadd.xlane.f32.xlu0 %v1307
    %v1309 = vpop.xlane.xlu0 %1308
    %v1310 = vsel %vm1041, %v1291, 0.0
    %1311 = vadd.xlane.f32.xlu0 %v1310
    %v1312 = vpop.xlane.xlu0 %1311
    %v1313 = vsel %vm1041, %v1293, 0.0
    %1314 = vadd.xlane.f32.xlu0 %v1313
    %v1315 = vpop.xlane.xlu0 %1314
    %v1316 = vsel %vm1041, %v1295, 0.0
    %1317 = vadd.xlane.f32.xlu0 %v1316
    %v1318 = vpop.xlane.xlu0 %1317
    %v1319 = vsel %vm1041, %v1297, 0.0
    %1320 = vadd.xlane.f32.xlu0 %v1319
    %v1321 = vpop.xlane.xlu0 %1320
    %v1322 = vrcp.pop %v1300
    %v1323 = vmul.f32 %v1300, %v1322
    %v1324 = vsub.f32 1.0, %v1323
    %v1325 = vmul.f32 %v1322, %v1324
    %v1326 = vadd.f32 %v1322, %v1325
    %vm1327 = vweird.f32 %v1300
    %vm1328 = vweird.f32 %v1322
    %vm1329 = vmor %vm1327, %vm1328
    %v1330 = vsel %vm1329, %v1322, %v1326
    %v1331 = vand.u32 2147483647, %v1300
    %vm1332 = vcmp.eq.f32.partialorder %v1331, 8.507059e+37
    %v1333 = vand.u32 %v1300, 2147483648
    %v1334 = vor.u32 1.1754944e-38, %v1333
    %v1335 = vsel %vm1332, %v1334, %v1330
    %v1336 = vrcp.pop %v1303
    %v1337 = vmul.f32 %v1303, %v1336
    %v1338 = vsub.f32 1.0, %v1337
    %v1339 = vmul.f32 %v1336, %v1338
    %v1340 = vadd.f32 %v1336, %v1339
    %vm1341 = vweird.f32 %v1303
    %vm1342 = vweird.f32 %v1336
    %vm1343 = vmor %vm1341, %vm1342
    %v1344 = vsel %vm1343, %v1336, %v1340
    %v1345 = vand.u32 2147483647, %v1303
    %vm1346 = vcmp.eq.f32.partialorder %v1345, 8.507059e+37
    %v1347 = vand.u32 %v1303, 2147483648
    %v1348 = vor.u32 1.1754944e-38, %v1347
    %v1349 = vsel %vm1346, %v1348, %v1344
    %v1350 = vrcp.pop %v1306
    %v1351 = vmul.f32 %v1306, %v1350
    %v1352 = vsub.f32 1.0, %v1351
    %v1353 = vmul.f32 %v1350, %v1352
    %v1354 = vadd.f32 %v1350, %v1353
    %vm1355 = vweird.f32 %v1306
    %vm1356 = vweird.f32 %v1350
    %vm1357 = vmor %vm1355, %vm1356
    %v1358 = vsel %vm1357, %v1350, %v1354
    %v1359 = vand.u32 2147483647, %v1306
    %vm1360 = vcmp.eq.f32.partialorder %v1359, 8.507059e+37
    %v1361 = vand.u32 %v1306, 2147483648
    %v1362 = vor.u32 1.1754944e-38, %v1361
    %v1363 = vsel %vm1360, %v1362, %v1358
    %v1364 = vrcp.pop %v1309
    %v1365 = vmul.f32 %v1309, %v1364
    %v1366 = vsub.f32 1.0, %v1365
    %v1367 = vmul.f32 %v1364, %v1366
    %v1368 = vadd.f32 %v1364, %v1367
    %vm1369 = vweird.f32 %v1309
    %vm1370 = vweird.f32 %v1364
    %vm1371 = vmor %vm1369, %vm1370
    %v1372 = vsel %vm1371, %v1364, %v1368
    %v1373 = vand.u32 2147483647, %v1309
    %vm1374 = vcmp.eq.f32.partialorder %v1373, 8.507059e+37
    %v1375 = vand.u32 %v1309, 2147483648
    %v1376 = vor.u32 1.1754944e-38, %v1375
    %v1377 = vsel %vm1374, %v1376, %v1372
    %v1378 = vrcp.pop %v1312
    %v1379 = vmul.f32 %v1312, %v1378
    %v1380 = vsub.f32 1.0, %v1379
    %v1381 = vmul.f32 %v1378, %v1380
    %v1382 = vadd.f32 %v1378, %v1381
    %vm1383 = vweird.f32 %v1312
    %vm1384 = vweird.f32 %v1378
    %vm1385 = vmor %vm1383, %vm1384
    %v1386 = vsel %vm1385, %v1378, %v1382
    %v1387 = vand.u32 2147483647, %v1312
    %vm1388 = vcmp.eq.f32.partialorder %v1387, 8.507059e+37
    %v1389 = vand.u32 %v1312, 2147483648
    %v1390 = vor.u32 1.1754944e-38, %v1389
    %v1391 = vsel %vm1388, %v1390, %v1386
    %v1392 = vrcp.pop %v1315
    %v1393 = vmul.f32 %v1315, %v1392
    %v1394 = vsub.f32 1.0, %v1393
    %v1395 = vmul.f32 %v1392, %v1394
    %v1396 = vadd.f32 %v1392, %v1395
    %vm1397 = vweird.f32 %v1315
    %vm1398 = vweird.f32 %v1392
    %vm1399 = vmor %vm1397, %vm1398
    %v1400 = vsel %vm1399, %v1392, %v1396
    %v1401 = vand.u32 2147483647, %v1315
    %vm1402 = vcmp.eq.f32.partialorder %v1401, 8.507059e+37
    %v1403 = vand.u32 %v1315, 2147483648
    %v1404 = vor.u32 1.1754944e-38, %v1403
    %v1405 = vsel %vm1402, %v1404, %v1400
    %v1406 = vrcp.pop %v1318
    %v1407 = vmul.f32 %v1318, %v1406
    %v1408 = vsub.f32 1.0, %v1407
    %v1409 = vmul.f32 %v1406, %v1408
    %v1410 = vadd.f32 %v1406, %v1409
    %vm1411 = vweird.f32 %v1318
    %vm1412 = vweird.f32 %v1406
    %vm1413 = vmor %vm1411, %vm1412
    %v1414 = vsel %vm1413, %v1406, %v1410
    %v1415 = vand.u32 2147483647, %v1318
    %vm1416 = vcmp.eq.f32.partialorder %v1415, 8.507059e+37
    %v1417 = vand.u32 %v1318, 2147483648
    %v1418 = vor.u32 1.1754944e-38, %v1417
    %v1419 = vsel %vm1416, %v1418, %v1414
    %v1420 = vrcp.pop %v1321
    %v1421 = vmul.f32 %v1321, %v1420
    %v1422 = vsub.f32 1.0, %v1421
    %v1423 = vmul.f32 %v1420, %v1422
    %v1424 = vadd.f32 %v1420, %v1423
    %vm1425 = vweird.f32 %v1321
    %vm1426 = vweird.f32 %v1420
    %vm1427 = vmor %vm1425, %vm1426
    %v1428 = vsel %vm1427, %v1420, %v1424
    %v1429 = vand.u32 2147483647, %v1321
    %vm1430 = vcmp.eq.f32.partialorder %v1429, 8.507059e+37
    %v1431 = vand.u32 %v1321, 2147483648
    %v1432 = vor.u32 1.1754944e-38, %v1431
    %v1433 = vsel %vm1430, %v1432, %v1428
    %v1434 = vmul.f32 %v1283, %v1335
    %v1435 = vmul.f32 %v1285, %v1349
    %v1436 = vmul.f32 %v1287, %v1363
    %v1437 = vmul.f32 %v1289, %v1377
    %v1438 = vmul.f32 %v1291, %v1391
    %v1439 = vmul.f32 %v1293, %v1405
    %v1440 = vmul.f32 %v1295, %v1419
    %v1441 = vmul.f32 %v1297, %v1433
    %v1443 = vsel %vm1041, %v1434, 0
    %1445 = vmatpush.msra.mxu0 0.0
    %1446 = vmatpush.msra.mxu0 0.0
    %1447 = vmatpush.msra.mxu0 0.0
    %1448 = vmatpush.msra.mxu0 0.0
    %1449 = vmatpush.msra.mxu0 0.0
    %1450 = vmatpush.msra.mxu0 0.0
    %1451 = vmatpush.msra.mxu0 0.0
    %1452 = vmatpush.msra.mxu0 0.0
    %1453 = vmatpush.msra.mxu0 0.0
    %1454 = vmatpush.msra.mxu0 0.0
    %1455 = vmatpush.msra.mxu0 0.0
    %1456 = vmatpush.msra.mxu0 0.0
    %1457 = vmatpush.msra.mxu0 0.0
    %1458 = vmatpush.msra.mxu0 0.0
    %1459 = vmatpush.msra.mxu0 0.0
    %1460 = vmatpush.msra.mxu0 %v978
    %1461 = vmatmul.f32.gmra.mxu0 %v1443
    %v1462 = vpop.f32.mrf.mxu0
    %v1463 = vadd.f32 0.0, %v1462
    %1464 = vdwg.mxu0
    %v1466 = vsel %vm1041, %v1435, 0
    %1468 = vmatpush.msra.mxu0 0.0
    %1469 = vmatpush.msra.mxu0 0.0
    %1470 = vmatpush.msra.mxu0 0.0
    %1471 = vmatpush.msra.mxu0 0.0
    %1472 = vmatpush.msra.mxu0 0.0
    %1473 = vmatpush.msra.mxu0 0.0
    %1474 = vmatpush.msra.mxu0 0.0
    %1475 = vmatpush.msra.mxu0 0.0
    %1476 = vmatpush.msra.mxu0 0.0
    %1477 = vmatpush.msra.mxu0 0.0
    %1478 = vmatpush.msra.mxu0 0.0
    %1479 = vmatpush.msra.mxu0 0.0
    %1480 = vmatpush.msra.mxu0 0.0
    %1481 = vmatpush.msra.mxu0 0.0
    %1482 = vmatpush.msra.mxu0 0.0
    %1483 = vmatpush.msra.mxu0 %v980
    %1484 = vmatmul.f32.gmra.mxu0 %v1466
    %v1485 = vpop.f32.mrf.mxu0
    %v1486 = vadd.f32 0.0, %v1485
    %1487 = vdwg.mxu0
    %v1489 = vsel %vm1041, %v1436, 0
    %1491 = vmatpush.msra.mxu0 0.0
    %1492 = vmatpush.msra.mxu0 0.0
    %1493 = vmatpush.msra.mxu0 0.0
    %1494 = vmatpush.msra.mxu0 0.0
    %1495 = vmatpush.msra.mxu0 0.0
    %1496 = vmatpush.msra.mxu0 0.0
    %1497 = vmatpush.msra.mxu0 0.0
    %1498 = vmatpush.msra.mxu0 0.0
    %1499 = vmatpush.msra.mxu0 0.0
    %1500 = vmatpush.msra.mxu0 0.0
    %1501 = vmatpush.msra.mxu0 0.0
    %1502 = vmatpush.msra.mxu0 0.0
    %1503 = vmatpush.msra.mxu0 0.0
    %1504 = vmatpush.msra.mxu0 0.0
    %1505 = vmatpush.msra.mxu0 0.0
    %1506 = vmatpush.msra.mxu0 %v982
    %1507 = vmatmul.f32.gmra.mxu0 %v1489
    %v1508 = vpop.f32.mrf.mxu0
    %v1509 = vadd.f32 0.0, %v1508
    %1510 = vdwg.mxu0
    %v1512 = vsel %vm1041, %v1437, 0
    %1514 = vmatpush.msra.mxu0 0.0
    %1515 = vmatpush.msra.mxu0 0.0
    %1516 = vmatpush.msra.mxu0 0.0
    %1517 = vmatpush.msra.mxu0 0.0
    %1518 = vmatpush.msra.mxu0 0.0
    %1519 = vmatpush.msra.mxu0 0.0
    %1520 = vmatpush.msra.mxu0 0.0
    %1521 = vmatpush.msra.mxu0 0.0
    %1522 = vmatpush.msra.mxu0 0.0
    %1523 = vmatpush.msra.mxu0 0.0
    %1524 = vmatpush.msra.mxu0 0.0
    %1525 = vmatpush.msra.mxu0 0.0
    %1526 = vmatpush.msra.mxu0 0.0
    %1527 = vmatpush.msra.mxu0 0.0
    %1528 = vmatpush.msra.mxu0 0.0
    %1529 = vmatpush.msra.mxu0 %v984
    %1530 = vmatmul.f32.gmra.mxu0 %v1512
    %v1531 = vpop.f32.mrf.mxu0
    %v1532 = vadd.f32 0.0, %v1531
    %1533 = vdwg.mxu0
    %v1535 = vsel %vm1041, %v1438, 0
    %1537 = vmatpush.msra.mxu0 0.0
    %1538 = vmatpush.msra.mxu0 0.0
    %1539 = vmatpush.msra.mxu0 0.0
    %1540 = vmatpush.msra.mxu0 0.0
    %1541 = vmatpush.msra.mxu0 0.0
    %1542 = vmatpush.msra.mxu0 0.0
    %1543 = vmatpush.msra.mxu0 0.0
    %1544 = vmatpush.msra.mxu0 0.0
    %1545 = vmatpush.msra.mxu0 0.0
    %1546 = vmatpush.msra.mxu0 0.0
    %1547 = vmatpush.msra.mxu0 0.0
    %1548 = vmatpush.msra.mxu0 0.0
    %1549 = vmatpush.msra.mxu0 0.0
    %1550 = vmatpush.msra.mxu0 0.0
    %1551 = vmatpush.msra.mxu0 0.0
    %1552 = vmatpush.msra.mxu0 %v1034
    %1553 = vmatmul.f32.gmra.mxu0 %v1535
    %v1554 = vpop.f32.mrf.mxu0
    %v1555 = vadd.f32 0.0, %v1554
    %1556 = vdwg.mxu0
    %v1558 = vsel %vm1041, %v1439, 0
    %1560 = vmatpush.msra.mxu0 0.0
    %1561 = vmatpush.msra.mxu0 0.0
    %1562 = vmatpush.msra.mxu0 0.0
    %1563 = vmatpush.msra.mxu0 0.0
    %1564 = vmatpush.msra.mxu0 0.0
    %1565 = vmatpush.msra.mxu0 0.0
    %1566 = vmatpush.msra.mxu0 0.0
    %1567 = vmatpush.msra.mxu0 0.0
    %1568 = vmatpush.msra.mxu0 0.0
    %1569 = vmatpush.msra.mxu0 0.0
    %1570 = vmatpush.msra.mxu0 0.0
    %1571 = vmatpush.msra.mxu0 0.0
    %1572 = vmatpush.msra.mxu0 0.0
    %1573 = vmatpush.msra.mxu0 0.0
    %1574 = vmatpush.msra.mxu0 0.0
    %1575 = vmatpush.msra.mxu0 %v1036
    %1576 = vmatmul.f32.gmra.mxu0 %v1558
    %v1577 = vpop.f32.mrf.mxu0
    %v1578 = vadd.f32 0.0, %v1577
    %1579 = vdwg.mxu0
    %v1581 = vsel %vm1041, %v1440, 0
    %1583 = vmatpush.msra.mxu0 0.0
    %1584 = vmatpush.msra.mxu0 0.0
    %1585 = vmatpush.msra.mxu0 0.0
    %1586 = vmatpush.msra.mxu0 0.0
    %1587 = vmatpush.msra.mxu0 0.0
    %1588 = vmatpush.msra.mxu0 0.0
    %1589 = vmatpush.msra.mxu0 0.0
    %1590 = vmatpush.msra.mxu0 0.0
    %1591 = vmatpush.msra.mxu0 0.0
    %1592 = vmatpush.msra.mxu0 0.0
    %1593 = vmatpush.msra.mxu0 0.0
    %1594 = vmatpush.msra.mxu0 0.0
    %1595 = vmatpush.msra.mxu0 0.0
    %1596 = vmatpush.msra.mxu0 0.0
    %1597 = vmatpush.msra.mxu0 0.0
    %1598 = vmatpush.msra.mxu0 %v1038
    %1599 = vmatmul.f32.gmra.mxu0 %v1581
    %v1600 = vpop.f32.mrf.mxu0
    %v1601 = vadd.f32 0.0, %v1600
    %1602 = vdwg.mxu0
    %v1604 = vsel %vm1041, %v1441, 0
    %1606 = vmatpush.msra.mxu0 0.0
    %1607 = vmatpush.msra.mxu0 0.0
    %1608 = vmatpush.msra.mxu0 0.0
    %1609 = vmatpush.msra.mxu0 0.0
    %1610 = vmatpush.msra.mxu0 0.0
    %1611 = vmatpush.msra.mxu0 0.0
    %1612 = vmatpush.msra.mxu0 0.0
    %1613 = vmatpush.msra.mxu0 0.0
    %1614 = vmatpush.msra.mxu0 0.0
    %1615 = vmatpush.msra.mxu0 0.0
    %1616 = vmatpush.msra.mxu0 0.0
    %1617 = vmatpush.msra.mxu0 0.0
    %1618 = vmatpush.msra.mxu0 0.0
    %1619 = vmatpush.msra.mxu0 0.0
    %1620 = vmatpush.msra.mxu0 0.0
    %1621 = vmatpush.msra.mxu0 %v1040
    %1622 = vmatmul.f32.gmra.mxu0 %v1604
    %v1623 = vpop.f32.mrf.mxu0
    %v1624 = vadd.f32 0.0, %v1623
    %1625 = vdwg.mxu0
    %v1626 = vrot.slane %v1509, 4
    %v1627 = vsel %vm341, %v1626, %v1463
    %v1628 = vrot.slane %v1463, 4
    %v1629 = vsel %vm341, %v1509, %v1628
    %v1631 = vunpack.c.l.s4 1983009808
    %v1632 = vunpack.c.0.s8 %v1631
    %v1633 = vperm.slane %v1627, %v1632
    %v1635 = vunpack.c.l.s4 1983009808
    %v1636 = vunpack.c.0.s8 %v1635
    %v1637 = vperm.slane %v1629, %v1636
    %v1638 = vrot.slane %v1532, 4
    %v1639 = vsel %vm341, %v1638, %v1486
    %v1640 = vrot.slane %v1486, 4
    %v1641 = vsel %vm341, %v1532, %v1640
    %v1643 = vunpack.c.l.s4 1983009808
    %v1644 = vunpack.c.0.s8 %v1643
    %v1645 = vperm.slane %v1639, %v1644
    %v1647 = vunpack.c.l.s4 1983009808
    %v1648 = vunpack.c.0.s8 %v1647
    %v1649 = vperm.slane %v1641, %v1648
    %v1650 = vrot.slane %v1645, 4
    %v1651 = vsel %vm341, %v1650, %v1633
    %v1652 = vrot.slane %v1633, 4
    %v1653 = vsel %vm341, %v1645, %v1652
    %v1655 = vunpack.c.l.s4 1934713408
    %v1656 = vunpack.c.0.s8 %v1655
    %v1657 = vperm.slane %v1651, %v1656
    %v1659 = vunpack.c.l.s4 1934713408
    %v1660 = vunpack.c.0.s8 %v1659
    %v1661 = vperm.slane %v1653, %v1660
    %v1662 = vrot.slane %v1649, 4
    %v1663 = vsel %vm341, %v1662, %v1637
    %v1664 = vrot.slane %v1637, 4
    %v1665 = vsel %vm341, %v1649, %v1664
    %v1667 = vunpack.c.l.s4 1934713408
    %v1668 = vunpack.c.0.s8 %v1667
    %v1669 = vperm.slane %v1663, %v1668
    %v1671 = vunpack.c.l.s4 1934713408
    %v1672 = vunpack.c.0.s8 %v1671
    %v1673 = vperm.slane %v1665, %v1672
    %v1674 = vrot.slane %v1657, 4
    %v1675 = vsel %vm341, 0.0, %v1674
    %v1676 = vrot.slane %v1661, 4
    %v1677 = vsel %vm341, 0.0, %v1676
    %v1678 = vrot.slane %v1669, 4
    %v1679 = vsel %vm341, 0.0, %v1678
    %v1680 = vrot.slane %v1673, 4
    %v1681 = vsel %vm341, 0.0, %v1680
    %v1682 = vrot.slane %v1601, 4
    %v1683 = vsel %vm341, %v1682, %v1555
    %v1684 = vrot.slane %v1555, 4
    %v1685 = vsel %vm341, %v1601, %v1684
    %v1687 = vunpack.c.l.s4 1983009808
    %v1688 = vunpack.c.0.s8 %v1687
    %v1689 = vperm.slane %v1683, %v1688
    %v1691 = vunpack.c.l.s4 1983009808
    %v1692 = vunpack.c.0.s8 %v1691
    %v1693 = vperm.slane %v1685, %v1692
    %v1694 = vrot.slane %v1624, 4
    %v1695 = vsel %vm341, %v1694, %v1578
    %v1696 = vrot.slane %v1578, 4
    %v1697 = vsel %vm341, %v1624, %v1696
    %v1699 = vunpack.c.l.s4 1983009808
    %v1700 = vunpack.c.0.s8 %v1699
    %v1701 = vperm.slane %v1695, %v1700
    %v1703 = vunpack.c.l.s4 1983009808
    %v1704 = vunpack.c.0.s8 %v1703
    %v1705 = vperm.slane %v1697, %v1704
    %v1706 = vrot.slane %v1701, 4
    %v1707 = vsel %vm341, %v1706, %v1689
    %v1708 = vrot.slane %v1689, 4
    %v1709 = vsel %vm341, %v1701, %v1708
    %v1711 = vunpack.c.l.s4 1934713408
    %v1712 = vunpack.c.0.s8 %v1711
    %v1713 = vperm.slane %v1707, %v1712
    %v1715 = vunpack.c.l.s4 1934713408
    %v1716 = vunpack.c.0.s8 %v1715
    %v1717 = vperm.slane %v1709, %v1716
    %v1718 = vrot.slane %v1705, 4
    %v1719 = vsel %vm341, %v1718, %v1693
    %v1720 = vrot.slane %v1693, 4
    %v1721 = vsel %vm341, %v1705, %v1720
    %v1723 = vunpack.c.l.s4 1934713408
    %v1724 = vunpack.c.0.s8 %v1723
    %v1725 = vperm.slane %v1719, %v1724
    %v1727 = vunpack.c.l.s4 1934713408
    %v1728 = vunpack.c.0.s8 %v1727
    %v1729 = vperm.slane %v1721, %v1728
    %v1730 = vrot.slane %v1713, 4
    %v1731 = vsel %vm341, 0.0, %v1730
    %v1732 = vrot.slane %v1717, 4
    %v1733 = vsel %vm341, 0.0, %v1732
    %v1734 = vrot.slane %v1725, 4
    %v1735 = vsel %vm341, 0.0, %v1734
    %v1736 = vrot.slane %v1729, 4
    %v1737 = vsel %vm341, 0.0, %v1736
    %v1738 = vrot.slane %v1675, 4
    %v1739 = vsel %vm341, %v1738, %v1657
    %v1741 = vunpack.c.l.s4 1983009808
    %v1742 = vunpack.c.0.s8 %v1741
    %v1743 = vperm.slane %v1739, %v1742
    %v1744 = vrot.slane %v1731, 4
    %v1745 = vsel %vm341, %v1744, %v1713
    %v1747 = vunpack.c.l.s4 1983009808
    %v1748 = vunpack.c.0.s8 %v1747
    %v1749 = vperm.slane %v1745, %v1748
    %v1750 = vrot.slane %v1677, 4
    %v1751 = vsel %vm341, %v1750, %v1661
    %v1753 = vunpack.c.l.s4 1983009808
    %v1754 = vunpack.c.0.s8 %v1753
    %v1755 = vperm.slane %v1751, %v1754
    %v1756 = vrot.slane %v1733, 4
    %v1757 = vsel %vm341, %v1756, %v1717
    %v1759 = vunpack.c.l.s4 1983009808
    %v1760 = vunpack.c.0.s8 %v1759
    %v1761 = vperm.slane %v1757, %v1760
    %v1762 = vrot.slane %v1749, 4
    %v1763 = vsel %vm341, %v1762, %v1743
    %v1764 = vrot.slane %v1743, 4
    %v1765 = vsel %vm341, %v1749, %v1764
    %v1767 = vunpack.c.l.s4 1934713408
    %v1768 = vunpack.c.0.s8 %v1767
    %v1769 = vperm.slane %v1763, %v1768
    %v1771 = vunpack.c.l.s4 1934713408
    %v1772 = vunpack.c.0.s8 %v1771
    %v1773 = vperm.slane %v1765, %v1772
    %v1774 = vrot.slane %v1761, 4
    %v1775 = vsel %vm341, %v1774, %v1755
    %v1776 = vrot.slane %v1755, 4
    %v1777 = vsel %vm341, %v1761, %v1776
    %v1779 = vunpack.c.l.s4 1934713408
    %v1780 = vunpack.c.0.s8 %v1779
    %v1781 = vperm.slane %v1775, %v1780
    %v1783 = vunpack.c.l.s4 1934713408
    %v1784 = vunpack.c.0.s8 %v1783
    %v1785 = vperm.slane %v1777, %v1784
    %v1786 = vrot.slane %v1781, 4
    %v1787 = vsel %vm341, %v1786, %v1769
    %v1788 = vrot.slane %v1769, 4
    %v1789 = vsel %vm341, %v1781, %v1788
    %v1790 = vrot.slane %v1785, 4
    %v1791 = vsel %vm341, %v1790, %v1773
    %v1792 = vrot.slane %v1773, 4
    %v1793 = vsel %vm341, %v1785, %v1792
    %v1794 = vrot.slane %v1679, 4
    %v1795 = vsel %vm341, %v1794, %v1669
    %v1797 = vunpack.c.l.s4 1983009808
    %v1798 = vunpack.c.0.s8 %v1797
    %v1799 = vperm.slane %v1795, %v1798
    %v1800 = vrot.slane %v1735, 4
    %v1801 = vsel %vm341, %v1800, %v1725
    %v1803 = vunpack.c.l.s4 1983009808
    %v1804 = vunpack.c.0.s8 %v1803
    %v1805 = vperm.slane %v1801, %v1804
    %v1806 = vrot.slane %v1681, 4
    %v1807 = vsel %vm341, %v1806, %v1673
    %v1809 = vunpack.c.l.s4 1983009808
    %v1810 = vunpack.c.0.s8 %v1809
    %v1811 = vperm.slane %v1807, %v1810
    %v1812 = vrot.slane %v1737, 4
    %v1813 = vsel %vm341, %v1812, %v1729
    %v1815 = vunpack.c.l.s4 1983009808
    %v1816 = vunpack.c.0.s8 %v1815
    %v1817 = vperm.slane %v1813, %v1816
    %v1818 = vrot.slane %v1805, 4
    %v1819 = vsel %vm341, %v1818, %v1799
    %v1820 = vrot.slane %v1799, 4
    %v1821 = vsel %vm341, %v1805, %v1820
    %v1823 = vunpack.c.l.s4 1934713408
    %v1824 = vunpack.c.0.s8 %v1823
    %v1825 = vperm.slane %v1819, %v1824
    %v1827 = vunpack.c.l.s4 1934713408
    %v1828 = vunpack.c.0.s8 %v1827
    %v1829 = vperm.slane %v1821, %v1828
    %v1830 = vrot.slane %v1817, 4
    %v1831 = vsel %vm341, %v1830, %v1811
    %v1832 = vrot.slane %v1811, 4
    %v1833 = vsel %vm341, %v1817, %v1832
    %v1835 = vunpack.c.l.s4 1934713408
    %v1836 = vunpack.c.0.s8 %v1835
    %v1837 = vperm.slane %v1831, %v1836
    %v1839 = vunpack.c.l.s4 1934713408
    %v1840 = vunpack.c.0.s8 %v1839
    %v1841 = vperm.slane %v1833, %v1840
    %v1842 = vrot.slane %v1837, 4
    %v1843 = vsel %vm341, %v1842, %v1825
    %v1844 = vrot.slane %v1825, 4
    %v1845 = vsel %vm341, %v1837, %v1844
    %v1846 = vrot.slane %v1841, 4
    %v1847 = vsel %vm341, %v1846, %v1829
    %v1848 = vrot.slane %v1829, 4
    %v1849 = vsel %vm341, %v1841, %v1848
    %1852 = vrot.lane.b32.xlu0 %v1789, 8
    %v1853 = vpop.permute.xlu0 %1852
    %1854 = vrot.lane.b32.xlu0 %v1845, 8
    %v1855 = vpop.permute.xlu0 %1854
    %1860 = vrot.lane.b32.xlu0 %v1791, 16
    %v1861 = vpop.permute.xlu0 %1860
    %1862 = vrot.lane.b32.xlu0 %v1847, 16
    %v1863 = vpop.permute.xlu0 %1862
    %1868 = vrot.lane.b32.xlu0 %v1793, 24
    %v1869 = vpop.permute.xlu0 %1868
    %1870 = vrot.lane.b32.xlu0 %v1849, 24
    %v1871 = vpop.permute.xlu0 %1870
    %v1874 = vsel %vm1041, %v1787, %v1853
    %v1875 = vsel %vm1041, %v1843, %v1855
    %vm1876 = vcmask 130048
    %v1877 = vsel %vm1876, %v1874, %v1861
    %v1878 = vsel %vm1876, %v1875, %v1863
    %vm1879 = vcmask 195584
    %v1880 = vsel %vm1879, %v1877, %v1869
    %v1881 = vsel %vm1879, %v1878, %v1871
    %v1882 = vld [vmem:[#allocation7] sm:$0xff]
    %v1883 = vld [vmem:[#allocation7 + $0x8] sm:$0xff]
    %v1884 = vld [vmem:[#allocation7 + $0x10] sm:$0xff]
    %v1885 = vld [vmem:[#allocation7 + $0x18] sm:$0xff]
    %v1886 = vld [vmem:[%s9] sm:$0x1]
    %v1888 = vperm.slane %v1886, 0
    %v1891 = vsel %vm180, %v1880, 0
    %v1894 = vsel %vm180, %v1881, 0
    %1896 = vmatpush.msra.mxu0 0.0
    %1897 = vmatpush.msra.mxu0 0.0
    %1898 = vmatpush.msra.mxu0 0.0
    %1899 = vmatpush.msra.mxu0 0.0
    %1900 = vmatpush.msra.mxu0 0.0
    %1901 = vmatpush.msra.mxu0 0.0
    %1902 = vmatpush.msra.mxu0 0.0
    %1903 = vmatpush.msra.mxu0 0.0
    %1904 = vmatpush.msra.mxu0 0.0
    %1905 = vmatpush.msra.mxu0 0.0
    %1906 = vmatpush.msra.mxu0 0.0
    %1907 = vmatpush.msra.mxu0 0.0
    %1908 = vmatpush.msra.mxu0 %v1885
    %1909 = vmatpush.msra.mxu0 %v1884
    %1910 = vmatpush.msra.mxu0 %v1883
    %1911 = vmatpush.msra.mxu0 %v1882
    %1912 = vmatmul.f32.gmra.mxu0 %v1891
    %v1913 = vpop.f32.mrf.mxu0
    %v1914 = vadd.f32 %v1888, %v1913
    %1915 = vmatmul.f32.gmra.mxu0 %v1894
    %v1916 = vpop.f32.mrf.mxu0
    %v1917 = vadd.f32 %v1888, %v1916
    %1918 = vdwg.mxu0
    %v1921 = vrot.slane %v1914, 2
    %v1922 = vrot.slane %v1914, 4
    %v1923 = vrot.slane %v1914, 6
    %v1924 = vrot.slane %v1917, 2
    %v1925 = vrot.slane %v1917, 4
    %v1926 = vrot.slane %v1917, 6
    %v1933 = vadd.f32 %v123, %v1914
    %v1934 = vadd.f32 %v124, %v1921
    %v1935 = vadd.f32 %v125, %v1922
    %v1936 = vadd.f32 %v126, %v1923
    %v1937 = vadd.f32 %v127, %v1917
    %v1938 = vadd.f32 %v128, %v1924
    %v1939 = vadd.f32 %v129, %v1925
    %v1940 = vadd.f32 %v130, %v1926
    %1949 = vst [vmem:[#allocation1] ss:$4 sm:$0xff] %v1933
    %s1950 = scalar_lea.vmem [#allocation1], 1
    %1951 = vst [vmem:[%s1950] ss:$4 sm:$0xff] %v1934
    %s1952 = scalar_lea.vmem [#allocation1], 2
    %1953 = vst [vmem:[%s1952] ss:$4 sm:$0xff] %v1935
    %s1954 = scalar_lea.vmem [#allocation1], 3
    %1955 = vst [vmem:[%s1954] ss:$4 sm:$0xff] %v1936
    %s1956 = scalar_lea.vmem [#allocation1], 32
    %1957 = vst [vmem:[%s1956] ss:$4 sm:$0xff] %v1937
    %s1958 = scalar_lea.vmem [#allocation1], 33
    %1959 = vst [vmem:[%s1958] ss:$4 sm:$0xff] %v1938
    %s1960 = scalar_lea.vmem [#allocation1], 34
    %1961 = vst [vmem:[%s1960] ss:$4 sm:$0xff] %v1939
    %s1962 = scalar_lea.vmem [#allocation1], 35
    %1963 = vst [vmem:[%s1962] ss:$4 sm:$0xff] %v1940
    %v1964 = vld.sshfl [vmem:[#allocation1] sm:$0xff pattern:$0x73625140]
    %v1965 = vld.sshfl [vmem:[#allocation1 + $0x20] sm:$0xff pattern:$0x73625140]
    %v1968 = vsel %vm180, %v1964, 0.0
    %1969 = vadd.xlane.f32.xlu0 %v1968
    %v1970 = vpop.xlane.xlu0 %1969
    %v1971 = vsel %vm180, %v1965, 0.0
    %1972 = vadd.xlane.f32.xlu0 %v1971
    %v1973 = vpop.xlane.xlu0 %1972
    %v1974 = vrcp.pop 32.0
    %v1975 = vmul.f32 32.0, %v1974
    %v1976 = vsub.f32 1.0, %v1975
    %v1977 = vmul.f32 %v1974, %v1976
    %v1978 = vadd.f32 %v1974, %v1977
    %vm1979 = vweird.f32 %v1974
    %v1980 = vsel %vm1979, %v1974, %v1978
    %v1981 = vmul.f32 %v1970, %v1980
    %v1982 = vmul.f32 %v1973, %v1980
    %v1986 = vunpack.c.l.s4 269488144
    %v1987 = vunpack.c.0.s8 %v1986
    %v1988 = vperm.slane %v1981, %v1987
    %v1990 = vunpack.c.l.s4 842150450
    %v1991 = vunpack.c.0.s8 %v1990
    %v1992 = vperm.slane %v1981, %v1991
    %v1994 = vunpack.c.l.s4 1414812756
    %v1995 = vunpack.c.0.s8 %v1994
    %v1996 = vperm.slane %v1981, %v1995
    %v1998 = vunpack.c.l.s4 1987475062
    %v1999 = vunpack.c.0.s8 %v1998
    %v2000 = vperm.slane %v1981, %v1999
    %v2002 = vunpack.c.l.s4 269488144
    %v2003 = vunpack.c.0.s8 %v2002
    %v2004 = vperm.slane %v1982, %v2003
    %v2006 = vunpack.c.l.s4 842150450
    %v2007 = vunpack.c.0.s8 %v2006
    %v2008 = vperm.slane %v1982, %v2007
    %v2010 = vunpack.c.l.s4 1414812756
    %v2011 = vunpack.c.0.s8 %v2010
    %v2012 = vperm.slane %v1982, %v2011
    %v2014 = vunpack.c.l.s4 1987475062
    %v2015 = vunpack.c.0.s8 %v2014
    %v2016 = vperm.slane %v1982, %v2015
    %v2025 = vsub.f32 %v1933, %v1988
    %v2026 = vsub.f32 %v1934, %v1992
    %v2027 = vsub.f32 %v1935, %v1996
    %v2028 = vsub.f32 %v1936, %v2000
    %v2029 = vsub.f32 %v1937, %v2004
    %v2030 = vsub.f32 %v1938, %v2008
    %v2031 = vsub.f32 %v1939, %v2012
    %v2032 = vsub.f32 %v1940, %v2016
    %v2033 = vmul.f32 %v2025, %v2025
    %v2034 = vmul.f32 %v2026, %v2026
    %v2035 = vmul.f32 %v2027, %v2027
    %v2036 = vmul.f32 %v2028, %v2028
    %v2037 = vmul.f32 %v2029, %v2029
    %v2038 = vmul.f32 %v2030, %v2030
    %v2039 = vmul.f32 %v2031, %v2031
    %v2040 = vmul.f32 %v2032, %v2032
    %2049 = vst [vmem:[#allocation1] ss:$4 sm:$0xff] %v2033
    %s2050 = scalar_lea.vmem [#allocation1], 1
    %2051 = vst [vmem:[%s2050] ss:$4 sm:$0xff] %v2034
    %s2052 = scalar_lea.vmem [#allocation1], 2
    %2053 = vst [vmem:[%s2052] ss:$4 sm:$0xff] %v2035
    %s2054 = scalar_lea.vmem [#allocation1], 3
    %2055 = vst [vmem:[%s2054] ss:$4 sm:$0xff] %v2036
    %s2056 = scalar_lea.vmem [#allocation1], 32
    %2057 = vst [vmem:[%s2056] ss:$4 sm:$0xff] %v2037
    %s2058 = scalar_lea.vmem [#allocation1], 33
    %2059 = vst [vmem:[%s2058] ss:$4 sm:$0xff] %v2038
    %s2060 = scalar_lea.vmem [#allocation1], 34
    %2061 = vst [vmem:[%s2060] ss:$4 sm:$0xff] %v2039
    %s2062 = scalar_lea.vmem [#allocation1], 35
    %2063 = vst [vmem:[%s2062] ss:$4 sm:$0xff] %v2040
    %v2064 = vld.sshfl [vmem:[#allocation1] sm:$0xff pattern:$0x73625140]
    %v2065 = vld.sshfl [vmem:[#allocation1 + $0x20] sm:$0xff pattern:$0x73625140]
    %v2068 = vsel %vm180, %v2064, 0.0
    %2069 = vadd.xlane.f32.xlu0 %v2068
    %v2070 = vpop.xlane.xlu0 %2069
    %v2071 = vsel %vm180, %v2065, 0.0
    %2072 = vadd.xlane.f32.xlu0 %v2071
    %v2073 = vpop.xlane.xlu0 %2072
    %v2074 = vmul.f32 %v2070, %v1980
    %v2075 = vmul.f32 %v2073, %v1980
    %v2076 = vadd.f32 %v2074, 1e-05
    %v2077 = vadd.f32 %v2075, 1e-05
    %v2078 = vrsqrt.pop %v2076
    %v2079 = vmul.f32 %v2078, %v2076
    %v2080 = vmul.f32 %v2079, %v2078
    %v2081 = vmul.f32 0.5, %v2080
    %v2082 = vsub.f32 1.5, %v2081
    %v2083 = vmul.f32 %v2078, %v2082
    %vm2084 = vweird.f32 %v2076
    %vm2085 = vweird.f32 %v2078
    %vm2086 = vmor %vm2084, %vm2085
    %v2087 = vsel %vm2086, %v2078, %v2083
    %v2088 = vrsqrt.pop %v2077
    %v2089 = vmul.f32 %v2088, %v2077
    %v2090 = vmul.f32 %v2089, %v2088
    %v2091 = vmul.f32 0.5, %v2090
    %v2092 = vsub.f32 1.5, %v2091
    %v2093 = vmul.f32 %v2088, %v2092
    %vm2094 = vweird.f32 %v2077
    %vm2095 = vweird.f32 %v2088
    %vm2096 = vmor %vm2094, %vm2095
    %v2097 = vsel %vm2096, %v2088, %v2093
    %v2101 = vunpack.c.l.s4 269488144
    %v2102 = vunpack.c.0.s8 %v2101
    %v2103 = vperm.slane %v2087, %v2102
    %v2105 = vunpack.c.l.s4 842150450
    %v2106 = vunpack.c.0.s8 %v2105
    %v2107 = vperm.slane %v2087, %v2106
    %v2109 = vunpack.c.l.s4 1414812756
    %v2110 = vunpack.c.0.s8 %v2109
    %v2111 = vperm.slane %v2087, %v2110
    %v2113 = vunpack.c.l.s4 1987475062
    %v2114 = vunpack.c.0.s8 %v2113
    %v2115 = vperm.slane %v2087, %v2114
    %v2117 = vunpack.c.l.s4 269488144
    %v2118 = vunpack.c.0.s8 %v2117
    %v2119 = vperm.slane %v2097, %v2118
    %v2121 = vunpack.c.l.s4 842150450
    %v2122 = vunpack.c.0.s8 %v2121
    %v2123 = vperm.slane %v2097, %v2122
    %v2125 = vunpack.c.l.s4 1414812756
    %v2126 = vunpack.c.0.s8 %v2125
    %v2127 = vperm.slane %v2097, %v2126
    %v2129 = vunpack.c.l.s4 1987475062
    %v2130 = vunpack.c.0.s8 %v2129
    %v2131 = vperm.slane %v2097, %v2130
    %v2140 = vmul.f32 %v2025, %v2103
    %v2141 = vmul.f32 %v2026, %v2107
    %v2142 = vmul.f32 %v2027, %v2111
    %v2143 = vmul.f32 %v2028, %v2115
    %v2144 = vmul.f32 %v2029, %v2119
    %v2145 = vmul.f32 %v2030, %v2123
    %v2146 = vmul.f32 %v2031, %v2127
    %v2147 = vmul.f32 %v2032, %v2131
    %v2148 = vld [vmem:[%s10] sm:$0x1]
    %v2150 = vperm.slane %v2148, 0
    %v2152 = vrot.slane %v2150, 2
    %v2153 = vrot.slane %v2150, 4
    %v2154 = vrot.slane %v2150, 6
    %v2158 = vmul.f32 %v2140, %v2150
    %v2159 = vmul.f32 %v2141, %v2152
    %v2160 = vmul.f32 %v2142, %v2153
    %v2161 = vmul.f32 %v2143, %v2154
    %v2162 = vmul.f32 %v2144, %v2150
    %v2163 = vmul.f32 %v2145, %v2152
    %v2164 = vmul.f32 %v2146, %v2153
    %v2165 = vmul.f32 %v2147, %v2154
    %v2166 = vld [vmem:[%s11] sm:$0x1]
    %v2168 = vperm.slane %v2166, 0
    %v2170 = vrot.slane %v2168, 2
    %v2171 = vrot.slane %v2168, 4
    %v2172 = vrot.slane %v2168, 6
    %v2176 = vadd.f32 %v2158, %v2168
    %v2177 = vadd.f32 %v2159, %v2170
    %v2178 = vadd.f32 %v2160, %v2171
    %v2179 = vadd.f32 %v2161, %v2172
    %v2180 = vadd.f32 %v2162, %v2168
    %v2181 = vadd.f32 %v2163, %v2170
    %v2182 = vadd.f32 %v2164, %v2171
    %v2183 = vadd.f32 %v2165, %v2172
    %v2184 = vld [vmem:[#allocation8] sm:$0xff]
    %v2185 = vld [vmem:[#allocation8 + $0x8] sm:$0xff]
    %v2186 = vld [vmem:[#allocation8 + $0x10] sm:$0xff]
    %v2187 = vld [vmem:[#allocation8 + $0x18] sm:$0xff]
    %v2188 = vld [vmem:[%s13] sm:$0x1]
    %v2190 = vperm.slane %v2188, 0
    %2200 = vst [vmem:[#allocation1] ss:$4 sm:$0xff] %v2176
    %s2201 = scalar_lea.vmem [#allocation1], 1
    %2202 = vst [vmem:[%s2201] ss:$4 sm:$0xff] %v2177
    %s2203 = scalar_lea.vmem [#allocation1], 2
    %2204 = vst [vmem:[%s2203] ss:$4 sm:$0xff] %v2178
    %s2205 = scalar_lea.vmem [#allocation1], 3
    %2206 = vst [vmem:[%s2205] ss:$4 sm:$0xff] %v2179
    %s2207 = scalar_lea.vmem [#allocation1], 32
    %2208 = vst [vmem:[%s2207] ss:$4 sm:$0xff] %v2180
    %s2209 = scalar_lea.vmem [#allocation1], 33
    %2210 = vst [vmem:[%s2209] ss:$4 sm:$0xff] %v2181
    %s2211 = scalar_lea.vmem [#allocation1], 34
    %2212 = vst [vmem:[%s2211] ss:$4 sm:$0xff] %v2182
    %s2213 = scalar_lea.vmem [#allocation1], 35
    %2214 = vst [vmem:[%s2213] ss:$4 sm:$0xff] %v2183
    %v2215 = vld.sshfl [vmem:[#allocation1] sm:$0xff pattern:$0x73625140]
    %v2216 = vld.sshfl [vmem:[#allocation1 + $0x20] sm:$0xff pattern:$0x73625140]
    %v2217 = vsel %vm180, %v2215, 0
    %v2219 = vsel %vm180, %v2216, 0
    %2221 = vmatpush.msra.mxu0 0.0
    %2222 = vmatpush.msra.mxu0 0.0
    %2223 = vmatpush.msra.mxu0 0.0
    %2224 = vmatpush.msra.mxu0 0.0
    %2225 = vmatpush.msra.mxu0 0.0
    %2226 = vmatpush.msra.mxu0 0.0
    %2227 = vmatpush.msra.mxu0 0.0
    %2228 = vmatpush.msra.mxu0 0.0
    %2229 = vmatpush.msra.mxu0 0.0
    %2230 = vmatpush.msra.mxu0 0.0
    %2231 = vmatpush.msra.mxu0 0.0
    %2232 = vmatpush.msra.mxu0 0.0
    %2233 = vmatpush.msra.mxu0 %v2187
    %2234 = vmatpush.msra.mxu0 %v2186
    %2235 = vmatpush.msra.mxu0 %v2185
    %2236 = vmatpush.msra.mxu0 %v2184
    %2237 = vmatmul.f32.gmra.mxu0 %v2217
    %v2238 = vpop.f32.mrf.mxu0
    %v2239 = vadd.f32 %v2190, %v2238
    %2240 = vmatmul.f32.gmra.mxu0 %v2219
    %v2241 = vpop.f32.mrf.mxu0
    %v2242 = vadd.f32 %v2190, %v2241
    %2243 = vdwg.mxu0
    %v2244 = vmax.f32 %v2239, 0.0
    %v2245 = vmax.f32 %v2242, 0.0
    %v2246 = vld [vmem:[%s14] sm:$0xff]
    %v2247 = vld [vmem:[%s14 + $0x8] sm:$0xff]
    %v2248 = vld [vmem:[%s14 + $0x10] sm:$0xff]
    %v2249 = vld [vmem:[%s14 + $0x18] sm:$0xff]
    %v2250 = vld [vmem:[%s14 + $0x20] sm:$0xff]
    %v2251 = vld [vmem:[%s14 + $0x28] sm:$0xff]
    %v2252 = vld [vmem:[%s14 + $0x30] sm:$0xff]
    %v2253 = vld [vmem:[%s14 + $0x38] sm:$0xff]
    %v2254 = vld [vmem:[%s15] sm:$0x1]
    %v2256 = vperm.slane %v2254, 0
    %vm2258 = vcmask 523264
    %v2260 = vsel %vm2258, %v2244, 0
    %v2263 = vsel %vm2258, %v2245, 0
    %2265 = vmatpush.msra.mxu0 0.0
    %2266 = vmatpush.msra.mxu0 0.0
    %2267 = vmatpush.msra.mxu0 0.0
    %2268 = vmatpush.msra.mxu0 0.0
    %2269 = vmatpush.msra.mxu0 0.0
    %2270 = vmatpush.msra.mxu0 0.0
    %2271 = vmatpush.msra.mxu0 0.0
    %2272 = vmatpush.msra.mxu0 0.0
    %2273 = vmatpush.msra.mxu0 %v2253
    %2274 = vmatpush.msra.mxu0 %v2252
    %2275 = vmatpush.msra.mxu0 %v2251
    %2276 = vmatpush.msra.mxu0 %v2250
    %2277 = vmatpush.msra.mxu0 %v2249
    %2278 = vmatpush.msra.mxu0 %v2248
    %2279 = vmatpush.msra.mxu0 %v2247
    %2280 = vmatpush.msra.mxu0 %v2246
    %2281 = vmatmul.f32.gmra.mxu0 %v2260
    %v2282 = vpop.f32.mrf.mxu0
    %v2283 = vadd.f32 %v2256, %v2282
    %2284 = vmatmul.f32.gmra.mxu0 %v2263
    %v2285 = vpop.f32.mrf.mxu0
    %v2286 = vadd.f32 %v2256, %v2285
    %2287 = vdwg.mxu0
    %v2290 = vrot.slane %v2283, 2
    %v2291 = vrot.slane %v2283, 4
    %v2292 = vrot.slane %v2283, 6
    %v2293 = vrot.slane %v2286, 2
    %v2294 = vrot.slane %v2286, 4
    %v2295 = vrot.slane %v2286, 6
    %v2302 = vadd.f32 %v2176, %v2283
    %v2303 = vadd.f32 %v2177, %v2290
    %v2304 = vadd.f32 %v2178, %v2291
    %v2305 = vadd.f32 %v2179, %v2292
    %v2306 = vadd.f32 %v2180, %v2286
    %v2307 = vadd.f32 %v2181, %v2293
    %v2308 = vadd.f32 %v2182, %v2294
    %v2309 = vadd.f32 %v2183, %v2295
    %2318 = vst [vmem:[#allocation1] ss:$4 sm:$0xff] %v2302
    %s2319 = scalar_lea.vmem [#allocation1], 1
    %2320 = vst [vmem:[%s2319] ss:$4 sm:$0xff] %v2303
    %s2321 = scalar_lea.vmem [#allocation1], 2
    %2322 = vst [vmem:[%s2321] ss:$4 sm:$0xff] %v2304
    %s2323 = scalar_lea.vmem [#allocation1], 3
    %2324 = vst [vmem:[%s2323] ss:$4 sm:$0xff] %v2305
    %s2325 = scalar_lea.vmem [#allocation1], 32
    %2326 = vst [vmem:[%s2325] ss:$4 sm:$0xff] %v2306
    %s2327 = scalar_lea.vmem [#allocation1], 33
    %2328 = vst [vmem:[%s2327] ss:$4 sm:$0xff] %v2307
    %s2329 = scalar_lea.vmem [#allocation1], 34
    %2330 = vst [vmem:[%s2329] ss:$4 sm:$0xff] %v2308
    %s2331 = scalar_lea.vmem [#allocation1], 35
    %2332 = vst [vmem:[%s2331] ss:$4 sm:$0xff] %v2309
    %v2333 = vld.sshfl [vmem:[#allocation1] sm:$0xff pattern:$0x73625140]
    %v2334 = vld.sshfl [vmem:[#allocation1 + $0x20] sm:$0xff pattern:$0x73625140]
    %v2337 = vsel %vm180, %v2333, 0.0
    %2338 = vadd.xlane.f32.xlu0 %v2337
    %v2339 = vpop.xlane.xlu0 %2338
    %v2340 = vsel %vm180, %v2334, 0.0
    %2341 = vadd.xlane.f32.xlu0 %v2340
    %v2342 = vpop.xlane.xlu0 %2341
    %v2343 = vmul.f32 %v2339, %v1980
    %v2344 = vmul.f32 %v2342, %v1980
    %v2348 = vunpack.c.l.s4 269488144
    %v2349 = vunpack.c.0.s8 %v2348
    %v2350 = vperm.slane %v2343, %v2349
    %v2352 = vunpack.c.l.s4 842150450
    %v2353 = vunpack.c.0.s8 %v2352
    %v2354 = vperm.slane %v2343, %v2353
    %v2356 = vunpack.c.l.s4 1414812756
    %v2357 = vunpack.c.0.s8 %v2356
    %v2358 = vperm.slane %v2343, %v2357
    %v2360 = vunpack.c.l.s4 1987475062
    %v2361 = vunpack.c.0.s8 %v2360
    %v2362 = vperm.slane %v2343, %v2361
    %v2364 = vunpack.c.l.s4 269488144
    %v2365 = vunpack.c.0.s8 %v2364
    %v2366 = vperm.slane %v2344, %v2365
    %v2368 = vunpack.c.l.s4 842150450
    %v2369 = vunpack.c.0.s8 %v2368
    %v2370 = vperm.slane %v2344, %v2369
    %v2372 = vunpack.c.l.s4 1414812756
    %v2373 = vunpack.c.0.s8 %v2372
    %v2374 = vperm.slane %v2344, %v2373
    %v2376 = vunpack.c.l.s4 1987475062
    %v2377 = vunpack.c.0.s8 %v2376
    %v2378 = vperm.slane %v2344, %v2377
    %v2387 = vsub.f32 %v2302, %v2350
    %v2388 = vsub.f32 %v2303, %v2354
    %v2389 = vsub.f32 %v2304, %v2358
    %v2390 = vsub.f32 %v2305, %v2362
    %v2391 = vsub.f32 %v2306, %v2366
    %v2392 = vsub.f32 %v2307, %v2370
    %v2393 = vsub.f32 %v2308, %v2374
    %v2394 = vsub.f32 %v2309, %v2378
    %v2395 = vmul.f32 %v2387, %v2387
    %v2396 = vmul.f32 %v2388, %v2388
    %v2397 = vmul.f32 %v2389, %v2389
    %v2398 = vmul.f32 %v2390, %v2390
    %v2399 = vmul.f32 %v2391, %v2391
    %v2400 = vmul.f32 %v2392, %v2392
    %v2401 = vmul.f32 %v2393, %v2393
    %v2402 = vmul.f32 %v2394, %v2394
    %2411 = vst [vmem:[#allocation1] ss:$4 sm:$0xff] %v2395
    %s2412 = scalar_lea.vmem [#allocation1], 1
    %2413 = vst [vmem:[%s2412] ss:$4 sm:$0xff] %v2396
    %s2414 = scalar_lea.vmem [#allocation1], 2
    %2415 = vst [vmem:[%s2414] ss:$4 sm:$0xff] %v2397
    %s2416 = scalar_lea.vmem [#allocation1], 3
    %2417 = vst [vmem:[%s2416] ss:$4 sm:$0xff] %v2398
    %s2418 = scalar_lea.vmem [#allocation1], 32
    %2419 = vst [vmem:[%s2418] ss:$4 sm:$0xff] %v2399
    %s2420 = scalar_lea.vmem [#allocation1], 33
    %2421 = vst [vmem:[%s2420] ss:$4 sm:$0xff] %v2400
    %s2422 = scalar_lea.vmem [#allocation1], 34
    %2423 = vst [vmem:[%s2422] ss:$4 sm:$0xff] %v2401
    %s2424 = scalar_lea.vmem [#allocation1], 35
    %2425 = vst [vmem:[%s2424] ss:$4 sm:$0xff] %v2402
    %v2426 = vld.sshfl [vmem:[#allocation1] sm:$0xff pattern:$0x73625140]
    %v2427 = vld.sshfl [vmem:[#allocation1 + $0x20] sm:$0xff pattern:$0x73625140]
    %v2430 = vsel %vm180, %v2426, 0.0
    %2431 = vadd.xlane.f32.xlu0 %v2430
    %v2432 = vpop.xlane.xlu0 %2431
    %v2433 = vsel %vm180, %v2427, 0.0
    %2434 = vadd.xlane.f32.xlu0 %v2433
    %v2435 = vpop.xlane.xlu0 %2434
    %v2436 = vmul.f32 %v2432, %v1980
    %v2437 = vmul.f32 %v2435, %v1980
    %v2438 = vadd.f32 %v2436, 1e-05
    %v2439 = vadd.f32 %v2437, 1e-05
    %v2440 = vrsqrt.pop %v2438
    %v2441 = vmul.f32 %v2440, %v2438
    %v2442 = vmul.f32 %v2441, %v2440
    %v2443 = vmul.f32 0.5, %v2442
    %v2444 = vsub.f32 1.5, %v2443
    %v2445 = vmul.f32 %v2440, %v2444
    %vm2446 = vweird.f32 %v2438
    %vm2447 = vweird.f32 %v2440
    %vm2448 = vmor %vm2446, %vm2447
    %v2449 = vsel %vm2448, %v2440, %v2445
    %v2450 = vrsqrt.pop %v2439
    %v2451 = vmul.f32 %v2450, %v2439
    %v2452 = vmul.f32 %v2451, %v2450
    %v2453 = vmul.f32 0.5, %v2452
    %v2454 = vsub.f32 1.5, %v2453
    %v2455 = vmul.f32 %v2450, %v2454
    %vm2456 = vweird.f32 %v2439
    %vm2457 = vweird.f32 %v2450
    %vm2458 = vmor %vm2456, %vm2457
    %v2459 = vsel %vm2458, %v2450, %v2455
    %v2463 = vunpack.c.l.s4 269488144
    %v2464 = vunpack.c.0.s8 %v2463
    %v2465 = vperm.slane %v2449, %v2464
    %v2467 = vunpack.c.l.s4 842150450
    %v2468 = vunpack.c.0.s8 %v2467
    %v2469 = vperm.slane %v2449, %v2468
    %v2471 = vunpack.c.l.s4 1414812756
    %v2472 = vunpack.c.0.s8 %v2471
    %v2473 = vperm.slane %v2449, %v2472
    %v2475 = vunpack.c.l.s4 1987475062
    %v2476 = vunpack.c.0.s8 %v2475
    %v2477 = vperm.slane %v2449, %v2476
    %v2479 = vunpack.c.l.s4 269488144
    %v2480 = vunpack.c.0.s8 %v2479
    %v2481 = vperm.slane %v2459, %v2480
    %v2483 = vunpack.c.l.s4 842150450
    %v2484 = vunpack.c.0.s8 %v2483
    %v2485 = vperm.slane %v2459, %v2484
    %v2487 = vunpack.c.l.s4 1414812756
    %v2488 = vunpack.c.0.s8 %v2487
    %v2489 = vperm.slane %v2459, %v2488
    %v2491 = vunpack.c.l.s4 1987475062
    %v2492 = vunpack.c.0.s8 %v2491
    %v2493 = vperm.slane %v2459, %v2492
    %v2502 = vmul.f32 %v2387, %v2465
    %v2503 = vmul.f32 %v2388, %v2469
    %v2504 = vmul.f32 %v2389, %v2473
    %v2505 = vmul.f32 %v2390, %v2477
    %v2506 = vmul.f32 %v2391, %v2481
    %v2507 = vmul.f32 %v2392, %v2485
    %v2508 = vmul.f32 %v2393, %v2489
    %v2509 = vmul.f32 %v2394, %v2493
    %v2510 = vld [vmem:[%s16] sm:$0x1]
    %v2512 = vperm.slane %v2510, 0
    %v2514 = vrot.slane %v2512, 2
    %v2515 = vrot.slane %v2512, 4
    %v2516 = vrot.slane %v2512, 6
    %v2520 = vmul.f32 %v2502, %v2512
    %v2521 = vmul.f32 %v2503, %v2514
    %v2522 = vmul.f32 %v2504, %v2515
    %v2523 = vmul.f32 %v2505, %v2516
    %v2524 = vmul.f32 %v2506, %v2512
    %v2525 = vmul.f32 %v2507, %v2514
    %v2526 = vmul.f32 %v2508, %v2515
    %v2527 = vmul.f32 %v2509, %v2516
    %v2528 = vld [vmem:[%s17] sm:$0x1]
    %v2530 = vperm.slane %v2528, 0
    %v2532 = vrot.slane %v2530, 2
    %v2533 = vrot.slane %v2530, 4
    %v2534 = vrot.slane %v2530, 6
    %v2538 = vadd.f32 %v2520, %v2530
    %v2539 = vadd.f32 %v2521, %v2532
    %v2540 = vadd.f32 %v2522, %v2533
    %v2541 = vadd.f32 %v2523, %v2534
    %v2542 = vadd.f32 %v2524, %v2530
    %v2543 = vadd.f32 %v2525, %v2532
    %v2544 = vadd.f32 %v2526, %v2533
    %v2545 = vadd.f32 %v2527, %v2534
    %vm2546 = vcmask 254976
    %2547 = vst.msk [vmem:[#allocation10] sm:$0x3] %vm2546, %v2538
    %2548 = vst.msk [vmem:[#allocation10 + $0x2] sm:$0x3] %vm2546, %v2539
    %2549 = vst.msk [vmem:[#allocation10 + $0x4] sm:$0x3] %vm2546, %v2540
    %2550 = vst.msk [vmem:[#allocation10 + $0x6] sm:$0x3] %vm2546, %v2541
    %2551 = vst.msk [vmem:[#allocation10 + $0x8] sm:$0x3] %vm2546, %v2542
    %2552 = vst.msk [vmem:[#allocation10 + $0xa] sm:$0x3] %vm2546, %v2543
    %2553 = vst.msk [vmem:[#allocation10 + $0xc] sm:$0x3] %vm2546, %v2544
    %2554 = vst.msk [vmem:[#allocation10 + $0xe] sm:$0x3] %vm2546, %v2545
    // Predicated region
    $region90: #{tpu_custom_call.1} parent=1 // pred_check
      _
    $region91: #{tpu_custom_call.1} parent=1 // pred_check_branch
      %2556 = sbr.rel (0) target = $region93
    $region92: #{tpu_custom_call.1} parent=1 // pred_region
      %2558 = vsyncadd [#allocation4], 0
      %s2559 = sshll.u32 [#allocation10], 4
      %s2560 = int_to_ptr.vmem [resolvable:$true] %s2559
      %s2561 = sshll.u32 %s18, 4
      %s2562 = int_to_ptr.hbm [resolvable:$true] %s2561
      %2567 = dma.vmem_to_hbm [thread:$0]  %s2560, 256, %s2562, [#allocation4], 32, 32, 2
    $region93: #{tpu_custom_call.1} parent=1 // pred_fallthru
      _
    // Predicated region
    $region94: #{tpu_custom_call.1} parent=1 // pred_check
      _
    $region95: #{tpu_custom_call.1} parent=1 // pred_check_branch
      %2569 = sbr.rel (0) target = $region97
    $region96: #{tpu_custom_call.1} parent=1 // pred_region
      %2571 = dma.done [#allocation4], 256
    $region97: #{tpu_custom_call.1} parent=1 // pred_fallthru
      _
    %2572 = vsyncpa [#allocation3], 1
    %2573 = vsyncpa [#allocation6], 1
    %2574 = vsyncpa [#allocation9], 1
    %2575 = vsyncpa [#allocation4], 1

// kernel: tpu_custom_call.1
$region0: #{tpu_custom_call.1}
  #allocation0 [shape = 'u32[]', space=smem, size = 0x4, offset = 0x4, fixed_abs, tag = 'smem constant byte address 0x4 - core index']
  #allocation1 [shape = 'u32[72,128]{1,0:T(1,128)}', space=vmem, size = 0x9000, scoped, tag = 'internal scratch']
  %s0 = inlined_call_operand.hbm [shape: f32[8,2,32], index: 0, kind: input, shape index: {}]
  %s1 = inlined_call_operand.hbm [shape: f32[8,2,32], index: 1, kind: input, shape index: {}]
  %s2 = inlined_call_operand.vmem [shape: f32[32,32], index: 2, kind: input, shape index: {}]
  %s3 = inlined_call_operand.vmem [shape: f32[32,32], index: 3, kind: input, shape index: {}]
  %s4 = inlined_call_operand.vmem [shape: f32[32,32], index: 4, kind: input, shape index: {}]
  %s5 = inlined_call_operand.vmem [shape: f32[1,32], index: 5, kind: input, shape index: {}]
  %s6 = inlined_call_operand.vmem [shape: f32[1,32], index: 6, kind: input, shape index: {}]
  %s7 = inlined_call_operand.vmem [shape: f32[1,32], index: 7, kind: input, shape index: {}]
  %s8 = inlined_call_operand.hbm [shape: f32[32,32], index: 8, kind: input, shape index: {}]
  %s9 = inlined_call_operand.vmem [shape: f32[1,32], index: 9, kind: input, shape index: {}]
  %s10 = inlined_call_operand.vmem [shape: f32[1,32], index: 10, kind: input, shape index: {}]
  %s11 = inlined_call_operand.vmem [shape: f32[1,32], index: 11, kind: input, shape index: {}]
  %s12 = inlined_call_operand.hbm [shape: f32[32,64], index: 12, kind: input, shape index: {}]
  %s13 = inlined_call_operand.vmem [shape: f32[1,64], index: 13, kind: input, shape index: {}]
  %s14 = inlined_call_operand.vmem [shape: f32[64,32], index: 14, kind: input, shape index: {}]
  %s15 = inlined_call_operand.vmem [shape: f32[1,32], index: 15, kind: input, shape index: {}]
  %s16 = inlined_call_operand.vmem [shape: f32[1,32], index: 16, kind: input, shape index: {}]
  %s17 = inlined_call_operand.vmem [shape: f32[1,32], index: 17, kind: input, shape index: {}]
  %s18 = inlined_call_operand.hbm [shape: f32[8,2,32], index: 18, kind: output, shape index: {}]
  %s19 = sld [smem:[#allocation0]]
  $region98: #{tpu_custom_call.1} parent=0
    _
  %s21 = ssub.s32 1, %s19
  %s22 = scalar_select 0, %s21, %s19
  $region1: #{tpu_custom_call.1} parent=0
    #allocation2 [shape = 'u8[8192]{0}', space=vmem, size = 0x2000, scoped, tag = 'input window, operand 0, single buffered']
    #allocation3 [shape = 's32[1]{0}', space=sflag, size = 0x4, scoped, tag = 'scoped memory for tpu_custom_call.1']
    #allocation4 [shape = 's32[1]{0}', space=sflag, size = 0x4, scoped, tag = 'scoped memory for tpu_custom_call.1']
    #allocation5 [shape = 'u8[8192]{0}', space=vmem, size = 0x2000, scoped, tag = 'input window, operand 1, single buffered']
    #allocation6 [shape = 's32[1]{0}', space=sflag, size = 0x4, scoped, tag = 'scoped memory for tpu_custom_call.1']
    #allocation7 [shape = 'u8[16384]{0}', space=vmem, size = 0x4000, scoped, tag = 'input window, operand 8, single buffered']
    #allocation8 [shape = 'u8[16384]{0}', space=vmem, size = 0x4000, scoped, tag = 'input window, operand 12, single buffered']
    #allocation9 [shape = 's32[1]{0}', space=sflag, size = 0x4, scoped, tag = 'scoped memory for tpu_custom_call.1']
    #allocation10 [shape = 'u8[8192]{0}', space=vmem, size = 0x2000, scoped, tag = 'output window, operand 0, single buffered']
    %23 = vsyncpa [#allocation3], 0
    %24 = vsyncpa [#allocation6], 0
    %25 = vsyncpa [#allocation9], 0
    %26 = vsyncpa [#allocation4], 0
    // Predicated region
    $region2: #{tpu_custom_call.1} parent=1 // pred_check
      _
    $region3: #{tpu_custom_call.1} parent=1 // pred_check_branch
      %28 = sbr.rel (0) target = $region5
    $region4: #{tpu_custom_call.1} parent=1 // pred_region
      %30 = vsyncadd [#allocation3], 0
      %s31 = sshll.u32 %s0, 4
      %s32 = int_to_ptr.hbm [resolvable:$true] %s31
      %s33 = sshll.u32 [#allocation2], 4
      %s34 = int_to_ptr.vmem [resolvable:$true] %s33
      %39 = dma.hbm_to_vmem [thread:$0]  %s32, 256, %s34, [#allocation3], 32, 32, 2
    $region5: #{tpu_custom_call.1} parent=1 // pred_fallthru
      _
    // Predicated region
    $region6: #{tpu_custom_call.1} parent=1 // pred_check
      _
    $region7: #{tpu_custom_call.1} parent=1 // pred_check_branch
      %41 = sbr.rel (0) target = $region9
    $region8: #{tpu_custom_call.1} parent=1 // pred_region
      %43 = vsyncadd [#allocation6], 0
      %s44 = sshll.u32 %s1, 4
      %s45 = int_to_ptr.hbm [resolvable:$true] %s44
      %s46 = sshll.u32 [#allocation5], 4
      %s47 = int_to_ptr.vmem [resolvable:$true] %s46
      %52 = dma.hbm_to_vmem [thread:$0]  %s45, 256, %s47, [#allocation6], 32, 32, 2
    $region9: #{tpu_custom_call.1} parent=1 // pred_fallthru
      _
    // Predicated region
    $region10: #{tpu_custom_call.1} parent=1 // pred_check
      _
    $region11: #{tpu_custom_call.1} parent=1 // pred_check_branch
      %54 = sbr.rel (0) target = $region13
    $region12: #{tpu_custom_call.1} parent=1 // pred_region
      _
    $region13: #{tpu_custom_call.1} parent=1 // pred_fallthru
      _
    // Predicated region
    $region14: #{tpu_custom_call.1} parent=1 // pred_check
      _
    $region15: #{tpu_custom_call.1} parent=1 // pred_check_branch
      %56 = sbr.rel (0) target = $region17
    $region16: #{tpu_custom_call.1} parent=1 // pred_region
      _
    $region17: #{tpu_custom_call.1} parent=1 // pred_fallthru
      _
    // Predicated region
    $region18: #{tpu_custom_call.1} parent=1 // pred_check
      _
    $region19: #{tpu_custom_call.1} parent=1 // pred_check_branch
      %58 = sbr.rel (0) target = $region21
    $region20: #{tpu_custom_call.1} parent=1 // pred_region
      _
    $region21: #{tpu_custom_call.1} parent=1 // pred_fallthru
      _
    // Predicated region
    $region22: #{tpu_custom_call.1} parent=1 // pred_check
      _
    $region23: #{tpu_custom_call.1} parent=1 // pred_check_branch
      %60 = sbr.rel (0) target = $region25
    $region24: #{tpu_custom_call.1} parent=1 // pred_region
      _
    $region25: #{tpu_custom_call.1} parent=1 // pred_fallthru
      _
    // Predicated region
    $region26: #{tpu_custom_call.1} parent=1 // pred_check
      _
    $region27: #{tpu_custom_call.1} parent=1 // pred_check_branch
      %62 = sbr.rel (0) target = $region29
    $region28: #{tpu_custom_call.1} parent=1 // pred_region
      _
    $region29: #{tpu_custom_call.1} parent=1 // pred_fallthru
      _
    // Predicated region
    $region30: #{tpu_custom_call.1} parent=1 // pred_check
      _
    $region31: #{tpu_custom_call.1} parent=1 // pred_check_branch
      %64 = sbr.rel (0) target = $region33
    $region32: #{tpu_custom_call.1} parent=1 // pred_region
      _
    $region33: #{tpu_custom_call.1} parent=1 // pred_fallthru
      _
    // Predicated region
    $region34: #{tpu_custom_call.1} parent=1 // pred_check
      _
    $region35: #{tpu_custom_call.1} parent=1 // pred_check_branch
      %66 = sbr.rel (0) target = $region37
    $region36: #{tpu_custom_call.1} parent=1 // pred_region
      %68 = vsyncadd [#allocation6], 0
      %s69 = sshll.u32 %s8, 4
      %s70 = int_to_ptr.hbm [resolvable:$true] %s69
      %s71 = sshll.u32 [#allocation7], 4
      %s72 = int_to_ptr.vmem [resolvable:$true] %s71
      %77 = dma.hbm_to_vmem [thread:$0]  %s70, 512, %s72, [#allocation6], 128, 128, 8
    $region37: #{tpu_custom_call.1} parent=1 // pred_fallthru
      _
    // Predicated region
    $region38: #{tpu_custom_call.1} parent=1 // pred_check
      _
    $region39: #{tpu_custom_call.1} parent=1 // pred_check_branch
      %79 = sbr.rel (0) target = $region41
    $region40: #{tpu_custom_call.1} parent=1 // pred_region
      _
    $region41: #{tpu_custom_call.1} parent=1 // pred_fallthru
      _
    // Predicated region
    $region42: #{tpu_custom_call.1} parent=1 // pred_check
      _
    $region43: #{tpu_custom_call.1} parent=1 // pred_check_branch
      %81 = sbr.rel (0) target = $region45
    $region44: #{tpu_custom_call.1} parent=1 // pred_region
      _
    $region45: #{tpu_custom_call.1} parent=1 // pred_fallthru
      _
    // Predicated region
    $region46: #{tpu_custom_call.1} parent=1 // pred_check
      _
    $region47: #{tpu_custom_call.1} parent=1 // pred_check_branch
      %83 = sbr.rel (0) target = $region49
    $region48: #{tpu_custom_call.1} parent=1 // pred_region
      _
    $region49: #{tpu_custom_call.1} parent=1 // pred_fallthru
      _
    // Predicated region
    $region50: #{tpu_custom_call.1} parent=1 // pred_check
      _
    $region51: #{tpu_custom_call.1} parent=1 // pred_check_branch
      %85 = sbr.rel (0) target = $region53
    $region52: #{tpu_custom_call.1} parent=1 // pred_region
      %87 = vsyncadd [#allocation9], 0
      %s88 = sshll.u32 %s12, 4
      %s89 = int_to_ptr.hbm [resolvable:$true] %s88
      %s90 = sshll.u32 [#allocation8], 4
      %s91 = int_to_ptr.vmem [resolvable:$true] %s90
      %96 = dma.hbm_to_vmem [thread:$0]  %s89, 512, %s91, [#allocation9], 128, 128, 8
    $region53: #{tpu_custom_call.1} parent=1 // pred_fallthru
      _
    // Predicated region
    $region54: #{tpu_custom_call.1} parent=1 // pred_check
      _
    $region55: #{tpu_custom_call.1} parent=1 // pred_check_branch
      %98 = sbr.rel (0) target = $region57
    $region56: #{tpu_custom_call.1} parent=1 // pred_region
      _
    $region57: #{tpu_custom_call.1} parent=1 // pred_fallthru
      _
    // Predicated region
    $region58: #{tpu_custom_call.1} parent=1 // pred_check
      _
    $region59: #{tpu_custom_call.1} parent=1 // pred_check_branch
      %100 = sbr.rel (0) target = $region61
    $region60: #{tpu_custom_call.1} parent=1 // pred_region
      _
    $region61: #{tpu_custom_call.1} parent=1 // pred_fallthru
      _
    // Predicated region
    $region62: #{tpu_custom_call.1} parent=1 // pred_check
      _
    $region63: #{tpu_custom_call.1} parent=1 // pred_check_branch
      %102 = sbr.rel (0) target = $region65
    $region64: #{tpu_custom_call.1} parent=1 // pred_region
      _
    $region65: #{tpu_custom_call.1} parent=1 // pred_fallthru
      _
    // Predicated region
    $region66: #{tpu_custom_call.1} parent=1 // pred_check
      _
    $region67: #{tpu_custom_call.1} parent=1 // pred_check_branch
      %104 = sbr.rel (0) target = $region69
    $region68: #{tpu_custom_call.1} parent=1 // pred_region
      _
    $region69: #{tpu_custom_call.1} parent=1 // pred_fallthru
      _
    // Predicated region
    $region70: #{tpu_custom_call.1} parent=1 // pred_check
      _
    $region71: #{tpu_custom_call.1} parent=1 // pred_check_branch
      %106 = sbr.rel (0) target = $region73
    $region72: #{tpu_custom_call.1} parent=1 // pred_region
      _
    $region73: #{tpu_custom_call.1} parent=1 // pred_fallthru
      _
    // Predicated region
    $region74: #{tpu_custom_call.1} parent=1 // pred_check
      _
    $region75: #{tpu_custom_call.1} parent=1 // pred_check_branch
      %108 = sbr.rel (0) target = $region77
    $region76: #{tpu_custom_call.1} parent=1 // pred_region
      %110 = dma.done [#allocation3], 256
    $region77: #{tpu_custom_call.1} parent=1 // pred_fallthru
      _
    // Predicated region
    $region78: #{tpu_custom_call.1} parent=1 // pred_check
      _
    $region79: #{tpu_custom_call.1} parent=1 // pred_check_branch
      %112 = sbr.rel (0) target = $region81
    $region80: #{tpu_custom_call.1} parent=1 // pred_region
      %114 = dma.done [#allocation6], 256
    $region81: #{tpu_custom_call.1} parent=1 // pred_fallthru
      _
    // Predicated region
    $region82: #{tpu_custom_call.1} parent=1 // pred_check
      _
    $region83: #{tpu_custom_call.1} parent=1 // pred_check_branch
      %116 = sbr.rel (0) target = $region85
    $region84: #{tpu_custom_call.1} parent=1 // pred_region
      %118 = dma.done [#allocation6], 512
    $region85: #{tpu_custom_call.1} parent=1 // pred_fallthru
      _
    // Predicated region
    $region86: #{tpu_custom_call.1} parent=1 // pred_check
      _
    $region87: #{tpu_custom_call.1} parent=1 // pred_check_branch
      %120 = sbr.rel (0) target = $region89
    $region88: #{tpu_custom_call.1} parent=1 // pred_region
      %122 = dma.done [#allocation9], 512
    $region89: #{tpu_custom_call.1} parent=1 // pred_fallthru
      _
    %v123 = vld [vmem:[#allocation2] sm:$0x3]
    %v124 = vld [vmem:[#allocation2 + $0x2] sm:$0x3]
    %v125 = vld [vmem:[#allocation2 + $0x4] sm:$0x3]
    %v126 = vld [vmem:[#allocation2 + $0x6] sm:$0x3]
    %v127 = vld [vmem:[#allocation2 + $0x8] sm:$0x3]
    %v128 = vld [vmem:[#allocation2 + $0xa] sm:$0x3]
    %v129 = vld [vmem:[#allocation2 + $0xc] sm:$0x3]
    %v130 = vld [vmem:[#allocation2 + $0xe] sm:$0x3]
    %v131 = vld [vmem:[#allocation5] sm:$0x3]
    %v132 = vld [vmem:[#allocation5 + $0x2] sm:$0x3]
    %v133 = vld [vmem:[#allocation5 + $0x4] sm:$0x3]
    %v134 = vld [vmem:[#allocation5 + $0x6] sm:$0x3]
    %v135 = vld [vmem:[#allocation5 + $0x8] sm:$0x3]
    %v136 = vld [vmem:[#allocation5 + $0xa] sm:$0x3]
    %v137 = vld [vmem:[#allocation5 + $0xc] sm:$0x3]
    %v138 = vld [vmem:[#allocation5 + $0xe] sm:$0x3]
    %v139 = vadd.f32 %v123, %v131
    %v140 = vadd.f32 %v124, %v132
    %v141 = vadd.f32 %v125, %v133
    %v142 = vadd.f32 %v126, %v134
    %v143 = vadd.f32 %v127, %v135
    %v144 = vadd.f32 %v128, %v136
    %v145 = vadd.f32 %v129, %v137
    %v146 = vadd.f32 %v130, %v138
    %v147 = vld [vmem:[%s2] sm:$0xff]
    %v148 = vld [vmem:[%s2 + $0x8] sm:$0xff]
    %v149 = vld [vmem:[%s2 + $0x10] sm:$0xff]
    %v150 = vld [vmem:[%s2 + $0x18] sm:$0xff]
    %v151 = vld [vmem:[%s5] sm:$0x1]
    %v153 = vperm.slane %v151, 0
    %163 = vst [vmem:[#allocation1] ss:$4 sm:$0xff] %v139
    %s164 = scalar_lea.vmem [#allocation1], 1
    %165 = vst [vmem:[%s164] ss:$4 sm:$0xff] %v140
    %s166 = scalar_lea.vmem [#allocation1], 2
    %167 = vst [vmem:[%s166] ss:$4 sm:$0xff] %v141
    %s168 = scalar_lea.vmem [#allocation1], 3
    %169 = vst [vmem:[%s168] ss:$4 sm:$0xff] %v142
    %s170 = scalar_lea.vmem [#allocation1], 32
    %171 = vst [vmem:[%s170] ss:$4 sm:$0xff] %v143
    %s172 = scalar_lea.vmem [#allocation1], 33
    %173 = vst [vmem:[%s172] ss:$4 sm:$0xff] %v144
    %s174 = scalar_lea.vmem [#allocation1], 34
    %175 = vst [vmem:[%s174] ss:$4 sm:$0xff] %v145
    %s176 = scalar_lea.vmem [#allocation1], 35
    %177 = vst [vmem:[%s176] ss:$4 sm:$0xff] %v146
    %v178 = vld.sshfl [vmem:[#allocation1] sm:$0xff pattern:$0x73625140]
    %v179 = vld.sshfl [vmem:[#allocation1 + $0x20] sm:$0xff pattern:$0x73625140]
    %vm180 = vcmask 261120
    %v181 = vsel %vm180, %v178, 0
    %v183 = vsel %vm180, %v179, 0
    %185 = vmatpush.msra.mxu0 0.0
    %186 = vmatpush.msra.mxu0 0.0
    %187 = vmatpush.msra.mxu0 0.0
    %188 = vmatpush.msra.mxu0 0.0
    %189 = vmatpush.msra.mxu0 0.0
    %190 = vmatpush.msra.mxu0 0.0
    %191 = vmatpush.msra.mxu0 0.0
    %192 = vmatpush.msra.mxu0 0.0
    %193 = vmatpush.msra.mxu0 0.0
    %194 = vmatpush.msra.mxu0 0.0
    %195 = vmatpush.msra.mxu0 0.0
    %196 = vmatpush.msra.mxu0 0.0
    %197 = vmatpush.msra.mxu0 %v150
    %198 = vmatpush.msra.mxu0 %v149
    %199 = vmatpush.msra.mxu0 %v148
    %200 = vmatpush.msra.mxu0 %v147
    %201 = vmatmul.f32.gmra.mxu0 %v181
    %v202 = vpop.f32.mrf.mxu0
    %v203 = vadd.f32 %v153, %v202
    %204 = vmatmul.f32.gmra.mxu0 %v183
    %v205 = vpop.f32.mrf.mxu0
    %v206 = vadd.f32 %v153, %v205
    %207 = vdwg.mxu0
    %v208 = vld [vmem:[%s3] sm:$0xff]
    %v209 = vld [vmem:[%s3 + $0x8] sm:$0xff]
    %v210 = vld [vmem:[%s3 + $0x10] sm:$0xff]
    %v211 = vld [vmem:[%s3 + $0x18] sm:$0xff]
    %v212 = vld [vmem:[%s6] sm:$0x1]
    %v214 = vperm.slane %v212, 0
    %216 = vst [vmem:[#allocation1] ss:$4 sm:$0xff] %v139
    %s217 = scalar_lea.vmem [#allocation1], 1
    %218 = vst [vmem:[%s217] ss:$4 sm:$0xff] %v140
    %s219 = scalar_lea.vmem [#allocation1], 2
    %220 = vst [vmem:[%s219] ss:$4 sm:$0xff] %v141
    %s221 = scalar_lea.vmem [#allocation1], 3
    %222 = vst [vmem:[%s221] ss:$4 sm:$0xff] %v142
    %s223 = scalar_lea.vmem [#allocation1], 32
    %224 = vst [vmem:[%s223] ss:$4 sm:$0xff] %v143
    %s225 = scalar_lea.vmem [#allocation1], 33
    %226 = vst [vmem:[%s225] ss:$4 sm:$0xff] %v144
    %s227 = scalar_lea.vmem [#allocation1], 34
    %228 = vst [vmem:[%s227] ss:$4 sm:$0xff] %v145
    %s229 = scalar_lea.vmem [#allocation1], 35
    %230 = vst [vmem:[%s229] ss:$4 sm:$0xff] %v146
    %v231 = vld.sshfl [vmem:[#allocation1] sm:$0xff pattern:$0x73625140]
    %v232 = vld.sshfl [vmem:[#allocation1 + $0x20] sm:$0xff pattern:$0x73625140]
    %v233 = vsel %vm180, %v231, 0
    %v235 = vsel %vm180, %v232, 0
    %237 = vmatpush.msra.mxu0 0.0
    %238 = vmatpush.msra.mxu0 0.0
    %239 = vmatpush.msra.mxu0 0.0
    %240 = vmatpush.msra.mxu0 0.0
    %241 = vmatpush.msra.mxu0 0.0
    %242 = vmatpush.msra.mxu0 0.0
    %243 = vmatpush.msra.mxu0 0.0
    %244 = vmatpush.msra.mxu0 0.0
    %245 = vmatpush.msra.mxu0 0.0
    %246 = vmatpush.msra.mxu0 0.0
    %247 = vmatpush.msra.mxu0 0.0
    %248 = vmatpush.msra.mxu0 0.0
    %249 = vmatpush.msra.mxu0 %v211
    %250 = vmatpush.msra.mxu0 %v210
    %251 = vmatpush.msra.mxu0 %v209
    %252 = vmatpush.msra.mxu0 %v208
    %253 = vmatmul.f32.gmra.mxu0 %v233
    %v254 = vpop.f32.mrf.mxu0
    %v255 = vadd.f32 %v214, %v254
    %256 = vmatmul.f32.gmra.mxu0 %v235
    %v257 = vpop.f32.mrf.mxu0
    %v258 = vadd.f32 %v214, %v257
    %259 = vdwg.mxu0
    %v260 = vld [vmem:[%s4] sm:$0xff]
    %v261 = vld [vmem:[%s4 + $0x8] sm:$0xff]
    %v262 = vld [vmem:[%s4 + $0x10] sm:$0xff]
    %v263 = vld [vmem:[%s4 + $0x18] sm:$0xff]
    %v264 = vld [vmem:[%s7] sm:$0x1]
    %v266 = vperm.slane %v264, 0
    %276 = vst [vmem:[#allocation1] ss:$4 sm:$0xff] %v123
    %s277 = scalar_lea.vmem [#allocation1], 1
    %278 = vst [vmem:[%s277] ss:$4 sm:$0xff] %v124
    %s279 = scalar_lea.vmem [#allocation1], 2
    %280 = vst [vmem:[%s279] ss:$4 sm:$0xff] %v125
    %s281 = scalar_lea.vmem [#allocation1], 3
    %282 = vst [vmem:[%s281] ss:$4 sm:$0xff] %v126
    %s283 = scalar_lea.vmem [#allocation1], 32
    %284 = vst [vmem:[%s283] ss:$4 sm:$0xff] %v127
    %s285 = scalar_lea.vmem [#allocation1], 33
    %286 = vst [vmem:[%s285] ss:$4 sm:$0xff] %v128
    %s287 = scalar_lea.vmem [#allocation1], 34
    %288 = vst [vmem:[%s287] ss:$4 sm:$0xff] %v129
    %s289 = scalar_lea.vmem [#allocation1], 35
    %290 = vst [vmem:[%s289] ss:$4 sm:$0xff] %v130
    %v291 = vld.sshfl [vmem:[#allocation1] sm:$0xff pattern:$0x73625140]
    %v292 = vld.sshfl [vmem:[#allocation1 + $0x20] sm:$0xff pattern:$0x73625140]
    %v293 = vsel %vm180, %v291, 0
    %v295 = vsel %vm180, %v292, 0
    %297 = vmatpush.msra.mxu0 0.0
    %298 = vmatpush.msra.mxu0 0.0
    %299 = vmatpush.msra.mxu0 0.0
    %300 = vmatpush.msra.mxu0 0.0
    %301 = vmatpush.msra.mxu0 0.0
    %302 = vmatpush.msra.mxu0 0.0
    %303 = vmatpush.msra.mxu0 0.0
    %304 = vmatpush.msra.mxu0 0.0
    %305 = vmatpush.msra.mxu0 0.0
    %306 = vmatpush.msra.mxu0 0.0
    %307 = vmatpush.msra.mxu0 0.0
    %308 = vmatpush.msra.mxu0 0.0
    %309 = vmatpush.msra.mxu0 %v263
    %310 = vmatpush.msra.mxu0 %v262
    %311 = vmatpush.msra.mxu0 %v261
    %312 = vmatpush.msra.mxu0 %v260
    %313 = vmatmul.f32.gmra.mxu0 %v293
    %v314 = vpop.f32.mrf.mxu0
    %v315 = vadd.f32 %v266, %v314
    %316 = vmatmul.f32.gmra.mxu0 %v295
    %v317 = vpop.f32.mrf.mxu0
    %v318 = vadd.f32 %v266, %v317
    %319 = vdwg.mxu0
    %322 = vrot.lane.b32.xlu0 %v203, 120
    %v323 = vpop.permute.xlu0 %322
    %324 = vrot.lane.b32.xlu0 %v206, 120
    %v325 = vpop.permute.xlu0 %324
    %328 = vrot.lane.b32.xlu0 %v203, 112
    %v329 = vpop.permute.xlu0 %328
    %330 = vrot.lane.b32.xlu0 %v206, 112
    %v331 = vpop.permute.xlu0 %330
    %334 = vrot.lane.b32.xlu0 %v203, 104
    %v335 = vpop.permute.xlu0 %334
    %336 = vrot.lane.b32.xlu0 %v206, 104
    %v337 = vpop.permute.xlu0 %336
    %v340 = vrot.slane %v329, 4
    %vm341 = vcmask 1047556
    %v342 = vsel %vm341, %v340, %v203
    %v343 = vrot.slane %v203, 4
    %v344 = vsel %vm341, %v329, %v343
    %v346 = vunpack.c.l.s4 1983009808
    %v347 = vunpack.c.0.s8 %v346
    %v348 = vperm.slane %v342, %v347
    %v350 = vunpack.c.l.s4 1983009808
    %v351 = vunpack.c.0.s8 %v350
    %v352 = vperm.slane %v344, %v351
    %v353 = vrot.slane %v335, 4
    %v354 = vsel %vm341, %v353, %v323
    %v355 = vrot.slane %v323, 4
    %v356 = vsel %vm341, %v335, %v355
    %v358 = vunpack.c.l.s4 1983009808
    %v359 = vunpack.c.0.s8 %v358
    %v360 = vperm.slane %v354, %v359
    %v362 = vunpack.c.l.s4 1983009808
    %v363 = vunpack.c.0.s8 %v362
    %v364 = vperm.slane %v356, %v363
    %v365 = vrot.slane %v360, 4
    %v366 = vsel %vm341, %v365, %v348
    %v367 = vrot.slane %v348, 4
    %v368 = vsel %vm341, %v360, %v367
    %v370 = vunpack.c.l.s4 1934713408
    %v371 = vunpack.c.0.s8 %v370
    %v372 = vperm.slane %v366, %v371
    %v374 = vunpack.c.l.s4 1934713408
    %v375 = vunpack.c.0.s8 %v374
    %v376 = vperm.slane %v368, %v375
    %v377 = vrot.slane %v364, 4
    %v378 = vsel %vm341, %v377, %v352
    %v379 = vrot.slane %v352, 4
    %v380 = vsel %vm341, %v364, %v379
    %v382 = vunpack.c.l.s4 1934713408
    %v383 = vunpack.c.0.s8 %v382
    %v384 = vperm.slane %v378, %v383
    %v386 = vunpack.c.l.s4 1934713408
    %v387 = vunpack.c.0.s8 %v386
    %v388 = vperm.slane %v380, %v387
    %v389 = vrot.slane %v372, 4
    %v390 = vsel %vm341, 0.0, %v389
    %v391 = vrot.slane %v376, 4
    %v392 = vsel %vm341, 0.0, %v391
    %v393 = vrot.slane %v384, 4
    %v394 = vsel %vm341, 0.0, %v393
    %v395 = vrot.slane %v388, 4
    %v396 = vsel %vm341, 0.0, %v395
    %v397 = vrot.slane %v331, 4
    %v398 = vsel %vm341, %v397, %v206
    %v399 = vrot.slane %v206, 4
    %v400 = vsel %vm341, %v331, %v399
    %v402 = vunpack.c.l.s4 1983009808
    %v403 = vunpack.c.0.s8 %v402
    %v404 = vperm.slane %v398, %v403
    %v406 = vunpack.c.l.s4 1983009808
    %v407 = vunpack.c.0.s8 %v406
    %v408 = vperm.slane %v400, %v407
    %v409 = vrot.slane %v337, 4
    %v410 = vsel %vm341, %v409, %v325
    %v411 = vrot.slane %v325, 4
    %v412 = vsel %vm341, %v337, %v411
    %v414 = vunpack.c.l.s4 1983009808
    %v415 = vunpack.c.0.s8 %v414
    %v416 = vperm.slane %v410, %v415
    %v418 = vunpack.c.l.s4 1983009808
    %v419 = vunpack.c.0.s8 %v418
    %v420 = vperm.slane %v412, %v419
    %v421 = vrot.slane %v416, 4
    %v422 = vsel %vm341, %v421, %v404
    %v423 = vrot.slane %v404, 4
    %v424 = vsel %vm341, %v416, %v423
    %v426 = vunpack.c.l.s4 1934713408
    %v427 = vunpack.c.0.s8 %v426
    %v428 = vperm.slane %v422, %v427
    %v430 = vunpack.c.l.s4 1934713408
    %v431 = vunpack.c.0.s8 %v430
    %v432 = vperm.slane %v424, %v431
    %v433 = vrot.slane %v420, 4
    %v434 = vsel %vm341, %v433, %v408
    %v435 = vrot.slane %v408, 4
    %v436 = vsel %vm341, %v420, %v435
    %v438 = vunpack.c.l.s4 1934713408
    %v439 = vunpack.c.0.s8 %v438
    %v440 = vperm.slane %v434, %v439
    %v442 = vunpack.c.l.s4 1934713408
    %v443 = vunpack.c.0.s8 %v442
    %v444 = vperm.slane %v436, %v443
    %v445 = vrot.slane %v428, 4
    %v446 = vsel %vm341, 0.0, %v445
    %v447 = vrot.slane %v432, 4
    %v448 = vsel %vm341, 0.0, %v447
    %v449 = vrot.slane %v440, 4
    %v450 = vsel %vm341, 0.0, %v449
    %v451 = vrot.slane %v444, 4
    %v452 = vsel %vm341, 0.0, %v451
    %v453 = vsel %vm341, %v393, %v372
    %v455 = vunpack.c.l.s4 1983009808
    %v456 = vunpack.c.0.s8 %v455
    %v457 = vperm.slane %v453, %v456
    %v458 = vsel %vm341, %v395, %v376
    %v460 = vunpack.c.l.s4 1983009808
    %v461 = vunpack.c.0.s8 %v460
    %v462 = vperm.slane %v458, %v461
    %v463 = vsel %vm341, %v449, %v428
    %v465 = vunpack.c.l.s4 1983009808
    %v466 = vunpack.c.0.s8 %v465
    %v467 = vperm.slane %v463, %v466
    %v468 = vsel %vm341, %v451, %v432
    %v470 = vunpack.c.l.s4 1983009808
    %v471 = vunpack.c.0.s8 %v470
    %v472 = vperm.slane %v468, %v471
    %v473 = vrot.slane %v462, 4
    %v474 = vsel %vm341, %v473, %v457
    %v475 = vrot.slane %v457, 4
    %v476 = vsel %vm341, %v462, %v475
    %v478 = vunpack.c.l.s4 1934713408
    %v479 = vunpack.c.0.s8 %v478
    %v480 = vperm.slane %v474, %v479
    %v482 = vunpack.c.l.s4 1934713408
    %v483 = vunpack.c.0.s8 %v482
    %v484 = vperm.slane %v476, %v483
    %v485 = vrot.slane %v472, 4
    %v486 = vsel %vm341, %v485, %v467
    %v487 = vrot.slane %v467, 4
    %v488 = vsel %vm341, %v472, %v487
    %v490 = vunpack.c.l.s4 1934713408
    %v491 = vunpack.c.0.s8 %v490
    %v492 = vperm.slane %v486, %v491
    %v494 = vunpack.c.l.s4 1934713408
    %v495 = vunpack.c.0.s8 %v494
    %v496 = vperm.slane %v488, %v495
    %v497 = vrot.slane %v492, 4
    %v498 = vsel %vm341, %v497, %v480
    %v499 = vrot.slane %v480, 4
    %v500 = vsel %vm341, %v492, %v499
    %v501 = vrot.slane %v496, 4
    %v502 = vsel %vm341, %v501, %v484
    %v503 = vrot.slane %v484, 4
    %v504 = vsel %vm341, %v496, %v503
    %v505 = vrot.slane %v394, 4
    %v506 = vsel %vm341, %v505, %v390
    %v508 = vunpack.c.l.s4 1983009808
    %v509 = vunpack.c.0.s8 %v508
    %v510 = vperm.slane %v506, %v509
    %v511 = vrot.slane %v396, 4
    %v512 = vsel %vm341, %v511, %v392
    %v514 = vunpack.c.l.s4 1983009808
    %v515 = vunpack.c.0.s8 %v514
    %v516 = vperm.slane %v512, %v515
    %v517 = vrot.slane %v450, 4
    %v518 = vsel %vm341, %v517, %v446
    %v520 = vunpack.c.l.s4 1983009808
    %v521 = vunpack.c.0.s8 %v520
    %v522 = vperm.slane %v518, %v521
    %v523 = vrot.slane %v452, 4
    %v524 = vsel %vm341, %v523, %v448
    %v526 = vunpack.c.l.s4 1983009808
    %v527 = vunpack.c.0.s8 %v526
    %v528 = vperm.slane %v524, %v527
    %v529 = vrot.slane %v516, 4
    %v530 = vsel %vm341, %v529, %v510
    %v531 = vrot.slane %v510, 4
    %v532 = vsel %vm341, %v516, %v531
    %v534 = vunpack.c.l.s4 1934713408
    %v535 = vunpack.c.0.s8 %v534
    %v536 = vperm.slane %v530, %v535
    %v538 = vunpack.c.l.s4 1934713408
    %v539 = vunpack.c.0.s8 %v538
    %v540 = vperm.slane %v532, %v539
    %v541 = vrot.slane %v528, 4
    %v542 = vsel %vm341, %v541, %v522
    %v543 = vrot.slane %v522, 4
    %v544 = vsel %vm341, %v528, %v543
    %v546 = vunpack.c.l.s4 1934713408
    %v547 = vunpack.c.0.s8 %v546
    %v548 = vperm.slane %v542, %v547
    %v550 = vunpack.c.l.s4 1934713408
    %v551 = vunpack.c.0.s8 %v550
    %v552 = vperm.slane %v544, %v551
    %v553 = vrot.slane %v548, 4
    %v554 = vsel %vm341, %v553, %v536
    %v555 = vrot.slane %v536, 4
    %v556 = vsel %vm341, %v548, %v555
    %v557 = vrot.slane %v552, 4
    %v558 = vsel %vm341, %v557, %v540
    %v559 = vrot.slane %v540, 4
    %v560 = vsel %vm341, %v552, %v559
    %563 = vrot.lane.b32.xlu0 %v255, 120
    %v564 = vpop.permute.xlu0 %563
    %565 = vrot.lane.b32.xlu0 %v258, 120
    %v566 = vpop.permute.xlu0 %565
    %569 = vrot.lane.b32.xlu0 %v255, 112
    %v570 = vpop.permute.xlu0 %569
    %571 = vrot.lane.b32.xlu0 %v258, 112
    %v572 = vpop.permute.xlu0 %571
    %575 = vrot.lane.b32.xlu0 %v255, 104
    %v576 = vpop.permute.xlu0 %575
    %577 = vrot.lane.b32.xlu0 %v258, 104
    %v578 = vpop.permute.xlu0 %577
    %v581 = vrot.slane %v570, 4
    %v582 = vsel %vm341, %v581, %v255
    %v583 = vrot.slane %v255, 4
    %v584 = vsel %vm341, %v570, %v583
    %v586 = vunpack.c.l.s4 1983009808
    %v587 = vunpack.c.0.s8 %v586
    %v588 = vperm.slane %v582, %v587
    %v590 = vunpack.c.l.s4 1983009808
    %v591 = vunpack.c.0.s8 %v590
    %v592 = vperm.slane %v584, %v591
    %v593 = vrot.slane %v576, 4
    %v594 = vsel %vm341, %v593, %v564
    %v595 = vrot.slane %v564, 4
    %v596 = vsel %vm341, %v576, %v595
    %v598 = vunpack.c.l.s4 1983009808
    %v599 = vunpack.c.0.s8 %v598
    %v600 = vperm.slane %v594, %v599
    %v602 = vunpack.c.l.s4 1983009808
    %v603 = vunpack.c.0.s8 %v602
    %v604 = vperm.slane %v596, %v603
    %v605 = vrot.slane %v600, 4
    %v606 = vsel %vm341, %v605, %v588
    %v607 = vrot.slane %v588, 4
    %v608 = vsel %vm341, %v600, %v607
    %v610 = vunpack.c.l.s4 1934713408
    %v611 = vunpack.c.0.s8 %v610
    %v612 = vperm.slane %v606, %v611
    %v614 = vunpack.c.l.s4 1934713408
    %v615 = vunpack.c.0.s8 %v614
    %v616 = vperm.slane %v608, %v615
    %v617 = vrot.slane %v604, 4
    %v618 = vsel %vm341, %v617, %v592
    %v619 = vrot.slane %v592, 4
    %v620 = vsel %vm341, %v604, %v619
    %v622 = vunpack.c.l.s4 1934713408
    %v623 = vunpack.c.0.s8 %v622
    %v624 = vperm.slane %v618, %v623
    %v626 = vunpack.c.l.s4 1934713408
    %v627 = vunpack.c.0.s8 %v626
    %v628 = vperm.slane %v620, %v627
    %v629 = vrot.slane %v612, 4
    %v630 = vsel %vm341, 0.0, %v629
    %v631 = vrot.slane %v616, 4
    %v632 = vsel %vm341, 0.0, %v631
    %v633 = vrot.slane %v624, 4
    %v634 = vsel %vm341, 0.0, %v633
    %v635 = vrot.slane %v628, 4
    %v636 = vsel %vm341, 0.0, %v635
    %v637 = vrot.slane %v572, 4
    %v638 = vsel %vm341, %v637, %v258
    %v639 = vrot.slane %v258, 4
    %v640 = vsel %vm341, %v572, %v639
    %v642 = vunpack.c.l.s4 1983009808
    %v643 = vunpack.c.0.s8 %v642
    %v644 = vperm.slane %v638, %v643
    %v646 = vunpack.c.l.s4 1983009808
    %v647 = vunpack.c.0.s8 %v646
    %v648 = vperm.slane %v640, %v647
    %v649 = vrot.slane %v578, 4
    %v650 = vsel %vm341, %v649, %v566
    %v651 = vrot.slane %v566, 4
    %v652 = vsel %vm341, %v578, %v651
    %v654 = vunpack.c.l.s4 1983009808
    %v655 = vunpack.c.0.s8 %v654
    %v656 = vperm.slane %v650, %v655
    %v658 = vunpack.c.l.s4 1983009808
    %v659 = vunpack.c.0.s8 %v658
    %v660 = vperm.slane %v652, %v659
    %v661 = vrot.slane %v656, 4
    %v662 = vsel %vm341, %v661, %v644
    %v663 = vrot.slane %v644, 4
    %v664 = vsel %vm341, %v656, %v663
    %v666 = vunpack.c.l.s4 1934713408
    %v667 = vunpack.c.0.s8 %v666
    %v668 = vperm.slane %v662, %v667
    %v670 = vunpack.c.l.s4 1934713408
    %v671 = vunpack.c.0.s8 %v670
    %v672 = vperm.slane %v664, %v671
    %v673 = vrot.slane %v660, 4
    %v674 = vsel %vm341, %v673, %v648
    %v675 = vrot.slane %v648, 4
    %v676 = vsel %vm341, %v660, %v675
    %v678 = vunpack.c.l.s4 1934713408
    %v679 = vunpack.c.0.s8 %v678
    %v680 = vperm.slane %v674, %v679
    %v682 = vunpack.c.l.s4 1934713408
    %v683 = vunpack.c.0.s8 %v682
    %v684 = vperm.slane %v676, %v683
    %v685 = vrot.slane %v668, 4
    %v686 = vsel %vm341, 0.0, %v685
    %v687 = vrot.slane %v672, 4
    %v688 = vsel %vm341, 0.0, %v687
    %v689 = vrot.slane %v680, 4
    %v690 = vsel %vm341, 0.0, %v689
    %v691 = vrot.slane %v684, 4
    %v692 = vsel %vm341, 0.0, %v691
    %v693 = vsel %vm341, %v633, %v612
    %v695 = vunpack.c.l.s4 1983009808
    %v696 = vunpack.c.0.s8 %v695
    %v697 = vperm.slane %v693, %v696
    %v698 = vsel %vm341, %v635, %v616
    %v700 = vunpack.c.l.s4 1983009808
    %v701 = vunpack.c.0.s8 %v700
    %v702 = vperm.slane %v698, %v701
    %v703 = vsel %vm341, %v689, %v668
    %v705 = vunpack.c.l.s4 1983009808
    %v706 = vunpack.c.0.s8 %v705
    %v707 = vperm.slane %v703, %v706
    %v708 = vsel %vm341, %v691, %v672
    %v710 = vunpack.c.l.s4 1983009808
    %v711 = vunpack.c.0.s8 %v710
    %v712 = vperm.slane %v708, %v711
    %v713 = vrot.slane %v702, 4
    %v714 = vsel %vm341, %v713, %v697
    %v715 = vrot.slane %v697, 4
    %v716 = vsel %vm341, %v702, %v715
    %v718 = vunpack.c.l.s4 1934713408
    %v719 = vunpack.c.0.s8 %v718
    %v720 = vperm.slane %v714, %v719
    %v722 = vunpack.c.l.s4 1934713408
    %v723 = vunpack.c.0.s8 %v722
    %v724 = vperm.slane %v716, %v723
    %v725 = vrot.slane %v712, 4
    %v726 = vsel %vm341, %v725, %v707
    %v727 = vrot.slane %v707, 4
    %v728 = vsel %vm341, %v712, %v727
    %v730 = vunpack.c.l.s4 1934713408
    %v731 = vunpack.c.0.s8 %v730
    %v732 = vperm.slane %v726, %v731
    %v734 = vunpack.c.l.s4 1934713408
    %v735 = vunpack.c.0.s8 %v734
    %v736 = vperm.slane %v728, %v735
    %v737 = vrot.slane %v732, 4
    %v738 = vsel %vm341, %v737, %v720
    %v739 = vrot.slane %v720, 4
    %v740 = vsel %vm341, %v732, %v739
    %v741 = vrot.slane %v736, 4
    %v742 = vsel %vm341, %v741, %v724
    %v743 = vrot.slane %v724, 4
    %v744 = vsel %vm341, %v736, %v743
    %v745 = vrot.slane %v634, 4
    %v746 = vsel %vm341, %v745, %v630
    %v748 = vunpack.c.l.s4 1983009808
    %v749 = vunpack.c.0.s8 %v748
    %v750 = vperm.slane %v746, %v749
    %v751 = vrot.slane %v636, 4
    %v752 = vsel %vm341, %v751, %v632
    %v754 = vunpack.c.l.s4 1983009808
    %v755 = vunpack.c.0.s8 %v754
    %v756 = vperm.slane %v752, %v755
    %v757 = vrot.slane %v690, 4
    %v758 = vsel %vm341, %v757, %v686
    %v760 = vunpack.c.l.s4 1983009808
    %v761 = vunpack.c.0.s8 %v760
    %v762 = vperm.slane %v758, %v761
    %v763 = vrot.slane %v692, 4
    %v764 = vsel %vm341, %v763, %v688
    %v766 = vunpack.c.l.s4 1983009808
    %v767 = vunpack.c.0.s8 %v766
    %v768 = vperm.slane %v764, %v767
    %v769 = vrot.slane %v756, 4
    %v770 = vsel %vm341, %v769, %v750
    %v771 = vrot.slane %v750, 4
    %v772 = vsel %vm341, %v756, %v771
    %v774 = vunpack.c.l.s4 1934713408
    %v775 = vunpack.c.0.s8 %v774
    %v776 = vperm.slane %v770, %v775
    %v778 = vunpack.c.l.s4 1934713408
    %v779 = vunpack.c.0.s8 %v778
    %v780 = vperm.slane %v772, %v779
    %v781 = vrot.slane %v768, 4
    %v782 = vsel %vm341, %v781, %v762
    %v783 = vrot.slane %v762, 4
    %v784 = vsel %vm341, %v768, %v783
    %v786 = vunpack.c.l.s4 1934713408
    %v787 = vunpack.c.0.s8 %v786
    %v788 = vperm.slane %v782, %v787
    %v790 = vunpack.c.l.s4 1934713408
    %v791 = vunpack.c.0.s8 %v790
    %v792 = vperm.slane %v784, %v791
    %v793 = vrot.slane %v788, 4
    %v794 = vsel %vm341, %v793, %v776
    %v795 = vrot.slane %v776, 4
    %v796 = vsel %vm341, %v788, %v795
    %v797 = vrot.slane %v792, 4
    %v798 = vsel %vm341, %v797, %v780
    %v799 = vrot.slane %v780, 4
    %v800 = vsel %vm341, %v792, %v799
    %803 = vrot.lane.b32.xlu0 %v315, 120
    %v804 = vpop.permute.xlu0 %803
    %805 = vrot.lane.b32.xlu0 %v318, 120
    %v806 = vpop.permute.xlu0 %805
    %809 = vrot.lane.b32.xlu0 %v315, 112
    %v810 = vpop.permute.xlu0 %809
    %811 = vrot.lane.b32.xlu0 %v318, 112
    %v812 = vpop.permute.xlu0 %811
    %815 = vrot.lane.b32.xlu0 %v315, 104
    %v816 = vpop.permute.xlu0 %815
    %817 = vrot.lane.b32.xlu0 %v318, 104
    %v818 = vpop.permute.xlu0 %817
    %v821 = vrot.slane %v810, 4
    %v822 = vsel %vm341, %v821, %v315
    %v823 = vrot.slane %v315, 4
    %v824 = vsel %vm341, %v810, %v823
    %v826 = vunpack.c.l.s4 1983009808
    %v827 = vunpack.c.0.s8 %v826
    %v828 = vperm.slane %v822, %v827
    %v830 = vunpack.c.l.s4 1983009808
    %v831 = vunpack.c.0.s8 %v830
    %v832 = vperm.slane %v824, %v831
    %v833 = vrot.slane %v816, 4
    %v834 = vsel %vm341, %v833, %v804
    %v835 = vrot.slane %v804, 4
    %v836 = vsel %vm341, %v816, %v835
    %v838 = vunpack.c.l.s4 1983009808
    %v839 = vunpack.c.0.s8 %v838
    %v840 = vperm.slane %v834, %v839
    %v842 = vunpack.c.l.s4 1983009808
    %v843 = vunpack.c.0.s8 %v842
    %v844 = vperm.slane %v836, %v843
    %v845 = vrot.slane %v840, 4
    %v846 = vsel %vm341, %v845, %v828
    %v847 = vrot.slane %v828, 4
    %v848 = vsel %vm341, %v840, %v847
    %v850 = vunpack.c.l.s4 1934713408
    %v851 = vunpack.c.0.s8 %v850
    %v852 = vperm.slane %v846, %v851
    %v854 = vunpack.c.l.s4 1934713408
    %v855 = vunpack.c.0.s8 %v854
    %v856 = vperm.slane %v848, %v855
    %v857 = vrot.slane %v844, 4
    %v858 = vsel %vm341, %v857, %v832
    %v859 = vrot.slane %v832, 4
    %v860 = vsel %vm341, %v844, %v859
    %v862 = vunpack.c.l.s4 1934713408
    %v863 = vunpack.c.0.s8 %v862
    %v864 = vperm.slane %v858, %v863
    %v866 = vunpack.c.l.s4 1934713408
    %v867 = vunpack.c.0.s8 %v866
    %v868 = vperm.slane %v860, %v867
    %v869 = vrot.slane %v852, 4
    %v870 = vsel %vm341, 0.0, %v869
    %v871 = vrot.slane %v856, 4
    %v872 = vsel %vm341, 0.0, %v871
    %v873 = vrot.slane %v864, 4
    %v874 = vsel %vm341, 0.0, %v873
    %v875 = vrot.slane %v868, 4
    %v876 = vsel %vm341, 0.0, %v875
    %v877 = vrot.slane %v812, 4
    %v878 = vsel %vm341, %v877, %v318
    %v879 = vrot.slane %v318, 4
    %v880 = vsel %vm341, %v812, %v879
    %v882 = vunpack.c.l.s4 1983009808
    %v883 = vunpack.c.0.s8 %v882
    %v884 = vperm.slane %v878, %v883
    %v886 = vunpack.c.l.s4 1983009808
    %v887 = vunpack.c.0.s8 %v886
    %v888 = vperm.slane %v880, %v887
    %v889 = vrot.slane %v818, 4
    %v890 = vsel %vm341, %v889, %v806
    %v891 = vrot.slane %v806, 4
    %v892 = vsel %vm341, %v818, %v891
    %v894 = vunpack.c.l.s4 1983009808
    %v895 = vunpack.c.0.s8 %v894
    %v896 = vperm.slane %v890, %v895
    %v898 = vunpack.c.l.s4 1983009808
    %v899 = vunpack.c.0.s8 %v898
    %v900 = vperm.slane %v892, %v899
    %v901 = vrot.slane %v896, 4
    %v902 = vsel %vm341, %v901, %v884
    %v903 = vrot.slane %v884, 4
    %v904 = vsel %vm341, %v896, %v903
    %v906 = vunpack.c.l.s4 1934713408
    %v907 = vunpack.c.0.s8 %v906
    %v908 = vperm.slane %v902, %v907
    %v910 = vunpack.c.l.s4 1934713408
    %v911 = vunpack.c.0.s8 %v910
    %v912 = vperm.slane %v904, %v911
    %v913 = vrot.slane %v900, 4
    %v914 = vsel %vm341, %v913, %v888
    %v915 = vrot.slane %v888, 4
    %v916 = vsel %vm341, %v900, %v915
    %v918 = vunpack.c.l.s4 1934713408
    %v919 = vunpack.c.0.s8 %v918
    %v920 = vperm.slane %v914, %v919
    %v922 = vunpack.c.l.s4 1934713408
    %v923 = vunpack.c.0.s8 %v922
    %v924 = vperm.slane %v916, %v923
    %v925 = vrot.slane %v908, 4
    %v926 = vsel %vm341, 0.0, %v925
    %v927 = vrot.slane %v912, 4
    %v928 = vsel %vm341, 0.0, %v927
    %v929 = vrot.slane %v920, 4
    %v930 = vsel %vm341, 0.0, %v929
    %v931 = vrot.slane %v924, 4
    %v932 = vsel %vm341, 0.0, %v931
    %v933 = vsel %vm341, %v873, %v852
    %v935 = vunpack.c.l.s4 1983009808
    %v936 = vunpack.c.0.s8 %v935
    %v937 = vperm.slane %v933, %v936
    %v938 = vsel %vm341, %v875, %v856
    %v940 = vunpack.c.l.s4 1983009808
    %v941 = vunpack.c.0.s8 %v940
    %v942 = vperm.slane %v938, %v941
    %v943 = vsel %vm341, %v929, %v908
    %v945 = vunpack.c.l.s4 1983009808
    %v946 = vunpack.c.0.s8 %v945
    %v947 = vperm.slane %v943, %v946
    %v948 = vsel %vm341, %v931, %v912
    %v950 = vunpack.c.l.s4 1983009808
    %v951 = vunpack.c.0.s8 %v950
    %v952 = vperm.slane %v948, %v951
    %v953 = vrot.slane %v942, 4
    %v954 = vsel %vm341, %v953, %v937
    %v955 = vrot.slane %v937, 4
    %v956 = vsel %vm341, %v942, %v955
    %v958 = vunpack.c.l.s4 1934713408
    %v959 = vunpack.c.0.s8 %v958
    %v960 = vperm.slane %v954, %v959
    %v962 = vunpack.c.l.s4 1934713408
    %v963 = vunpack.c.0.s8 %v962
    %v964 = vperm.slane %v956, %v963
    %v965 = vrot.slane %v952, 4
    %v966 = vsel %vm341, %v965, %v947
    %v967 = vrot.slane %v947, 4
    %v968 = vsel %vm341, %v952, %v967
    %v970 = vunpack.c.l.s4 1934713408
    %v971 = vunpack.c.0.s8 %v970
    %v972 = vperm.slane %v966, %v971
    %v974 = vunpack.c.l.s4 1934713408
    %v975 = vunpack.c.0.s8 %v974
    %v976 = vperm.slane %v968, %v975
    %v977 = vrot.slane %v972, 4
    %v978 = vsel %vm341, %v977, %v960
    %v979 = vrot.slane %v960, 4
    %v980 = vsel %vm341, %v972, %v979
    %v981 = vrot.slane %v976, 4
    %v982 = vsel %vm341, %v981, %v964
    %v983 = vrot.slane %v964, 4
    %v984 = vsel %vm341, %v976, %v983
    %v985 = vrot.slane %v874, 4
    %v986 = vsel %vm341, %v985, %v870
    %v988 = vunpack.c.l.s4 1983009808
    %v989 = vunpack.c.0.s8 %v988
    %v990 = vperm.slane %v986, %v989
    %v991 = vrot.slane %v876, 4
    %v992 = vsel %vm341, %v991, %v872
    %v994 = vunpack.c.l.s4 1983009808
    %v995 = vunpack.c.0.s8 %v994
    %v996 = vperm.slane %v992, %v995
    %v997 = vrot.slane %v930, 4
    %v998 = vsel %vm341, %v997, %v926
    %v1000 = vunpack.c.l.s4 1983009808
    %v1001 = vunpack.c.0.s8 %v1000
    %v1002 = vperm.slane %v998, %v1001
    %v1003 = vrot.slane %v932, 4
    %v1004 = vsel %vm341, %v1003, %v928
    %v1006 = vunpack.c.l.s4 1983009808
    %v1007 = vunpack.c.0.s8 %v1006
    %v1008 = vperm.slane %v1004, %v1007
    %v1009 = vrot.slane %v996, 4
    %v1010 = vsel %vm341, %v1009, %v990
    %v1011 = vrot.slane %v990, 4
    %v1012 = vsel %vm341, %v996, %v1011
    %v1014 = vunpack.c.l.s4 1934713408
    %v1015 = vunpack.c.0.s8 %v1014
    %v1016 = vperm.slane %v1010, %v1015
    %v1018 = vunpack.c.l.s4 1934713408
    %v1019 = vunpack.c.0.s8 %v1018
    %v1020 = vperm.slane %v1012, %v1019
    %v1021 = vrot.slane %v1008, 4
    %v1022 = vsel %vm341, %v1021, %v1002
    %v1023 = vrot.slane %v1002, 4
    %v1024 = vsel %vm341, %v1008, %v1023
    %v1026 = vunpack.c.l.s4 1934713408
    %v1027 = vunpack.c.0.s8 %v1026
    %v1028 = vperm.slane %v1022, %v1027
    %v1030 = vunpack.c.l.s4 1934713408
    %v1031 = vunpack.c.0.s8 %v1030
    %v1032 = vperm.slane %v1024, %v1031
    %v1033 = vrot.slane %v1028, 4
    %v1034 = vsel %vm341, %v1033, %v1016
    %v1035 = vrot.slane %v1016, 4
    %v1036 = vsel %vm341, %v1028, %v1035
    %v1037 = vrot.slane %v1032, 4
    %v1038 = vsel %vm341, %v1037, %v1020
    %v1039 = vrot.slane %v1020, 4
    %v1040 = vsel %vm341, %v1032, %v1039
    %vm1041 = vcmask 64512
    %v1043 = vsel %vm1041, %v498, 0
    %v1046 = vsel %vm1041, %v738, 0
    %1048 = vmatpush.xpose.msra.mxu0 0.0
    %1049 = vmatpush.xpose.msra.mxu0 0.0
    %1050 = vmatpush.xpose.msra.mxu0 0.0
    %1051 = vmatpush.xpose.msra.mxu0 0.0
    %1052 = vmatpush.xpose.msra.mxu0 0.0
    %1053 = vmatpush.xpose.msra.mxu0 0.0
    %1054 = vmatpush.xpose.msra.mxu0 0.0
    %1055 = vmatpush.xpose.msra.mxu0 0.0
    %1056 = vmatpush.xpose.msra.mxu0 0.0
    %1057 = vmatpush.xpose.msra.mxu0 0.0
    %1058 = vmatpush.xpose.msra.mxu0 0.0
    %1059 = vmatpush.xpose.msra.mxu0 0.0
    %1060 = vmatpush.xpose.msra.mxu0 0.0
    %1061 = vmatpush.xpose.msra.mxu0 0.0
    %1062 = vmatpush.xpose.msra.mxu0 0.0
    %1063 = vmatpush.xpose.msra.mxu0 %v1046
    %1064 = vmatmul.f32.gmra.mxu0 %v1043
    %v1065 = vpop.f32.mrf.mxu0
    %v1066 = vadd.f32 0.0, %v1065
    %1067 = vdwg.mxu0
    %v1069 = vsel %vm1041, %v500, 0
    %v1072 = vsel %vm1041, %v740, 0
    %1074 = vmatpush.xpose.msra.mxu0 0.0
    %1075 = vmatpush.xpose.msra.mxu0 0.0
    %1076 = vmatpush.xpose.msra.mxu0 0.0
    %1077 = vmatpush.xpose.msra.mxu0 0.0
    %1078 = vmatpush.xpose.msra.mxu0 0.0
    %1079 = vmatpush.xpose.msra.mxu0 0.0
    %1080 = vmatpush.xpose.msra.mxu0 0.0
    %1081 = vmatpush.xpose.msra.mxu0 0.0
    %1082 = vmatpush.xpose.msra.mxu0 0.0
    %1083 = vmatpush.xpose.msra.mxu0 0.0
    %1084 = vmatpush.xpose.msra.mxu0 0.0
    %1085 = vmatpush.xpose.msra.mxu0 0.0
    %1086 = vmatpush.xpose.msra.mxu0 0.0
    %1087 = vmatpush.xpose.msra.mxu0 0.0
    %1088 = vmatpush.xpose.msra.mxu0 0.0
    %1089 = vmatpush.xpose.msra.mxu0 %v1072
    %1090 = vmatmul.f32.gmra.mxu0 %v1069
    %v1091 = vpop.f32.mrf.mxu0
    %v1092 = vadd.f32 0.0, %v1091
    %1093 = vdwg.mxu0
    %v1095 = vsel %vm1041, %v502, 0
    %v1098 = vsel %vm1041, %v742, 0
    %1100 = vmatpush.xpose.msra.mxu0 0.0
    %1101 = vmatpush.xpose.msra.mxu0 0.0
    %1102 = vmatpush.xpose.msra.mxu0 0.0
    %1103 = vmatpush.xpose.msra.mxu0 0.0
    %1104 = vmatpush.xpose.msra.mxu0 0.0
    %1105 = vmatpush.xpose.msra.mxu0 0.0
    %1106 = vmatpush.xpose.msra.mxu0 0.0
    %1107 = vmatpush.xpose.msra.mxu0 0.0
    %1108 = vmatpush.xpose.msra.mxu0 0.0
    %1109 = vmatpush.xpose.msra.mxu0 0.0
    %1110 = vmatpush.xpose.msra.mxu0 0.0
    %1111 = vmatpush.xpose.msra.mxu0 0.0
    %1112 = vmatpush.xpose.msra.mxu0 0.0
    %1113 = vmatpush.xpose.msra.mxu0 0.0
    %1114 = vmatpush.xpose.msra.mxu0 0.0
    %1115 = vmatpush.xpose.msra.mxu0 %v1098
    %1116 = vmatmul.f32.gmra.mxu0 %v1095
    %v1117 = vpop.f32.mrf.mxu0
    %v1118 = vadd.f32 0.0, %v1117
    %1119 = vdwg.mxu0
    %v1121 = vsel %vm1041, %v504, 0
    %v1124 = vsel %vm1041, %v744, 0
    %1126 = vmatpush.xpose.msra.mxu0 0.0
    %1127 = vmatpush.xpose.msra.mxu0 0.0
    %1128 = vmatpush.xpose.msra.mxu0 0.0
    %1129 = vmatpush.xpose.msra.mxu0 0.0
    %1130 = vmatpush.xpose.msra.mxu0 0.0
    %1131 = vmatpush.xpose.msra.mxu0 0.0
    %1132 = vmatpush.xpose.msra.mxu0 0.0
    %1133 = vmatpush.xpose.msra.mxu0 0.0
    %1134 = vmatpush.xpose.msra.mxu0 0.0
    %1135 = vmatpush.xpose.msra.mxu0 0.0
    %1136 = vmatpush.xpose.msra.mxu0 0.0
    %1137 = vmatpush.xpose.msra.mxu0 0.0
    %1138 = vmatpush.xpose.msra.mxu0 0.0
    %1139 = vmatpush.xpose.msra.mxu0 0.0
    %1140 = vmatpush.xpose.msra.mxu0 0.0
    %1141 = vmatpush.xpose.msra.mxu0 %v1124
    %1142 = vmatmul.f32.gmra.mxu0 %v1121
    %v1143 = vpop.f32.mrf.mxu0
    %v1144 = vadd.f32 0.0, %v1143
    %1145 = vdwg.mxu0
    %v1147 = vsel %vm1041, %v554, 0
    %v1150 = vsel %vm1041, %v794, 0
    %1152 = vmatpush.xpose.msra.mxu0 0.0
    %1153 = vmatpush.xpose.msra.mxu0 0.0
    %1154 = vmatpush.xpose.msra.mxu0 0.0
    %1155 = vmatpush.xpose.msra.mxu0 0.0
    %1156 = vmatpush.xpose.msra.mxu0 0.0
    %1157 = vmatpush.xpose.msra.mxu0 0.0
    %1158 = vmatpush.xpose.msra.mxu0 0.0
    %1159 = vmatpush.xpose.msra.mxu0 0.0
    %1160 = vmatpush.xpose.msra.mxu0 0.0
    %1161 = vmatpush.xpose.msra.mxu0 0.0
    %1162 = vmatpush.xpose.msra.mxu0 0.0
    %1163 = vmatpush.xpose.msra.mxu0 0.0
    %1164 = vmatpush.xpose.msra.mxu0 0.0
    %1165 = vmatpush.xpose.msra.mxu0 0.0
    %1166 = vmatpush.xpose.msra.mxu0 0.0
    %1167 = vmatpush.xpose.msra.mxu0 %v1150
    %1168 = vmatmul.f32.gmra.mxu0 %v1147
    %v1169 = vpop.f32.mrf.mxu0
    %v1170 = vadd.f32 0.0, %v1169
    %1171 = vdwg.mxu0
    %v1173 = vsel %vm1041, %v556, 0
    %v1176 = vsel %vm1041, %v796, 0
    %1178 = vmatpush.xpose.msra.mxu0 0.0
    %1179 = vmatpush.xpose.msra.mxu0 0.0
    %1180 = vmatpush.xpose.msra.mxu0 0.0
    %1181 = vmatpush.xpose.msra.mxu0 0.0
    %1182 = vmatpush.xpose.msra.mxu0 0.0
    %1183 = vmatpush.xpose.msra.mxu0 0.0
    %1184 = vmatpush.xpose.msra.mxu0 0.0
    %1185 = vmatpush.xpose.msra.mxu0 0.0
    %1186 = vmatpush.xpose.msra.mxu0 0.0
    %1187 = vmatpush.xpose.msra.mxu0 0.0
    %1188 = vmatpush.xpose.msra.mxu0 0.0
    %1189 = vmatpush.xpose.msra.mxu0 0.0
    %1190 = vmatpush.xpose.msra.mxu0 0.0
    %1191 = vmatpush.xpose.msra.mxu0 0.0
    %1192 = vmatpush.xpose.msra.mxu0 0.0
    %1193 = vmatpush.xpose.msra.mxu0 %v1176
    %1194 = vmatmul.f32.gmra.mxu0 %v1173
    %v1195 = vpop.f32.mrf.mxu0
    %v1196 = vadd.f32 0.0, %v1195
    %1197 = vdwg.mxu0
    %v1199 = vsel %vm1041, %v558, 0
    %v1202 = vsel %vm1041, %v798, 0
    %1204 = vmatpush.xpose.msra.mxu0 0.0
    %1205 = vmatpush.xpose.msra.mxu0 0.0
    %1206 = vmatpush.xpose.msra.mxu0 0.0
    %1207 = vmatpush.xpose.msra.mxu0 0.0
    %1208 = vmatpush.xpose.msra.mxu0 0.0
    %1209 = vmatpush.xpose.msra.mxu0 0.0
    %1210 = vmatpush.xpose.msra.mxu0 0.0
    %1211 = vmatpush.xpose.msra.mxu0 0.0
    %1212 = vmatpush.xpose.msra.mxu0 0.0
    %1213 = vmatpush.xpose.msra.mxu0 0.0
    %1214 = vmatpush.xpose.msra.mxu0 0.0
    %1215 = vmatpush.xpose.msra.mxu0 0.0
    %1216 = vmatpush.xpose.msra.mxu0 0.0
    %1217 = vmatpush.xpose.msra.mxu0 0.0
    %1218 = vmatpush.xpose.msra.mxu0 0.0
    %1219 = vmatpush.xpose.msra.mxu0 %v1202
    %1220 = vmatmul.f32.gmra.mxu0 %v1199
    %v1221 = vpop.f32.mrf.mxu0
    %v1222 = vadd.f32 0.0, %v1221
    %1223 = vdwg.mxu0
    %v1225 = vsel %vm1041, %v560, 0
    %v1228 = vsel %vm1041, %v800, 0
    %1230 = vmatpush.xpose.msra.mxu0 0.0
    %1231 = vmatpush.xpose.msra.mxu0 0.0
    %1232 = vmatpush.xpose.msra.mxu0 0.0
    %1233 = vmatpush.xpose.msra.mxu0 0.0
    %1234 = vmatpush.xpose.msra.mxu0 0.0
    %1235 = vmatpush.xpose.msra.mxu0 0.0
    %1236 = vmatpush.xpose.msra.mxu0 0.0
    %1237 = vmatpush.xpose.msra.mxu0 0.0
    %1238 = vmatpush.xpose.msra.mxu0 0.0
    %1239 = vmatpush.xpose.msra.mxu0 0.0
    %1240 = vmatpush.xpose.msra.mxu0 0.0
    %1241 = vmatpush.xpose.msra.mxu0 0.0
    %1242 = vmatpush.xpose.msra.mxu0 0.0
    %1243 = vmatpush.xpose.msra.mxu0 0.0
    %1244 = vmatpush.xpose.msra.mxu0 0.0
    %1245 = vmatpush.xpose.msra.mxu0 %v1228
    %1246 = vmatmul.f32.gmra.mxu0 %v1225
    %v1247 = vpop.f32.mrf.mxu0
    %v1248 = vadd.f32 0.0, %v1247
    %1249 = vdwg.mxu0
    %v1250 = vsel %vm1041, %v1066, -inf
    %1251 = vmax.xlane.f32.xlu0 %v1250
    %v1252 = vpop.xlane.xlu0 %1251
    %v1253 = vsel %vm1041, %v1092, -inf
    %1254 = vmax.xlane.f32.xlu0 %v1253
    %v1255 = vpop.xlane.xlu0 %1254
    %v1256 = vsel %vm1041, %v1118, -inf
    %1257 = vmax.xlane.f32.xlu0 %v1256
    %v1258 = vpop.xlane.xlu0 %1257
    %v1259 = vsel %vm1041, %v1144, -inf
    %1260 = vmax.xlane.f32.xlu0 %v1259
    %v1261 = vpop.xlane.xlu0 %1260
    %v1262 = vsel %vm1041, %v1170, -inf
    %1263 = vmax.xlane.f32.xlu0 %v1262
    %v1264 = vpop.xlane.xlu0 %1263
    %v1265 = vsel %vm1041, %v1196, -inf
    %1266 = vmax.xlane.f32.xlu0 %v1265
    %v1267 = vpop.xlane.xlu0 %1266
    %v1268 = vsel %vm1041, %v1222, -inf
    %1269 = vmax.xlane.f32.xlu0 %v1268
    %v1270 = vpop.xlane.xlu0 %1269
    %v1271 = vsel %vm1041, %v1248, -inf
    %1272 = vmax.xlane.f32.xlu0 %v1271
    %v1273 = vpop.xlane.xlu0 %1272
    %v1274 = vsub.f32 %v1066, %v1252
    %v1275 = vsub.f32 %v1092, %v1255
    %v1276 = vsub.f32 %v1118, %v1258
    %v1277 = vsub.f32 %v1144, %v1261
    %v1278 = vsub.f32 %v1170, %v1264
    %v1279 = vsub.f32 %v1196, %v1267
    %v1280 = vsub.f32 %v1222, %v1270
    %v1281 = vsub.f32 %v1248, %v1273
    %v1282 = vmul.f32 %v1274, 1.442695
    %v1283 = vpow.pop %v1282
    %v1284 = vmul.f32 %v1275, 1.442695
    %v1285 = vpow.pop %v1284
    %v1286 = vmul.f32 %v1276, 1.442695
    %v1287 = vpow.pop %v1286
    %v1288 = vmul.f32 %v1277, 1.442695
    %v1289 = vpow.pop %v1288
    %v1290 = vmul.f32 %v1278, 1.442695
    %v1291 = vpow.pop %v1290
    %v1292 = vmul.f32 %v1279, 1.442695
    %v1293 = vpow.pop %v1292
    %v1294 = vmul.f32 %v1280, 1.442695
    %v1295 = vpow.pop %v1294
    %v1296 = vmul.f32 %v1281, 1.442695
    %v1297 = vpow.pop %v1296
    %v1298 = vsel %vm1041, %v1283, 0.0
    %1299 = vadd.xlane.f32.xlu0 %v1298
    %v1300 = vpop.xlane.xlu0 %1299
    %v1301 = vsel %vm1041, %v1285, 0.0
    %1302 = vadd.xlane.f32.xlu0 %v1301
    %v1303 = vpop.xlane.xlu0 %1302
    %v1304 = vsel %vm1041, %v1287, 0.0
    %1305 = vadd.xlane.f32.xlu0 %v1304
    %v1306 = vpop.xlane.xlu0 %1305
    %v1307 = vsel %vm1041, %v1289, 0.0
    %1308 = vadd.xlane.f32.xlu0 %v1307
    %v1309 = vpop.xlane.xlu0 %1308
    %v1310 = vsel %vm1041, %v1291, 0.0
    %1311 = vadd.xlane.f32.xlu0 %v1310
    %v1312 = vpop.xlane.xlu0 %1311
    %v1313 = vsel %vm1041, %v1293, 0.0
    %1314 = vadd.xlane.f32.xlu0 %v1313
    %v1315 = vpop.xlane.xlu0 %1314
    %v1316 = vsel %vm1041, %v1295, 0.0
    %1317 = vadd.xlane.f32.xlu0 %v1316
    %v1318 = vpop.xlane.xlu0 %1317
    %v1319 = vsel %vm1041, %v1297, 0.0
    %1320 = vadd.xlane.f32.xlu0 %v1319
    %v1321 = vpop.xlane.xlu0 %1320
    %v1322 = vrcp.pop %v1300
    %v1323 = vmul.f32 %v1300, %v1322
    %v1324 = vsub.f32 1.0, %v1323
    %v1325 = vmul.f32 %v1322, %v1324
    %v1326 = vadd.f32 %v1322, %v1325
    %vm1327 = vweird.f32 %v1300
    %vm1328 = vweird.f32 %v1322
    %vm1329 = vmor %vm1327, %vm1328
    %v1330 = vsel %vm1329, %v1322, %v1326
    %v1331 = vand.u32 2147483647, %v1300
    %vm1332 = vcmp.eq.f32.partialorder %v1331, 8.507059e+37
    %v1333 = vand.u32 %v1300, 2147483648
    %v1334 = vor.u32 1.1754944e-38, %v1333
    %v1335 = vsel %vm1332, %v1334, %v1330
    %v1336 = vrcp.pop %v1303
    %v1337 = vmul.f32 %v1303, %v1336
    %v1338 = vsub.f32 1.0, %v1337
    %v1339 = vmul.f32 %v1336, %v1338
    %v1340 = vadd.f32 %v1336, %v1339
    %vm1341 = vweird.f32 %v1303
    %vm1342 = vweird.f32 %v1336
    %vm1343 = vmor %vm1341, %vm1342
    %v1344 = vsel %vm1343, %v1336, %v1340
    %v1345 = vand.u32 2147483647, %v1303
    %vm1346 = vcmp.eq.f32.partialorder %v1345, 8.507059e+37
    %v1347 = vand.u32 %v1303, 2147483648
    %v1348 = vor.u32 1.1754944e-38, %v1347
    %v1349 = vsel %vm1346, %v1348, %v1344
    %v1350 = vrcp.pop %v1306
    %v1351 = vmul.f32 %v1306, %v1350
    %v1352 = vsub.f32 1.0, %v1351
    %v1353 = vmul.f32 %v1350, %v1352
    %v1354 = vadd.f32 %v1350, %v1353
    %vm1355 = vweird.f32 %v1306
    %vm1356 = vweird.f32 %v1350
    %vm1357 = vmor %vm1355, %vm1356
    %v1358 = vsel %vm1357, %v1350, %v1354
    %v1359 = vand.u32 2147483647, %v1306
    %vm1360 = vcmp.eq.f32.partialorder %v1359, 8.507059e+37
    %v1361 = vand.u32 %v1306, 2147483648
    %v1362 = vor.u32 1.1754944e-38, %v1361
    %v1363 = vsel %vm1360, %v1362, %v1358
    %v1364 = vrcp.pop %v1309
    %v1365 = vmul.f32 %v1309, %v1364
    %v1366 = vsub.f32 1.0, %v1365
    %v1367 = vmul.f32 %v1364, %v1366
    %v1368 = vadd.f32 %v1364, %v1367
    %vm1369 = vweird.f32 %v1309
    %vm1370 = vweird.f32 %v1364
    %vm1371 = vmor %vm1369, %vm1370
    %v1372 = vsel %vm1371, %v1364, %v1368
    %v1373 = vand.u32 2147483647, %v1309
    %vm1374 = vcmp.eq.f32.partialorder %v1373, 8.507059e+37
    %v1375 = vand.u32 %v1309, 2147483648
    %v1376 = vor.u32 1.1754944e-38, %v1375
    %v1377 = vsel %vm1374, %v1376, %v1372
    %v1378 = vrcp.pop %v1312
    %v1379 = vmul.f32 %v1312, %v1378
    %v1380 = vsub.f32 1.0, %v1379
    %v1381 = vmul.f32 %v1378, %v1380
    %v1382 = vadd.f32 %v1378, %v1381
    %vm1383 = vweird.f32 %v1312
    %vm1384 = vweird.f32 %v1378
    %vm1385 = vmor %vm1383, %vm1384
    %v1386 = vsel %vm1385, %v1378, %v1382
    %v1387 = vand.u32 2147483647, %v1312
    %vm1388 = vcmp.eq.f32.partialorder %v1387, 8.507059e+37
    %v1389 = vand.u32 %v1312, 2147483648
    %v1390 = vor.u32 1.1754944e-38, %v1389
    %v1391 = vsel %vm1388, %v1390, %v1386
    %v1392 = vrcp.pop %v1315
    %v1393 = vmul.f32 %v1315, %v1392
    %v1394 = vsub.f32 1.0, %v1393
    %v1395 = vmul.f32 %v1392, %v1394
    %v1396 = vadd.f32 %v1392, %v1395
    %vm1397 = vweird.f32 %v1315
    %vm1398 = vweird.f32 %v1392
    %vm1399 = vmor %vm1397, %vm1398
    %v1400 = vsel %vm1399, %v1392, %v1396
    %v1401 = vand.u32 2147483647, %v1315
    %vm1402 = vcmp.eq.f32.partialorder %v1401, 8.507059e+37
    %v1403 = vand.u32 %v1315, 2147483648
    %v1404 = vor.u32 1.1754944e-38, %v1403
    %v1405 = vsel %vm1402, %v1404, %v1400
    %v1406 = vrcp.pop %v1318
    %v1407 = vmul.f32 %v1318, %v1406
    %v1408 = vsub.f32 1.0, %v1407
    %v1409 = vmul.f32 %v1406, %v1408
    %v1410 = vadd.f32 %v1406, %v1409
    %vm1411 = vweird.f32 %v1318
    %vm1412 = vweird.f32 %v1406
    %vm1413 = vmor %vm1411, %vm1412
    %v1414 = vsel %vm1413, %v1406, %v1410
    %v1415 = vand.u32 2147483647, %v1318
    %vm1416 = vcmp.eq.f32.partialorder %v1415, 8.507059e+37
    %v1417 = vand.u32 %v1318, 2147483648
    %v1418 = vor.u32 1.1754944e-38, %v1417
    %v1419 = vsel %vm1416, %v1418, %v1414
    %v1420 = vrcp.pop %v1321
    %v1421 = vmul.f32 %v1321, %v1420
    %v1422 = vsub.f32 1.0, %v1421
    %v1423 = vmul.f32 %v1420, %v1422
    %v1424 = vadd.f32 %v1420, %v1423
    %vm1425 = vweird.f32 %v1321
    %vm1426 = vweird.f32 %v1420
    %vm1427 = vmor %vm1425, %vm1426
    %v1428 = vsel %vm1427, %v1420, %v1424
    %v1429 = vand.u32 2147483647, %v1321
    %vm1430 = vcmp.eq.f32.partialorder %v1429, 8.507059e+37
    %v1431 = vand.u32 %v1321, 2147483648
    %v1432 = vor.u32 1.1754944e-38, %v1431
    %v1433 = vsel %vm1430, %v1432, %v1428
    %v1434 = vmul.f32 %v1283, %v1335
    %v1435 = vmul.f32 %v1285, %v1349
    %v1436 = vmul.f32 %v1287, %v1363
    %v1437 = vmul.f32 %v1289, %v1377
    %v1438 = vmul.f32 %v1291, %v1391
    %v1439 = vmul.f32 %v1293, %v1405
    %v1440 = vmul.f32 %v1295, %v1419
    %v1441 = vmul.f32 %v1297, %v1433
    %v1443 = vsel %vm1041, %v1434, 0
    %1445 = vmatpush.msra.mxu0 0.0
    %1446 = vmatpush.msra.mxu0 0.0
    %1447 = vmatpush.msra.mxu0 0.0
    %1448 = vmatpush.msra.mxu0 0.0
    %1449 = vmatpush.msra.mxu0 0.0
    %1450 = vmatpush.msra.mxu0 0.0
    %1451 = vmatpush.msra.mxu0 0.0
    %1452 = vmatpush.msra.mxu0 0.0
    %1453 = vmatpush.msra.mxu0 0.0
    %1454 = vmatpush.msra.mxu0 0.0
    %1455 = vmatpush.msra.mxu0 0.0
    %1456 = vmatpush.msra.mxu0 0.0
    %1457 = vmatpush.msra.mxu0 0.0
    %1458 = vmatpush.msra.mxu0 0.0
    %1459 = vmatpush.msra.mxu0 0.0
    %1460 = vmatpush.msra.mxu0 %v978
    %1461 = vmatmul.f32.gmra.mxu0 %v1443
    %v1462 = vpop.f32.mrf.mxu0
    %v1463 = vadd.f32 0.0, %v1462
    %1464 = vdwg.mxu0
    %v1466 = vsel %vm1041, %v1435, 0
    %1468 = vmatpush.msra.mxu0 0.0
    %1469 = vmatpush.msra.mxu0 0.0
    %1470 = vmatpush.msra.mxu0 0.0
    %1471 = vmatpush.msra.mxu0 0.0
    %1472 = vmatpush.msra.mxu0 0.0
    %1473 = vmatpush.msra.mxu0 0.0
    %1474 = vmatpush.msra.mxu0 0.0
    %1475 = vmatpush.msra.mxu0 0.0
    %1476 = vmatpush.msra.mxu0 0.0
    %1477 = vmatpush.msra.mxu0 0.0
    %1478 = vmatpush.msra.mxu0 0.0
    %1479 = vmatpush.msra.mxu0 0.0
    %1480 = vmatpush.msra.mxu0 0.0
    %1481 = vmatpush.msra.mxu0 0.0
    %1482 = vmatpush.msra.mxu0 0.0
    %1483 = vmatpush.msra.mxu0 %v980
    %1484 = vmatmul.f32.gmra.mxu0 %v1466
    %v1485 = vpop.f32.mrf.mxu0
    %v1486 = vadd.f32 0.0, %v1485
    %1487 = vdwg.mxu0
    %v1489 = vsel %vm1041, %v1436, 0
    %1491 = vmatpush.msra.mxu0 0.0
    %1492 = vmatpush.msra.mxu0 0.0
    %1493 = vmatpush.msra.mxu0 0.0
    %1494 = vmatpush.msra.mxu0 0.0
    %1495 = vmatpush.msra.mxu0 0.0
    %1496 = vmatpush.msra.mxu0 0.0
    %1497 = vmatpush.msra.mxu0 0.0
    %1498 = vmatpush.msra.mxu0 0.0
    %1499 = vmatpush.msra.mxu0 0.0
    %1500 = vmatpush.msra.mxu0 0.0
    %1501 = vmatpush.msra.mxu0 0.0
    %1502 = vmatpush.msra.mxu0 0.0
    %1503 = vmatpush.msra.mxu0 0.0
    %1504 = vmatpush.msra.mxu0 0.0
    %1505 = vmatpush.msra.mxu0 0.0
    %1506 = vmatpush.msra.mxu0 %v982
    %1507 = vmatmul.f32.gmra.mxu0 %v1489
    %v1508 = vpop.f32.mrf.mxu0
    %v1509 = vadd.f32 0.0, %v1508
    %1510 = vdwg.mxu0
    %v1512 = vsel %vm1041, %v1437, 0
    %1514 = vmatpush.msra.mxu0 0.0
    %1515 = vmatpush.msra.mxu0 0.0
    %1516 = vmatpush.msra.mxu0 0.0
    %1517 = vmatpush.msra.mxu0 0.0
    %1518 = vmatpush.msra.mxu0 0.0
    %1519 = vmatpush.msra.mxu0 0.0
    %1520 = vmatpush.msra.mxu0 0.0
    %1521 = vmatpush.msra.mxu0 0.0
    %1522 = vmatpush.msra.mxu0 0.0
    %1523 = vmatpush.msra.mxu0 0.0
    %1524 = vmatpush.msra.mxu0 0.0
    %1525 = vmatpush.msra.mxu0 0.0
    %1526 = vmatpush.msra.mxu0 0.0
    %1527 = vmatpush.msra.mxu0 0.0
    %1528 = vmatpush.msra.mxu0 0.0
    %1529 = vmatpush.msra.mxu0 %v984
    %1530 = vmatmul.f32.gmra.mxu0 %v1512
    %v1531 = vpop.f32.mrf.mxu0
    %v1532 = vadd.f32 0.0, %v1531
    %1533 = vdwg.mxu0
    %v1535 = vsel %vm1041, %v1438, 0
    %1537 = vmatpush.msra.mxu0 0.0
    %1538 = vmatpush.msra.mxu0 0.0
    %1539 = vmatpush.msra.mxu0 0.0
    %1540 = vmatpush.msra.mxu0 0.0
    %1541 = vmatpush.msra.mxu0 0.0
    %1542 = vmatpush.msra.mxu0 0.0
    %1543 = vmatpush.msra.mxu0 0.0
    %1544 = vmatpush.msra.mxu0 0.0
    %1545 = vmatpush.msra.mxu0 0.0
    %1546 = vmatpush.msra.mxu0 0.0
    %1547 = vmatpush.msra.mxu0 0.0
    %1548 = vmatpush.msra.mxu0 0.0
    %1549 = vmatpush.msra.mxu0 0.0
    %1550 = vmatpush.msra.mxu0 0.0
    %1551 = vmatpush.msra.mxu0 0.0
    %1552 = vmatpush.msra.mxu0 %v1034
    %1553 = vmatmul.f32.gmra.mxu0 %v1535
    %v1554 = vpop.f32.mrf.mxu0
    %v1555 = vadd.f32 0.0, %v1554
    %1556 = vdwg.mxu0
    %v1558 = vsel %vm1041, %v1439, 0
    %1560 = vmatpush.msra.mxu0 0.0
    %1561 = vmatpush.msra.mxu0 0.0
    %1562 = vmatpush.msra.mxu0 0.0
    %1563 = vmatpush.msra.mxu0 0.0
    %1564 = vmatpush.msra.mxu0 0.0
    %1565 = vmatpush.msra.mxu0 0.0
    %1566 = vmatpush.msra.mxu0 0.0
    %1567 = vmatpush.msra.mxu0 0.0
    %1568 = vmatpush.msra.mxu0 0.0
    %1569 = vmatpush.msra.mxu0 0.0
    %1570 = vmatpush.msra.mxu0 0.0
    %1571 = vmatpush.msra.mxu0 0.0
    %1572 = vmatpush.msra.mxu0 0.0
    %1573 = vmatpush.msra.mxu0 0.0
    %1574 = vmatpush.msra.mxu0 0.0
    %1575 = vmatpush.msra.mxu0 %v1036
    %1576 = vmatmul.f32.gmra.mxu0 %v1558
    %v1577 = vpop.f32.mrf.mxu0
    %v1578 = vadd.f32 0.0, %v1577
    %1579 = vdwg.mxu0
    %v1581 = vsel %vm1041, %v1440, 0
    %1583 = vmatpush.msra.mxu0 0.0
    %1584 = vmatpush.msra.mxu0 0.0
    %1585 = vmatpush.msra.mxu0 0.0
    %1586 = vmatpush.msra.mxu0 0.0
    %1587 = vmatpush.msra.mxu0 0.0
    %1588 = vmatpush.msra.mxu0 0.0
    %1589 = vmatpush.msra.mxu0 0.0
    %1590 = vmatpush.msra.mxu0 0.0
    %1591 = vmatpush.msra.mxu0 0.0
    %1592 = vmatpush.msra.mxu0 0.0
    %1593 = vmatpush.msra.mxu0 0.0
    %1594 = vmatpush.msra.mxu0 0.0
    %1595 = vmatpush.msra.mxu0 0.0
    %1596 = vmatpush.msra.mxu0 0.0
    %1597 = vmatpush.msra.mxu0 0.0
    %1598 = vmatpush.msra.mxu0 %v1038
    %1599 = vmatmul.f32.gmra.mxu0 %v1581
    %v1600 = vpop.f32.mrf.mxu0
    %v1601 = vadd.f32 0.0, %v1600
    %1602 = vdwg.mxu0
    %v1604 = vsel %vm1041, %v1441, 0
    %1606 = vmatpush.msra.mxu0 0.0
    %1607 = vmatpush.msra.mxu0 0.0
    %1608 = vmatpush.msra.mxu0 0.0
    %1609 = vmatpush.msra.mxu0 0.0
    %1610 = vmatpush.msra.mxu0 0.0
    %1611 = vmatpush.msra.mxu0 0.0
    %1612 = vmatpush.msra.mxu0 0.0
    %1613 = vmatpush.msra.mxu0 0.0
    %1614 = vmatpush.msra.mxu0 0.0
    %1615 = vmatpush.msra.mxu0 0.0
    %1616 = vmatpush.msra.mxu0 0.0
    %1617 = vmatpush.msra.mxu0 0.0
    %1618 = vmatpush.msra.mxu0 0.0
    %1619 = vmatpush.msra.mxu0 0.0
    %1620 = vmatpush.msra.mxu0 0.0
    %1621 = vmatpush.msra.mxu0 %v1040
    %1622 = vmatmul.f32.gmra.mxu0 %v1604
    %v1623 = vpop.f32.mrf.mxu0
    %v1624 = vadd.f32 0.0, %v1623
    %1625 = vdwg.mxu0
    %v1626 = vrot.slane %v1509, 4
    %v1627 = vsel %vm341, %v1626, %v1463
    %v1628 = vrot.slane %v1463, 4
    %v1629 = vsel %vm341, %v1509, %v1628
    %v1631 = vunpack.c.l.s4 1983009808
    %v1632 = vunpack.c.0.s8 %v1631
    %v1633 = vperm.slane %v1627, %v1632
    %v1635 = vunpack.c.l.s4 1983009808
    %v1636 = vunpack.c.0.s8 %v1635
    %v1637 = vperm.slane %v1629, %v1636
    %v1638 = vrot.slane %v1532, 4
    %v1639 = vsel %vm341, %v1638, %v1486
    %v1640 = vrot.slane %v1486, 4
    %v1641 = vsel %vm341, %v1532, %v1640
    %v1643 = vunpack.c.l.s4 1983009808
    %v1644 = vunpack.c.0.s8 %v1643
    %v1645 = vperm.slane %v1639, %v1644
    %v1647 = vunpack.c.l.s4 1983009808
    %v1648 = vunpack.c.0.s8 %v1647
    %v1649 = vperm.slane %v1641, %v1648
    %v1650 = vrot.slane %v1645, 4
    %v1651 = vsel %vm341, %v1650, %v1633
    %v1652 = vrot.slane %v1633, 4
    %v1653 = vsel %vm341, %v1645, %v1652
    %v1655 = vunpack.c.l.s4 1934713408
    %v1656 = vunpack.c.0.s8 %v1655
    %v1657 = vperm.slane %v1651, %v1656
    %v1659 = vunpack.c.l.s4 1934713408
    %v1660 = vunpack.c.0.s8 %v1659
    %v1661 = vperm.slane %v1653, %v1660
    %v1662 = vrot.slane %v1649, 4
    %v1663 = vsel %vm341, %v1662, %v1637
    %v1664 = vrot.slane %v1637, 4
    %v1665 = vsel %vm341, %v1649, %v1664
    %v1667 = vunpack.c.l.s4 1934713408
    %v1668 = vunpack.c.0.s8 %v1667
    %v1669 = vperm.slane %v1663, %v1668
    %v1671 = vunpack.c.l.s4 1934713408
    %v1672 = vunpack.c.0.s8 %v1671
    %v1673 = vperm.slane %v1665, %v1672
    %v1674 = vrot.slane %v1657, 4
    %v1675 = vsel %vm341, 0.0, %v1674
    %v1676 = vrot.slane %v1661, 4
    %v1677 = vsel %vm341, 0.0, %v1676
    %v1678 = vrot.slane %v1669, 4
    %v1679 = vsel %vm341, 0.0, %v1678
    %v1680 = vrot.slane %v1673, 4
    %v1681 = vsel %vm341, 0.0, %v1680
    %v1682 = vrot.slane %v1601, 4
    %v1683 = vsel %vm341, %v1682, %v1555
    %v1684 = vrot.slane %v1555, 4
    %v1685 = vsel %vm341, %v1601, %v1684
    %v1687 = vunpack.c.l.s4 1983009808
    %v1688 = vunpack.c.0.s8 %v1687
    %v1689 = vperm.slane %v1683, %v1688
    %v1691 = vunpack.c.l.s4 1983009808
    %v1692 = vunpack.c.0.s8 %v1691
    %v1693 = vperm.slane %v1685, %v1692
    %v1694 = vrot.slane %v1624, 4
    %v1695 = vsel %vm341, %v1694, %v1578
    %v1696 = vrot.slane %v1578, 4
    %v1697 = vsel %vm341, %v1624, %v1696
    %v1699 = vunpack.c.l.s4 1983009808
    %v1700 = vunpack.c.0.s8 %v1699
    %v1701 = vperm.slane %v1695, %v1700
    %v1703 = vunpack.c.l.s4 1983009808
    %v1704 = vunpack.c.0.s8 %v1703
    %v1705 = vperm.slane %v1697, %v1704
    %v1706 = vrot.slane %v1701, 4
    %v1707 = vsel %vm341, %v1706, %v1689
    %v1708 = vrot.slane %v1689, 4
    %v1709 = vsel %vm341, %v1701, %v1708
    %v1711 = vunpack.c.l.s4 1934713408
    %v1712 = vunpack.c.0.s8 %v1711
    %v1713 = vperm.slane %v1707, %v1712
    %v1715 = vunpack.c.l.s4 1934713408
    %v1716 = vunpack.c.0.s8 %v1715
    %v1717 = vperm.slane %v1709, %v1716
    %v1718 = vrot.slane %v1705, 4
    %v1719 = vsel %vm341, %v1718, %v1693
    %v1720 = vrot.slane %v1693, 4
    %v1721 = vsel %vm341, %v1705, %v1720
    %v1723 = vunpack.c.l.s4 1934713408
    %v1724 = vunpack.c.0.s8 %v1723
    %v1725 = vperm.slane %v1719, %v1724
    %v1727 = vunpack.c.l.s4 1934713408
    %v1728 = vunpack.c.0.s8 %v1727
    %v1729 = vperm.slane %v1721, %v1728
    %v1730 = vrot.slane %v1713, 4
    %v1731 = vsel %vm341, 0.0, %v1730
    %v1732 = vrot.slane %v1717, 4
    %v1733 = vsel %vm341, 0.0, %v1732
    %v1734 = vrot.slane %v1725, 4
    %v1735 = vsel %vm341, 0.0, %v1734
    %v1736 = vrot.slane %v1729, 4
    %v1737 = vsel %vm341, 0.0, %v1736
    %v1738 = vrot.slane %v1675, 4
    %v1739 = vsel %vm341, %v1738, %v1657
    %v1741 = vunpack.c.l.s4 1983009808
    %v1742 = vunpack.c.0.s8 %v1741
    %v1743 = vperm.slane %v1739, %v1742
    %v1744 = vrot.slane %v1731, 4
    %v1745 = vsel %vm341, %v1744, %v1713
    %v1747 = vunpack.c.l.s4 1983009808
    %v1748 = vunpack.c.0.s8 %v1747
    %v1749 = vperm.slane %v1745, %v1748
    %v1750 = vrot.slane %v1677, 4
    %v1751 = vsel %vm341, %v1750, %v1661
    %v1753 = vunpack.c.l.s4 1983009808
    %v1754 = vunpack.c.0.s8 %v1753
    %v1755 = vperm.slane %v1751, %v1754
    %v1756 = vrot.slane %v1733, 4
    %v1757 = vsel %vm341, %v1756, %v1717
    %v1759 = vunpack.c.l.s4 1983009808
    %v1760 = vunpack.c.0.s8 %v1759
    %v1761 = vperm.slane %v1757, %v1760
    %v1762 = vrot.slane %v1749, 4
    %v1763 = vsel %vm341, %v1762, %v1743
    %v1764 = vrot.slane %v1743, 4
    %v1765 = vsel %vm341, %v1749, %v1764
    %v1767 = vunpack.c.l.s4 1934713408
    %v1768 = vunpack.c.0.s8 %v1767
    %v1769 = vperm.slane %v1763, %v1768
    %v1771 = vunpack.c.l.s4 1934713408
    %v1772 = vunpack.c.0.s8 %v1771
    %v1773 = vperm.slane %v1765, %v1772
    %v1774 = vrot.slane %v1761, 4
    %v1775 = vsel %vm341, %v1774, %v1755
    %v1776 = vrot.slane %v1755, 4
    %v1777 = vsel %vm341, %v1761, %v1776
    %v1779 = vunpack.c.l.s4 1934713408
    %v1780 = vunpack.c.0.s8 %v1779
    %v1781 = vperm.slane %v1775, %v1780
    %v1783 = vunpack.c.l.s4 1934713408
    %v1784 = vunpack.c.0.s8 %v1783
    %v1785 = vperm.slane %v1777, %v1784
    %v1786 = vrot.slane %v1781, 4
    %v1787 = vsel %vm341, %v1786, %v1769
    %v1788 = vrot.slane %v1769, 4
    %v1789 = vsel %vm341, %v1781, %v1788
    %v1790 = vrot.slane %v1785, 4
    %v1791 = vsel %vm341, %v1790, %v1773
    %v1792 = vrot.slane %v1773, 4
    %v1793 = vsel %vm341, %v1785, %v1792
    %v1794 = vrot.slane %v1679, 4
    %v1795 = vsel %vm341, %v1794, %v1669
    %v1797 = vunpack.c.l.s4 1983009808
    %v1798 = vunpack.c.0.s8 %v1797
    %v1799 = vperm.slane %v1795, %v1798
    %v1800 = vrot.slane %v1735, 4
    %v1801 = vsel %vm341, %v1800, %v1725
    %v1803 = vunpack.c.l.s4 1983009808
    %v1804 = vunpack.c.0.s8 %v1803
    %v1805 = vperm.slane %v1801, %v1804
    %v1806 = vrot.slane %v1681, 4
    %v1807 = vsel %vm341, %v1806, %v1673
    %v1809 = vunpack.c.l.s4 1983009808
    %v1810 = vunpack.c.0.s8 %v1809
    %v1811 = vperm.slane %v1807, %v1810
    %v1812 = vrot.slane %v1737, 4
    %v1813 = vsel %vm341, %v1812, %v1729
    %v1815 = vunpack.c.l.s4 1983009808
    %v1816 = vunpack.c.0.s8 %v1815
    %v1817 = vperm.slane %v1813, %v1816
    %v1818 = vrot.slane %v1805, 4
    %v1819 = vsel %vm341, %v1818, %v1799
    %v1820 = vrot.slane %v1799, 4
    %v1821 = vsel %vm341, %v1805, %v1820
    %v1823 = vunpack.c.l.s4 1934713408
    %v1824 = vunpack.c.0.s8 %v1823
    %v1825 = vperm.slane %v1819, %v1824
    %v1827 = vunpack.c.l.s4 1934713408
    %v1828 = vunpack.c.0.s8 %v1827
    %v1829 = vperm.slane %v1821, %v1828
    %v1830 = vrot.slane %v1817, 4
    %v1831 = vsel %vm341, %v1830, %v1811
    %v1832 = vrot.slane %v1811, 4
    %v1833 = vsel %vm341, %v1817, %v1832
    %v1835 = vunpack.c.l.s4 1934713408
    %v1836 = vunpack.c.0.s8 %v1835
    %v1837 = vperm.slane %v1831, %v1836
    %v1839 = vunpack.c.l.s4 1934713408
    %v1840 = vunpack.c.0.s8 %v1839
    %v1841 = vperm.slane %v1833, %v1840
    %v1842 = vrot.slane %v1837, 4
    %v1843 = vsel %vm341, %v1842, %v1825
    %v1844 = vrot.slane %v1825, 4
    %v1845 = vsel %vm341, %v1837, %v1844
    %v1846 = vrot.slane %v1841, 4
    %v1847 = vsel %vm341, %v1846, %v1829
    %v1848 = vrot.slane %v1829, 4
    %v1849 = vsel %vm341, %v1841, %v1848
    %1852 = vrot.lane.b32.xlu0 %v1789, 8
    %v1853 = vpop.permute.xlu0 %1852
    %1854 = vrot.lane.b32.xlu0 %v1845, 8
    %v1855 = vpop.permute.xlu0 %1854
    %1860 = vrot.lane.b32.xlu0 %v1791, 16
    %v1861 = vpop.permute.xlu0 %1860
    %1862 = vrot.lane.b32.xlu0 %v1847, 16
    %v1863 = vpop.permute.xlu0 %1862
    %1868 = vrot.lane.b32.xlu0 %v1793, 24
    %v1869 = vpop.permute.xlu0 %1868
    %1870 = vrot.lane.b32.xlu0 %v1849, 24
    %v1871 = vpop.permute.xlu0 %1870
    %v1874 = vsel %vm1041, %v1787, %v1853
    %v1875 = vsel %vm1041, %v1843, %v1855
    %vm1876 = vcmask 130048
    %v1877 = vsel %vm1876, %v1874, %v1861
    %v1878 = vsel %vm1876, %v1875, %v1863
    %vm1879 = vcmask 195584
    %v1880 = vsel %vm1879, %v1877, %v1869
    %v1881 = vsel %vm1879, %v1878, %v1871
    %v1882 = vld [vmem:[#allocation7] sm:$0xff]
    %v1883 = vld [vmem:[#allocation7 + $0x8] sm:$0xff]
    %v1884 = vld [vmem:[#allocation7 + $0x10] sm:$0xff]
    %v1885 = vld [vmem:[#allocation7 + $0x18] sm:$0xff]
    %v1886 = vld [vmem:[%s9] sm:$0x1]
    %v1888 = vperm.slane %v1886, 0
    %v1891 = vsel %vm180, %v1880, 0
    %v1894 = vsel %vm180, %v1881, 0
    %1896 = vmatpush.msra.mxu0 0.0
    %1897 = vmatpush.msra.mxu0 0.0
    %1898 = vmatpush.msra.mxu0 0.0
    %1899 = vmatpush.msra.mxu0 0.0
    %1900 = vmatpush.msra.mxu0 0.0
    %1901 = vmatpush.msra.mxu0 0.0
    %1902 = vmatpush.msra.mxu0 0.0
    %1903 = vmatpush.msra.mxu0 0.0
    %1904 = vmatpush.msra.mxu0 0.0
    %1905 = vmatpush.msra.mxu0 0.0
    %1906 = vmatpush.msra.mxu0 0.0
    %1907 = vmatpush.msra.mxu0 0.0
    %1908 = vmatpush.msra.mxu0 %v1885
    %1909 = vmatpush.msra.mxu0 %v1884
    %1910 = vmatpush.msra.mxu0 %v1883
    %1911 = vmatpush.msra.mxu0 %v1882
    %1912 = vmatmul.f32.gmra.mxu0 %v1891
    %v1913 = vpop.f32.mrf.mxu0
    %v1914 = vadd.f32 %v1888, %v1913
    %1915 = vmatmul.f32.gmra.mxu0 %v1894
    %v1916 = vpop.f32.mrf.mxu0
    %v1917 = vadd.f32 %v1888, %v1916
    %1918 = vdwg.mxu0
    %v1921 = vrot.slane %v1914, 2
    %v1922 = vrot.slane %v1914, 4
    %v1923 = vrot.slane %v1914, 6
    %v1924 = vrot.slane %v1917, 2
    %v1925 = vrot.slane %v1917, 4
    %v1926 = vrot.slane %v1917, 6
    %v1933 = vadd.f32 %v123, %v1914
    %v1934 = vadd.f32 %v124, %v1921
    %v1935 = vadd.f32 %v125, %v1922
    %v1936 = vadd.f32 %v126, %v1923
    %v1937 = vadd.f32 %v127, %v1917
    %v1938 = vadd.f32 %v128, %v1924
    %v1939 = vadd.f32 %v129, %v1925
    %v1940 = vadd.f32 %v130, %v1926
    %1949 = vst [vmem:[#allocation1] ss:$4 sm:$0xff] %v1933
    %s1950 = scalar_lea.vmem [#allocation1], 1
    %1951 = vst [vmem:[%s1950] ss:$4 sm:$0xff] %v1934
    %s1952 = scalar_lea.vmem [#allocation1], 2
    %1953 = vst [vmem:[%s1952] ss:$4 sm:$0xff] %v1935
    %s1954 = scalar_lea.vmem [#allocation1], 3
    %1955 = vst [vmem:[%s1954] ss:$4 sm:$0xff] %v1936
    %s1956 = scalar_lea.vmem [#allocation1], 32
    %1957 = vst [vmem:[%s1956] ss:$4 sm:$0xff] %v1937
    %s1958 = scalar_lea.vmem [#allocation1], 33
    %1959 = vst [vmem:[%s1958] ss:$4 sm:$0xff] %v1938
    %s1960 = scalar_lea.vmem [#allocation1], 34
    %1961 = vst [vmem:[%s1960] ss:$4 sm:$0xff] %v1939
    %s1962 = scalar_lea.vmem [#allocation1], 35
    %1963 = vst [vmem:[%s1962] ss:$4 sm:$0xff] %v1940
    %v1964 = vld.sshfl [vmem:[#allocation1] sm:$0xff pattern:$0x73625140]
    %v1965 = vld.sshfl [vmem:[#allocation1 + $0x20] sm:$0xff pattern:$0x73625140]
    %v1968 = vsel %vm180, %v1964, 0.0
    %1969 = vadd.xlane.f32.xlu0 %v1968
    %v1970 = vpop.xlane.xlu0 %1969
    %v1971 = vsel %vm180, %v1965, 0.0
    %1972 = vadd.xlane.f32.xlu0 %v1971
    %v1973 = vpop.xlane.xlu0 %1972
    %v1974 = vrcp.pop 32.0
    %v1975 = vmul.f32 32.0, %v1974
    %v1976 = vsub.f32 1.0, %v1975
    %v1977 = vmul.f32 %v1974, %v1976
    %v1978 = vadd.f32 %v1974, %v1977
    %vm1979 = vweird.f32 %v1974
    %v1980 = vsel %vm1979, %v1974, %v1978
    %v1981 = vmul.f32 %v1970, %v1980
    %v1982 = vmul.f32 %v1973, %v1980
    %v1986 = vunpack.c.l.s4 269488144
    %v1987 = vunpack.c.0.s8 %v1986
    %v1988 = vperm.slane %v1981, %v1987
    %v1990 = vunpack.c.l.s4 842150450
    %v1991 = vunpack.c.0.s8 %v1990
    %v1992 = vperm.slane %v1981, %v1991
    %v1994 = vunpack.c.l.s4 1414812756
    %v1995 = vunpack.c.0.s8 %v1994
    %v1996 = vperm.slane %v1981, %v1995
    %v1998 = vunpack.c.l.s4 1987475062
    %v1999 = vunpack.c.0.s8 %v1998
    %v2000 = vperm.slane %v1981, %v1999
    %v2002 = vunpack.c.l.s4 269488144
    %v2003 = vunpack.c.0.s8 %v2002
    %v2004 = vperm.slane %v1982, %v2003
    %v2006 = vunpack.c.l.s4 842150450
    %v2007 = vunpack.c.0.s8 %v2006
    %v2008 = vperm.slane %v1982, %v2007
    %v2010 = vunpack.c.l.s4 1414812756
    %v2011 = vunpack.c.0.s8 %v2010
    %v2012 = vperm.slane %v1982, %v2011
    %v2014 = vunpack.c.l.s4 1987475062
    %v2015 = vunpack.c.0.s8 %v2014
    %v2016 = vperm.slane %v1982, %v2015
    %v2025 = vsub.f32 %v1933, %v1988
    %v2026 = vsub.f32 %v1934, %v1992
    %v2027 = vsub.f32 %v1935, %v1996
    %v2028 = vsub.f32 %v1936, %v2000
    %v2029 = vsub.f32 %v1937, %v2004
    %v2030 = vsub.f32 %v1938, %v2008
    %v2031 = vsub.f32 %v1939, %v2012
    %v2032 = vsub.f32 %v1940, %v2016
    %v2033 = vmul.f32 %v2025, %v2025
    %v2034 = vmul.f32 %v2026, %v2026
    %v2035 = vmul.f32 %v2027, %v2027
    %v2036 = vmul.f32 %v2028, %v2028
    %v2037 = vmul.f32 %v2029, %v2029
    %v2038 = vmul.f32 %v2030, %v2030
    %v2039 = vmul.f32 %v2031, %v2031
    %v2040 = vmul.f32 %v2032, %v2032
    %2049 = vst [vmem:[#allocation1] ss:$4 sm:$0xff] %v2033
    %s2050 = scalar_lea.vmem [#allocation1], 1
    %2051 = vst [vmem:[%s2050] ss:$4 sm:$0xff] %v2034
    %s2052 = scalar_lea.vmem [#allocation1], 2
    %2053 = vst [vmem:[%s2052] ss:$4 sm:$0xff] %v2035
    %s2054 = scalar_lea.vmem [#allocation1], 3
    %2055 = vst [vmem:[%s2054] ss:$4 sm:$0xff] %v2036
    %s2056 = scalar_lea.vmem [#allocation1], 32
    %2057 = vst [vmem:[%s2056] ss:$4 sm:$0xff] %v2037
    %s2058 = scalar_lea.vmem [#allocation1], 33
    %2059 = vst [vmem:[%s2058] ss:$4 sm:$0xff] %v2038
    %s2060 = scalar_lea.vmem [#allocation1], 34
    %2061 = vst [vmem:[%s2060] ss:$4 sm:$0xff] %v2039
    %s2062 = scalar_lea.vmem [#allocation1], 35
    %2063 = vst [vmem:[%s2062] ss:$4 sm:$0xff] %v2040
    %v2064 = vld.sshfl [vmem:[#allocation1] sm:$0xff pattern:$0x73625140]
    %v2065 = vld.sshfl [vmem:[#allocation1 + $0x20] sm:$0xff pattern:$0x73625140]
    %v2068 = vsel %vm180, %v2064, 0.0
    %2069 = vadd.xlane.f32.xlu0 %v2068
    %v2070 = vpop.xlane.xlu0 %2069
    %v2071 = vsel %vm180, %v2065, 0.0
    %2072 = vadd.xlane.f32.xlu0 %v2071
    %v2073 = vpop.xlane.xlu0 %2072
    %v2074 = vmul.f32 %v2070, %v1980
    %v2075 = vmul.f32 %v2073, %v1980
    %v2076 = vadd.f32 %v2074, 1e-05
    %v2077 = vadd.f32 %v2075, 1e-05
    %v2078 = vrsqrt.pop %v2076
    %v2079 = vmul.f32 %v2078, %v2076
    %v2080 = vmul.f32 %v2079, %v2078
    %v2081 = vmul.f32 0.5, %v2080
    %v2082 = vsub.f32 1.5, %v2081
    %v2083 = vmul.f32 %v2078, %v2082
    %vm2084 = vweird.f32 %v2076
    %vm2085 = vweird.f32 %v2078
    %vm2086 = vmor %vm2084, %vm2085
    %v2087 = vsel %vm2086, %v2078, %v2083
    %v2088 = vrsqrt.pop %v2077
    %v2089 = vmul.f32 %v2088, %v2077
    %v2090 = vmul.f32 %v2089, %v2088
    %v2091 = vmul.f32 0.5, %v2090
    %v2092 = vsub.f32 1.5, %v2091
    %v2093 = vmul.f32 %v2088, %v2092
    %vm2094 = vweird.f32 %v2077
    %vm2095 = vweird.f32 %v2088
    %vm2096 = vmor %vm2094, %vm2095
    %v2097 = vsel %vm2096, %v2088, %v2093
    %v2101 = vunpack.c.l.s4 269488144
    %v2102 = vunpack.c.0.s8 %v2101
    %v2103 = vperm.slane %v2087, %v2102
    %v2105 = vunpack.c.l.s4 842150450
    %v2106 = vunpack.c.0.s8 %v2105
    %v2107 = vperm.slane %v2087, %v2106
    %v2109 = vunpack.c.l.s4 1414812756
    %v2110 = vunpack.c.0.s8 %v2109
    %v2111 = vperm.slane %v2087, %v2110
    %v2113 = vunpack.c.l.s4 1987475062
    %v2114 = vunpack.c.0.s8 %v2113
    %v2115 = vperm.slane %v2087, %v2114
    %v2117 = vunpack.c.l.s4 269488144
    %v2118 = vunpack.c.0.s8 %v2117
    %v2119 = vperm.slane %v2097, %v2118
    %v2121 = vunpack.c.l.s4 842150450
    %v2122 = vunpack.c.0.s8 %v2121
    %v2123 = vperm.slane %v2097, %v2122
    %v2125 = vunpack.c.l.s4 1414812756
    %v2126 = vunpack.c.0.s8 %v2125
    %v2127 = vperm.slane %v2097, %v2126
    %v2129 = vunpack.c.l.s4 1987475062
    %v2130 = vunpack.c.0.s8 %v2129
    %v2131 = vperm.slane %v2097, %v2130
    %v2140 = vmul.f32 %v2025, %v2103
    %v2141 = vmul.f32 %v2026, %v2107
    %v2142 = vmul.f32 %v2027, %v2111
    %v2143 = vmul.f32 %v2028, %v2115
    %v2144 = vmul.f32 %v2029, %v2119
    %v2145 = vmul.f32 %v2030, %v2123
    %v2146 = vmul.f32 %v2031, %v2127
    %v2147 = vmul.f32 %v2032, %v2131
    %v2148 = vld [vmem:[%s10] sm:$0x1]
    %v2150 = vperm.slane %v2148, 0
    %v2152 = vrot.slane %v2150, 2
    %v2153 = vrot.slane %v2150, 4
    %v2154 = vrot.slane %v2150, 6
    %v2158 = vmul.f32 %v2140, %v2150
    %v2159 = vmul.f32 %v2141, %v2152
    %v2160 = vmul.f32 %v2142, %v2153
    %v2161 = vmul.f32 %v2143, %v2154
    %v2162 = vmul.f32 %v2144, %v2150
    %v2163 = vmul.f32 %v2145, %v2152
    %v2164 = vmul.f32 %v2146, %v2153
    %v2165 = vmul.f32 %v2147, %v2154
    %v2166 = vld [vmem:[%s11] sm:$0x1]
    %v2168 = vperm.slane %v2166, 0
    %v2170 = vrot.slane %v2168, 2
    %v2171 = vrot.slane %v2168, 4
    %v2172 = vrot.slane %v2168, 6
    %v2176 = vadd.f32 %v2158, %v2168
    %v2177 = vadd.f32 %v2159, %v2170
    %v2178 = vadd.f32 %v2160, %v2171
    %v2179 = vadd.f32 %v2161, %v2172
    %v2180 = vadd.f32 %v2162, %v2168
    %v2181 = vadd.f32 %v2163, %v2170
    %v2182 = vadd.f32 %v2164, %v2171
    %v2183 = vadd.f32 %v2165, %v2172
    %v2184 = vld [vmem:[#allocation8] sm:$0xff]
    %v2185 = vld [vmem:[#allocation8 + $0x8] sm:$0xff]
    %v2186 = vld [vmem:[#allocation8 + $0x10] sm:$0xff]
    %v2187 = vld [vmem:[#allocation8 + $0x18] sm:$0xff]
    %v2188 = vld [vmem:[%s13] sm:$0x1]
    %v2190 = vperm.slane %v2188, 0
    %2200 = vst [vmem:[#allocation1] ss:$4 sm:$0xff] %v2176
    %s2201 = scalar_lea.vmem [#allocation1], 1
    %2202 = vst [vmem:[%s2201] ss:$4 sm:$0xff] %v2177
    %s2203 = scalar_lea.vmem [#allocation1], 2
    %2204 = vst [vmem:[%s2203] ss:$4 sm:$0xff] %v2178
    %s2205 = scalar_lea.vmem [#allocation1], 3
    %2206 = vst [vmem:[%s2205] ss:$4 sm:$0xff] %v2179
    %s2207 = scalar_lea.vmem [#allocation1], 32
    %2208 = vst [vmem:[%s2207] ss:$4 sm:$0xff] %v2180
    %s2209 = scalar_lea.vmem [#allocation1], 33
    %2210 = vst [vmem:[%s2209] ss:$4 sm:$0xff] %v2181
    %s2211 = scalar_lea.vmem [#allocation1], 34
    %2212 = vst [vmem:[%s2211] ss:$4 sm:$0xff] %v2182
    %s2213 = scalar_lea.vmem [#allocation1], 35
    %2214 = vst [vmem:[%s2213] ss:$4 sm:$0xff] %v2183
    %v2215 = vld.sshfl [vmem:[#allocation1] sm:$0xff pattern:$0x73625140]
    %v2216 = vld.sshfl [vmem:[#allocation1 + $0x20] sm:$0xff pattern:$0x73625140]
    %v2217 = vsel %vm180, %v2215, 0
    %v2219 = vsel %vm180, %v2216, 0
    %2221 = vmatpush.msra.mxu0 0.0
    %2222 = vmatpush.msra.mxu0 0.0
    %2223 = vmatpush.msra.mxu0 0.0
    %2224 = vmatpush.msra.mxu0 0.0
    %2225 = vmatpush.msra.mxu0 0.0
    %2226 = vmatpush.msra.mxu0 0.0
    %2227 = vmatpush.msra.mxu0 0.0
    %2228 = vmatpush.msra.mxu0 0.0
    %2229 = vmatpush.msra.mxu0 0.0
    %2230 = vmatpush.msra.mxu0 0.0
    %2231 = vmatpush.msra.mxu0 0.0
    %2232 = vmatpush.msra.mxu0 0.0
    %2233 = vmatpush.msra.mxu0 %v2187
    %2234 = vmatpush.msra.mxu0 %v2186
    %2235 = vmatpush.msra.mxu0 %v2185
    %2236 = vmatpush.msra.mxu0 %v2184
    %2237 = vmatmul.f32.gmra.mxu0 %v2217
    %v2238 = vpop.f32.mrf.mxu0
    %v2239 = vadd.f32 %v2190, %v2238
    %2240 = vmatmul.f32.gmra.mxu0 %v2219
    %v2241 = vpop.f32.mrf.mxu0
    %v2242 = vadd.f32 %v2190, %v2241
    %2243 = vdwg.mxu0
    %v2244 = vmax.f32 %v2239, 0.0
    %v2245 = vmax.f32 %v2242, 0.0
    %v2246 = vld [vmem:[%s14] sm:$0xff]
    %v2247 = vld [vmem:[%s14 + $0x8] sm:$0xff]
    %v2248 = vld [vmem:[%s14 + $0x10] sm:$0xff]
    %v2249 = vld [vmem:[%s14 + $0x18] sm:$0xff]
    %v2250 = vld [vmem:[%s14 + $0x20] sm:$0xff]
    %v2251 = vld [vmem:[%s14 + $0x28] sm:$0xff]
    %v2252 = vld [vmem:[%s14 + $0x30] sm:$0xff]
    %v2253 = vld [vmem:[%s14 + $0x38] sm:$0xff]
    %v2254 = vld [vmem:[%s15] sm:$0x1]
    %v2256 = vperm.slane %v2254, 0
    %vm2258 = vcmask 523264
    %v2260 = vsel %vm2258, %v2244, 0
    %v2263 = vsel %vm2258, %v2245, 0
    %2265 = vmatpush.msra.mxu0 0.0
    %2266 = vmatpush.msra.mxu0 0.0
    %2267 = vmatpush.msra.mxu0 0.0
    %2268 = vmatpush.msra.mxu0 0.0
    %2269 = vmatpush.msra.mxu0 0.0
    %2270 = vmatpush.msra.mxu0 0.0
    %2271 = vmatpush.msra.mxu0 0.0
    %2272 = vmatpush.msra.mxu0 0.0
    %2273 = vmatpush.msra.mxu0 %v2253
    %2274 = vmatpush.msra.mxu0 %v2252
    %2275 = vmatpush.msra.mxu0 %v2251
    %2276 = vmatpush.msra.mxu0 %v2250
    %2277 = vmatpush.msra.mxu0 %v2249
    %2278 = vmatpush.msra.mxu0 %v2248
    %2279 = vmatpush.msra.mxu0 %v2247
    %2280 = vmatpush.msra.mxu0 %v2246
    %2281 = vmatmul.f32.gmra.mxu0 %v2260
    %v2282 = vpop.f32.mrf.mxu0
    %v2283 = vadd.f32 %v2256, %v2282
    %2284 = vmatmul.f32.gmra.mxu0 %v2263
    %v2285 = vpop.f32.mrf.mxu0
    %v2286 = vadd.f32 %v2256, %v2285
    %2287 = vdwg.mxu0
    %v2290 = vrot.slane %v2283, 2
    %v2291 = vrot.slane %v2283, 4
    %v2292 = vrot.slane %v2283, 6
    %v2293 = vrot.slane %v2286, 2
    %v2294 = vrot.slane %v2286, 4
    %v2295 = vrot.slane %v2286, 6
    %v2302 = vadd.f32 %v2176, %v2283
    %v2303 = vadd.f32 %v2177, %v2290
    %v2304 = vadd.f32 %v2178, %v2291
    %v2305 = vadd.f32 %v2179, %v2292
    %v2306 = vadd.f32 %v2180, %v2286
    %v2307 = vadd.f32 %v2181, %v2293
    %v2308 = vadd.f32 %v2182, %v2294
    %v2309 = vadd.f32 %v2183, %v2295
    %2318 = vst [vmem:[#allocation1] ss:$4 sm:$0xff] %v2302
    %s2319 = scalar_lea.vmem [#allocation1], 1
    %2320 = vst [vmem:[%s2319] ss:$4 sm:$0xff] %v2303
    %s2321 = scalar_lea.vmem [#allocation1], 2
    %2322 = vst [vmem:[%s2321] ss:$4 sm:$0xff] %v2304
    %s2323 = scalar_lea.vmem [#allocation1], 3
    %2324 = vst [vmem:[%s2323] ss:$4 sm:$0xff] %v2305
    %s2325 = scalar_lea.vmem [#allocation1], 32
    %2326 = vst [vmem:[%s2325] ss:$4 sm:$0xff] %v2306
    %s2327 = scalar_lea.vmem [#allocation1], 33
    %2328 = vst [vmem:[%s2327] ss:$4 sm:$0xff] %v2307
    %s2329 = scalar_lea.vmem [#allocation1], 34
    %2330 = vst [vmem:[%s2329] ss:$4 sm:$0xff] %v2308
    %s2331 = scalar_lea.vmem [#allocation1], 35
    %2332 = vst [vmem:[%s2331] ss:$4 sm:$0xff] %v2309
    %v2333 = vld.sshfl [vmem:[#allocation1] sm:$0xff pattern:$0x73625140]
    %v2334 = vld.sshfl [vmem:[#allocation1 + $0x20] sm:$0xff pattern:$0x73625140]
    %v2337 = vsel %vm180, %v2333, 0.0
    %2338 = vadd.xlane.f32.xlu0 %v2337
    %v2339 = vpop.xlane.xlu0 %2338
    %v2340 = vsel %vm180, %v2334, 0.0
    %2341 = vadd.xlane.f32.xlu0 %v2340
    %v2342 = vpop.xlane.xlu0 %2341
    %v2343 = vmul.f32 %v2339, %v1980
    %v2344 = vmul.f32 %v2342, %v1980
    %v2348 = vunpack.c.l.s4 269488144
    %v2349 = vunpack.c.0.s8 %v2348
    %v2350 = vperm.slane %v2343, %v2349
    %v2352 = vunpack.c.l.s4 842150450
    %v2353 = vunpack.c.0.s8 %v2352
    %v2354 = vperm.slane %v2343, %v2353
    %v2356 = vunpack.c.l.s4 1414812756
    %v2357 = vunpack.c.0.s8 %v2356
    %v2358 = vperm.slane %v2343, %v2357
    %v2360 = vunpack.c.l.s4 1987475062
    %v2361 = vunpack.c.0.s8 %v2360
    %v2362 = vperm.slane %v2343, %v2361
    %v2364 = vunpack.c.l.s4 269488144
    %v2365 = vunpack.c.0.s8 %v2364
    %v2366 = vperm.slane %v2344, %v2365
    %v2368 = vunpack.c.l.s4 842150450
    %v2369 = vunpack.c.0.s8 %v2368
    %v2370 = vperm.slane %v2344, %v2369
    %v2372 = vunpack.c.l.s4 1414812756
    %v2373 = vunpack.c.0.s8 %v2372
    %v2374 = vperm.slane %v2344, %v2373
    %v2376 = vunpack.c.l.s4 1987475062
    %v2377 = vunpack.c.0.s8 %v2376
    %v2378 = vperm.slane %v2344, %v2377
    %v2387 = vsub.f32 %v2302, %v2350
    %v2388 = vsub.f32 %v2303, %v2354
    %v2389 = vsub.f32 %v2304, %v2358
    %v2390 = vsub.f32 %v2305, %v2362
    %v2391 = vsub.f32 %v2306, %v2366
    %v2392 = vsub.f32 %v2307, %v2370
    %v2393 = vsub.f32 %v2308, %v2374
    %v2394 = vsub.f32 %v2309, %v2378
    %v2395 = vmul.f32 %v2387, %v2387
    %v2396 = vmul.f32 %v2388, %v2388
    %v2397 = vmul.f32 %v2389, %v2389
    %v2398 = vmul.f32 %v2390, %v2390
    %v2399 = vmul.f32 %v2391, %v2391
    %v2400 = vmul.f32 %v2392, %v2392
    %v2401 = vmul.f32 %v2393, %v2393
    %v2402 = vmul.f32 %v2394, %v2394
    %2411 = vst [vmem:[#allocation1] ss:$4 sm:$0xff] %v2395
    %s2412 = scalar_lea.vmem [#allocation1], 1
    %2413 = vst [vmem:[%s2412] ss:$4 sm:$0xff] %v2396
    %s2414 = scalar_lea.vmem [#allocation1], 2
    %2415 = vst [vmem:[%s2414] ss:$4 sm:$0xff] %v2397
    %s2416 = scalar_lea.vmem [#allocation1], 3
    %2417 = vst [vmem:[%s2416] ss:$4 sm:$0xff] %v2398
    %s2418 = scalar_lea.vmem [#allocation1], 32
    %2419 = vst [vmem:[%s2418] ss:$4 sm:$0xff] %v2399
    %s2420 = scalar_lea.vmem [#allocation1], 33
    %2421 = vst [vmem:[%s2420] ss:$4 sm:$0xff] %v2400
    %s2422 = scalar_lea.vmem [#allocation1], 34
    %2423 = vst [vmem:[%s2422] ss:$4 sm:$0xff] %v2401
    %s2424 = scalar_lea.vmem [#allocation1], 35
    %2425 = vst [vmem:[%s2424] ss:$4 sm:$0xff] %v2402
    %v2426 = vld.sshfl [vmem:[#allocation1] sm:$0xff pattern:$0x73625140]
    %v2427 = vld.sshfl [vmem:[#allocation1 + $0x20] sm:$0xff pattern:$0x73625140]
    %v2430 = vsel %vm180, %v2426, 0.0
    %2431 = vadd.xlane.f32.xlu0 %v2430
    %v2432 = vpop.xlane.xlu0 %2431
    %v2433 = vsel %vm180, %v2427, 0.0
    %2434 = vadd.xlane.f32.xlu0 %v2433
    %v2435 = vpop.xlane.xlu0 %2434
    %v2436 = vmul.f32 %v2432, %v1980
    %v2437 = vmul.f32 %v2435, %v1980
    %v2438 = vadd.f32 %v2436, 1e-05
    %v2439 = vadd.f32 %v2437, 1e-05
    %v2440 = vrsqrt.pop %v2438
    %v2441 = vmul.f32 %v2440, %v2438
    %v2442 = vmul.f32 %v2441, %v2440
    %v2443 = vmul.f32 0.5, %v2442
    %v2444 = vsub.f32 1.5, %v2443
    %v2445 = vmul.f32 %v2440, %v2444
    %vm2446 = vweird.f32 %v2438
    %vm2447 = vweird.f32 %v2440
    %vm2448 = vmor %vm2446, %vm2447
    %v2449 = vsel %vm2448, %v2440, %v2445
    %v2450 = vrsqrt.pop %v2439
    %v2451 = vmul.f32 %v2450, %v2439
    %v2452 = vmul.f32 %v2451, %v2450
    %v2453 = vmul.f32 0.5, %v2452
    %v2454 = vsub.f32 1.5, %v2453
    %v2455 = vmul.f32 %v2450, %v2454
    %vm2456 = vweird.f32 %v2439
    %vm2457 = vweird.f32 %v2450
    %vm2458 = vmor %vm2456, %vm2457
    %v2459 = vsel %vm2458, %v2450, %v2455
    %v2463 = vunpack.c.l.s4 269488144
    %v2464 = vunpack.c.0.s8 %v2463
    %v2465 = vperm.slane %v2449, %v2464
    %v2467 = vunpack.c.l.s4 842150450
    %v2468 = vunpack.c.0.s8 %v2467
    %v2469 = vperm.slane %v2449, %v2468
    %v2471 = vunpack.c.l.s4 1414812756
    %v2472 = vunpack.c.0.s8 %v2471
    %v2473 = vperm.slane %v2449, %v2472
    %v2475 = vunpack.c.l.s4 1987475062
    %v2476 = vunpack.c.0.s8 %v2475
    %v2477 = vperm.slane %v2449, %v2476
    %v2479 = vunpack.c.l.s4 269488144
    %v2480 = vunpack.c.0.s8 %v2479
    %v2481 = vperm.slane %v2459, %v2480
    %v2483 = vunpack.c.l.s4 842150450
    %v2484 = vunpack.c.0.s8 %v2483
    %v2485 = vperm.slane %v2459, %v2484
    %v2487 = vunpack.c.l.s4 1414812756
    %v2488 = vunpack.c.0.s8 %v2487
    %v2489 = vperm.slane %v2459, %v2488
    %v2491 = vunpack.c.l.s4 1987475062
    %v2492 = vunpack.c.0.s8 %v2491
    %v2493 = vperm.slane %v2459, %v2492
    %v2502 = vmul.f32 %v2387, %v2465
    %v2503 = vmul.f32 %v2388, %v2469
    %v2504 = vmul.f32 %v2389, %v2473
    %v2505 = vmul.f32 %v2390, %v2477
    %v2506 = vmul.f32 %v2391, %v2481
    %v2507 = vmul.f32 %v2392, %v2485
    %v2508 = vmul.f32 %v2393, %v2489
    %v2509 = vmul.f32 %v2394, %v2493
    %v2510 = vld [vmem:[%s16] sm:$0x1]
    %v2512 = vperm.slane %v2510, 0
    %v2514 = vrot.slane %v2512, 2
    %v2515 = vrot.slane %v2512, 4
    %v2516 = vrot.slane %v2512, 6
    %v2520 = vmul.f32 %v2502, %v2512
    %v2521 = vmul.f32 %v2503, %v2514
    %v2522 = vmul.f32 %v2504, %v2515
    %v2523 = vmul.f32 %v2505, %v2516
    %v2524 = vmul.f32 %v2506, %v2512
    %v2525 = vmul.f32 %v2507, %v2514
    %v2526 = vmul.f32 %v2508, %v2515
    %v2527 = vmul.f32 %v2509, %v2516
    %v2528 = vld [vmem:[%s17] sm:$0x1]
    %v2530 = vperm.slane %v2528, 0
    %v2532 = vrot.slane %v2530, 2
    %v2533 = vrot.slane %v2530, 4
    %v2534 = vrot.slane %v2530, 6
    %v2538 = vadd.f32 %v2520, %v2530
    %v2539 = vadd.f32 %v2521, %v2532
    %v2540 = vadd.f32 %v2522, %v2533
    %v2541 = vadd.f32 %v2523, %v2534
    %v2542 = vadd.f32 %v2524, %v2530
    %v2543 = vadd.f32 %v2525, %v2532
    %v2544 = vadd.f32 %v2526, %v2533
    %v2545 = vadd.f32 %v2527, %v2534
    %vm2546 = vcmask 254976
    %2547 = vst.msk [vmem:[#allocation10] sm:$0x3] %vm2546, %v2538
    %2548 = vst.msk [vmem:[#allocation10 + $0x2] sm:$0x3] %vm2546, %v2539
    %2549 = vst.msk [vmem:[#allocation10 + $0x4] sm:$0x3] %vm2546, %v2540
    %2550 = vst.msk [vmem:[#allocation10 + $0x6] sm:$0x3] %vm2546, %v2541
    %2551 = vst.msk [vmem:[#allocation10 + $0x8] sm:$0x3] %vm2546, %v2542
    %2552 = vst.msk [vmem:[#allocation10 + $0xa] sm:$0x3] %vm2546, %v2543
    %2553 = vst.msk [vmem:[#allocation10 + $0xc] sm:$0x3] %vm2546, %v2544
    %2554 = vst.msk [vmem:[#allocation10 + $0xe] sm:$0x3] %vm2546, %v2545
    // Predicated region
    $region90: #{tpu_custom_call.1} parent=1 // pred_check
      _
    $region91: #{tpu_custom_call.1} parent=1 // pred_check_branch
      %2556 = sbr.rel (0) target = $region93
    $region92: #{tpu_custom_call.1} parent=1 // pred_region
      %2558 = vsyncadd [#allocation4], 0
      %s2559 = sshll.u32 [#allocation10], 4
      %s2560 = int_to_ptr.vmem [resolvable:$true] %s2559
      %s2561 = sshll.u32 %s18, 4
      %s2562 = int_to_ptr.hbm [resolvable:$true] %s2561
      %2567 = dma.vmem_to_hbm [thread:$0]  %s2560, 256, %s2562, [#allocation4], 32, 32, 2
    $region93: #{tpu_custom_call.1} parent=1 // pred_fallthru
      _
    // Predicated region
    $region94: #{tpu_custom_call.1} parent=1 // pred_check
      _
    $region95: #{tpu_custom_call.1} parent=1 // pred_check_branch
      %2569 = sbr.rel (0) target = $region97
    $region96: #{tpu_custom_call.1} parent=1 // pred_region
      %2571 = dma.done [#allocation4], 256
    $region97: #{tpu_custom_call.1} parent=1 // pred_fallthru
      _
    %2572 = vsyncpa [#allocation3], 1
    %2573 = vsyncpa [#allocation6], 1
    %2574 = vsyncpa [#allocation9], 1
    %2575 = vsyncpa [#allocation4], 1

// kernel: tpu_custom_call.1
$region0: #{tpu_custom_call.1}
  #allocation0 [shape = 'u32[]', space=smem, size = 0x4, offset = 0x4, fixed_abs, tag = 'smem constant byte address 0x4 - core index']
  #allocation1 [shape = 'u32[72,128]{1,0:T(1,128)}', space=vmem, size = 0x9000, scoped, tag = 'internal scratch']
  %s0 = inlined_call_operand.hbm [shape: f32[8,2,32], index: 0, kind: input, shape index: {}]
  %s1 = inlined_call_operand.hbm [shape: f32[8,2,32], index: 1, kind: input, shape index: {}]
  %s2 = inlined_call_operand.vmem [shape: f32[32,32], index: 2, kind: input, shape index: {}]
  %s3 = inlined_call_operand.vmem [shape: f32[32,32], index: 3, kind: input, shape index: {}]
  %s4 = inlined_call_operand.vmem [shape: f32[32,32], index: 4, kind: input, shape index: {}]
  %s5 = inlined_call_operand.vmem [shape: f32[1,32], index: 5, kind: input, shape index: {}]
  %s6 = inlined_call_operand.vmem [shape: f32[1,32], index: 6, kind: input, shape index: {}]
  %s7 = inlined_call_operand.vmem [shape: f32[1,32], index: 7, kind: input, shape index: {}]
  %s8 = inlined_call_operand.hbm [shape: f32[32,32], index: 8, kind: input, shape index: {}]
  %s9 = inlined_call_operand.vmem [shape: f32[1,32], index: 9, kind: input, shape index: {}]
  %s10 = inlined_call_operand.vmem [shape: f32[1,32], index: 10, kind: input, shape index: {}]
  %s11 = inlined_call_operand.vmem [shape: f32[1,32], index: 11, kind: input, shape index: {}]
  %s12 = inlined_call_operand.hbm [shape: f32[32,64], index: 12, kind: input, shape index: {}]
  %s13 = inlined_call_operand.vmem [shape: f32[1,64], index: 13, kind: input, shape index: {}]
  %s14 = inlined_call_operand.vmem [shape: f32[64,32], index: 14, kind: input, shape index: {}]
  %s15 = inlined_call_operand.vmem [shape: f32[1,32], index: 15, kind: input, shape index: {}]
  %s16 = inlined_call_operand.vmem [shape: f32[1,32], index: 16, kind: input, shape index: {}]
  %s17 = inlined_call_operand.vmem [shape: f32[1,32], index: 17, kind: input, shape index: {}]
  %s18 = inlined_call_operand.hbm [shape: f32[8,2,32], index: 18, kind: output, shape index: {}]
  %s19 = sld [smem:[#allocation0]]
  $region98: #{tpu_custom_call.1} parent=0
    _
  %s21 = ssub.s32 1, %s19
  %s22 = scalar_select 0, %s21, %s19
  $region1: #{tpu_custom_call.1} parent=0
    #allocation2 [shape = 'u8[8192]{0}', space=vmem, size = 0x2000, scoped, tag = 'input window, operand 0, single buffered']
    #allocation3 [shape = 's32[1]{0}', space=sflag, size = 0x4, scoped, tag = 'scoped memory for tpu_custom_call.1']
    #allocation4 [shape = 's32[1]{0}', space=sflag, size = 0x4, scoped, tag = 'scoped memory for tpu_custom_call.1']
    #allocation5 [shape = 'u8[8192]{0}', space=vmem, size = 0x2000, scoped, tag = 'input window, operand 1, single buffered']
    #allocation6 [shape = 's32[1]{0}', space=sflag, size = 0x4, scoped, tag = 'scoped memory for tpu_custom_call.1']
    #allocation7 [shape = 'u8[16384]{0}', space=vmem, size = 0x4000, scoped, tag = 'input window, operand 8, single buffered']
    #allocation8 [shape = 'u8[16384]{0}', space=vmem, size = 0x4000, scoped, tag = 'input window, operand 12, single buffered']
    #allocation9 [shape = 's32[1]{0}', space=sflag, size = 0x4, scoped, tag = 'scoped memory for tpu_custom_call.1']
    #allocation10 [shape = 'u8[8192]{0}', space=vmem, size = 0x2000, scoped, tag = 'output window, operand 0, single buffered']
    %23 = vsyncpa [#allocation3], 0
    %24 = vsyncpa [#allocation6], 0
    %25 = vsyncpa [#allocation9], 0
    %26 = vsyncpa [#allocation4], 0
    // Predicated region
    $region2: #{tpu_custom_call.1} parent=1 // pred_check
      _
    $region3: #{tpu_custom_call.1} parent=1 // pred_check_branch
      %28 = sbr.rel (0) target = $region5
    $region4: #{tpu_custom_call.1} parent=1 // pred_region
      %30 = vsyncadd [#allocation3], 0
      %s31 = sshll.u32 %s0, 4
      %s32 = int_to_ptr.hbm [resolvable:$true] %s31
      %s33 = sshll.u32 [#allocation2], 4
      %s34 = int_to_ptr.vmem [resolvable:$true] %s33
      %39 = dma.hbm_to_vmem [thread:$0]  %s32, 256, %s34, [#allocation3], 32, 32, 2
    $region5: #{tpu_custom_call.1} parent=1 // pred_fallthru
      _
    // Predicated region
    $region6: #{tpu_custom_call.1} parent=1 // pred_check
      _
    $region7: #{tpu_custom_call.1} parent=1 // pred_check_branch
      %41 = sbr.rel (0) target = $region9
    $region8: #{tpu_custom_call.1} parent=1 // pred_region
      %43 = vsyncadd [#allocation6], 0
      %s44 = sshll.u32 %s1, 4
      %s45 = int_to_ptr.hbm [resolvable:$true] %s44
      %s46 = sshll.u32 [#allocation5], 4
      %s47 = int_to_ptr.vmem [resolvable:$true] %s46
      %52 = dma.hbm_to_vmem [thread:$0]  %s45, 256, %s47, [#allocation6], 32, 32, 2
    $region9: #{tpu_custom_call.1} parent=1 // pred_fallthru
      _
    // Predicated region
    $region10: #{tpu_custom_call.1} parent=1 // pred_check
      _
    $region11: #{tpu_custom_call.1} parent=1 // pred_check_branch
      %54 = sbr.rel (0) target = $region13
    $region12: #{tpu_custom_call.1} parent=1 // pred_region
      _
    $region13: #{tpu_custom_call.1} parent=1 // pred_fallthru
      _
    // Predicated region
    $region14: #{tpu_custom_call.1} parent=1 // pred_check
      _
    $region15: #{tpu_custom_call.1} parent=1 // pred_check_branch
      %56 = sbr.rel (0) target = $region17
    $region16: #{tpu_custom_call.1} parent=1 // pred_region
      _
    $region17: #{tpu_custom_call.1} parent=1 // pred_fallthru
      _
    // Predicated region
    $region18: #{tpu_custom_call.1} parent=1 // pred_check
      _
    $region19: #{tpu_custom_call.1} parent=1 // pred_check_branch
      %58 = sbr.rel (0) target = $region21
    $region20: #{tpu_custom_call.1} parent=1 // pred_region
      _
    $region21: #{tpu_custom_call.1} parent=1 // pred_fallthru
      _
    // Predicated region
    $region22: #{tpu_custom_call.1} parent=1 // pred_check
      _
    $region23: #{tpu_custom_call.1} parent=1 // pred_check_branch
      %60 = sbr.rel (0) target = $region25
    $region24: #{tpu_custom_call.1} parent=1 // pred_region
      _
    $region25: #{tpu_custom_call.1} parent=1 // pred_fallthru
      _
    // Predicated region
    $region26: #{tpu_custom_call.1} parent=1 // pred_check
      _
    $region27: #{tpu_custom_call.1} parent=1 // pred_check_branch
      %62 = sbr.rel (0) target = $region29
    $region28: #{tpu_custom_call.1} parent=1 // pred_region
      _
    $region29: #{tpu_custom_call.1} parent=1 // pred_fallthru
      _
    // Predicated region
    $region30: #{tpu_custom_call.1} parent=1 // pred_check
      _
    $region31: #{tpu_custom_call.1} parent=1 // pred_check_branch
      %64 = sbr.rel (0) target = $region33
    $region32: #{tpu_custom_call.1} parent=1 // pred_region
      _
    $region33: #{tpu_custom_call.1} parent=1 // pred_fallthru
      _
    // Predicated region
    $region34: #{tpu_custom_call.1} parent=1 // pred_check
      _
    $region35: #{tpu_custom_call.1} parent=1 // pred_check_branch
      %66 = sbr.rel (0) target = $region37
    $region36: #{tpu_custom_call.1} parent=1 // pred_region
      %68 = vsyncadd [#allocation6], 0
      %s69 = sshll.u32 %s8, 4
      %s70 = int_to_ptr.hbm [resolvable:$true] %s69
      %s71 = sshll.u32 [#allocation7], 4
      %s72 = int_to_ptr.vmem [resolvable:$true] %s71
      %77 = dma.hbm_to_vmem [thread:$0]  %s70, 512, %s72, [#allocation6], 128, 128, 8
    $region37: #{tpu_custom_call.1} parent=1 // pred_fallthru
      _
    // Predicated region
    $region38: #{tpu_custom_call.1} parent=1 // pred_check
      _
    $region39: #{tpu_custom_call.1} parent=1 // pred_check_branch
      %79 = sbr.rel (0) target = $region41
    $region40: #{tpu_custom_call.1} parent=1 // pred_region
      _
    $region41: #{tpu_custom_call.1} parent=1 // pred_fallthru
      _
    // Predicated region
    $region42: #{tpu_custom_call.1} parent=1 // pred_check
      _
    $region43: #{tpu_custom_call.1} parent=1 // pred_check_branch
      %81 = sbr.rel (0) target = $region45
    $region44: #{tpu_custom_call.1} parent=1 // pred_region
      _
    $region45: #{tpu_custom_call.1} parent=1 // pred_fallthru
      _
    // Predicated region
    $region46: #{tpu_custom_call.1} parent=1 // pred_check
      _
    $region47: #{tpu_custom_call.1} parent=1 // pred_check_branch
      %83 = sbr.rel (0) target = $region49
    $region48: #{tpu_custom_call.1} parent=1 // pred_region
      _
    $region49: #{tpu_custom_call.1} parent=1 // pred_fallthru
      _
    // Predicated region
    $region50: #{tpu_custom_call.1} parent=1 // pred_check
      _
    $region51: #{tpu_custom_call.1} parent=1 // pred_check_branch
      %85 = sbr.rel (0) target = $region53
    $region52: #{tpu_custom_call.1} parent=1 // pred_region
      %87 = vsyncadd [#allocation9], 0
      %s88 = sshll.u32 %s12, 4
      %s89 = int_to_ptr.hbm [resolvable:$true] %s88
      %s90 = sshll.u32 [#allocation8], 4
      %s91 = int_to_ptr.vmem [resolvable:$true] %s90
      %96 = dma.hbm_to_vmem [thread:$0]  %s89, 512, %s91, [#allocation9], 128, 128, 8
    $region53: #{tpu_custom_call.1} parent=1 // pred_fallthru
      _
    // Predicated region
    $region54: #{tpu_custom_call.1} parent=1 // pred_check
      _
    $region55: #{tpu_custom_call.1} parent=1 // pred_check_branch
      %98 = sbr.rel (0) target = $region57
    $region56: #{tpu_custom_call.1} parent=1 // pred_region
      _
    $region57: #{tpu_custom_call.1} parent=1 // pred_fallthru
      _
    // Predicated region
    $region58: #{tpu_custom_call.1} parent=1 // pred_check
      _
    $region59: #{tpu_custom_call.1} parent=1 // pred_check_branch
      %100 = sbr.rel (0) target = $region61
    $region60: #{tpu_custom_call.1} parent=1 // pred_region
      _
    $region61: #{tpu_custom_call.1} parent=1 // pred_fallthru
      _
    // Predicated region
    $region62: #{tpu_custom_call.1} parent=1 // pred_check
      _
    $region63: #{tpu_custom_call.1} parent=1 // pred_check_branch
      %102 = sbr.rel (0) target = $region65
    $region64: #{tpu_custom_call.1} parent=1 // pred_region
      _
    $region65: #{tpu_custom_call.1} parent=1 // pred_fallthru
      _
    // Predicated region
    $region66: #{tpu_custom_call.1} parent=1 // pred_check
      _
    $region67: #{tpu_custom_call.1} parent=1 // pred_check_branch
      %104 = sbr.rel (0) target = $region69
    $region68: #{tpu_custom_call.1} parent=1 // pred_region
      _
    $region69: #{tpu_custom_call.1} parent=1 // pred_fallthru
      _
    // Predicated region
    $region70: #{tpu_custom_call.1} parent=1 // pred_check
      _
    $region71: #{tpu_custom_call.1} parent=1 // pred_check_branch
      %106 = sbr.rel (0) target = $region73
    $region72: #{tpu_custom_call.1} parent=1 // pred_region
      _
    $region73: #{tpu_custom_call.1} parent=1 // pred_fallthru
      _
    // Predicated region
    $region74: #{tpu_custom_call.1} parent=1 // pred_check
      _
    $region75: #{tpu_custom_call.1} parent=1 // pred_check_branch
      %108 = sbr.rel (0) target = $region77
    $region76: #{tpu_custom_call.1} parent=1 // pred_region
      %110 = dma.done [#allocation3], 256
    $region77: #{tpu_custom_call.1} parent=1 // pred_fallthru
      _
    // Predicated region
    $region78: #{tpu_custom_call.1} parent=1 // pred_check
      _
    $region79: #{tpu_custom_call.1} parent=1 // pred_check_branch
      %112 = sbr.rel (0) target = $region81
    $region80: #{tpu_custom_call.1} parent=1 // pred_region
      %114 = dma.done [#allocation6], 256
    $region81: #{tpu_custom_call.1} parent=1 // pred_fallthru
      _
    // Predicated region
    $region82: #{tpu_custom_call.1} parent=1 // pred_check
      _
    $region83: #{tpu_custom_call.1} parent=1 // pred_check_branch
      %116 = sbr.rel (0) target = $region85
    $region84: #{tpu_custom_call.1} parent=1 // pred_region
      %118 = dma.done [#allocation6], 512
    $region85: #{tpu_custom_call.1} parent=1 // pred_fallthru
      _
    // Predicated region
    $region86: #{tpu_custom_call.1} parent=1 // pred_check
      _
    $region87: #{tpu_custom_call.1} parent=1 // pred_check_branch
      %120 = sbr.rel (0) target = $region89
    $region88: #{tpu_custom_call.1} parent=1 // pred_region
      %122 = dma.done [#allocation9], 512
    $region89: #{tpu_custom_call.1} parent=1 // pred_fallthru
      _
    %v123 = vld [vmem:[#allocation2] sm:$0x3]
    %v124 = vld [vmem:[#allocation2 + $0x2] sm:$0x3]
    %v125 = vld [vmem:[#allocation2 + $0x4] sm:$0x3]
    %v126 = vld [vmem:[#allocation2 + $0x6] sm:$0x3]
    %v127 = vld [vmem:[#allocation2 + $0x8] sm:$0x3]
    %v128 = vld [vmem:[#allocation2 + $0xa] sm:$0x3]
    %v129 = vld [vmem:[#allocation2 + $0xc] sm:$0x3]
    %v130 = vld [vmem:[#allocation2 + $0xe] sm:$0x3]
    %v131 = vld [vmem:[#allocation5] sm:$0x3]
    %v132 = vld [vmem:[#allocation5 + $0x2] sm:$0x3]
    %v133 = vld [vmem:[#allocation5 + $0x4] sm:$0x3]
    %v134 = vld [vmem:[#allocation5 + $0x6] sm:$0x3]
    %v135 = vld [vmem:[#allocation5 + $0x8] sm:$0x3]
    %v136 = vld [vmem:[#allocation5 + $0xa] sm:$0x3]
    %v137 = vld [vmem:[#allocation5 + $0xc] sm:$0x3]
    %v138 = vld [vmem:[#allocation5 + $0xe] sm:$0x3]
    %v139 = vadd.f32 %v123, %v131
    %v140 = vadd.f32 %v124, %v132
    %v141 = vadd.f32 %v125, %v133
    %v142 = vadd.f32 %v126, %v134
    %v143 = vadd.f32 %v127, %v135
    %v144 = vadd.f32 %v128, %v136
    %v145 = vadd.f32 %v129, %v137
    %v146 = vadd.f32 %v130, %v138
    %v147 = vrot.slane %v125, 4
    %vm148 = vcmask 1047556
    %v149 = vsel %vm148, %v147, %v123
    %v151 = vunpack.c.l.s4 1983009808
    %v152 = vunpack.c.0.s8 %v151
    %v153 = vperm.slane %v149, %v152
    %v154 = vrot.slane %v126, 4
    %v155 = vsel %vm148, %v154, %v124
    %v157 = vunpack.c.l.s4 1983009808
    %v158 = vunpack.c.0.s8 %v157
    %v159 = vperm.slane %v155, %v158
    %v160 = vrot.slane %v129, 4
    %v161 = vsel %vm148, %v160, %v127
    %v163 = vunpack.c.l.s4 1983009808
    %v164 = vunpack.c.0.s8 %v163
    %v165 = vperm.slane %v161, %v164
    %v166 = vrot.slane %v130, 4
    %v167 = vsel %vm148, %v166, %v128
    %v169 = vunpack.c.l.s4 1983009808
    %v170 = vunpack.c.0.s8 %v169
    %v171 = vperm.slane %v167, %v170
    %v172 = vrot.slane %v159, 4
    %v173 = vsel %vm148, %v172, %v153
    %v175 = vunpack.c.l.s4 1934713408
    %v176 = vunpack.c.0.s8 %v175
    %v177 = vperm.slane %v173, %v176
    %v178 = vrot.slane %v171, 4
    %v179 = vsel %vm148, %v178, %v165
    %v181 = vunpack.c.l.s4 1934713408
    %v182 = vunpack.c.0.s8 %v181
    %v183 = vperm.slane %v179, %v182
    %v184 = vrot.slane %v183, 4
    %v185 = vsel %vm148, %v184, %v177
    %v186 = vrot.slane %v177, 4
    %v187 = vsel %vm148, %v183, %v186
    %v188 = vrot.slane %v141, 4
    %v189 = vsel %vm148, %v188, %v139
    %v191 = vunpack.c.l.s4 1983009808
    %v192 = vunpack.c.0.s8 %v191
    %v193 = vperm.slane %v189, %v192
    %v194 = vrot.slane %v142, 4
    %v195 = vsel %vm148, %v194, %v140
    %v197 = vunpack.c.l.s4 1983009808
    %v198 = vunpack.c.0.s8 %v197
    %v199 = vperm.slane %v195, %v198
    %v200 = vrot.slane %v145, 4
    %v201 = vsel %vm148, %v200, %v143
    %v203 = vunpack.c.l.s4 1983009808
    %v204 = vunpack.c.0.s8 %v203
    %v205 = vperm.slane %v201, %v204
    %v206 = vrot.slane %v146, 4
    %v207 = vsel %vm148, %v206, %v144
    %v209 = vunpack.c.l.s4 1983009808
    %v210 = vunpack.c.0.s8 %v209
    %v211 = vperm.slane %v207, %v210
    %v212 = vrot.slane %v199, 4
    %v213 = vsel %vm148, %v212, %v193
    %v215 = vunpack.c.l.s4 1934713408
    %v216 = vunpack.c.0.s8 %v215
    %v217 = vperm.slane %v213, %v216
    %v218 = vrot.slane %v211, 4
    %v219 = vsel %vm148, %v218, %v205
    %v221 = vunpack.c.l.s4 1934713408
    %v222 = vunpack.c.0.s8 %v221
    %v223 = vperm.slane %v219, %v222
    %v224 = vrot.slane %v223, 4
    %v225 = vsel %vm148, %v224, %v217
    %v226 = vrot.slane %v217, 4
    %v227 = vsel %vm148, %v223, %v226
    %v228 = vld [vmem:[%s2] sm:$0xff]
    %v229 = vld [vmem:[%s2 + $0x8] sm:$0xff]
    %v230 = vld [vmem:[%s2 + $0x10] sm:$0xff]
    %v231 = vld [vmem:[%s2 + $0x18] sm:$0xff]
    %v232 = vld [vmem:[%s5] sm:$0x1]
    %v234 = vperm.slane %v232, 0
    %vm236 = vcmask 261120
    %v238 = vsel %vm236, %v225, 0
    %v241 = vsel %vm236, %v227, 0
    %243 = vmatpush.msra.mxu0 0.0
    %244 = vmatpush.msra.mxu0 0.0
    %245 = vmatpush.msra.mxu0 0.0
    %246 = vmatpush.msra.mxu0 0.0
    %247 = vmatpush.msra.mxu0 0.0
    %248 = vmatpush.msra.mxu0 0.0
    %249 = vmatpush.msra.mxu0 0.0
    %250 = vmatpush.msra.mxu0 0.0
    %251 = vmatpush.msra.mxu0 0.0
    %252 = vmatpush.msra.mxu0 0.0
    %253 = vmatpush.msra.mxu0 0.0
    %254 = vmatpush.msra.mxu0 0.0
    %255 = vmatpush.msra.mxu0 %v231
    %256 = vmatpush.msra.mxu0 %v230
    %257 = vmatpush.msra.mxu0 %v229
    %258 = vmatpush.msra.mxu0 %v228
    %259 = vmatmul.f32.gmra.mxu0 %v238
    %v260 = vpop.f32.mrf.mxu0
    %v261 = vadd.f32 %v234, %v260
    %262 = vmatmul.f32.gmra.mxu0 %v241
    %v263 = vpop.f32.mrf.mxu0
    %v264 = vadd.f32 %v234, %v263
    %265 = vdwg.mxu0
    %v266 = vld [vmem:[%s3] sm:$0xff]
    %v267 = vld [vmem:[%s3 + $0x8] sm:$0xff]
    %v268 = vld [vmem:[%s3 + $0x10] sm:$0xff]
    %v269 = vld [vmem:[%s3 + $0x18] sm:$0xff]
    %v270 = vld [vmem:[%s6] sm:$0x1]
    %v272 = vperm.slane %v270, 0
    %274 = vmatpush.msra.mxu0 0.0
    %275 = vmatpush.msra.mxu0 0.0
    %276 = vmatpush.msra.mxu0 0.0
    %277 = vmatpush.msra.mxu0 0.0
    %278 = vmatpush.msra.mxu0 0.0
    %279 = vmatpush.msra.mxu0 0.0
    %280 = vmatpush.msra.mxu0 0.0
    %281 = vmatpush.msra.mxu0 0.0
    %282 = vmatpush.msra.mxu0 0.0
    %283 = vmatpush.msra.mxu0 0.0
    %284 = vmatpush.msra.mxu0 0.0
    %285 = vmatpush.msra.mxu0 0.0
    %286 = vmatpush.msra.mxu0 %v269
    %287 = vmatpush.msra.mxu0 %v268
    %288 = vmatpush.msra.mxu0 %v267
    %289 = vmatpush.msra.mxu0 %v266
    %290 = vmatmul.f32.gmra.mxu0 %v238
    %v291 = vpop.f32.mrf.mxu0
    %v292 = vadd.f32 %v272, %v291
    %293 = vmatmul.f32.gmra.mxu0 %v241
    %v294 = vpop.f32.mrf.mxu0
    %v295 = vadd.f32 %v272, %v294
    %296 = vdwg.mxu0
    %v297 = vld [vmem:[%s4] sm:$0xff]
    %v298 = vld [vmem:[%s4 + $0x8] sm:$0xff]
    %v299 = vld [vmem:[%s4 + $0x10] sm:$0xff]
    %v300 = vld [vmem:[%s4 + $0x18] sm:$0xff]
    %v301 = vld [vmem:[%s7] sm:$0x1]
    %v303 = vperm.slane %v301, 0
    %v306 = vsel %vm236, %v185, 0
    %v309 = vsel %vm236, %v187, 0
    %311 = vmatpush.msra.mxu0 0.0
    %312 = vmatpush.msra.mxu0 0.0
    %313 = vmatpush.msra.mxu0 0.0
    %314 = vmatpush.msra.mxu0 0.0
    %315 = vmatpush.msra.mxu0 0.0
    %316 = vmatpush.msra.mxu0 0.0
    %317 = vmatpush.msra.mxu0 0.0
    %318 = vmatpush.msra.mxu0 0.0
    %319 = vmatpush.msra.mxu0 0.0
    %320 = vmatpush.msra.mxu0 0.0
    %321 = vmatpush.msra.mxu0 0.0
    %322 = vmatpush.msra.mxu0 0.0
    %323 = vmatpush.msra.mxu0 %v300
    %324 = vmatpush.msra.mxu0 %v299
    %325 = vmatpush.msra.mxu0 %v298
    %326 = vmatpush.msra.mxu0 %v297
    %327 = vmatmul.f32.gmra.mxu0 %v306
    %v328 = vpop.f32.mrf.mxu0
    %v329 = vadd.f32 %v303, %v328
    %330 = vmatmul.f32.gmra.mxu0 %v309
    %v331 = vpop.f32.mrf.mxu0
    %v332 = vadd.f32 %v303, %v331
    %333 = vdwg.mxu0
    %336 = vrot.lane.b32.xlu0 %v261, 120
    %v337 = vpop.permute.xlu0 %336
    %338 = vrot.lane.b32.xlu0 %v264, 120
    %v339 = vpop.permute.xlu0 %338
    %340 = vrot.lane.b32.xlu0 %v261, 112
    %v341 = vpop.permute.xlu0 %340
    %342 = vrot.lane.b32.xlu0 %v264, 112
    %v343 = vpop.permute.xlu0 %342
    %344 = vrot.lane.b32.xlu0 %v261, 104
    %v345 = vpop.permute.xlu0 %344
    %346 = vrot.lane.b32.xlu0 %v264, 104
    %v347 = vpop.permute.xlu0 %346
    %350 = vrot.lane.b32.xlu0 %v292, 120
    %v351 = vpop.permute.xlu0 %350
    %352 = vrot.lane.b32.xlu0 %v295, 120
    %v353 = vpop.permute.xlu0 %352
    %354 = vrot.lane.b32.xlu0 %v292, 112
    %v355 = vpop.permute.xlu0 %354
    %356 = vrot.lane.b32.xlu0 %v295, 112
    %v357 = vpop.permute.xlu0 %356
    %358 = vrot.lane.b32.xlu0 %v292, 104
    %v359 = vpop.permute.xlu0 %358
    %360 = vrot.lane.b32.xlu0 %v295, 104
    %v361 = vpop.permute.xlu0 %360
    %364 = vrot.lane.b32.xlu0 %v329, 120
    %v365 = vpop.permute.xlu0 %364
    %366 = vrot.lane.b32.xlu0 %v332, 120
    %v367 = vpop.permute.xlu0 %366
    %370 = vrot.lane.b32.xlu0 %v329, 112
    %v371 = vpop.permute.xlu0 %370
    %372 = vrot.lane.b32.xlu0 %v332, 112
    %v373 = vpop.permute.xlu0 %372
    %376 = vrot.lane.b32.xlu0 %v329, 104
    %v377 = vpop.permute.xlu0 %376
    %378 = vrot.lane.b32.xlu0 %v332, 104
    %v379 = vpop.permute.xlu0 %378
    %vm382 = vcmask 64512
    %v383 = vsel %vm382, %v261, 0
    %v385 = vsel %vm382, %v292, 0
    %387 = vmatpush.xpose.msra.mxu0 0.0
    %388 = vmatpush.xpose.msra.mxu0 0.0
    %389 = vmatpush.xpose.msra.mxu0 0.0
    %390 = vmatpush.xpose.msra.mxu0 0.0
    %391 = vmatpush.xpose.msra.mxu0 0.0
    %392 = vmatpush.xpose.msra.mxu0 0.0
    %393 = vmatpush.xpose.msra.mxu0 0.0
    %394 = vmatpush.xpose.msra.mxu0 0.0
    %395 = vmatpush.xpose.msra.mxu0 0.0
    %396 = vmatpush.xpose.msra.mxu0 0.0
    %397 = vmatpush.xpose.msra.mxu0 0.0
    %398 = vmatpush.xpose.msra.mxu0 0.0
    %399 = vmatpush.xpose.msra.mxu0 0.0
    %400 = vmatpush.xpose.msra.mxu0 0.0
    %401 = vmatpush.xpose.msra.mxu0 0.0
    %402 = vmatpush.xpose.msra.mxu0 %v385
    %403 = vmatmul.f32.gmra.mxu0 %v383
    %v404 = vpop.f32.mrf.mxu0
    %v405 = vadd.f32 0.0, %v404
    %406 = vdwg.mxu0
    %v407 = vsel %vm382, %v264, 0
    %v409 = vsel %vm382, %v295, 0
    %411 = vmatpush.xpose.msra.mxu0 0.0
    %412 = vmatpush.xpose.msra.mxu0 0.0
    %413 = vmatpush.xpose.msra.mxu0 0.0
    %414 = vmatpush.xpose.msra.mxu0 0.0
    %415 = vmatpush.xpose.msra.mxu0 0.0
    %416 = vmatpush.xpose.msra.mxu0 0.0
    %417 = vmatpush.xpose.msra.mxu0 0.0
    %418 = vmatpush.xpose.msra.mxu0 0.0
    %419 = vmatpush.xpose.msra.mxu0 0.0
    %420 = vmatpush.xpose.msra.mxu0 0.0
    %421 = vmatpush.xpose.msra.mxu0 0.0
    %422 = vmatpush.xpose.msra.mxu0 0.0
    %423 = vmatpush.xpose.msra.mxu0 0.0
    %424 = vmatpush.xpose.msra.mxu0 0.0
    %425 = vmatpush.xpose.msra.mxu0 0.0
    %426 = vmatpush.xpose.msra.mxu0 %v409
    %427 = vmatmul.f32.gmra.mxu0 %v407
    %v428 = vpop.f32.mrf.mxu0
    %v429 = vadd.f32 0.0, %v428
    %430 = vdwg.mxu0
    %v431 = vsel %vm382, %v337, 0
    %v433 = vsel %vm382, %v351, 0
    %435 = vmatpush.xpose.msra.mxu0 0.0
    %436 = vmatpush.xpose.msra.mxu0 0.0
    %437 = vmatpush.xpose.msra.mxu0 0.0
    %438 = vmatpush.xpose.msra.mxu0 0.0
    %439 = vmatpush.xpose.msra.mxu0 0.0
    %440 = vmatpush.xpose.msra.mxu0 0.0
    %441 = vmatpush.xpose.msra.mxu0 0.0
    %442 = vmatpush.xpose.msra.mxu0 0.0
    %443 = vmatpush.xpose.msra.mxu0 0.0
    %444 = vmatpush.xpose.msra.mxu0 0.0
    %445 = vmatpush.xpose.msra.mxu0 0.0
    %446 = vmatpush.xpose.msra.mxu0 0.0
    %447 = vmatpush.xpose.msra.mxu0 0.0
    %448 = vmatpush.xpose.msra.mxu0 0.0
    %449 = vmatpush.xpose.msra.mxu0 0.0
    %450 = vmatpush.xpose.msra.mxu0 %v433
    %451 = vmatmul.f32.gmra.mxu0 %v431
    %v452 = vpop.f32.mrf.mxu0
    %v453 = vadd.f32 0.0, %v452
    %454 = vdwg.mxu0
    %v455 = vsel %vm382, %v339, 0
    %v457 = vsel %vm382, %v353, 0
    %459 = vmatpush.xpose.msra.mxu0 0.0
    %460 = vmatpush.xpose.msra.mxu0 0.0
    %461 = vmatpush.xpose.msra.mxu0 0.0
    %462 = vmatpush.xpose.msra.mxu0 0.0
    %463 = vmatpush.xpose.msra.mxu0 0.0
    %464 = vmatpush.xpose.msra.mxu0 0.0
    %465 = vmatpush.xpose.msra.mxu0 0.0
    %466 = vmatpush.xpose.msra.mxu0 0.0
    %467 = vmatpush.xpose.msra.mxu0 0.0
    %468 = vmatpush.xpose.msra.mxu0 0.0
    %469 = vmatpush.xpose.msra.mxu0 0.0
    %470 = vmatpush.xpose.msra.mxu0 0.0
    %471 = vmatpush.xpose.msra.mxu0 0.0
    %472 = vmatpush.xpose.msra.mxu0 0.0
    %473 = vmatpush.xpose.msra.mxu0 0.0
    %474 = vmatpush.xpose.msra.mxu0 %v457
    %475 = vmatmul.f32.gmra.mxu0 %v455
    %v476 = vpop.f32.mrf.mxu0
    %v477 = vadd.f32 0.0, %v476
    %478 = vdwg.mxu0
    %v479 = vsel %vm382, %v341, 0
    %v481 = vsel %vm382, %v355, 0
    %483 = vmatpush.xpose.msra.mxu0 0.0
    %484 = vmatpush.xpose.msra.mxu0 0.0
    %485 = vmatpush.xpose.msra.mxu0 0.0
    %486 = vmatpush.xpose.msra.mxu0 0.0
    %487 = vmatpush.xpose.msra.mxu0 0.0
    %488 = vmatpush.xpose.msra.mxu0 0.0
    %489 = vmatpush.xpose.msra.mxu0 0.0
    %490 = vmatpush.xpose.msra.mxu0 0.0
    %491 = vmatpush.xpose.msra.mxu0 0.0
    %492 = vmatpush.xpose.msra.mxu0 0.0
    %493 = vmatpush.xpose.msra.mxu0 0.0
    %494 = vmatpush.xpose.msra.mxu0 0.0
    %495 = vmatpush.xpose.msra.mxu0 0.0
    %496 = vmatpush.xpose.msra.mxu0 0.0
    %497 = vmatpush.xpose.msra.mxu0 0.0
    %498 = vmatpush.xpose.msra.mxu0 %v481
    %499 = vmatmul.f32.gmra.mxu0 %v479
    %v500 = vpop.f32.mrf.mxu0
    %v501 = vadd.f32 0.0, %v500
    %502 = vdwg.mxu0
    %v503 = vsel %vm382, %v343, 0
    %v505 = vsel %vm382, %v357, 0
    %507 = vmatpush.xpose.msra.mxu0 0.0
    %508 = vmatpush.xpose.msra.mxu0 0.0
    %509 = vmatpush.xpose.msra.mxu0 0.0
    %510 = vmatpush.xpose.msra.mxu0 0.0
    %511 = vmatpush.xpose.msra.mxu0 0.0
    %512 = vmatpush.xpose.msra.mxu0 0.0
    %513 = vmatpush.xpose.msra.mxu0 0.0
    %514 = vmatpush.xpose.msra.mxu0 0.0
    %515 = vmatpush.xpose.msra.mxu0 0.0
    %516 = vmatpush.xpose.msra.mxu0 0.0
    %517 = vmatpush.xpose.msra.mxu0 0.0
    %518 = vmatpush.xpose.msra.mxu0 0.0
    %519 = vmatpush.xpose.msra.mxu0 0.0
    %520 = vmatpush.xpose.msra.mxu0 0.0
    %521 = vmatpush.xpose.msra.mxu0 0.0
    %522 = vmatpush.xpose.msra.mxu0 %v505
    %523 = vmatmul.f32.gmra.mxu0 %v503
    %v524 = vpop.f32.mrf.mxu0
    %v525 = vadd.f32 0.0, %v524
    %526 = vdwg.mxu0
    %v527 = vsel %vm382, %v345, 0
    %v529 = vsel %vm382, %v359, 0
    %531 = vmatpush.xpose.msra.mxu0 0.0
    %532 = vmatpush.xpose.msra.mxu0 0.0
    %533 = vmatpush.xpose.msra.mxu0 0.0
    %534 = vmatpush.xpose.msra.mxu0 0.0
    %535 = vmatpush.xpose.msra.mxu0 0.0
    %536 = vmatpush.xpose.msra.mxu0 0.0
    %537 = vmatpush.xpose.msra.mxu0 0.0
    %538 = vmatpush.xpose.msra.mxu0 0.0
    %539 = vmatpush.xpose.msra.mxu0 0.0
    %540 = vmatpush.xpose.msra.mxu0 0.0
    %541 = vmatpush.xpose.msra.mxu0 0.0
    %542 = vmatpush.xpose.msra.mxu0 0.0
    %543 = vmatpush.xpose.msra.mxu0 0.0
    %544 = vmatpush.xpose.msra.mxu0 0.0
    %545 = vmatpush.xpose.msra.mxu0 0.0
    %546 = vmatpush.xpose.msra.mxu0 %v529
    %547 = vmatmul.f32.gmra.mxu0 %v527
    %v548 = vpop.f32.mrf.mxu0
    %v549 = vadd.f32 0.0, %v548
    %550 = vdwg.mxu0
    %v551 = vsel %vm382, %v347, 0
    %v553 = vsel %vm382, %v361, 0
    %555 = vmatpush.xpose.msra.mxu0 0.0
    %556 = vmatpush.xpose.msra.mxu0 0.0
    %557 = vmatpush.xpose.msra.mxu0 0.0
    %558 = vmatpush.xpose.msra.mxu0 0.0
    %559 = vmatpush.xpose.msra.mxu0 0.0
    %560 = vmatpush.xpose.msra.mxu0 0.0
    %561 = vmatpush.xpose.msra.mxu0 0.0
    %562 = vmatpush.xpose.msra.mxu0 0.0
    %563 = vmatpush.xpose.msra.mxu0 0.0
    %564 = vmatpush.xpose.msra.mxu0 0.0
    %565 = vmatpush.xpose.msra.mxu0 0.0
    %566 = vmatpush.xpose.msra.mxu0 0.0
    %567 = vmatpush.xpose.msra.mxu0 0.0
    %568 = vmatpush.xpose.msra.mxu0 0.0
    %569 = vmatpush.xpose.msra.mxu0 0.0
    %570 = vmatpush.xpose.msra.mxu0 %v553
    %571 = vmatmul.f32.gmra.mxu0 %v551
    %v572 = vpop.f32.mrf.mxu0
    %v573 = vadd.f32 0.0, %v572
    %574 = vdwg.mxu0
    %v575 = vsel %vm382, %v405, -inf
    %576 = vmax.xlane.f32.xlu0 %v575
    %v577 = vpop.xlane.xlu0 %576
    %v578 = vsel %vm382, %v429, -inf
    %579 = vmax.xlane.f32.xlu0 %v578
    %v580 = vpop.xlane.xlu0 %579
    %v581 = vsel %vm382, %v453, -inf
    %582 = vmax.xlane.f32.xlu0 %v581
    %v583 = vpop.xlane.xlu0 %582
    %v584 = vsel %vm382, %v477, -inf
    %585 = vmax.xlane.f32.xlu0 %v584
    %v586 = vpop.xlane.xlu0 %585
    %v587 = vsel %vm382, %v501, -inf
    %588 = vmax.xlane.f32.xlu0 %v587
    %v589 = vpop.xlane.xlu0 %588
    %v590 = vsel %vm382, %v525, -inf
    %591 = vmax.xlane.f32.xlu0 %v590
    %v592 = vpop.xlane.xlu0 %591
    %v593 = vsel %vm382, %v549, -inf
    %594 = vmax.xlane.f32.xlu0 %v593
    %v595 = vpop.xlane.xlu0 %594
    %v596 = vsel %vm382, %v573, -inf
    %597 = vmax.xlane.f32.xlu0 %v596
    %v598 = vpop.xlane.xlu0 %597
    %v599 = vsub.f32 %v405, %v577
    %v600 = vsub.f32 %v429, %v580
    %v601 = vsub.f32 %v453, %v583
    %v602 = vsub.f32 %v477, %v586
    %v603 = vsub.f32 %v501, %v589
    %v604 = vsub.f32 %v525, %v592
    %v605 = vsub.f32 %v549, %v595
    %v606 = vsub.f32 %v573, %v598
    %v607 = vmul.f32 %v599, 1.442695
    %v608 = vpow.pop %v607
    %v609 = vmul.f32 %v600, 1.442695
    %v610 = vpow.pop %v609
    %v611 = vmul.f32 %v601, 1.442695
    %v612 = vpow.pop %v611
    %v613 = vmul.f32 %v602, 1.442695
    %v614 = vpow.pop %v613
    %v615 = vmul.f32 %v603, 1.442695
    %v616 = vpow.pop %v615
    %v617 = vmul.f32 %v604, 1.442695
    %v618 = vpow.pop %v617
    %v619 = vmul.f32 %v605, 1.442695
    %v620 = vpow.pop %v619
    %v621 = vmul.f32 %v606, 1.442695
    %v622 = vpow.pop %v621
    %v623 = vsel %vm382, %v608, 0.0
    %624 = vadd.xlane.f32.xlu0 %v623
    %v625 = vpop.xlane.xlu0 %624
    %v626 = vsel %vm382, %v610, 0.0
    %627 = vadd.xlane.f32.xlu0 %v626
    %v628 = vpop.xlane.xlu0 %627
    %v629 = vsel %vm382, %v612, 0.0
    %630 = vadd.xlane.f32.xlu0 %v629
    %v631 = vpop.xlane.xlu0 %630
    %v632 = vsel %vm382, %v614, 0.0
    %633 = vadd.xlane.f32.xlu0 %v632
    %v634 = vpop.xlane.xlu0 %633
    %v635 = vsel %vm382, %v616, 0.0
    %636 = vadd.xlane.f32.xlu0 %v635
    %v637 = vpop.xlane.xlu0 %636
    %v638 = vsel %vm382, %v618, 0.0
    %639 = vadd.xlane.f32.xlu0 %v638
    %v640 = vpop.xlane.xlu0 %639
    %v641 = vsel %vm382, %v620, 0.0
    %642 = vadd.xlane.f32.xlu0 %v641
    %v643 = vpop.xlane.xlu0 %642
    %v644 = vsel %vm382, %v622, 0.0
    %645 = vadd.xlane.f32.xlu0 %v644
    %v646 = vpop.xlane.xlu0 %645
    %v647 = vrcp.pop %v625
    %v648 = vmul.f32 %v625, %v647
    %v649 = vsub.f32 1.0, %v648
    %v650 = vmul.f32 %v647, %v649
    %v651 = vadd.f32 %v647, %v650
    %vm652 = vweird.f32 %v625
    %vm653 = vweird.f32 %v647
    %vm654 = vmor %vm652, %vm653
    %v655 = vsel %vm654, %v647, %v651
    %v656 = vand.u32 2147483647, %v625
    %vm657 = vcmp.eq.f32.partialorder %v656, 8.507059e+37
    %v658 = vand.u32 %v625, 2147483648
    %v659 = vor.u32 1.1754944e-38, %v658
    %v660 = vsel %vm657, %v659, %v655
    %v661 = vrcp.pop %v628
    %v662 = vmul.f32 %v628, %v661
    %v663 = vsub.f32 1.0, %v662
    %v664 = vmul.f32 %v661, %v663
    %v665 = vadd.f32 %v661, %v664
    %vm666 = vweird.f32 %v628
    %vm667 = vweird.f32 %v661
    %vm668 = vmor %vm666, %vm667
    %v669 = vsel %vm668, %v661, %v665
    %v670 = vand.u32 2147483647, %v628
    %vm671 = vcmp.eq.f32.partialorder %v670, 8.507059e+37
    %v672 = vand.u32 %v628, 2147483648
    %v673 = vor.u32 1.1754944e-38, %v672
    %v674 = vsel %vm671, %v673, %v669
    %v675 = vrcp.pop %v631
    %v676 = vmul.f32 %v631, %v675
    %v677 = vsub.f32 1.0, %v676
    %v678 = vmul.f32 %v675, %v677
    %v679 = vadd.f32 %v675, %v678
    %vm680 = vweird.f32 %v631
    %vm681 = vweird.f32 %v675
    %vm682 = vmor %vm680, %vm681
    %v683 = vsel %vm682, %v675, %v679
    %v684 = vand.u32 2147483647, %v631
    %vm685 = vcmp.eq.f32.partialorder %v684, 8.507059e+37
    %v686 = vand.u32 %v631, 2147483648
    %v687 = vor.u32 1.1754944e-38, %v686
    %v688 = vsel %vm685, %v687, %v683
    %v689 = vrcp.pop %v634
    %v690 = vmul.f32 %v634, %v689
    %v691 = vsub.f32 1.0, %v690
    %v692 = vmul.f32 %v689, %v691
    %v693 = vadd.f32 %v689, %v692
    %vm694 = vweird.f32 %v634
    %vm695 = vweird.f32 %v689
    %vm696 = vmor %vm694, %vm695
    %v697 = vsel %vm696, %v689, %v693
    %v698 = vand.u32 2147483647, %v634
    %vm699 = vcmp.eq.f32.partialorder %v698, 8.507059e+37
    %v700 = vand.u32 %v634, 2147483648
    %v701 = vor.u32 1.1754944e-38, %v700
    %v702 = vsel %vm699, %v701, %v697
    %v703 = vrcp.pop %v637
    %v704 = vmul.f32 %v637, %v703
    %v705 = vsub.f32 1.0, %v704
    %v706 = vmul.f32 %v703, %v705
    %v707 = vadd.f32 %v703, %v706
    %vm708 = vweird.f32 %v637
    %vm709 = vweird.f32 %v703
    %vm710 = vmor %vm708, %vm709
    %v711 = vsel %vm710, %v703, %v707
    %v712 = vand.u32 2147483647, %v637
    %vm713 = vcmp.eq.f32.partialorder %v712, 8.507059e+37
    %v714 = vand.u32 %v637, 2147483648
    %v715 = vor.u32 1.1754944e-38, %v714
    %v716 = vsel %vm713, %v715, %v711
    %v717 = vrcp.pop %v640
    %v718 = vmul.f32 %v640, %v717
    %v719 = vsub.f32 1.0, %v718
    %v720 = vmul.f32 %v717, %v719
    %v721 = vadd.f32 %v717, %v720
    %vm722 = vweird.f32 %v640
    %vm723 = vweird.f32 %v717
    %vm724 = vmor %vm722, %vm723
    %v725 = vsel %vm724, %v717, %v721
    %v726 = vand.u32 2147483647, %v640
    %vm727 = vcmp.eq.f32.partialorder %v726, 8.507059e+37
    %v728 = vand.u32 %v640, 2147483648
    %v729 = vor.u32 1.1754944e-38, %v728
    %v730 = vsel %vm727, %v729, %v725
    %v731 = vrcp.pop %v643
    %v732 = vmul.f32 %v643, %v731
    %v733 = vsub.f32 1.0, %v732
    %v734 = vmul.f32 %v731, %v733
    %v735 = vadd.f32 %v731, %v734
    %vm736 = vweird.f32 %v643
    %vm737 = vweird.f32 %v731
    %vm738 = vmor %vm736, %vm737
    %v739 = vsel %vm738, %v731, %v735
    %v740 = vand.u32 2147483647, %v643
    %vm741 = vcmp.eq.f32.partialorder %v740, 8.507059e+37
    %v742 = vand.u32 %v643, 2147483648
    %v743 = vor.u32 1.1754944e-38, %v742
    %v744 = vsel %vm741, %v743, %v739
    %v745 = vrcp.pop %v646
    %v746 = vmul.f32 %v646, %v745
    %v747 = vsub.f32 1.0, %v746
    %v748 = vmul.f32 %v745, %v747
    %v749 = vadd.f32 %v745, %v748
    %vm750 = vweird.f32 %v646
    %vm751 = vweird.f32 %v745
    %vm752 = vmor %vm750, %vm751
    %v753 = vsel %vm752, %v745, %v749
    %v754 = vand.u32 2147483647, %v646
    %vm755 = vcmp.eq.f32.partialorder %v754, 8.507059e+37
    %v756 = vand.u32 %v646, 2147483648
    %v757 = vor.u32 1.1754944e-38, %v756
    %v758 = vsel %vm755, %v757, %v753
    %v759 = vmul.f32 %v608, %v660
    %v760 = vmul.f32 %v610, %v674
    %v761 = vmul.f32 %v612, %v688
    %v762 = vmul.f32 %v614, %v702
    %v763 = vmul.f32 %v616, %v716
    %v764 = vmul.f32 %v618, %v730
    %v765 = vmul.f32 %v620, %v744
    %v766 = vmul.f32 %v622, %v758
    %v768 = vsel %vm382, %v759, 0
    %770 = vmatpush.msra.mxu0 0.0
    %771 = vmatpush.msra.mxu0 0.0
    %772 = vmatpush.msra.mxu0 0.0
    %773 = vmatpush.msra.mxu0 0.0
    %774 = vmatpush.msra.mxu0 0.0
    %775 = vmatpush.msra.mxu0 0.0
    %776 = vmatpush.msra.mxu0 0.0
    %777 = vmatpush.msra.mxu0 0.0
    %778 = vmatpush.msra.mxu0 0.0
    %779 = vmatpush.msra.mxu0 0.0
    %780 = vmatpush.msra.mxu0 0.0
    %781 = vmatpush.msra.mxu0 0.0
    %782 = vmatpush.msra.mxu0 0.0
    %783 = vmatpush.msra.mxu0 0.0
    %784 = vmatpush.msra.mxu0 0.0
    %785 = vmatpush.msra.mxu0 %v329
    %786 = vmatmul.f32.gmra.mxu0 %v768
    %v787 = vpop.f32.mrf.mxu0
    %v788 = vadd.f32 0.0, %v787
    %789 = vdwg.mxu0
    %v791 = vsel %vm382, %v760, 0
    %793 = vmatpush.msra.mxu0 0.0
    %794 = vmatpush.msra.mxu0 0.0
    %795 = vmatpush.msra.mxu0 0.0
    %796 = vmatpush.msra.mxu0 0.0
    %797 = vmatpush.msra.mxu0 0.0
    %798 = vmatpush.msra.mxu0 0.0
    %799 = vmatpush.msra.mxu0 0.0
    %800 = vmatpush.msra.mxu0 0.0
    %801 = vmatpush.msra.mxu0 0.0
    %802 = vmatpush.msra.mxu0 0.0
    %803 = vmatpush.msra.mxu0 0.0
    %804 = vmatpush.msra.mxu0 0.0
    %805 = vmatpush.msra.mxu0 0.0
    %806 = vmatpush.msra.mxu0 0.0
    %807 = vmatpush.msra.mxu0 0.0
    %808 = vmatpush.msra.mxu0 %v332
    %809 = vmatmul.f32.gmra.mxu0 %v791
    %v810 = vpop.f32.mrf.mxu0
    %v811 = vadd.f32 0.0, %v810
    %812 = vdwg.mxu0
    %v814 = vsel %vm382, %v761, 0
    %816 = vmatpush.msra.mxu0 0.0
    %817 = vmatpush.msra.mxu0 0.0
    %818 = vmatpush.msra.mxu0 0.0
    %819 = vmatpush.msra.mxu0 0.0
    %820 = vmatpush.msra.mxu0 0.0
    %821 = vmatpush.msra.mxu0 0.0
    %822 = vmatpush.msra.mxu0 0.0
    %823 = vmatpush.msra.mxu0 0.0
    %824 = vmatpush.msra.mxu0 0.0
    %825 = vmatpush.msra.mxu0 0.0
    %826 = vmatpush.msra.mxu0 0.0
    %827 = vmatpush.msra.mxu0 0.0
    %828 = vmatpush.msra.mxu0 0.0
    %829 = vmatpush.msra.mxu0 0.0
    %830 = vmatpush.msra.mxu0 0.0
    %831 = vmatpush.msra.mxu0 %v365
    %832 = vmatmul.f32.gmra.mxu0 %v814
    %v833 = vpop.f32.mrf.mxu0
    %v834 = vadd.f32 0.0, %v833
    %835 = vdwg.mxu0
    %v837 = vsel %vm382, %v762, 0
    %839 = vmatpush.msra.mxu0 0.0
    %840 = vmatpush.msra.mxu0 0.0
    %841 = vmatpush.msra.mxu0 0.0
    %842 = vmatpush.msra.mxu0 0.0
    %843 = vmatpush.msra.mxu0 0.0
    %844 = vmatpush.msra.mxu0 0.0
    %845 = vmatpush.msra.mxu0 0.0
    %846 = vmatpush.msra.mxu0 0.0
    %847 = vmatpush.msra.mxu0 0.0
    %848 = vmatpush.msra.mxu0 0.0
    %849 = vmatpush.msra.mxu0 0.0
    %850 = vmatpush.msra.mxu0 0.0
    %851 = vmatpush.msra.mxu0 0.0
    %852 = vmatpush.msra.mxu0 0.0
    %853 = vmatpush.msra.mxu0 0.0
    %854 = vmatpush.msra.mxu0 %v367
    %855 = vmatmul.f32.gmra.mxu0 %v837
    %v856 = vpop.f32.mrf.mxu0
    %v857 = vadd.f32 0.0, %v856
    %858 = vdwg.mxu0
    %v860 = vsel %vm382, %v763, 0
    %862 = vmatpush.msra.mxu0 0.0
    %863 = vmatpush.msra.mxu0 0.0
    %864 = vmatpush.msra.mxu0 0.0
    %865 = vmatpush.msra.mxu0 0.0
    %866 = vmatpush.msra.mxu0 0.0
    %867 = vmatpush.msra.mxu0 0.0
    %868 = vmatpush.msra.mxu0 0.0
    %869 = vmatpush.msra.mxu0 0.0
    %870 = vmatpush.msra.mxu0 0.0
    %871 = vmatpush.msra.mxu0 0.0
    %872 = vmatpush.msra.mxu0 0.0
    %873 = vmatpush.msra.mxu0 0.0
    %874 = vmatpush.msra.mxu0 0.0
    %875 = vmatpush.msra.mxu0 0.0
    %876 = vmatpush.msra.mxu0 0.0
    %877 = vmatpush.msra.mxu0 %v371
    %878 = vmatmul.f32.gmra.mxu0 %v860
    %v879 = vpop.f32.mrf.mxu0
    %v880 = vadd.f32 0.0, %v879
    %881 = vdwg.mxu0
    %v883 = vsel %vm382, %v764, 0
    %885 = vmatpush.msra.mxu0 0.0
    %886 = vmatpush.msra.mxu0 0.0
    %887 = vmatpush.msra.mxu0 0.0
    %888 = vmatpush.msra.mxu0 0.0
    %889 = vmatpush.msra.mxu0 0.0
    %890 = vmatpush.msra.mxu0 0.0
    %891 = vmatpush.msra.mxu0 0.0
    %892 = vmatpush.msra.mxu0 0.0
    %893 = vmatpush.msra.mxu0 0.0
    %894 = vmatpush.msra.mxu0 0.0
    %895 = vmatpush.msra.mxu0 0.0
    %896 = vmatpush.msra.mxu0 0.0
    %897 = vmatpush.msra.mxu0 0.0
    %898 = vmatpush.msra.mxu0 0.0
    %899 = vmatpush.msra.mxu0 0.0
    %900 = vmatpush.msra.mxu0 %v373
    %901 = vmatmul.f32.gmra.mxu0 %v883
    %v902 = vpop.f32.mrf.mxu0
    %v903 = vadd.f32 0.0, %v902
    %904 = vdwg.mxu0
    %v906 = vsel %vm382, %v765, 0
    %908 = vmatpush.msra.mxu0 0.0
    %909 = vmatpush.msra.mxu0 0.0
    %910 = vmatpush.msra.mxu0 0.0
    %911 = vmatpush.msra.mxu0 0.0
    %912 = vmatpush.msra.mxu0 0.0
    %913 = vmatpush.msra.mxu0 0.0
    %914 = vmatpush.msra.mxu0 0.0
    %915 = vmatpush.msra.mxu0 0.0
    %916 = vmatpush.msra.mxu0 0.0
    %917 = vmatpush.msra.mxu0 0.0
    %918 = vmatpush.msra.mxu0 0.0
    %919 = vmatpush.msra.mxu0 0.0
    %920 = vmatpush.msra.mxu0 0.0
    %921 = vmatpush.msra.mxu0 0.0
    %922 = vmatpush.msra.mxu0 0.0
    %923 = vmatpush.msra.mxu0 %v377
    %924 = vmatmul.f32.gmra.mxu0 %v906
    %v925 = vpop.f32.mrf.mxu0
    %v926 = vadd.f32 0.0, %v925
    %927 = vdwg.mxu0
    %v929 = vsel %vm382, %v766, 0
    %931 = vmatpush.msra.mxu0 0.0
    %932 = vmatpush.msra.mxu0 0.0
    %933 = vmatpush.msra.mxu0 0.0
    %934 = vmatpush.msra.mxu0 0.0
    %935 = vmatpush.msra.mxu0 0.0
    %936 = vmatpush.msra.mxu0 0.0
    %937 = vmatpush.msra.mxu0 0.0
    %938 = vmatpush.msra.mxu0 0.0
    %939 = vmatpush.msra.mxu0 0.0
    %940 = vmatpush.msra.mxu0 0.0
    %941 = vmatpush.msra.mxu0 0.0
    %942 = vmatpush.msra.mxu0 0.0
    %943 = vmatpush.msra.mxu0 0.0
    %944 = vmatpush.msra.mxu0 0.0
    %945 = vmatpush.msra.mxu0 0.0
    %946 = vmatpush.msra.mxu0 %v379
    %947 = vmatmul.f32.gmra.mxu0 %v929
    %v948 = vpop.f32.mrf.mxu0
    %v949 = vadd.f32 0.0, %v948
    %950 = vdwg.mxu0
    %v951 = vld [vmem:[#allocation7] sm:$0xff]
    %v952 = vld [vmem:[#allocation7 + $0x8] sm:$0xff]
    %v953 = vld [vmem:[#allocation7 + $0x10] sm:$0xff]
    %v954 = vld [vmem:[#allocation7 + $0x18] sm:$0xff]
    %v956 = vsel %vm382, %v834, 0
    %v959 = vsel %vm382, %v857, 0
    %961 = vmatpush.msra.mxu0 0.0
    %962 = vmatpush.msra.mxu0 0.0
    %963 = vmatpush.msra.mxu0 0.0
    %964 = vmatpush.msra.mxu0 0.0
    %965 = vmatpush.msra.mxu0 0.0
    %966 = vmatpush.msra.mxu0 0.0
    %967 = vmatpush.msra.mxu0 0.0
    %968 = vmatpush.msra.mxu0 0.0
    %969 = vmatpush.msra.mxu0 0.0
    %970 = vmatpush.msra.mxu0 0.0
    %971 = vmatpush.msra.mxu0 0.0
    %972 = vmatpush.msra.mxu0 0.0
    %973 = vmatpush.msra.mxu0 0.0
    %974 = vmatpush.msra.mxu0 0.0
    %975 = vmatpush.msra.mxu0 0.0
    %976 = vmatpush.msra.mxu0 %v952
    %977 = vmatmul.f32.gmra.mxu0 %v956
    %v978 = vpop.f32.mrf.mxu0
    %v979 = vadd.f32 0.0, %v978
    %980 = vmatmul.f32.gmra.mxu0 %v959
    %v981 = vpop.f32.mrf.mxu0
    %v982 = vadd.f32 0.0, %v981
    %983 = vdwg.mxu0
    %v985 = vsel %vm382, %v788, 0
    %v988 = vsel %vm382, %v811, 0
    %990 = vmatpush.msra.mxu0 0.0
    %991 = vmatpush.msra.mxu0 0.0
    %992 = vmatpush.msra.mxu0 0.0
    %993 = vmatpush.msra.mxu0 0.0
    %994 = vmatpush.msra.mxu0 0.0
    %995 = vmatpush.msra.mxu0 0.0
    %996 = vmatpush.msra.mxu0 0.0
    %997 = vmatpush.msra.mxu0 0.0
    %998 = vmatpush.msra.mxu0 0.0
    %999 = vmatpush.msra.mxu0 0.0
    %1000 = vmatpush.msra.mxu0 0.0
    %1001 = vmatpush.msra.mxu0 0.0
    %1002 = vmatpush.msra.mxu0 0.0
    %1003 = vmatpush.msra.mxu0 0.0
    %1004 = vmatpush.msra.mxu0 0.0
    %1005 = vmatpush.msra.mxu0 %v951
    %1006 = vmatmul.f32.gmra.mxu0 %v985
    %v1007 = vpop.f32.mrf.mxu0
    %v1008 = vadd.f32 %v979, %v1007
    %1009 = vmatmul.f32.gmra.mxu0 %v988
    %v1010 = vpop.f32.mrf.mxu0
    %v1011 = vadd.f32 %v982, %v1010
    %1012 = vdwg.mxu0
    %v1014 = vsel %vm382, %v880, 0
    %v1017 = vsel %vm382, %v903, 0
    %1019 = vmatpush.msra.mxu0 0.0
    %1020 = vmatpush.msra.mxu0 0.0
    %1021 = vmatpush.msra.mxu0 0.0
    %1022 = vmatpush.msra.mxu0 0.0
    %1023 = vmatpush.msra.mxu0 0.0
    %1024 = vmatpush.msra.mxu0 0.0
    %1025 = vmatpush.msra.mxu0 0.0
    %1026 = vmatpush.msra.mxu0 0.0
    %1027 = vmatpush.msra.mxu0 0.0
    %1028 = vmatpush.msra.mxu0 0.0
    %1029 = vmatpush.msra.mxu0 0.0
    %1030 = vmatpush.msra.mxu0 0.0
    %1031 = vmatpush.msra.mxu0 0.0
    %1032 = vmatpush.msra.mxu0 0.0
    %1033 = vmatpush.msra.mxu0 0.0
    %1034 = vmatpush.msra.mxu0 %v953
    %1035 = vmatmul.f32.gmra.mxu0 %v1014
    %v1036 = vpop.f32.mrf.mxu0
    %v1037 = vadd.f32 0.0, %v1036
    %1038 = vmatmul.f32.gmra.mxu0 %v1017
    %v1039 = vpop.f32.mrf.mxu0
    %v1040 = vadd.f32 0.0, %v1039
    %1041 = vdwg.mxu0
    %v1042 = vadd.f32 %v1008, %v1037
    %v1043 = vadd.f32 %v1011, %v1040
    %v1045 = vsel %vm382, %v926, 0
    %v1048 = vsel %vm382, %v949, 0
    %1050 = vmatpush.msra.mxu0 0.0
    %1051 = vmatpush.msra.mxu0 0.0
    %1052 = vmatpush.msra.mxu0 0.0
    %1053 = vmatpush.msra.mxu0 0.0
    %1054 = vmatpush.msra.mxu0 0.0
    %1055 = vmatpush.msra.mxu0 0.0
    %1056 = vmatpush.msra.mxu0 0.0
    %1057 = vmatpush.msra.mxu0 0.0
    %1058 = vmatpush.msra.mxu0 0.0
    %1059 = vmatpush.msra.mxu0 0.0
    %1060 = vmatpush.msra.mxu0 0.0
    %1061 = vmatpush.msra.mxu0 0.0
    %1062 = vmatpush.msra.mxu0 0.0
    %1063 = vmatpush.msra.mxu0 0.0
    %1064 = vmatpush.msra.mxu0 0.0
    %1065 = vmatpush.msra.mxu0 %v954
    %1066 = vmatmul.f32.gmra.mxu0 %v1045
    %v1067 = vpop.f32.mrf.mxu0
    %v1068 = vadd.f32 0.0, %v1067
    %1069 = vmatmul.f32.gmra.mxu0 %v1048
    %v1070 = vpop.f32.mrf.mxu0
    %v1071 = vadd.f32 0.0, %v1070
    %1072 = vdwg.mxu0
    %v1073 = vadd.f32 %v1042, %v1068
    %v1074 = vadd.f32 %v1043, %v1071
    %v1075 = vld [vmem:[%s9] sm:$0x1]
    %v1077 = vperm.slane %v1075, 0
    %v1079 = vadd.f32 %v1073, %v1077
    %v1080 = vadd.f32 %v1074, %v1077
    %v1081 = vadd.f32 %v185, %v1079
    %v1082 = vadd.f32 %v187, %v1080
    %v1083 = vsel %vm236, %v1081, 0.0
    %1084 = vadd.xlane.f32.xlu0 %v1083
    %v1085 = vpop.xlane.xlu0 %1084
    %v1086 = vsel %vm236, %v1082, 0.0
    %1087 = vadd.xlane.f32.xlu0 %v1086
    %v1088 = vpop.xlane.xlu0 %1087
    %v1089 = vrcp.pop 32.0
    %v1090 = vmul.f32 32.0, %v1089
    %v1091 = vsub.f32 1.0, %v1090
    %v1092 = vmul.f32 %v1089, %v1091
    %v1093 = vadd.f32 %v1089, %v1092
    %vm1094 = vweird.f32 %v1089
    %v1095 = vsel %vm1094, %v1089, %v1093
    %v1096 = vmul.f32 %v1085, %v1095
    %v1097 = vmul.f32 %v1088, %v1095
    %v1098 = vsub.f32 %v1081, %v1096
    %v1099 = vsub.f32 %v1082, %v1097
    %v1100 = vmul.f32 %v1098, %v1098
    %v1101 = vmul.f32 %v1099, %v1099
    %v1102 = vsel %vm236, %v1100, 0.0
    %1103 = vadd.xlane.f32.xlu0 %v1102
    %v1104 = vpop.xlane.xlu0 %1103
    %v1105 = vsel %vm236, %v1101, 0.0
    %1106 = vadd.xlane.f32.xlu0 %v1105
    %v1107 = vpop.xlane.xlu0 %1106
    %v1108 = vmul.f32 %v1104, %v1095
    %v1109 = vmul.f32 %v1107, %v1095
    %v1110 = vadd.f32 %v1108, 1e-05
    %v1111 = vadd.f32 %v1109, 1e-05
    %v1112 = vrsqrt.pop %v1110
    %v1113 = vmul.f32 %v1112, %v1110
    %v1114 = vmul.f32 %v1113, %v1112
    %v1115 = vmul.f32 0.5, %v1114
    %v1116 = vsub.f32 1.5, %v1115
    %v1117 = vmul.f32 %v1112, %v1116
    %vm1118 = vweird.f32 %v1110
    %vm1119 = vweird.f32 %v1112
    %vm1120 = vmor %vm1118, %vm1119
    %v1121 = vsel %vm1120, %v1112, %v1117
    %v1122 = vrsqrt.pop %v1111
    %v1123 = vmul.f32 %v1122, %v1111
    %v1124 = vmul.f32 %v1123, %v1122
    %v1125 = vmul.f32 0.5, %v1124
    %v1126 = vsub.f32 1.5, %v1125
    %v1127 = vmul.f32 %v1122, %v1126
    %vm1128 = vweird.f32 %v1111
    %vm1129 = vweird.f32 %v1122
    %vm1130 = vmor %vm1128, %vm1129
    %v1131 = vsel %vm1130, %v1122, %v1127
    %v1132 = vmul.f32 %v1098, %v1121
    %v1133 = vmul.f32 %v1099, %v1131
    %v1134 = vld [vmem:[%s10] sm:$0x1]
    %v1136 = vperm.slane %v1134, 0
    %v1138 = vmul.f32 %v1132, %v1136
    %v1139 = vmul.f32 %v1133, %v1136
    %v1140 = vld [vmem:[%s11] sm:$0x1]
    %v1142 = vperm.slane %v1140, 0
    %v1144 = vadd.f32 %v1138, %v1142
    %v1145 = vadd.f32 %v1139, %v1142
    %v1146 = vld [vmem:[#allocation8] sm:$0xff]
    %v1147 = vld [vmem:[#allocation8 + $0x8] sm:$0xff]
    %v1148 = vld [vmem:[#allocation8 + $0x10] sm:$0xff]
    %v1149 = vld [vmem:[#allocation8 + $0x18] sm:$0xff]
    %v1150 = vld [vmem:[%s13] sm:$0x1]
    %v1152 = vperm.slane %v1150, 0
    %v1155 = vsel %vm236, %v1144, 0
    %v1158 = vsel %vm236, %v1145, 0
    %1160 = vmatpush.msra.mxu0 0.0
    %1161 = vmatpush.msra.mxu0 0.0
    %1162 = vmatpush.msra.mxu0 0.0
    %1163 = vmatpush.msra.mxu0 0.0
    %1164 = vmatpush.msra.mxu0 0.0
    %1165 = vmatpush.msra.mxu0 0.0
    %1166 = vmatpush.msra.mxu0 0.0
    %1167 = vmatpush.msra.mxu0 0.0
    %1168 = vmatpush.msra.mxu0 0.0
    %1169 = vmatpush.msra.mxu0 0.0
    %1170 = vmatpush.msra.mxu0 0.0
    %1171 = vmatpush.msra.mxu0 0.0
    %1172 = vmatpush.msra.mxu0 %v1149
    %1173 = vmatpush.msra.mxu0 %v1148
    %1174 = vmatpush.msra.mxu0 %v1147
    %1175 = vmatpush.msra.mxu0 %v1146
    %1176 = vmatmul.f32.gmra.mxu0 %v1155
    %v1177 = vpop.f32.mrf.mxu0
    %v1178 = vadd.f32 %v1152, %v1177
    %1179 = vmatmul.f32.gmra.mxu0 %v1158
    %v1180 = vpop.f32.mrf.mxu0
    %v1181 = vadd.f32 %v1152, %v1180
    %1182 = vdwg.mxu0
    %v1183 = vmax.f32 %v1178, 0.0
    %v1184 = vmax.f32 %v1181, 0.0
    %v1185 = vld [vmem:[%s14] sm:$0xff]
    %v1186 = vld [vmem:[%s14 + $0x8] sm:$0xff]
    %v1187 = vld [vmem:[%s14 + $0x10] sm:$0xff]
    %v1188 = vld [vmem:[%s14 + $0x18] sm:$0xff]
    %v1189 = vld [vmem:[%s14 + $0x20] sm:$0xff]
    %v1190 = vld [vmem:[%s14 + $0x28] sm:$0xff]
    %v1191 = vld [vmem:[%s14 + $0x30] sm:$0xff]
    %v1192 = vld [vmem:[%s14 + $0x38] sm:$0xff]
    %v1193 = vld [vmem:[%s15] sm:$0x1]
    %v1195 = vperm.slane %v1193, 0
    %vm1197 = vcmask 523264
    %v1199 = vsel %vm1197, %v1183, 0
    %v1202 = vsel %vm1197, %v1184, 0
    %1204 = vmatpush.msra.mxu0 0.0
    %1205 = vmatpush.msra.mxu0 0.0
    %1206 = vmatpush.msra.mxu0 0.0
    %1207 = vmatpush.msra.mxu0 0.0
    %1208 = vmatpush.msra.mxu0 0.0
    %1209 = vmatpush.msra.mxu0 0.0
    %1210 = vmatpush.msra.mxu0 0.0
    %1211 = vmatpush.msra.mxu0 0.0
    %1212 = vmatpush.msra.mxu0 %v1192
    %1213 = vmatpush.msra.mxu0 %v1191
    %1214 = vmatpush.msra.mxu0 %v1190
    %1215 = vmatpush.msra.mxu0 %v1189
    %1216 = vmatpush.msra.mxu0 %v1188
    %1217 = vmatpush.msra.mxu0 %v1187
    %1218 = vmatpush.msra.mxu0 %v1186
    %1219 = vmatpush.msra.mxu0 %v1185
    %1220 = vmatmul.f32.gmra.mxu0 %v1199
    %v1221 = vpop.f32.mrf.mxu0
    %v1222 = vadd.f32 %v1195, %v1221
    %1223 = vmatmul.f32.gmra.mxu0 %v1202
    %v1224 = vpop.f32.mrf.mxu0
    %v1225 = vadd.f32 %v1195, %v1224
    %1226 = vdwg.mxu0
    %v1227 = vadd.f32 %v1144, %v1222
    %v1228 = vadd.f32 %v1145, %v1225
    %v1229 = vsel %vm236, %v1227, 0.0
    %1230 = vadd.xlane.f32.xlu0 %v1229
    %v1231 = vpop.xlane.xlu0 %1230
    %v1232 = vsel %vm236, %v1228, 0.0
    %1233 = vadd.xlane.f32.xlu0 %v1232
    %v1234 = vpop.xlane.xlu0 %1233
    %v1235 = vmul.f32 %v1231, %v1095
    %v1236 = vmul.f32 %v1234, %v1095
    %v1237 = vsub.f32 %v1227, %v1235
    %v1238 = vsub.f32 %v1228, %v1236
    %v1239 = vmul.f32 %v1237, %v1237
    %v1240 = vmul.f32 %v1238, %v1238
    %v1241 = vsel %vm236, %v1239, 0.0
    %1242 = vadd.xlane.f32.xlu0 %v1241
    %v1243 = vpop.xlane.xlu0 %1242
    %v1244 = vsel %vm236, %v1240, 0.0
    %1245 = vadd.xlane.f32.xlu0 %v1244
    %v1246 = vpop.xlane.xlu0 %1245
    %v1247 = vmul.f32 %v1243, %v1095
    %v1248 = vmul.f32 %v1246, %v1095
    %v1249 = vadd.f32 %v1247, 1e-05
    %v1250 = vadd.f32 %v1248, 1e-05
    %v1251 = vrsqrt.pop %v1249
    %v1252 = vmul.f32 %v1251, %v1249
    %v1253 = vmul.f32 %v1252, %v1251
    %v1254 = vmul.f32 0.5, %v1253
    %v1255 = vsub.f32 1.5, %v1254
    %v1256 = vmul.f32 %v1251, %v1255
    %vm1257 = vweird.f32 %v1249
    %vm1258 = vweird.f32 %v1251
    %vm1259 = vmor %vm1257, %vm1258
    %v1260 = vsel %vm1259, %v1251, %v1256
    %v1261 = vrsqrt.pop %v1250
    %v1262 = vmul.f32 %v1261, %v1250
    %v1263 = vmul.f32 %v1262, %v1261
    %v1264 = vmul.f32 0.5, %v1263
    %v1265 = vsub.f32 1.5, %v1264
    %v1266 = vmul.f32 %v1261, %v1265
    %vm1267 = vweird.f32 %v1250
    %vm1268 = vweird.f32 %v1261
    %vm1269 = vmor %vm1267, %vm1268
    %v1270 = vsel %vm1269, %v1261, %v1266
    %v1271 = vmul.f32 %v1237, %v1260
    %v1272 = vmul.f32 %v1238, %v1270
    %v1273 = vld [vmem:[%s16] sm:$0x1]
    %v1275 = vperm.slane %v1273, 0
    %v1277 = vmul.f32 %v1271, %v1275
    %v1278 = vmul.f32 %v1272, %v1275
    %v1279 = vld [vmem:[%s17] sm:$0x1]
    %v1281 = vperm.slane %v1279, 0
    %v1283 = vadd.f32 %v1277, %v1281
    %v1284 = vadd.f32 %v1278, %v1281
    %v1285 = vrot.slane %v1283, 4
    %v1286 = vsel %vm148, 0.0, %v1285
    %v1288 = vunpack.c.l.s4 1983009808
    %v1289 = vunpack.c.0.s8 %v1288
    %v1290 = vperm.slane %v1283, %v1289
    %v1292 = vunpack.c.l.s4 1983009808
    %v1293 = vunpack.c.0.s8 %v1292
    %v1294 = vperm.slane %v1286, %v1293
    %v1295 = vrot.slane %v1284, 4
    %v1296 = vsel %vm148, 0.0, %v1295
    %v1298 = vunpack.c.l.s4 1983009808
    %v1299 = vunpack.c.0.s8 %v1298
    %v1300 = vperm.slane %v1284, %v1299
    %v1302 = vunpack.c.l.s4 1983009808
    %v1303 = vunpack.c.0.s8 %v1302
    %v1304 = vperm.slane %v1296, %v1303
    %v1305 = vrot.slane %v1300, 4
    %v1306 = vsel %vm148, %v1305, %v1290
    %v1307 = vrot.slane %v1290, 4
    %v1308 = vsel %vm148, %v1300, %v1307
    %v1310 = vunpack.c.l.s4 1934713408
    %v1311 = vunpack.c.0.s8 %v1310
    %v1312 = vperm.slane %v1306, %v1311
    %v1314 = vunpack.c.l.s4 1934713408
    %v1315 = vunpack.c.0.s8 %v1314
    %v1316 = vperm.slane %v1308, %v1315
    %v1317 = vrot.slane %v1304, 4
    %v1318 = vsel %vm148, %v1317, %v1294
    %v1319 = vrot.slane %v1294, 4
    %v1320 = vsel %vm148, %v1304, %v1319
    %v1322 = vunpack.c.l.s4 1934713408
    %v1323 = vunpack.c.0.s8 %v1322
    %v1324 = vperm.slane %v1318, %v1323
    %v1326 = vunpack.c.l.s4 1934713408
    %v1327 = vunpack.c.0.s8 %v1326
    %v1328 = vperm.slane %v1320, %v1327
    %v1329 = vrot.slane %v1312, 4
    %v1330 = vsel %vm148, 0.0, %v1329
    %v1331 = vrot.slane %v1316, 4
    %v1332 = vsel %vm148, 0.0, %v1331
    %v1333 = vrot.slane %v1324, 4
    %v1334 = vsel %vm148, 0.0, %v1333
    %v1335 = vrot.slane %v1328, 4
    %v1336 = vsel %vm148, 0.0, %v1335
    %vm1337 = vcmask 254976
    %1338 = vst.msk [vmem:[#allocation10] sm:$0x3] %vm1337, %v1312
    %1339 = vst.msk [vmem:[#allocation10 + $0x2] sm:$0x3] %vm1337, %v1330
    %1340 = vst.msk [vmem:[#allocation10 + $0x4] sm:$0x3] %vm1337, %v1316
    %1341 = vst.msk [vmem:[#allocation10 + $0x6] sm:$0x3] %vm1337, %v1332
    %1342 = vst.msk [vmem:[#allocation10 + $0x8] sm:$0x3] %vm1337, %v1324
    %1343 = vst.msk [vmem:[#allocation10 + $0xa] sm:$0x3] %vm1337, %v1334
    %1344 = vst.msk [vmem:[#allocation10 + $0xc] sm:$0x3] %vm1337, %v1328
    %1345 = vst.msk [vmem:[#allocation10 + $0xe] sm:$0x3] %vm1337, %v1336
    // Predicated region
    $region90: #{tpu_custom_call.1} parent=1 // pred_check
      _
    $region91: #{tpu_custom_call.1} parent=1 // pred_check_branch
      %1347 = sbr.rel (0) target = $region93
    $region92: #{tpu_custom_call.1} parent=1 // pred_region
      %1349 = vsyncadd [#allocation4], 0
      %s1350 = sshll.u32 [#allocation10], 4
      %s1351 = int_to_ptr.vmem [resolvable:$true] %s1350
      %s1352 = sshll.u32 %s18, 4
      %s1353 = int_to_ptr.hbm [resolvable:$true] %s1352
      %1358 = dma.vmem_to_hbm [thread:$0]  %s1351, 256, %s1353, [#allocation4], 32, 32, 2
    $region93: #{tpu_custom_call.1} parent=1 // pred_fallthru
      _
    // Predicated region
    $region94: #{tpu_custom_call.1} parent=1 // pred_check
      _
    $region95: #{tpu_custom_call.1} parent=1 // pred_check_branch
      %1360 = sbr.rel (0) target = $region97
    $region96: #{tpu_custom_call.1} parent=1 // pred_region
      %1362 = dma.done [#allocation4], 256
    $region97: #{tpu_custom_call.1} parent=1 // pred_fallthru
      _
    %1363 = vsyncpa [#allocation3], 1
    %1364 = vsyncpa [#allocation6], 1
    %1365 = vsyncpa [#allocation9], 1
    %1366 = vsyncpa [#allocation4], 1

// kernel: tpu_custom_call.1
$region0: #{tpu_custom_call.1}
  #allocation0 [shape = 'u32[]', space=smem, size = 0x4, offset = 0x4, fixed_abs, tag = 'smem constant byte address 0x4 - core index']
  #allocation1 [shape = 'u32[72,128]{1,0:T(1,128)}', space=vmem, size = 0x9000, scoped, tag = 'internal scratch']
  %s0 = inlined_call_operand.hbm [shape: f32[8,2,32], index: 0, kind: input, shape index: {}]
  %s1 = inlined_call_operand.hbm [shape: f32[8,2,32], index: 1, kind: input, shape index: {}]
  %s2 = inlined_call_operand.vmem [shape: f32[32,32], index: 2, kind: input, shape index: {}]
  %s3 = inlined_call_operand.vmem [shape: f32[32,32], index: 3, kind: input, shape index: {}]
  %s4 = inlined_call_operand.vmem [shape: f32[32,32], index: 4, kind: input, shape index: {}]
  %s5 = inlined_call_operand.vmem [shape: f32[1,32], index: 5, kind: input, shape index: {}]
  %s6 = inlined_call_operand.vmem [shape: f32[1,32], index: 6, kind: input, shape index: {}]
  %s7 = inlined_call_operand.vmem [shape: f32[1,32], index: 7, kind: input, shape index: {}]
  %s8 = inlined_call_operand.hbm [shape: f32[32,32], index: 8, kind: input, shape index: {}]
  %s9 = inlined_call_operand.vmem [shape: f32[1,32], index: 9, kind: input, shape index: {}]
  %s10 = inlined_call_operand.vmem [shape: f32[1,32], index: 10, kind: input, shape index: {}]
  %s11 = inlined_call_operand.vmem [shape: f32[1,32], index: 11, kind: input, shape index: {}]
  %s12 = inlined_call_operand.hbm [shape: f32[32,64], index: 12, kind: input, shape index: {}]
  %s13 = inlined_call_operand.vmem [shape: f32[1,64], index: 13, kind: input, shape index: {}]
  %s14 = inlined_call_operand.vmem [shape: f32[64,32], index: 14, kind: input, shape index: {}]
  %s15 = inlined_call_operand.vmem [shape: f32[1,32], index: 15, kind: input, shape index: {}]
  %s16 = inlined_call_operand.vmem [shape: f32[1,32], index: 16, kind: input, shape index: {}]
  %s17 = inlined_call_operand.vmem [shape: f32[1,32], index: 17, kind: input, shape index: {}]
  %s18 = inlined_call_operand.hbm [shape: f32[8,2,32], index: 18, kind: output, shape index: {}]
  %s19 = sld [smem:[#allocation0]]
  $region98: #{tpu_custom_call.1} parent=0
    _
  %s21 = ssub.s32 1, %s19
  %s22 = scalar_select 0, %s21, %s19
  $region1: #{tpu_custom_call.1} parent=0
    #allocation2 [shape = 'u8[8192]{0}', space=vmem, size = 0x2000, scoped, tag = 'input window, operand 0, single buffered']
    #allocation3 [shape = 's32[1]{0}', space=sflag, size = 0x4, scoped, tag = 'scoped memory for tpu_custom_call.1']
    #allocation4 [shape = 's32[1]{0}', space=sflag, size = 0x4, scoped, tag = 'scoped memory for tpu_custom_call.1']
    #allocation5 [shape = 'u8[8192]{0}', space=vmem, size = 0x2000, scoped, tag = 'input window, operand 1, single buffered']
    #allocation6 [shape = 's32[1]{0}', space=sflag, size = 0x4, scoped, tag = 'scoped memory for tpu_custom_call.1']
    #allocation7 [shape = 'u8[16384]{0}', space=vmem, size = 0x4000, scoped, tag = 'input window, operand 8, single buffered']
    #allocation8 [shape = 'u8[16384]{0}', space=vmem, size = 0x4000, scoped, tag = 'input window, operand 12, single buffered']
    #allocation9 [shape = 's32[1]{0}', space=sflag, size = 0x4, scoped, tag = 'scoped memory for tpu_custom_call.1']
    #allocation10 [shape = 'u8[8192]{0}', space=vmem, size = 0x2000, scoped, tag = 'output window, operand 0, single buffered']
    %23 = vsyncpa [#allocation3], 0
    %24 = vsyncpa [#allocation6], 0
    %25 = vsyncpa [#allocation9], 0
    %26 = vsyncpa [#allocation4], 0
    // Predicated region
    $region2: #{tpu_custom_call.1} parent=1 // pred_check
      _
    $region3: #{tpu_custom_call.1} parent=1 // pred_check_branch
      %28 = sbr.rel (0) target = $region5
    $region4: #{tpu_custom_call.1} parent=1 // pred_region
      %30 = vsyncadd [#allocation3], 0
      %s31 = sshll.u32 %s0, 4
      %s32 = int_to_ptr.hbm [resolvable:$true] %s31
      %s33 = sshll.u32 [#allocation2], 4
      %s34 = int_to_ptr.vmem [resolvable:$true] %s33
      %39 = dma.hbm_to_vmem [thread:$0]  %s32, 256, %s34, [#allocation3], 32, 32, 2
    $region5: #{tpu_custom_call.1} parent=1 // pred_fallthru
      _
    // Predicated region
    $region6: #{tpu_custom_call.1} parent=1 // pred_check
      _
    $region7: #{tpu_custom_call.1} parent=1 // pred_check_branch
      %41 = sbr.rel (0) target = $region9
    $region8: #{tpu_custom_call.1} parent=1 // pred_region
      %43 = vsyncadd [#allocation6], 0
      %s44 = sshll.u32 %s1, 4
      %s45 = int_to_ptr.hbm [resolvable:$true] %s44
      %s46 = sshll.u32 [#allocation5], 4
      %s47 = int_to_ptr.vmem [resolvable:$true] %s46
      %52 = dma.hbm_to_vmem [thread:$0]  %s45, 256, %s47, [#allocation6], 32, 32, 2
    $region9: #{tpu_custom_call.1} parent=1 // pred_fallthru
      _
    // Predicated region
    $region10: #{tpu_custom_call.1} parent=1 // pred_check
      _
    $region11: #{tpu_custom_call.1} parent=1 // pred_check_branch
      %54 = sbr.rel (0) target = $region13
    $region12: #{tpu_custom_call.1} parent=1 // pred_region
      _
    $region13: #{tpu_custom_call.1} parent=1 // pred_fallthru
      _
    // Predicated region
    $region14: #{tpu_custom_call.1} parent=1 // pred_check
      _
    $region15: #{tpu_custom_call.1} parent=1 // pred_check_branch
      %56 = sbr.rel (0) target = $region17
    $region16: #{tpu_custom_call.1} parent=1 // pred_region
      _
    $region17: #{tpu_custom_call.1} parent=1 // pred_fallthru
      _
    // Predicated region
    $region18: #{tpu_custom_call.1} parent=1 // pred_check
      _
    $region19: #{tpu_custom_call.1} parent=1 // pred_check_branch
      %58 = sbr.rel (0) target = $region21
    $region20: #{tpu_custom_call.1} parent=1 // pred_region
      _
    $region21: #{tpu_custom_call.1} parent=1 // pred_fallthru
      _
    // Predicated region
    $region22: #{tpu_custom_call.1} parent=1 // pred_check
      _
    $region23: #{tpu_custom_call.1} parent=1 // pred_check_branch
      %60 = sbr.rel (0) target = $region25
    $region24: #{tpu_custom_call.1} parent=1 // pred_region
      _
    $region25: #{tpu_custom_call.1} parent=1 // pred_fallthru
      _
    // Predicated region
    $region26: #{tpu_custom_call.1} parent=1 // pred_check
      _
    $region27: #{tpu_custom_call.1} parent=1 // pred_check_branch
      %62 = sbr.rel (0) target = $region29
    $region28: #{tpu_custom_call.1} parent=1 // pred_region
      _
    $region29: #{tpu_custom_call.1} parent=1 // pred_fallthru
      _
    // Predicated region
    $region30: #{tpu_custom_call.1} parent=1 // pred_check
      _
    $region31: #{tpu_custom_call.1} parent=1 // pred_check_branch
      %64 = sbr.rel (0) target = $region33
    $region32: #{tpu_custom_call.1} parent=1 // pred_region
      _
    $region33: #{tpu_custom_call.1} parent=1 // pred_fallthru
      _
    // Predicated region
    $region34: #{tpu_custom_call.1} parent=1 // pred_check
      _
    $region35: #{tpu_custom_call.1} parent=1 // pred_check_branch
      %66 = sbr.rel (0) target = $region37
    $region36: #{tpu_custom_call.1} parent=1 // pred_region
      %68 = vsyncadd [#allocation6], 0
      %s69 = sshll.u32 %s8, 4
      %s70 = int_to_ptr.hbm [resolvable:$true] %s69
      %s71 = sshll.u32 [#allocation7], 4
      %s72 = int_to_ptr.vmem [resolvable:$true] %s71
      %77 = dma.hbm_to_vmem [thread:$0]  %s70, 512, %s72, [#allocation6], 128, 128, 8
    $region37: #{tpu_custom_call.1} parent=1 // pred_fallthru
      _
    // Predicated region
    $region38: #{tpu_custom_call.1} parent=1 // pred_check
      _
    $region39: #{tpu_custom_call.1} parent=1 // pred_check_branch
      %79 = sbr.rel (0) target = $region41
    $region40: #{tpu_custom_call.1} parent=1 // pred_region
      _
    $region41: #{tpu_custom_call.1} parent=1 // pred_fallthru
      _
    // Predicated region
    $region42: #{tpu_custom_call.1} parent=1 // pred_check
      _
    $region43: #{tpu_custom_call.1} parent=1 // pred_check_branch
      %81 = sbr.rel (0) target = $region45
    $region44: #{tpu_custom_call.1} parent=1 // pred_region
      _
    $region45: #{tpu_custom_call.1} parent=1 // pred_fallthru
      _
    // Predicated region
    $region46: #{tpu_custom_call.1} parent=1 // pred_check
      _
    $region47: #{tpu_custom_call.1} parent=1 // pred_check_branch
      %83 = sbr.rel (0) target = $region49
    $region48: #{tpu_custom_call.1} parent=1 // pred_region
      _
    $region49: #{tpu_custom_call.1} parent=1 // pred_fallthru
      _
    // Predicated region
    $region50: #{tpu_custom_call.1} parent=1 // pred_check
      _
    $region51: #{tpu_custom_call.1} parent=1 // pred_check_branch
      %85 = sbr.rel (0) target = $region53
    $region52: #{tpu_custom_call.1} parent=1 // pred_region
      %87 = vsyncadd [#allocation9], 0
      %s88 = sshll.u32 %s12, 4
      %s89 = int_to_ptr.hbm [resolvable:$true] %s88
      %s90 = sshll.u32 [#allocation8], 4
      %s91 = int_to_ptr.vmem [resolvable:$true] %s90
      %96 = dma.hbm_to_vmem [thread:$0]  %s89, 512, %s91, [#allocation9], 128, 128, 8
    $region53: #{tpu_custom_call.1} parent=1 // pred_fallthru
      _
    // Predicated region
    $region54: #{tpu_custom_call.1} parent=1 // pred_check
      _
    $region55: #{tpu_custom_call.1} parent=1 // pred_check_branch
      %98 = sbr.rel (0) target = $region57
    $region56: #{tpu_custom_call.1} parent=1 // pred_region
      _
    $region57: #{tpu_custom_call.1} parent=1 // pred_fallthru
      _
    // Predicated region
    $region58: #{tpu_custom_call.1} parent=1 // pred_check
      _
    $region59: #{tpu_custom_call.1} parent=1 // pred_check_branch
      %100 = sbr.rel (0) target = $region61
    $region60: #{tpu_custom_call.1} parent=1 // pred_region
      _
    $region61: #{tpu_custom_call.1} parent=1 // pred_fallthru
      _
    // Predicated region
    $region62: #{tpu_custom_call.1} parent=1 // pred_check
      _
    $region63: #{tpu_custom_call.1} parent=1 // pred_check_branch
      %102 = sbr.rel (0) target = $region65
    $region64: #{tpu_custom_call.1} parent=1 // pred_region
      _
    $region65: #{tpu_custom_call.1} parent=1 // pred_fallthru
      _
    // Predicated region
    $region66: #{tpu_custom_call.1} parent=1 // pred_check
      _
    $region67: #{tpu_custom_call.1} parent=1 // pred_check_branch
      %104 = sbr.rel (0) target = $region69
    $region68: #{tpu_custom_call.1} parent=1 // pred_region
      _
    $region69: #{tpu_custom_call.1} parent=1 // pred_fallthru
      _
    // Predicated region
    $region70: #{tpu_custom_call.1} parent=1 // pred_check
      _
    $region71: #{tpu_custom_call.1} parent=1 // pred_check_branch
      %106 = sbr.rel (0) target = $region73
    $region72: #{tpu_custom_call.1} parent=1 // pred_region
      _
    $region73: #{tpu_custom_call.1} parent=1 // pred_fallthru
      _
    // Predicated region
    $region74: #{tpu_custom_call.1} parent=1 // pred_check
      _
    $region75: #{tpu_custom_call.1} parent=1 // pred_check_branch
      %108 = sbr.rel (0) target = $region77
    $region76: #{tpu_custom_call.1} parent=1 // pred_region
      %110 = dma.done [#allocation3], 256
    $region77: #{tpu_custom_call.1} parent=1 // pred_fallthru
      _
    // Predicated region
    $region78: #{tpu_custom_call.1} parent=1 // pred_check
      _
    $region79: #{tpu_custom_call.1} parent=1 // pred_check_branch
      %112 = sbr.rel (0) target = $region81
    $region80: #{tpu_custom_call.1} parent=1 // pred_region
      %114 = dma.done [#allocation6], 256
    $region81: #{tpu_custom_call.1} parent=1 // pred_fallthru
      _
    // Predicated region
    $region82: #{tpu_custom_call.1} parent=1 // pred_check
      _
    $region83: #{tpu_custom_call.1} parent=1 // pred_check_branch
      %116 = sbr.rel (0) target = $region85
    $region84: #{tpu_custom_call.1} parent=1 // pred_region
      %118 = dma.done [#allocation6], 512
    $region85: #{tpu_custom_call.1} parent=1 // pred_fallthru
      _
    // Predicated region
    $region86: #{tpu_custom_call.1} parent=1 // pred_check
      _
    $region87: #{tpu_custom_call.1} parent=1 // pred_check_branch
      %120 = sbr.rel (0) target = $region89
    $region88: #{tpu_custom_call.1} parent=1 // pred_region
      %122 = dma.done [#allocation9], 512
    $region89: #{tpu_custom_call.1} parent=1 // pred_fallthru
      _
    %v123 = vld [vmem:[#allocation2] sm:$0x3]
    %v124 = vld [vmem:[#allocation2 + $0x2] sm:$0x3]
    %v125 = vld [vmem:[#allocation2 + $0x4] sm:$0x3]
    %v126 = vld [vmem:[#allocation2 + $0x6] sm:$0x3]
    %v127 = vld [vmem:[#allocation2 + $0x8] sm:$0x3]
    %v128 = vld [vmem:[#allocation2 + $0xa] sm:$0x3]
    %v129 = vld [vmem:[#allocation2 + $0xc] sm:$0x3]
    %v130 = vld [vmem:[#allocation2 + $0xe] sm:$0x3]
    %v131 = vld [vmem:[#allocation5] sm:$0x3]
    %v132 = vld [vmem:[#allocation5 + $0x2] sm:$0x3]
    %v133 = vld [vmem:[#allocation5 + $0x4] sm:$0x3]
    %v134 = vld [vmem:[#allocation5 + $0x6] sm:$0x3]
    %v135 = vld [vmem:[#allocation5 + $0x8] sm:$0x3]
    %v136 = vld [vmem:[#allocation5 + $0xa] sm:$0x3]
    %v137 = vld [vmem:[#allocation5 + $0xc] sm:$0x3]
    %v138 = vld [vmem:[#allocation5 + $0xe] sm:$0x3]
    %v139 = vadd.f32 %v123, %v131
    %v140 = vadd.f32 %v124, %v132
    %v141 = vadd.f32 %v125, %v133
    %v142 = vadd.f32 %v126, %v134
    %v143 = vadd.f32 %v127, %v135
    %v144 = vadd.f32 %v128, %v136
    %v145 = vadd.f32 %v129, %v137
    %v146 = vadd.f32 %v130, %v138
    %v147 = vrot.slane %v125, 4
    %vm148 = vcmask 1047556
    %v149 = vsel %vm148, %v147, %v123
    %v151 = vunpack.c.l.s4 1983009808
    %v152 = vunpack.c.0.s8 %v151
    %v153 = vperm.slane %v149, %v152
    %v154 = vrot.slane %v126, 4
    %v155 = vsel %vm148, %v154, %v124
    %v157 = vunpack.c.l.s4 1983009808
    %v158 = vunpack.c.0.s8 %v157
    %v159 = vperm.slane %v155, %v158
    %v160 = vrot.slane %v129, 4
    %v161 = vsel %vm148, %v160, %v127
    %v163 = vunpack.c.l.s4 1983009808
    %v164 = vunpack.c.0.s8 %v163
    %v165 = vperm.slane %v161, %v164
    %v166 = vrot.slane %v130, 4
    %v167 = vsel %vm148, %v166, %v128
    %v169 = vunpack.c.l.s4 1983009808
    %v170 = vunpack.c.0.s8 %v169
    %v171 = vperm.slane %v167, %v170
    %v172 = vrot.slane %v159, 4
    %v173 = vsel %vm148, %v172, %v153
    %v175 = vunpack.c.l.s4 1934713408
    %v176 = vunpack.c.0.s8 %v175
    %v177 = vperm.slane %v173, %v176
    %v178 = vrot.slane %v171, 4
    %v179 = vsel %vm148, %v178, %v165
    %v181 = vunpack.c.l.s4 1934713408
    %v182 = vunpack.c.0.s8 %v181
    %v183 = vperm.slane %v179, %v182
    %v184 = vrot.slane %v183, 4
    %v185 = vsel %vm148, %v184, %v177
    %v186 = vrot.slane %v177, 4
    %v187 = vsel %vm148, %v183, %v186
    %v188 = vrot.slane %v141, 4
    %v189 = vsel %vm148, %v188, %v139
    %v191 = vunpack.c.l.s4 1983009808
    %v192 = vunpack.c.0.s8 %v191
    %v193 = vperm.slane %v189, %v192
    %v194 = vrot.slane %v142, 4
    %v195 = vsel %vm148, %v194, %v140
    %v197 = vunpack.c.l.s4 1983009808
    %v198 = vunpack.c.0.s8 %v197
    %v199 = vperm.slane %v195, %v198
    %v200 = vrot.slane %v145, 4
    %v201 = vsel %vm148, %v200, %v143
    %v203 = vunpack.c.l.s4 1983009808
    %v204 = vunpack.c.0.s8 %v203
    %v205 = vperm.slane %v201, %v204
    %v206 = vrot.slane %v146, 4
    %v207 = vsel %vm148, %v206, %v144
    %v209 = vunpack.c.l.s4 1983009808
    %v210 = vunpack.c.0.s8 %v209
    %v211 = vperm.slane %v207, %v210
    %v212 = vrot.slane %v199, 4
    %v213 = vsel %vm148, %v212, %v193
    %v215 = vunpack.c.l.s4 1934713408
    %v216 = vunpack.c.0.s8 %v215
    %v217 = vperm.slane %v213, %v216
    %v218 = vrot.slane %v211, 4
    %v219 = vsel %vm148, %v218, %v205
    %v221 = vunpack.c.l.s4 1934713408
    %v222 = vunpack.c.0.s8 %v221
    %v223 = vperm.slane %v219, %v222
    %v224 = vrot.slane %v223, 4
    %v225 = vsel %vm148, %v224, %v217
    %v226 = vrot.slane %v217, 4
    %v227 = vsel %vm148, %v223, %v226
    %v228 = vld [vmem:[%s2] sm:$0xff]
    %v229 = vld [vmem:[%s2 + $0x8] sm:$0xff]
    %v230 = vld [vmem:[%s2 + $0x10] sm:$0xff]
    %v231 = vld [vmem:[%s2 + $0x18] sm:$0xff]
    %v232 = vld [vmem:[%s5] sm:$0x1]
    %v234 = vperm.slane %v232, 0
    %vm236 = vcmask 261120
    %v238 = vsel %vm236, %v225, 0
    %v241 = vsel %vm236, %v227, 0
    %243 = vmatpush.msra.mxu0 0.0
    %244 = vmatpush.msra.mxu0 0.0
    %245 = vmatpush.msra.mxu0 0.0
    %246 = vmatpush.msra.mxu0 0.0
    %247 = vmatpush.msra.mxu0 0.0
    %248 = vmatpush.msra.mxu0 0.0
    %249 = vmatpush.msra.mxu0 0.0
    %250 = vmatpush.msra.mxu0 0.0
    %251 = vmatpush.msra.mxu0 0.0
    %252 = vmatpush.msra.mxu0 0.0
    %253 = vmatpush.msra.mxu0 0.0
    %254 = vmatpush.msra.mxu0 0.0
    %255 = vmatpush.msra.mxu0 %v231
    %256 = vmatpush.msra.mxu0 %v230
    %257 = vmatpush.msra.mxu0 %v229
    %258 = vmatpush.msra.mxu0 %v228
    %259 = vmatmul.f32.gmra.mxu0 %v238
    %v260 = vpop.f32.mrf.mxu0
    %v261 = vadd.f32 %v234, %v260
    %262 = vmatmul.f32.gmra.mxu0 %v241
    %v263 = vpop.f32.mrf.mxu0
    %v264 = vadd.f32 %v234, %v263
    %265 = vdwg.mxu0
    %v266 = vld [vmem:[%s3] sm:$0xff]
    %v267 = vld [vmem:[%s3 + $0x8] sm:$0xff]
    %v268 = vld [vmem:[%s3 + $0x10] sm:$0xff]
    %v269 = vld [vmem:[%s3 + $0x18] sm:$0xff]
    %v270 = vld [vmem:[%s6] sm:$0x1]
    %v272 = vperm.slane %v270, 0
    %274 = vmatpush.msra.mxu0 0.0
    %275 = vmatpush.msra.mxu0 0.0
    %276 = vmatpush.msra.mxu0 0.0
    %277 = vmatpush.msra.mxu0 0.0
    %278 = vmatpush.msra.mxu0 0.0
    %279 = vmatpush.msra.mxu0 0.0
    %280 = vmatpush.msra.mxu0 0.0
    %281 = vmatpush.msra.mxu0 0.0
    %282 = vmatpush.msra.mxu0 0.0
    %283 = vmatpush.msra.mxu0 0.0
    %284 = vmatpush.msra.mxu0 0.0
    %285 = vmatpush.msra.mxu0 0.0
    %286 = vmatpush.msra.mxu0 %v269
    %287 = vmatpush.msra.mxu0 %v268
    %288 = vmatpush.msra.mxu0 %v267
    %289 = vmatpush.msra.mxu0 %v266
    %290 = vmatmul.f32.gmra.mxu0 %v238
    %v291 = vpop.f32.mrf.mxu0
    %v292 = vadd.f32 %v272, %v291
    %293 = vmatmul.f32.gmra.mxu0 %v241
    %v294 = vpop.f32.mrf.mxu0
    %v295 = vadd.f32 %v272, %v294
    %296 = vdwg.mxu0
    %v297 = vld [vmem:[%s4] sm:$0xff]
    %v298 = vld [vmem:[%s4 + $0x8] sm:$0xff]
    %v299 = vld [vmem:[%s4 + $0x10] sm:$0xff]
    %v300 = vld [vmem:[%s4 + $0x18] sm:$0xff]
    %v301 = vld [vmem:[%s7] sm:$0x1]
    %v303 = vperm.slane %v301, 0
    %v306 = vsel %vm236, %v185, 0
    %v309 = vsel %vm236, %v187, 0
    %311 = vmatpush.msra.mxu0 0.0
    %312 = vmatpush.msra.mxu0 0.0
    %313 = vmatpush.msra.mxu0 0.0
    %314 = vmatpush.msra.mxu0 0.0
    %315 = vmatpush.msra.mxu0 0.0
    %316 = vmatpush.msra.mxu0 0.0
    %317 = vmatpush.msra.mxu0 0.0
    %318 = vmatpush.msra.mxu0 0.0
    %319 = vmatpush.msra.mxu0 0.0
    %320 = vmatpush.msra.mxu0 0.0
    %321 = vmatpush.msra.mxu0 0.0
    %322 = vmatpush.msra.mxu0 0.0
    %323 = vmatpush.msra.mxu0 %v300
    %324 = vmatpush.msra.mxu0 %v299
    %325 = vmatpush.msra.mxu0 %v298
    %326 = vmatpush.msra.mxu0 %v297
    %327 = vmatmul.f32.gmra.mxu0 %v306
    %v328 = vpop.f32.mrf.mxu0
    %v329 = vadd.f32 %v303, %v328
    %330 = vmatmul.f32.gmra.mxu0 %v309
    %v331 = vpop.f32.mrf.mxu0
    %v332 = vadd.f32 %v303, %v331
    %333 = vdwg.mxu0
    %336 = vrot.lane.b32.xlu0 %v261, 120
    %v337 = vpop.permute.xlu0 %336
    %338 = vrot.lane.b32.xlu0 %v264, 120
    %v339 = vpop.permute.xlu0 %338
    %340 = vrot.lane.b32.xlu0 %v261, 112
    %v341 = vpop.permute.xlu0 %340
    %342 = vrot.lane.b32.xlu0 %v264, 112
    %v343 = vpop.permute.xlu0 %342
    %344 = vrot.lane.b32.xlu0 %v261, 104
    %v345 = vpop.permute.xlu0 %344
    %346 = vrot.lane.b32.xlu0 %v264, 104
    %v347 = vpop.permute.xlu0 %346
    %350 = vrot.lane.b32.xlu0 %v292, 120
    %v351 = vpop.permute.xlu0 %350
    %352 = vrot.lane.b32.xlu0 %v295, 120
    %v353 = vpop.permute.xlu0 %352
    %354 = vrot.lane.b32.xlu0 %v292, 112
    %v355 = vpop.permute.xlu0 %354
    %356 = vrot.lane.b32.xlu0 %v295, 112
    %v357 = vpop.permute.xlu0 %356
    %358 = vrot.lane.b32.xlu0 %v292, 104
    %v359 = vpop.permute.xlu0 %358
    %360 = vrot.lane.b32.xlu0 %v295, 104
    %v361 = vpop.permute.xlu0 %360
    %364 = vrot.lane.b32.xlu0 %v329, 120
    %v365 = vpop.permute.xlu0 %364
    %366 = vrot.lane.b32.xlu0 %v332, 120
    %v367 = vpop.permute.xlu0 %366
    %370 = vrot.lane.b32.xlu0 %v329, 112
    %v371 = vpop.permute.xlu0 %370
    %372 = vrot.lane.b32.xlu0 %v332, 112
    %v373 = vpop.permute.xlu0 %372
    %376 = vrot.lane.b32.xlu0 %v329, 104
    %v377 = vpop.permute.xlu0 %376
    %378 = vrot.lane.b32.xlu0 %v332, 104
    %v379 = vpop.permute.xlu0 %378
    %vm382 = vcmask 64512
    %v383 = vsel %vm382, %v261, 0
    %v385 = vsel %vm382, %v292, 0
    %387 = vmatpush.xpose.msra.mxu0 0.0
    %388 = vmatpush.xpose.msra.mxu0 0.0
    %389 = vmatpush.xpose.msra.mxu0 0.0
    %390 = vmatpush.xpose.msra.mxu0 0.0
    %391 = vmatpush.xpose.msra.mxu0 0.0
    %392 = vmatpush.xpose.msra.mxu0 0.0
    %393 = vmatpush.xpose.msra.mxu0 0.0
    %394 = vmatpush.xpose.msra.mxu0 0.0
    %395 = vmatpush.xpose.msra.mxu0 0.0
    %396 = vmatpush.xpose.msra.mxu0 0.0
    %397 = vmatpush.xpose.msra.mxu0 0.0
    %398 = vmatpush.xpose.msra.mxu0 0.0
    %399 = vmatpush.xpose.msra.mxu0 0.0
    %400 = vmatpush.xpose.msra.mxu0 0.0
    %401 = vmatpush.xpose.msra.mxu0 0.0
    %402 = vmatpush.xpose.msra.mxu0 %v385
    %403 = vmatmul.f32.gmra.mxu0 %v383
    %v404 = vpop.f32.mrf.mxu0
    %v405 = vadd.f32 0.0, %v404
    %406 = vdwg.mxu0
    %v407 = vsel %vm382, %v264, 0
    %v409 = vsel %vm382, %v295, 0
    %411 = vmatpush.xpose.msra.mxu0 0.0
    %412 = vmatpush.xpose.msra.mxu0 0.0
    %413 = vmatpush.xpose.msra.mxu0 0.0
    %414 = vmatpush.xpose.msra.mxu0 0.0
    %415 = vmatpush.xpose.msra.mxu0 0.0
    %416 = vmatpush.xpose.msra.mxu0 0.0
    %417 = vmatpush.xpose.msra.mxu0 0.0
    %418 = vmatpush.xpose.msra.mxu0 0.0
    %419 = vmatpush.xpose.msra.mxu0 0.0
    %420 = vmatpush.xpose.msra.mxu0 0.0
    %421 = vmatpush.xpose.msra.mxu0 0.0
    %422 = vmatpush.xpose.msra.mxu0 0.0
    %423 = vmatpush.xpose.msra.mxu0 0.0
    %424 = vmatpush.xpose.msra.mxu0 0.0
    %425 = vmatpush.xpose.msra.mxu0 0.0
    %426 = vmatpush.xpose.msra.mxu0 %v409
    %427 = vmatmul.f32.gmra.mxu0 %v407
    %v428 = vpop.f32.mrf.mxu0
    %v429 = vadd.f32 0.0, %v428
    %430 = vdwg.mxu0
    %v431 = vsel %vm382, %v337, 0
    %v433 = vsel %vm382, %v351, 0
    %435 = vmatpush.xpose.msra.mxu0 0.0
    %436 = vmatpush.xpose.msra.mxu0 0.0
    %437 = vmatpush.xpose.msra.mxu0 0.0
    %438 = vmatpush.xpose.msra.mxu0 0.0
    %439 = vmatpush.xpose.msra.mxu0 0.0
    %440 = vmatpush.xpose.msra.mxu0 0.0
    %441 = vmatpush.xpose.msra.mxu0 0.0
    %442 = vmatpush.xpose.msra.mxu0 0.0
    %443 = vmatpush.xpose.msra.mxu0 0.0
    %444 = vmatpush.xpose.msra.mxu0 0.0
    %445 = vmatpush.xpose.msra.mxu0 0.0
    %446 = vmatpush.xpose.msra.mxu0 0.0
    %447 = vmatpush.xpose.msra.mxu0 0.0
    %448 = vmatpush.xpose.msra.mxu0 0.0
    %449 = vmatpush.xpose.msra.mxu0 0.0
    %450 = vmatpush.xpose.msra.mxu0 %v433
    %451 = vmatmul.f32.gmra.mxu0 %v431
    %v452 = vpop.f32.mrf.mxu0
    %v453 = vadd.f32 0.0, %v452
    %454 = vdwg.mxu0
    %v455 = vsel %vm382, %v339, 0
    %v457 = vsel %vm382, %v353, 0
    %459 = vmatpush.xpose.msra.mxu0 0.0
    %460 = vmatpush.xpose.msra.mxu0 0.0
    %461 = vmatpush.xpose.msra.mxu0 0.0
    %462 = vmatpush.xpose.msra.mxu0 0.0
    %463 = vmatpush.xpose.msra.mxu0 0.0
    %464 = vmatpush.xpose.msra.mxu0 0.0
    %465 = vmatpush.xpose.msra.mxu0 0.0
    %466 = vmatpush.xpose.msra.mxu0 0.0
    %467 = vmatpush.xpose.msra.mxu0 0.0
    %468 = vmatpush.xpose.msra.mxu0 0.0
    %469 = vmatpush.xpose.msra.mxu0 0.0
    %470 = vmatpush.xpose.msra.mxu0 0.0
    %471 = vmatpush.xpose.msra.mxu0 0.0
    %472 = vmatpush.xpose.msra.mxu0 0.0
    %473 = vmatpush.xpose.msra.mxu0 0.0
    %474 = vmatpush.xpose.msra.mxu0 %v457
    %475 = vmatmul.f32.gmra.mxu0 %v455
    %v476 = vpop.f32.mrf.mxu0
    %v477 = vadd.f32 0.0, %v476
    %478 = vdwg.mxu0
    %v479 = vsel %vm382, %v341, 0
    %v481 = vsel %vm382, %v355, 0
    %483 = vmatpush.xpose.msra.mxu0 0.0
    %484 = vmatpush.xpose.msra.mxu0 0.0
    %485 = vmatpush.xpose.msra.mxu0 0.0
    %486 = vmatpush.xpose.msra.mxu0 0.0
    %487 = vmatpush.xpose.msra.mxu0 0.0
    %488 = vmatpush.xpose.msra.mxu0 0.0
    %489 = vmatpush.xpose.msra.mxu0 0.0
    %490 = vmatpush.xpose.msra.mxu0 0.0
    %491 = vmatpush.xpose.msra.mxu0 0.0
    %492 = vmatpush.xpose.msra.mxu0 0.0
    %493 = vmatpush.xpose.msra.mxu0 0.0
    %494 = vmatpush.xpose.msra.mxu0 0.0
    %495 = vmatpush.xpose.msra.mxu0 0.0
    %496 = vmatpush.xpose.msra.mxu0 0.0
    %497 = vmatpush.xpose.msra.mxu0 0.0
    %498 = vmatpush.xpose.msra.mxu0 %v481
    %499 = vmatmul.f32.gmra.mxu0 %v479
    %v500 = vpop.f32.mrf.mxu0
    %v501 = vadd.f32 0.0, %v500
    %502 = vdwg.mxu0
    %v503 = vsel %vm382, %v343, 0
    %v505 = vsel %vm382, %v357, 0
    %507 = vmatpush.xpose.msra.mxu0 0.0
    %508 = vmatpush.xpose.msra.mxu0 0.0
    %509 = vmatpush.xpose.msra.mxu0 0.0
    %510 = vmatpush.xpose.msra.mxu0 0.0
    %511 = vmatpush.xpose.msra.mxu0 0.0
    %512 = vmatpush.xpose.msra.mxu0 0.0
    %513 = vmatpush.xpose.msra.mxu0 0.0
    %514 = vmatpush.xpose.msra.mxu0 0.0
    %515 = vmatpush.xpose.msra.mxu0 0.0
    %516 = vmatpush.xpose.msra.mxu0 0.0
    %517 = vmatpush.xpose.msra.mxu0 0.0
    %518 = vmatpush.xpose.msra.mxu0 0.0
    %519 = vmatpush.xpose.msra.mxu0 0.0
    %520 = vmatpush.xpose.msra.mxu0 0.0
    %521 = vmatpush.xpose.msra.mxu0 0.0
    %522 = vmatpush.xpose.msra.mxu0 %v505
    %523 = vmatmul.f32.gmra.mxu0 %v503
    %v524 = vpop.f32.mrf.mxu0
    %v525 = vadd.f32 0.0, %v524
    %526 = vdwg.mxu0
    %v527 = vsel %vm382, %v345, 0
    %v529 = vsel %vm382, %v359, 0
    %531 = vmatpush.xpose.msra.mxu0 0.0
    %532 = vmatpush.xpose.msra.mxu0 0.0
    %533 = vmatpush.xpose.msra.mxu0 0.0
    %534 = vmatpush.xpose.msra.mxu0 0.0
    %535 = vmatpush.xpose.msra.mxu0 0.0
    %536 = vmatpush.xpose.msra.mxu0 0.0
    %537 = vmatpush.xpose.msra.mxu0 0.0
    %538 = vmatpush.xpose.msra.mxu0 0.0
    %539 = vmatpush.xpose.msra.mxu0 0.0
    %540 = vmatpush.xpose.msra.mxu0 0.0
    %541 = vmatpush.xpose.msra.mxu0 0.0
    %542 = vmatpush.xpose.msra.mxu0 0.0
    %543 = vmatpush.xpose.msra.mxu0 0.0
    %544 = vmatpush.xpose.msra.mxu0 0.0
    %545 = vmatpush.xpose.msra.mxu0 0.0
    %546 = vmatpush.xpose.msra.mxu0 %v529
    %547 = vmatmul.f32.gmra.mxu0 %v527
    %v548 = vpop.f32.mrf.mxu0
    %v549 = vadd.f32 0.0, %v548
    %550 = vdwg.mxu0
    %v551 = vsel %vm382, %v347, 0
    %v553 = vsel %vm382, %v361, 0
    %555 = vmatpush.xpose.msra.mxu0 0.0
    %556 = vmatpush.xpose.msra.mxu0 0.0
    %557 = vmatpush.xpose.msra.mxu0 0.0
    %558 = vmatpush.xpose.msra.mxu0 0.0
    %559 = vmatpush.xpose.msra.mxu0 0.0
    %560 = vmatpush.xpose.msra.mxu0 0.0
    %561 = vmatpush.xpose.msra.mxu0 0.0
    %562 = vmatpush.xpose.msra.mxu0 0.0
    %563 = vmatpush.xpose.msra.mxu0 0.0
    %564 = vmatpush.xpose.msra.mxu0 0.0
    %565 = vmatpush.xpose.msra.mxu0 0.0
    %566 = vmatpush.xpose.msra.mxu0 0.0
    %567 = vmatpush.xpose.msra.mxu0 0.0
    %568 = vmatpush.xpose.msra.mxu0 0.0
    %569 = vmatpush.xpose.msra.mxu0 0.0
    %570 = vmatpush.xpose.msra.mxu0 %v553
    %571 = vmatmul.f32.gmra.mxu0 %v551
    %v572 = vpop.f32.mrf.mxu0
    %v573 = vadd.f32 0.0, %v572
    %574 = vdwg.mxu0
    %v575 = vsel %vm382, %v405, -inf
    %576 = vmax.xlane.f32.xlu0 %v575
    %v577 = vpop.xlane.xlu0 %576
    %v578 = vsel %vm382, %v429, -inf
    %579 = vmax.xlane.f32.xlu0 %v578
    %v580 = vpop.xlane.xlu0 %579
    %v581 = vsel %vm382, %v453, -inf
    %582 = vmax.xlane.f32.xlu0 %v581
    %v583 = vpop.xlane.xlu0 %582
    %v584 = vsel %vm382, %v477, -inf
    %585 = vmax.xlane.f32.xlu0 %v584
    %v586 = vpop.xlane.xlu0 %585
    %v587 = vsel %vm382, %v501, -inf
    %588 = vmax.xlane.f32.xlu0 %v587
    %v589 = vpop.xlane.xlu0 %588
    %v590 = vsel %vm382, %v525, -inf
    %591 = vmax.xlane.f32.xlu0 %v590
    %v592 = vpop.xlane.xlu0 %591
    %v593 = vsel %vm382, %v549, -inf
    %594 = vmax.xlane.f32.xlu0 %v593
    %v595 = vpop.xlane.xlu0 %594
    %v596 = vsel %vm382, %v573, -inf
    %597 = vmax.xlane.f32.xlu0 %v596
    %v598 = vpop.xlane.xlu0 %597
    %v599 = vsub.f32 %v405, %v577
    %v600 = vsub.f32 %v429, %v580
    %v601 = vsub.f32 %v453, %v583
    %v602 = vsub.f32 %v477, %v586
    %v603 = vsub.f32 %v501, %v589
    %v604 = vsub.f32 %v525, %v592
    %v605 = vsub.f32 %v549, %v595
    %v606 = vsub.f32 %v573, %v598
    %v607 = vmul.f32 %v599, 1.442695
    %v608 = vpow.pop %v607
    %v609 = vmul.f32 %v600, 1.442695
    %v610 = vpow.pop %v609
    %v611 = vmul.f32 %v601, 1.442695
    %v612 = vpow.pop %v611
    %v613 = vmul.f32 %v602, 1.442695
    %v614 = vpow.pop %v613
    %v615 = vmul.f32 %v603, 1.442695
    %v616 = vpow.pop %v615
    %v617 = vmul.f32 %v604, 1.442695
    %v618 = vpow.pop %v617
    %v619 = vmul.f32 %v605, 1.442695
    %v620 = vpow.pop %v619
    %v621 = vmul.f32 %v606, 1.442695
    %v622 = vpow.pop %v621
    %v623 = vsel %vm382, %v608, 0.0
    %624 = vadd.xlane.f32.xlu0 %v623
    %v625 = vpop.xlane.xlu0 %624
    %v626 = vsel %vm382, %v610, 0.0
    %627 = vadd.xlane.f32.xlu0 %v626
    %v628 = vpop.xlane.xlu0 %627
    %v629 = vsel %vm382, %v612, 0.0
    %630 = vadd.xlane.f32.xlu0 %v629
    %v631 = vpop.xlane.xlu0 %630
    %v632 = vsel %vm382, %v614, 0.0
    %633 = vadd.xlane.f32.xlu0 %v632
    %v634 = vpop.xlane.xlu0 %633
    %v635 = vsel %vm382, %v616, 0.0
    %636 = vadd.xlane.f32.xlu0 %v635
    %v637 = vpop.xlane.xlu0 %636
    %v638 = vsel %vm382, %v618, 0.0
    %639 = vadd.xlane.f32.xlu0 %v638
    %v640 = vpop.xlane.xlu0 %639
    %v641 = vsel %vm382, %v620, 0.0
    %642 = vadd.xlane.f32.xlu0 %v641
    %v643 = vpop.xlane.xlu0 %642
    %v644 = vsel %vm382, %v622, 0.0
    %645 = vadd.xlane.f32.xlu0 %v644
    %v646 = vpop.xlane.xlu0 %645
    %v647 = vrcp.pop %v625
    %v648 = vmul.f32 %v625, %v647
    %v649 = vsub.f32 1.0, %v648
    %v650 = vmul.f32 %v647, %v649
    %v651 = vadd.f32 %v647, %v650
    %vm652 = vweird.f32 %v625
    %vm653 = vweird.f32 %v647
    %vm654 = vmor %vm652, %vm653
    %v655 = vsel %vm654, %v647, %v651
    %v656 = vand.u32 2147483647, %v625
    %vm657 = vcmp.eq.f32.partialorder %v656, 8.507059e+37
    %v658 = vand.u32 %v625, 2147483648
    %v659 = vor.u32 1.1754944e-38, %v658
    %v660 = vsel %vm657, %v659, %v655
    %v661 = vrcp.pop %v628
    %v662 = vmul.f32 %v628, %v661
    %v663 = vsub.f32 1.0, %v662
    %v664 = vmul.f32 %v661, %v663
    %v665 = vadd.f32 %v661, %v664
    %vm666 = vweird.f32 %v628
    %vm667 = vweird.f32 %v661
    %vm668 = vmor %vm666, %vm667
    %v669 = vsel %vm668, %v661, %v665
    %v670 = vand.u32 2147483647, %v628
    %vm671 = vcmp.eq.f32.partialorder %v670, 8.507059e+37
    %v672 = vand.u32 %v628, 2147483648
    %v673 = vor.u32 1.1754944e-38, %v672
    %v674 = vsel %vm671, %v673, %v669
    %v675 = vrcp.pop %v631
    %v676 = vmul.f32 %v631, %v675
    %v677 = vsub.f32 1.0, %v676
    %v678 = vmul.f32 %v675, %v677
    %v679 = vadd.f32 %v675, %v678
    %vm680 = vweird.f32 %v631
    %vm681 = vweird.f32 %v675
    %vm682 = vmor %vm680, %vm681
    %v683 = vsel %vm682, %v675, %v679
    %v684 = vand.u32 2147483647, %v631
    %vm685 = vcmp.eq.f32.partialorder %v684, 8.507059e+37
    %v686 = vand.u32 %v631, 2147483648
    %v687 = vor.u32 1.1754944e-38, %v686
    %v688 = vsel %vm685, %v687, %v683
    %v689 = vrcp.pop %v634
    %v690 = vmul.f32 %v634, %v689
    %v691 = vsub.f32 1.0, %v690
    %v692 = vmul.f32 %v689, %v691
    %v693 = vadd.f32 %v689, %v692
    %vm694 = vweird.f32 %v634
    %vm695 = vweird.f32 %v689
    %vm696 = vmor %vm694, %vm695
    %v697 = vsel %vm696, %v689, %v693
    %v698 = vand.u32 2147483647, %v634
    %vm699 = vcmp.eq.f32.partialorder %v698, 8.507059e+37
    %v700 = vand.u32 %v634, 2147483648
    %v701 = vor.u32 1.1754944e-38, %v700
    %v702 = vsel %vm699, %v701, %v697
    %v703 = vrcp.pop %v637
    %v704 = vmul.f32 %v637, %v703
    %v705 = vsub.f32 1.0, %v704
    %v706 = vmul.f32 %v703, %v705
    %v707 = vadd.f32 %v703, %v706
    %vm708 = vweird.f32 %v637
    %vm709 = vweird.f32 %v703
    %vm710 = vmor %vm708, %vm709
    %v711 = vsel %vm710, %v703, %v707
    %v712 = vand.u32 2147483647, %v637
    %vm713 = vcmp.eq.f32.partialorder %v712, 8.507059e+37
    %v714 = vand.u32 %v637, 2147483648
    %v715 = vor.u32 1.1754944e-38, %v714
    %v716 = vsel %vm713, %v715, %v711
    %v717 = vrcp.pop %v640
    %v718 = vmul.f32 %v640, %v717
    %v719 = vsub.f32 1.0, %v718
    %v720 = vmul.f32 %v717, %v719
    %v721 = vadd.f32 %v717, %v720
    %vm722 = vweird.f32 %v640
    %vm723 = vweird.f32 %v717
    %vm724 = vmor %vm722, %vm723
    %v725 = vsel %vm724, %v717, %v721
    %v726 = vand.u32 2147483647, %v640
    %vm727 = vcmp.eq.f32.partialorder %v726, 8.507059e+37
    %v728 = vand.u32 %v640, 2147483648
    %v729 = vor.u32 1.1754944e-38, %v728
    %v730 = vsel %vm727, %v729, %v725
    %v731 = vrcp.pop %v643
    %v732 = vmul.f32 %v643, %v731
    %v733 = vsub.f32 1.0, %v732
    %v734 = vmul.f32 %v731, %v733
    %v735 = vadd.f32 %v731, %v734
    %vm736 = vweird.f32 %v643
    %vm737 = vweird.f32 %v731
    %vm738 = vmor %vm736, %vm737
    %v739 = vsel %vm738, %v731, %v735
    %v740 = vand.u32 2147483647, %v643
    %vm741 = vcmp.eq.f32.partialorder %v740, 8.507059e+37
    %v742 = vand.u32 %v643, 2147483648
    %v743 = vor.u32 1.1754944e-38, %v742
    %v744 = vsel %vm741, %v743, %v739
    %v745 = vrcp.pop %v646
    %v746 = vmul.f32 %v646, %v745
    %v747 = vsub.f32 1.0, %v746
    %v748 = vmul.f32 %v745, %v747
    %v749 = vadd.f32 %v745, %v748
    %vm750 = vweird.f32 %v646
    %vm751 = vweird.f32 %v745
    %vm752 = vmor %vm750, %vm751
    %v753 = vsel %vm752, %v745, %v749
    %v754 = vand.u32 2147483647, %v646
    %vm755 = vcmp.eq.f32.partialorder %v754, 8.507059e+37
    %v756 = vand.u32 %v646, 2147483648
    %v757 = vor.u32 1.1754944e-38, %v756
    %v758 = vsel %vm755, %v757, %v753
    %v759 = vmul.f32 %v608, %v660
    %v760 = vmul.f32 %v610, %v674
    %v761 = vmul.f32 %v612, %v688
    %v762 = vmul.f32 %v614, %v702
    %v763 = vmul.f32 %v616, %v716
    %v764 = vmul.f32 %v618, %v730
    %v765 = vmul.f32 %v620, %v744
    %v766 = vmul.f32 %v622, %v758
    %v768 = vsel %vm382, %v759, 0
    %770 = vmatpush.msra.mxu0 0.0
    %771 = vmatpush.msra.mxu0 0.0
    %772 = vmatpush.msra.mxu0 0.0
    %773 = vmatpush.msra.mxu0 0.0
    %774 = vmatpush.msra.mxu0 0.0
    %775 = vmatpush.msra.mxu0 0.0
    %776 = vmatpush.msra.mxu0 0.0
    %777 = vmatpush.msra.mxu0 0.0
    %778 = vmatpush.msra.mxu0 0.0
    %779 = vmatpush.msra.mxu0 0.0
    %780 = vmatpush.msra.mxu0 0.0
    %781 = vmatpush.msra.mxu0 0.0
    %782 = vmatpush.msra.mxu0 0.0
    %783 = vmatpush.msra.mxu0 0.0
    %784 = vmatpush.msra.mxu0 0.0
    %785 = vmatpush.msra.mxu0 %v329
    %786 = vmatmul.f32.gmra.mxu0 %v768
    %v787 = vpop.f32.mrf.mxu0
    %v788 = vadd.f32 0.0, %v787
    %789 = vdwg.mxu0
    %v791 = vsel %vm382, %v760, 0
    %793 = vmatpush.msra.mxu0 0.0
    %794 = vmatpush.msra.mxu0 0.0
    %795 = vmatpush.msra.mxu0 0.0
    %796 = vmatpush.msra.mxu0 0.0
    %797 = vmatpush.msra.mxu0 0.0
    %798 = vmatpush.msra.mxu0 0.0
    %799 = vmatpush.msra.mxu0 0.0
    %800 = vmatpush.msra.mxu0 0.0
    %801 = vmatpush.msra.mxu0 0.0
    %802 = vmatpush.msra.mxu0 0.0
    %803 = vmatpush.msra.mxu0 0.0
    %804 = vmatpush.msra.mxu0 0.0
    %805 = vmatpush.msra.mxu0 0.0
    %806 = vmatpush.msra.mxu0 0.0
    %807 = vmatpush.msra.mxu0 0.0
    %808 = vmatpush.msra.mxu0 %v332
    %809 = vmatmul.f32.gmra.mxu0 %v791
    %v810 = vpop.f32.mrf.mxu0
    %v811 = vadd.f32 0.0, %v810
    %812 = vdwg.mxu0
    %v814 = vsel %vm382, %v761, 0
    %816 = vmatpush.msra.mxu0 0.0
    %817 = vmatpush.msra.mxu0 0.0
    %818 = vmatpush.msra.mxu0 0.0
    %819 = vmatpush.msra.mxu0 0.0
    %820 = vmatpush.msra.mxu0 0.0
    %821 = vmatpush.msra.mxu0 0.0
    %822 = vmatpush.msra.mxu0 0.0
    %823 = vmatpush.msra.mxu0 0.0
    %824 = vmatpush.msra.mxu0 0.0
    %825 = vmatpush.msra.mxu0 0.0
    %826 = vmatpush.msra.mxu0 0.0
    %827 = vmatpush.msra.mxu0 0.0
    %828 = vmatpush.msra.mxu0 0.0
    %829 = vmatpush.msra.mxu0 0.0
    %830 = vmatpush.msra.mxu0 0.0
    %831 = vmatpush.msra.mxu0 %v365
    %832 = vmatmul.f32.gmra.mxu0 %v814
    %v833 = vpop.f32.mrf.mxu0
    %v834 = vadd.f32 0.0, %v833
    %835 = vdwg.mxu0
    %v837 = vsel %vm382, %v762, 0
    %839 = vmatpush.msra.mxu0 0.0
    %840 = vmatpush.msra.mxu0 0.0
    %841 = vmatpush.msra.mxu0 0.0
    %842 = vmatpush.msra.mxu0 0.0
    %843 = vmatpush.msra.mxu0 0.0
    %844 = vmatpush.msra.mxu0 0.0
    %845 = vmatpush.msra.mxu0 0.0
    %846 = vmatpush.msra.mxu0 0.0
    %847 = vmatpush.msra.mxu0 0.0
    %848 = vmatpush.msra.mxu0 0.0
    %849 = vmatpush.msra.mxu0 0.0
    %850 = vmatpush.msra.mxu0 0.0
    %851 = vmatpush.msra.mxu0 0.0
    %852 = vmatpush.msra.mxu0 0.0
    %853 = vmatpush.msra.mxu0 0.0
    %854 = vmatpush.msra.mxu0 %v367
    %855 = vmatmul.f32.gmra.mxu0 %v837
    %v856 = vpop.f32.mrf.mxu0
    %v857 = vadd.f32 0.0, %v856
    %858 = vdwg.mxu0
    %v860 = vsel %vm382, %v763, 0
    %862 = vmatpush.msra.mxu0 0.0
    %863 = vmatpush.msra.mxu0 0.0
    %864 = vmatpush.msra.mxu0 0.0
    %865 = vmatpush.msra.mxu0 0.0
    %866 = vmatpush.msra.mxu0 0.0
    %867 = vmatpush.msra.mxu0 0.0
    %868 = vmatpush.msra.mxu0 0.0
    %869 = vmatpush.msra.mxu0 0.0
    %870 = vmatpush.msra.mxu0 0.0
    %871 = vmatpush.msra.mxu0 0.0
    %872 = vmatpush.msra.mxu0 0.0
    %873 = vmatpush.msra.mxu0 0.0
    %874 = vmatpush.msra.mxu0 0.0
    %875 = vmatpush.msra.mxu0 0.0
    %876 = vmatpush.msra.mxu0 0.0
    %877 = vmatpush.msra.mxu0 %v371
    %878 = vmatmul.f32.gmra.mxu0 %v860
    %v879 = vpop.f32.mrf.mxu0
    %v880 = vadd.f32 0.0, %v879
    %881 = vdwg.mxu0
    %v883 = vsel %vm382, %v764, 0
    %885 = vmatpush.msra.mxu0 0.0
    %886 = vmatpush.msra.mxu0 0.0
    %887 = vmatpush.msra.mxu0 0.0
    %888 = vmatpush.msra.mxu0 0.0
    %889 = vmatpush.msra.mxu0 0.0
    %890 = vmatpush.msra.mxu0 0.0
    %891 = vmatpush.msra.mxu0 0.0
    %892 = vmatpush.msra.mxu0 0.0
    %893 = vmatpush.msra.mxu0 0.0
    %894 = vmatpush.msra.mxu0 0.0
    %895 = vmatpush.msra.mxu0 0.0
    %896 = vmatpush.msra.mxu0 0.0
    %897 = vmatpush.msra.mxu0 0.0
    %898 = vmatpush.msra.mxu0 0.0
    %899 = vmatpush.msra.mxu0 0.0
    %900 = vmatpush.msra.mxu0 %v373
    %901 = vmatmul.f32.gmra.mxu0 %v883
    %v902 = vpop.f32.mrf.mxu0
    %v903 = vadd.f32 0.0, %v902
    %904 = vdwg.mxu0
    %v906 = vsel %vm382, %v765, 0
    %908 = vmatpush.msra.mxu0 0.0
    %909 = vmatpush.msra.mxu0 0.0
    %910 = vmatpush.msra.mxu0 0.0
    %911 = vmatpush.msra.mxu0 0.0
    %912 = vmatpush.msra.mxu0 0.0
    %913 = vmatpush.msra.mxu0 0.0
    %914 = vmatpush.msra.mxu0 0.0
    %915 = vmatpush.msra.mxu0 0.0
    %916 = vmatpush.msra.mxu0 0.0
    %917 = vmatpush.msra.mxu0 0.0
    %918 = vmatpush.msra.mxu0 0.0
    %919 = vmatpush.msra.mxu0 0.0
    %920 = vmatpush.msra.mxu0 0.0
    %921 = vmatpush.msra.mxu0 0.0
    %922 = vmatpush.msra.mxu0 0.0
    %923 = vmatpush.msra.mxu0 %v377
    %924 = vmatmul.f32.gmra.mxu0 %v906
    %v925 = vpop.f32.mrf.mxu0
    %v926 = vadd.f32 0.0, %v925
    %927 = vdwg.mxu0
    %v929 = vsel %vm382, %v766, 0
    %931 = vmatpush.msra.mxu0 0.0
    %932 = vmatpush.msra.mxu0 0.0
    %933 = vmatpush.msra.mxu0 0.0
    %934 = vmatpush.msra.mxu0 0.0
    %935 = vmatpush.msra.mxu0 0.0
    %936 = vmatpush.msra.mxu0 0.0
    %937 = vmatpush.msra.mxu0 0.0
    %938 = vmatpush.msra.mxu0 0.0
    %939 = vmatpush.msra.mxu0 0.0
    %940 = vmatpush.msra.mxu0 0.0
    %941 = vmatpush.msra.mxu0 0.0
    %942 = vmatpush.msra.mxu0 0.0
    %943 = vmatpush.msra.mxu0 0.0
    %944 = vmatpush.msra.mxu0 0.0
    %945 = vmatpush.msra.mxu0 0.0
    %946 = vmatpush.msra.mxu0 %v379
    %947 = vmatmul.f32.gmra.mxu0 %v929
    %v948 = vpop.f32.mrf.mxu0
    %v949 = vadd.f32 0.0, %v948
    %950 = vdwg.mxu0
    %v951 = vld [vmem:[#allocation7] sm:$0xff]
    %v952 = vld [vmem:[#allocation7 + $0x8] sm:$0xff]
    %v953 = vld [vmem:[#allocation7 + $0x10] sm:$0xff]
    %v954 = vld [vmem:[#allocation7 + $0x18] sm:$0xff]
    %v956 = vsel %vm382, %v834, 0
    %v959 = vsel %vm382, %v857, 0
    %961 = vmatpush.msra.mxu0 0.0
    %962 = vmatpush.msra.mxu0 0.0
    %963 = vmatpush.msra.mxu0 0.0
    %964 = vmatpush.msra.mxu0 0.0
    %965 = vmatpush.msra.mxu0 0.0
    %966 = vmatpush.msra.mxu0 0.0
    %967 = vmatpush.msra.mxu0 0.0
    %968 = vmatpush.msra.mxu0 0.0
    %969 = vmatpush.msra.mxu0 0.0
    %970 = vmatpush.msra.mxu0 0.0
    %971 = vmatpush.msra.mxu0 0.0
    %972 = vmatpush.msra.mxu0 0.0
    %973 = vmatpush.msra.mxu0 0.0
    %974 = vmatpush.msra.mxu0 0.0
    %975 = vmatpush.msra.mxu0 0.0
    %976 = vmatpush.msra.mxu0 %v952
    %977 = vmatmul.f32.gmra.mxu0 %v956
    %v978 = vpop.f32.mrf.mxu0
    %v979 = vadd.f32 0.0, %v978
    %980 = vmatmul.f32.gmra.mxu0 %v959
    %v981 = vpop.f32.mrf.mxu0
    %v982 = vadd.f32 0.0, %v981
    %983 = vdwg.mxu0
    %v985 = vsel %vm382, %v788, 0
    %v988 = vsel %vm382, %v811, 0
    %990 = vmatpush.msra.mxu0 0.0
    %991 = vmatpush.msra.mxu0 0.0
    %992 = vmatpush.msra.mxu0 0.0
    %993 = vmatpush.msra.mxu0 0.0
    %994 = vmatpush.msra.mxu0 0.0
    %995 = vmatpush.msra.mxu0 0.0
    %996 = vmatpush.msra.mxu0 0.0
    %997 = vmatpush.msra.mxu0 0.0
    %998 = vmatpush.msra.mxu0 0.0
    %999 = vmatpush.msra.mxu0 0.0
    %1000 = vmatpush.msra.mxu0 0.0
    %1001 = vmatpush.msra.mxu0 0.0
    %1002 = vmatpush.msra.mxu0 0.0
    %1003 = vmatpush.msra.mxu0 0.0
    %1004 = vmatpush.msra.mxu0 0.0
    %1005 = vmatpush.msra.mxu0 %v951
    %1006 = vmatmul.f32.gmra.mxu0 %v985
    %v1007 = vpop.f32.mrf.mxu0
    %v1008 = vadd.f32 %v979, %v1007
    %1009 = vmatmul.f32.gmra.mxu0 %v988
    %v1010 = vpop.f32.mrf.mxu0
    %v1011 = vadd.f32 %v982, %v1010
    %1012 = vdwg.mxu0
    %v1014 = vsel %vm382, %v880, 0
    %v1017 = vsel %vm382, %v903, 0
    %1019 = vmatpush.msra.mxu0 0.0
    %1020 = vmatpush.msra.mxu0 0.0
    %1021 = vmatpush.msra.mxu0 0.0
    %1022 = vmatpush.msra.mxu0 0.0
    %1023 = vmatpush.msra.mxu0 0.0
    %1024 = vmatpush.msra.mxu0 0.0
    %1025 = vmatpush.msra.mxu0 0.0
    %1026 = vmatpush.msra.mxu0 0.0
    %1027 = vmatpush.msra.mxu0 0.0
    %1028 = vmatpush.msra.mxu0 0.0
    %1029 = vmatpush.msra.mxu0 0.0
    %1030 = vmatpush.msra.mxu0 0.0
    %1031 = vmatpush.msra.mxu0 0.0
    %1032 = vmatpush.msra.mxu0 0.0
    %1033 = vmatpush.msra.mxu0 0.0
    %1034 = vmatpush.msra.mxu0 %v953
    %1035 = vmatmul.f32.gmra.mxu0 %v1014
    %v1036 = vpop.f32.mrf.mxu0
    %v1037 = vadd.f32 0.0, %v1036
    %1038 = vmatmul.f32.gmra.mxu0 %v1017
    %v1039 = vpop.f32.mrf.mxu0
    %v1040 = vadd.f32 0.0, %v1039
    %1041 = vdwg.mxu0
    %v1042 = vadd.f32 %v1008, %v1037
    %v1043 = vadd.f32 %v1011, %v1040
    %v1045 = vsel %vm382, %v926, 0
    %v1048 = vsel %vm382, %v949, 0
    %1050 = vmatpush.msra.mxu0 0.0
    %1051 = vmatpush.msra.mxu0 0.0
    %1052 = vmatpush.msra.mxu0 0.0
    %1053 = vmatpush.msra.mxu0 0.0
    %1054 = vmatpush.msra.mxu0 0.0
    %1055 = vmatpush.msra.mxu0 0.0
    %1056 = vmatpush.msra.mxu0 0.0
    %1057 = vmatpush.msra.mxu0 0.0
    %1058 = vmatpush.msra.mxu0 0.0
    %1059 = vmatpush.msra.mxu0 0.0
    %1060 = vmatpush.msra.mxu0 0.0
    %1061 = vmatpush.msra.mxu0 0.0
    %1062 = vmatpush.msra.mxu0 0.0
    %1063 = vmatpush.msra.mxu0 0.0
    %1064 = vmatpush.msra.mxu0 0.0
    %1065 = vmatpush.msra.mxu0 %v954
    %1066 = vmatmul.f32.gmra.mxu0 %v1045
    %v1067 = vpop.f32.mrf.mxu0
    %v1068 = vadd.f32 0.0, %v1067
    %1069 = vmatmul.f32.gmra.mxu0 %v1048
    %v1070 = vpop.f32.mrf.mxu0
    %v1071 = vadd.f32 0.0, %v1070
    %1072 = vdwg.mxu0
    %v1073 = vadd.f32 %v1042, %v1068
    %v1074 = vadd.f32 %v1043, %v1071
    %v1075 = vld [vmem:[%s9] sm:$0x1]
    %v1077 = vperm.slane %v1075, 0
    %v1079 = vadd.f32 %v1073, %v1077
    %v1080 = vadd.f32 %v1074, %v1077
    %v1081 = vadd.f32 %v185, %v1079
    %v1082 = vadd.f32 %v187, %v1080
    %v1083 = vsel %vm236, %v1081, 0.0
    %1084 = vadd.xlane.f32.xlu0 %v1083
    %v1085 = vpop.xlane.xlu0 %1084
    %v1086 = vsel %vm236, %v1082, 0.0
    %1087 = vadd.xlane.f32.xlu0 %v1086
    %v1088 = vpop.xlane.xlu0 %1087
    %v1089 = vrcp.pop 32.0
    %v1090 = vmul.f32 32.0, %v1089
    %v1091 = vsub.f32 1.0, %v1090
    %v1092 = vmul.f32 %v1089, %v1091
    %v1093 = vadd.f32 %v1089, %v1092
    %vm1094 = vweird.f32 %v1089
    %v1095 = vsel %vm1094, %v1089, %v1093
    %v1096 = vmul.f32 %v1085, %v1095
    %v1097 = vmul.f32 %v1088, %v1095
    %v1098 = vsub.f32 %v1081, %v1096
    %v1099 = vsub.f32 %v1082, %v1097
    %v1100 = vmul.f32 %v1098, %v1098
    %v1101 = vmul.f32 %v1099, %v1099
    %v1102 = vsel %vm236, %v1100, 0.0
    %1103 = vadd.xlane.f32.xlu0 %v1102
    %v1104 = vpop.xlane.xlu0 %1103
    %v1105 = vsel %vm236, %v1101, 0.0
    %1106 = vadd.xlane.f32.xlu0 %v1105
    %v1107 = vpop.xlane.xlu0 %1106
    %v1108 = vmul.f32 %v1104, %v1095
    %v1109 = vmul.f32 %v1107, %v1095
    %v1110 = vadd.f32 %v1108, 1e-05
    %v1111 = vadd.f32 %v1109, 1e-05
    %v1112 = vrsqrt.pop %v1110
    %v1113 = vmul.f32 %v1112, %v1110
    %v1114 = vmul.f32 %v1113, %v1112
    %v1115 = vmul.f32 0.5, %v1114
    %v1116 = vsub.f32 1.5, %v1115
    %v1117 = vmul.f32 %v1112, %v1116
    %vm1118 = vweird.f32 %v1110
    %vm1119 = vweird.f32 %v1112
    %vm1120 = vmor %vm1118, %vm1119
    %v1121 = vsel %vm1120, %v1112, %v1117
    %v1122 = vrsqrt.pop %v1111
    %v1123 = vmul.f32 %v1122, %v1111
    %v1124 = vmul.f32 %v1123, %v1122
    %v1125 = vmul.f32 0.5, %v1124
    %v1126 = vsub.f32 1.5, %v1125
    %v1127 = vmul.f32 %v1122, %v1126
    %vm1128 = vweird.f32 %v1111
    %vm1129 = vweird.f32 %v1122
    %vm1130 = vmor %vm1128, %vm1129
    %v1131 = vsel %vm1130, %v1122, %v1127
    %v1132 = vmul.f32 %v1098, %v1121
    %v1133 = vmul.f32 %v1099, %v1131
    %v1134 = vld [vmem:[%s10] sm:$0x1]
    %v1136 = vperm.slane %v1134, 0
    %v1138 = vmul.f32 %v1132, %v1136
    %v1139 = vmul.f32 %v1133, %v1136
    %v1140 = vld [vmem:[%s11] sm:$0x1]
    %v1142 = vperm.slane %v1140, 0
    %v1144 = vadd.f32 %v1138, %v1142
    %v1145 = vadd.f32 %v1139, %v1142
    %v1146 = vld [vmem:[#allocation8] sm:$0xff]
    %v1147 = vld [vmem:[#allocation8 + $0x8] sm:$0xff]
    %v1148 = vld [vmem:[#allocation8 + $0x10] sm:$0xff]
    %v1149 = vld [vmem:[#allocation8 + $0x18] sm:$0xff]
    %v1150 = vld [vmem:[%s13] sm:$0x1]
    %v1152 = vperm.slane %v1150, 0
    %v1155 = vsel %vm236, %v1144, 0
    %v1158 = vsel %vm236, %v1145, 0
    %1160 = vmatpush.msra.mxu0 0.0
    %1161 = vmatpush.msra.mxu0 0.0
    %1162 = vmatpush.msra.mxu0 0.0
    %1163 = vmatpush.msra.mxu0 0.0
    %1164 = vmatpush.msra.mxu0 0.0
    %1165 = vmatpush.msra.mxu0 0.0
    %1166 = vmatpush.msra.mxu0 0.0
    %1167 = vmatpush.msra.mxu0 0.0
    %1168 = vmatpush.msra.mxu0 0.0
    %1169 = vmatpush.msra.mxu0 0.0
    %1170 = vmatpush.msra.mxu0 0.0
    %1171 = vmatpush.msra.mxu0 0.0
    %1172 = vmatpush.msra.mxu0 %v1149
    %1173 = vmatpush.msra.mxu0 %v1148
    %1174 = vmatpush.msra.mxu0 %v1147
    %1175 = vmatpush.msra.mxu0 %v1146
    %1176 = vmatmul.f32.gmra.mxu0 %v1155
    %v1177 = vpop.f32.mrf.mxu0
    %v1178 = vadd.f32 %v1152, %v1177
    %1179 = vmatmul.f32.gmra.mxu0 %v1158
    %v1180 = vpop.f32.mrf.mxu0
    %v1181 = vadd.f32 %v1152, %v1180
    %1182 = vdwg.mxu0
    %v1183 = vmax.f32 %v1178, 0.0
    %v1184 = vmax.f32 %v1181, 0.0
    %v1185 = vld [vmem:[%s14] sm:$0xff]
    %v1186 = vld [vmem:[%s14 + $0x8] sm:$0xff]
    %v1187 = vld [vmem:[%s14 + $0x10] sm:$0xff]
    %v1188 = vld [vmem:[%s14 + $0x18] sm:$0xff]
    %v1189 = vld [vmem:[%s14 + $0x20] sm:$0xff]
    %v1190 = vld [vmem:[%s14 + $0x28] sm:$0xff]
    %v1191 = vld [vmem:[%s14 + $0x30] sm:$0xff]
    %v1192 = vld [vmem:[%s14 + $0x38] sm:$0xff]
    %v1193 = vld [vmem:[%s15] sm:$0x1]
    %v1195 = vperm.slane %v1193, 0
    %vm1197 = vcmask 523264
    %v1199 = vsel %vm1197, %v1183, 0
    %v1202 = vsel %vm1197, %v1184, 0
    %1204 = vmatpush.msra.mxu0 0.0
    %1205 = vmatpush.msra.mxu0 0.0
    %1206 = vmatpush.msra.mxu0 0.0
    %1207 = vmatpush.msra.mxu0 0.0
    %1208 = vmatpush.msra.mxu0 0.0
    %1209 = vmatpush.msra.mxu0 0.0
    %1210 = vmatpush.msra.mxu0 0.0
    %1211 = vmatpush.msra.mxu0 0.0
    %1212 = vmatpush.msra.mxu0 %v1192
    %1213 = vmatpush.msra.mxu0 %v1191
    %1214 = vmatpush.msra.mxu0 %v1190
    %1215 = vmatpush.msra.mxu0 %v1189
    %1216 = vmatpush.msra.mxu0 %v1188
    %1217 = vmatpush.msra.mxu0 %v1187
    %1218 = vmatpush.msra.mxu0 %v1186
    %1219 = vmatpush.msra.mxu0 %v1185
    %1220 = vmatmul.f32.gmra.mxu0 %v1199
    %v1221 = vpop.f32.mrf.mxu0
    %v1222 = vadd.f32 %v1195, %v1221
    %1223 = vmatmul.f32.gmra.mxu0 %v1202
    %v1224 = vpop.f32.mrf.mxu0
    %v1225 = vadd.f32 %v1195, %v1224
    %1226 = vdwg.mxu0
    %v1227 = vadd.f32 %v1144, %v1222
    %v1228 = vadd.f32 %v1145, %v1225
    %v1229 = vsel %vm236, %v1227, 0.0
    %1230 = vadd.xlane.f32.xlu0 %v1229
    %v1231 = vpop.xlane.xlu0 %1230
    %v1232 = vsel %vm236, %v1228, 0.0
    %1233 = vadd.xlane.f32.xlu0 %v1232
    %v1234 = vpop.xlane.xlu0 %1233
    %v1235 = vmul.f32 %v1231, %v1095
    %v1236 = vmul.f32 %v1234, %v1095
    %v1237 = vsub.f32 %v1227, %v1235
    %v1238 = vsub.f32 %v1228, %v1236
    %v1239 = vmul.f32 %v1237, %v1237
    %v1240 = vmul.f32 %v1238, %v1238
    %v1241 = vsel %vm236, %v1239, 0.0
    %1242 = vadd.xlane.f32.xlu0 %v1241
    %v1243 = vpop.xlane.xlu0 %1242
    %v1244 = vsel %vm236, %v1240, 0.0
    %1245 = vadd.xlane.f32.xlu0 %v1244
    %v1246 = vpop.xlane.xlu0 %1245
    %v1247 = vmul.f32 %v1243, %v1095
    %v1248 = vmul.f32 %v1246, %v1095
    %v1249 = vadd.f32 %v1247, 1e-05
    %v1250 = vadd.f32 %v1248, 1e-05
    %v1251 = vrsqrt.pop %v1249
    %v1252 = vmul.f32 %v1251, %v1249
    %v1253 = vmul.f32 %v1252, %v1251
    %v1254 = vmul.f32 0.5, %v1253
    %v1255 = vsub.f32 1.5, %v1254
    %v1256 = vmul.f32 %v1251, %v1255
    %vm1257 = vweird.f32 %v1249
    %vm1258 = vweird.f32 %v1251
    %vm1259 = vmor %vm1257, %vm1258
    %v1260 = vsel %vm1259, %v1251, %v1256
    %v1261 = vrsqrt.pop %v1250
    %v1262 = vmul.f32 %v1261, %v1250
    %v1263 = vmul.f32 %v1262, %v1261
    %v1264 = vmul.f32 0.5, %v1263
    %v1265 = vsub.f32 1.5, %v1264
    %v1266 = vmul.f32 %v1261, %v1265
    %vm1267 = vweird.f32 %v1250
    %vm1268 = vweird.f32 %v1261
    %vm1269 = vmor %vm1267, %vm1268
    %v1270 = vsel %vm1269, %v1261, %v1266
    %v1271 = vmul.f32 %v1237, %v1260
    %v1272 = vmul.f32 %v1238, %v1270
    %v1273 = vld [vmem:[%s16] sm:$0x1]
    %v1275 = vperm.slane %v1273, 0
    %v1277 = vmul.f32 %v1271, %v1275
    %v1278 = vmul.f32 %v1272, %v1275
    %v1279 = vld [vmem:[%s17] sm:$0x1]
    %v1281 = vperm.slane %v1279, 0
    %v1283 = vadd.f32 %v1277, %v1281
    %v1284 = vadd.f32 %v1278, %v1281
    %v1285 = vrot.slane %v1283, 4
    %v1286 = vsel %vm148, 0.0, %v1285
    %v1288 = vunpack.c.l.s4 1983009808
    %v1289 = vunpack.c.0.s8 %v1288
    %v1290 = vperm.slane %v1283, %v1289
    %v1292 = vunpack.c.l.s4 1983009808
    %v1293 = vunpack.c.0.s8 %v1292
    %v1294 = vperm.slane %v1286, %v1293
    %v1295 = vrot.slane %v1284, 4
    %v1296 = vsel %vm148, 0.0, %v1295
    %v1298 = vunpack.c.l.s4 1983009808
    %v1299 = vunpack.c.0.s8 %v1298
    %v1300 = vperm.slane %v1284, %v1299
    %v1302 = vunpack.c.l.s4 1983009808
    %v1303 = vunpack.c.0.s8 %v1302
    %v1304 = vperm.slane %v1296, %v1303
    %v1305 = vrot.slane %v1300, 4
    %v1306 = vsel %vm148, %v1305, %v1290
    %v1307 = vrot.slane %v1290, 4
    %v1308 = vsel %vm148, %v1300, %v1307
    %v1310 = vunpack.c.l.s4 1934713408
    %v1311 = vunpack.c.0.s8 %v1310
    %v1312 = vperm.slane %v1306, %v1311
    %v1314 = vunpack.c.l.s4 1934713408
    %v1315 = vunpack.c.0.s8 %v1314
    %v1316 = vperm.slane %v1308, %v1315
    %v1317 = vrot.slane %v1304, 4
    %v1318 = vsel %vm148, %v1317, %v1294
    %v1319 = vrot.slane %v1294, 4
    %v1320 = vsel %vm148, %v1304, %v1319
    %v1322 = vunpack.c.l.s4 1934713408
    %v1323 = vunpack.c.0.s8 %v1322
    %v1324 = vperm.slane %v1318, %v1323
    %v1326 = vunpack.c.l.s4 1934713408
    %v1327 = vunpack.c.0.s8 %v1326
    %v1328 = vperm.slane %v1320, %v1327
    %v1329 = vrot.slane %v1312, 4
    %v1330 = vsel %vm148, 0.0, %v1329
    %v1331 = vrot.slane %v1316, 4
    %v1332 = vsel %vm148, 0.0, %v1331
    %v1333 = vrot.slane %v1324, 4
    %v1334 = vsel %vm148, 0.0, %v1333
    %v1335 = vrot.slane %v1328, 4
    %v1336 = vsel %vm148, 0.0, %v1335
    %vm1337 = vcmask 254976
    %1338 = vst.msk [vmem:[#allocation10] sm:$0x3] %vm1337, %v1312
    %1339 = vst.msk [vmem:[#allocation10 + $0x2] sm:$0x3] %vm1337, %v1330
    %1340 = vst.msk [vmem:[#allocation10 + $0x4] sm:$0x3] %vm1337, %v1316
    %1341 = vst.msk [vmem:[#allocation10 + $0x6] sm:$0x3] %vm1337, %v1332
    %1342 = vst.msk [vmem:[#allocation10 + $0x8] sm:$0x3] %vm1337, %v1324
    %1343 = vst.msk [vmem:[#allocation10 + $0xa] sm:$0x3] %vm1337, %v1334
    %1344 = vst.msk [vmem:[#allocation10 + $0xc] sm:$0x3] %vm1337, %v1328
    %1345 = vst.msk [vmem:[#allocation10 + $0xe] sm:$0x3] %vm1337, %v1336
    // Predicated region
    $region90: #{tpu_custom_call.1} parent=1 // pred_check
      _
    $region91: #{tpu_custom_call.1} parent=1 // pred_check_branch
      %1347 = sbr.rel (0) target = $region93
    $region92: #{tpu_custom_call.1} parent=1 // pred_region
      %1349 = vsyncadd [#allocation4], 0
      %s1350 = sshll.u32 [#allocation10], 4
      %s1351 = int_to_ptr.vmem [resolvable:$true] %s1350
      %s1352 = sshll.u32 %s18, 4
      %s1353 = int_to_ptr.hbm [resolvable:$true] %s1352
      %1358 = dma.vmem_to_hbm [thread:$0]  %s1351, 256, %s1353, [#allocation4], 32, 32, 2
    $region93: #{tpu_custom_call.1} parent=1 // pred_fallthru
      _
    // Predicated region
    $region94: #{tpu_custom_call.1} parent=1 // pred_check
      _
    $region95: #{tpu_custom_call.1} parent=1 // pred_check_branch
      %1360 = sbr.rel (0) target = $region97
    $region96: #{tpu_custom_call.1} parent=1 // pred_region
      %1362 = dma.done [#allocation4], 256
    $region97: #{tpu_custom_call.1} parent=1 // pred_fallthru
      _
    %1363 = vsyncpa [#allocation3], 1
    %1364 = vsyncpa [#allocation6], 1
    %1365 = vsyncpa [#allocation9], 1
    %1366 = vsyncpa [#allocation4], 1

</llo_original>
